<compile_context>
chip_gen: v7x
topology: tpu7x:2x2x1
jax: 0.10.0
libtpu: 0.0.40
codegen_flags: <defaults>
</compile_context>

<pallas_src>
import functools

import jax
import jax.numpy as jnp
import numpy as np
from jax.experimental import pallas as pl
from jax.experimental.pallas import tpu as pltpu


def _gcn_fused_kernel(x_ref, a_ref, w_ref, b_ref, o_ref, *, order, n_support):
    """Fused diffusion-GCN forward for one batch element.

    x_ref: (1, L, V, C)     input slab, time-major / channels-last
    a_ref: (1, S, V, V)     per-batch support (adjacency) matrices
    w_ref: (T, C, Cout)     1x1-conv weight pre-split per concat term, T = order*S + 1
    b_ref: (1, 1, Cout)     1x1-conv bias
    o_ref: (1, L, V, Cout)  output slab
    """
    x0 = x_ref[0]                                # (L, V, C) f32
    L, V, C = x0.shape
    Co = w_ref.shape[-1]

    def apply_term(xk, t):
        # (L, V, C) x (C, Cout) as an L-batched matmul (contract channels);
        # split-accumulate replaces the concat + single (Cout, 7C) matmul.
        wt = jnp.broadcast_to(w_ref[t], (L, C, Co))
        return jnp.einsum('lvc,lco->lvo', xk, wt,
                          preferred_element_type=jnp.float32)

    # Term 0: identity term of the concat.
    acc = apply_term(x0, 0)

    t = 1
    for s in range(n_support):
        # Graph mixing: (L, V, V) x (L, V, C), A contracted on its last dim
        # (MXU-native, no adjacency transpose), batched over the time axis.
        a_b = jnp.broadcast_to(a_ref[0, s], (L, V, V))
        xk = x0
        for _ in range(order):
            xk = jnp.einsum('lwv,lvc->lwc', a_b, xk,
                            preferred_element_type=jnp.float32)
            acc = acc + apply_term(xk, t)
            t += 1

    # F.dropout: identity at inference.
    # TODO(synk): training-mode dropout (random mask) is not implemented.
    o_ref[0] = (acc + b_ref[...]).astype(o_ref.dtype)


def gcn_forward(x, support, mlp_w, mlp_b, *, order=2):
    """Pallas forward of `gcn`.

    x:       (B, C, V, L)  float32
    support: list of S adjacencies, each (B, V, V)   (einsum 'ncvl,nwv->ncwl')
    mlp_w:   (Cout, (order*S + 1) * C)   (Conv2d 1x1 weight, squeezed)
    mlp_b:   (Cout,)
    returns: (B, Cout, V, L)
    """
    B, C, V, L = x.shape
    S = len(support)
    Co = mlp_w.shape[0]
    T = order * S + 1
    assert mlp_w.shape == (Co, T * C), mlp_w.shape

    # One-time layout plumbing on tiny tensors (outside the kernel).
    xt = jnp.transpose(x, (0, 3, 2, 1))                          # (B, L, V, C)
    a_stack = jnp.stack(support, axis=1)                         # (B, S, V, V)
    w_split = jnp.transpose(mlp_w.reshape(Co, T, C), (1, 2, 0))  # (T, C, Cout)
    b3 = mlp_b.reshape(1, 1, Co)

    kernel = functools.partial(_gcn_fused_kernel, order=order, n_support=S)

    y = pl.pallas_call(
        kernel,
        out_shape=jax.ShapeDtypeStruct((B, L, V, Co), jnp.float32),
        grid=(B,),
        in_specs=[
            pl.BlockSpec((1, L, V, C), lambda b: (b, 0, 0, 0)),
            pl.BlockSpec((1, S, V, V), lambda b: (b, 0, 0, 0)),
            pl.BlockSpec((T, C, Co), lambda b: (0, 0, 0)),
            pl.BlockSpec((1, 1, Co), lambda b: (0, 0, 0)),
        ],
        out_specs=pl.BlockSpec((1, L, V, Co), lambda b: (b, 0, 0, 0)),
        compiler_params=pltpu.CompilerParams(
            dimension_semantics=("parallel",)),
    )(xt, a_stack, w_split, b3)

    return jnp.transpose(y, (0, 3, 2, 1))                        # (B, Cout, V, L)


def gcn_reference(x, support, mlp_w, mlp_b, *, order=2):
    """Pure-JAX reference matching the PyTorch module (eval mode)."""
    out = [x]
    for a in support:
        xk = jnp.einsum('ncvl,nwv->ncwl', x, a)
        out.append(xk)
        for _ in range(2, order + 1):
            xk = jnp.einsum('ncvl,nwv->ncwl', xk, a)
            out.append(xk)
    h = jnp.concatenate(out, axis=1)
    y = jnp.einsum('oi,nivl->novl', mlp_w, h) + mlp_b[None, :, None, None]
    return y  # dropout = identity at inference


if __name__ == "__main__":
    # Small shapes consistent with the module: batch=2, c_in=4, nodes=16,
    # time=8, c_out=32, support_len=3, order=2.
    B, C_IN, V, L = 2, 4, 16, 8
    C_OUT, SUPPORT_LEN, ORDER = 32, 3, 2

    root = jax.random.PRNGKey(0)
    k_x, k_a, k_w, k_b = jax.random.split(root, 4)

    x = jax.random.normal(k_x, (B, C_IN, V, L), jnp.float32)
    support = [
        jax.nn.softmax(jax.random.normal(k, (B, V, V), jnp.float32), axis=-1)
        for k in jax.random.split(k_a, SUPPORT_LEN)
    ]
    mlp_w = 0.1 * jax.random.normal(
        k_w, (C_OUT, (ORDER * SUPPORT_LEN + 1) * C_IN), jnp.float32)
    mlp_b = 0.1 * jax.random.normal(k_b, (C_OUT,), jnp.float32)

    out = jax.block_until_ready(
        gcn_forward(x, support, mlp_w, mlp_b, order=ORDER))
    ref = jax.block_until_ready(
        gcn_reference(x, support, mlp_w, mlp_b, order=ORDER))

    assert out.shape == (B, C_OUT, V, L), out.shape
    err = float(np.max(np.abs(np.asarray(out) - np.asarray(ref))))
    assert np.allclose(np.asarray(out), np.asarray(ref), atol=2e-4, rtol=2e-4), err
    print("KERNEL_OK")
</pallas_src>

<mosaic_0001>
module attributes {stable_mosaic.version = 11 : i64} {
  func.func @_gcn_fused_kernel(%arg0: i32, %arg1: memref<1x8x16x4xf32, #tpu.memory_space<vmem>>, %arg2: memref<1x3x16x16xf32, #tpu.memory_space<vmem>>, %arg3: memref<7x4x32xf32, #tpu.memory_space<vmem>>, %arg4: memref<1x1x32xf32, #tpu.memory_space<vmem>>, %arg5: memref<1x8x16x32xf32, #tpu.memory_space<vmem>>) attributes {dimension_semantics = [#tpu.dimension_semantics<parallel>], iteration_bounds = array<i64: 2>, scalar_prefetch = 0 : i64, scratch_operands = 0 : i64, tpu.core_type = #tpu.core_type<tc>, window_params = [{transform_indices = @transform_0, window_bounds = array<i64: 1, 8, 16, 4>}, {transform_indices = @transform_1, window_bounds = array<i64: 1, 3, 16, 16>}, {pipeline_mode = #tpu.pipeline_mode<synchronous>, transform_indices = @transform_2, window_bounds = array<i64: 7, 4, 32>}, {pipeline_mode = #tpu.pipeline_mode<synchronous>, transform_indices = @transform_3, window_bounds = array<i64: 1, 1, 32>}, {transform_indices = @transform_4, window_bounds = array<i64: 1, 8, 16, 32>}]} {
    %c0 = arith.constant 0 : index
    %c0_0 = arith.constant 0 : index
    %c0_1 = arith.constant 0 : index
    %c0_2 = arith.constant 0 : index
    %0 = vector.load %arg1[%c0, %c0_0, %c0_1, %c0_2] : memref<1x8x16x4xf32, #tpu.memory_space<vmem>>, vector<1x8x16x4xf32>
    %1 = vector.shape_cast %0 : vector<1x8x16x4xf32> to vector<8x16x4xf32>
    %c0_3 = arith.constant 0 : index
    %c0_4 = arith.constant 0 : index
    %c0_5 = arith.constant 0 : index
    %2 = vector.load %arg3[%c0_3, %c0_4, %c0_5] : memref<7x4x32xf32, #tpu.memory_space<vmem>>, vector<1x4x32xf32>
    %3 = vector.shape_cast %2 : vector<1x4x32xf32> to vector<4x32xf32>
    %4 = vector.shape_cast %3 : vector<4x32xf32> to vector<1x4x32xf32>
    %5 = vector.broadcast %4 : vector<1x4x32xf32> to vector<8x4x32xf32>
    "tpu.trace_start"() <{level = 10 : i32, message = "lvc,lco->lvo"}> : () -> ()
    %cst = arith.constant dense<0.000000e+00> : vector<8x16x32xf32>
    %6 = tpu.matmul %1, %5, %cst {dimension_numbers = #tpu.dot_dimension_numbers<[2], [1], [1], [2], [0, 0, 0, 1, 1, 2], [0], [0]>} : vector<8x16x4xf32>, vector<8x4x32xf32>, vector<8x16x32xf32> -> vector<8x16x32xf32>
    "tpu.trace_stop"() : () -> ()
    %c0_6 = arith.constant 0 : index
    %c0_7 = arith.constant 0 : index
    %c0_8 = arith.constant 0 : index
    %c0_9 = arith.constant 0 : index
    %7 = vector.load %arg2[%c0_6, %c0_7, %c0_8, %c0_9] : memref<1x3x16x16xf32, #tpu.memory_space<vmem>>, vector<1x1x16x16xf32>
    %8 = vector.shape_cast %7 : vector<1x1x16x16xf32> to vector<16x16xf32>
    %9 = vector.shape_cast %8 : vector<16x16xf32> to vector<1x16x16xf32>
    %10 = vector.broadcast %9 : vector<1x16x16xf32> to vector<8x16x16xf32>
    "tpu.trace_start"() <{level = 10 : i32, message = "lwv,lvc->lwc"}> : () -> ()
    %cst_10 = arith.constant dense<0.000000e+00> : vector<8x16x4xf32>
    %11 = tpu.matmul %10, %1, %cst_10 {dimension_numbers = #tpu.dot_dimension_numbers<[2], [1], [1], [2], [0, 0, 0, 1, 1, 2], [0], [0]>} : vector<8x16x16xf32>, vector<8x16x4xf32>, vector<8x16x4xf32> -> vector<8x16x4xf32>
    "tpu.trace_stop"() : () -> ()
    %c1 = arith.constant 1 : index
    %c0_11 = arith.constant 0 : index
    %c0_12 = arith.constant 0 : index
    %12 = vector.load %arg3[%c1, %c0_11, %c0_12] : memref<7x4x32xf32, #tpu.memory_space<vmem>>, vector<1x4x32xf32>
    %13 = vector.shape_cast %12 : vector<1x4x32xf32> to vector<4x32xf32>
    %14 = vector.shape_cast %13 : vector<4x32xf32> to vector<1x4x32xf32>
    %15 = vector.broadcast %14 : vector<1x4x32xf32> to vector<8x4x32xf32>
    "tpu.trace_start"() <{level = 10 : i32, message = "lvc,lco->lvo"}> : () -> ()
    %cst_13 = arith.constant dense<0.000000e+00> : vector<8x16x32xf32>
    %16 = tpu.matmul %11, %15, %cst_13 {dimension_numbers = #tpu.dot_dimension_numbers<[2], [1], [1], [2], [0, 0, 0, 1, 1, 2], [0], [0]>} : vector<8x16x4xf32>, vector<8x4x32xf32>, vector<8x16x32xf32> -> vector<8x16x32xf32>
    "tpu.trace_stop"() : () -> ()
    %17 = arith.addf %6, %16 : vector<8x16x32xf32>
    "tpu.trace_start"() <{level = 10 : i32, message = "lwv,lvc->lwc"}> : () -> ()
    %cst_14 = arith.constant dense<0.000000e+00> : vector<8x16x4xf32>
    %18 = tpu.matmul %10, %11, %cst_14 {dimension_numbers = #tpu.dot_dimension_numbers<[2], [1], [1], [2], [0, 0, 0, 1, 1, 2], [0], [0]>} : vector<8x16x16xf32>, vector<8x16x4xf32>, vector<8x16x4xf32> -> vector<8x16x4xf32>
    "tpu.trace_stop"() : () -> ()
    %c2 = arith.constant 2 : index
    %c0_15 = arith.constant 0 : index
    %c0_16 = arith.constant 0 : index
    %19 = vector.load %arg3[%c2, %c0_15, %c0_16] : memref<7x4x32xf32, #tpu.memory_space<vmem>>, vector<1x4x32xf32>
    %20 = vector.shape_cast %19 : vector<1x4x32xf32> to vector<4x32xf32>
    %21 = vector.shape_cast %20 : vector<4x32xf32> to vector<1x4x32xf32>
    %22 = vector.broadcast %21 : vector<1x4x32xf32> to vector<8x4x32xf32>
    "tpu.trace_start"() <{level = 10 : i32, message = "lvc,lco->lvo"}> : () -> ()
    %cst_17 = arith.constant dense<0.000000e+00> : vector<8x16x32xf32>
    %23 = tpu.matmul %18, %22, %cst_17 {dimension_numbers = #tpu.dot_dimension_numbers<[2], [1], [1], [2], [0, 0, 0, 1, 1, 2], [0], [0]>} : vector<8x16x4xf32>, vector<8x4x32xf32>, vector<8x16x32xf32> -> vector<8x16x32xf32>
    "tpu.trace_stop"() : () -> ()
    %24 = arith.addf %17, %23 : vector<8x16x32xf32>
    %c0_18 = arith.constant 0 : index
    %c1_19 = arith.constant 1 : index
    %c0_20 = arith.constant 0 : index
    %c0_21 = arith.constant 0 : index
    %25 = vector.load %arg2[%c0_18, %c1_19, %c0_20, %c0_21] : memref<1x3x16x16xf32, #tpu.memory_space<vmem>>, vector<1x1x16x16xf32>
    %26 = vector.shape_cast %25 : vector<1x1x16x16xf32> to vector<16x16xf32>
    %27 = vector.shape_cast %26 : vector<16x16xf32> to vector<1x16x16xf32>
    %28 = vector.broadcast %27 : vector<1x16x16xf32> to vector<8x16x16xf32>
    "tpu.trace_start"() <{level = 10 : i32, message = "lwv,lvc->lwc"}> : () -> ()
    %cst_22 = arith.constant dense<0.000000e+00> : vector<8x16x4xf32>
    %29 = tpu.matmul %28, %1, %cst_22 {dimension_numbers = #tpu.dot_dimension_numbers<[2], [1], [1], [2], [0, 0, 0, 1, 1, 2], [0], [0]>} : vector<8x16x16xf32>, vector<8x16x4xf32>, vector<8x16x4xf32> -> vector<8x16x4xf32>
    "tpu.trace_stop"() : () -> ()
    %c3 = arith.constant 3 : index
    %c0_23 = arith.constant 0 : index
    %c0_24 = arith.constant 0 : index
    %30 = vector.load %arg3[%c3, %c0_23, %c0_24] : memref<7x4x32xf32, #tpu.memory_space<vmem>>, vector<1x4x32xf32>
    %31 = vector.shape_cast %30 : vector<1x4x32xf32> to vector<4x32xf32>
    %32 = vector.shape_cast %31 : vector<4x32xf32> to vector<1x4x32xf32>
    %33 = vector.broadcast %32 : vector<1x4x32xf32> to vector<8x4x32xf32>
    "tpu.trace_start"() <{level = 10 : i32, message = "lvc,lco->lvo"}> : () -> ()
    %cst_25 = arith.constant dense<0.000000e+00> : vector<8x16x32xf32>
    %34 = tpu.matmul %29, %33, %cst_25 {dimension_numbers = #tpu.dot_dimension_numbers<[2], [1], [1], [2], [0, 0, 0, 1, 1, 2], [0], [0]>} : vector<8x16x4xf32>, vector<8x4x32xf32>, vector<8x16x32xf32> -> vector<8x16x32xf32>
    "tpu.trace_stop"() : () -> ()
    %35 = arith.addf %24, %34 : vector<8x16x32xf32>
    "tpu.trace_start"() <{level = 10 : i32, message = "lwv,lvc->lwc"}> : () -> ()
    %cst_26 = arith.constant dense<0.000000e+00> : vector<8x16x4xf32>
    %36 = tpu.matmul %28, %29, %cst_26 {dimension_numbers = #tpu.dot_dimension_numbers<[2], [1], [1], [2], [0, 0, 0, 1, 1, 2], [0], [0]>} : vector<8x16x16xf32>, vector<8x16x4xf32>, vector<8x16x4xf32> -> vector<8x16x4xf32>
    "tpu.trace_stop"() : () -> ()
    %c4 = arith.constant 4 : index
    %c0_27 = arith.constant 0 : index
    %c0_28 = arith.constant 0 : index
    %37 = vector.load %arg3[%c4, %c0_27, %c0_28] : memref<7x4x32xf32, #tpu.memory_space<vmem>>, vector<1x4x32xf32>
    %38 = vector.shape_cast %37 : vector<1x4x32xf32> to vector<4x32xf32>
    %39 = vector.shape_cast %38 : vector<4x32xf32> to vector<1x4x32xf32>
    %40 = vector.broadcast %39 : vector<1x4x32xf32> to vector<8x4x32xf32>
    "tpu.trace_start"() <{level = 10 : i32, message = "lvc,lco->lvo"}> : () -> ()
    %cst_29 = arith.constant dense<0.000000e+00> : vector<8x16x32xf32>
    %41 = tpu.matmul %36, %40, %cst_29 {dimension_numbers = #tpu.dot_dimension_numbers<[2], [1], [1], [2], [0, 0, 0, 1, 1, 2], [0], [0]>} : vector<8x16x4xf32>, vector<8x4x32xf32>, vector<8x16x32xf32> -> vector<8x16x32xf32>
    "tpu.trace_stop"() : () -> ()
    %42 = arith.addf %35, %41 : vector<8x16x32xf32>
    %c0_30 = arith.constant 0 : index
    %c2_31 = arith.constant 2 : index
    %c0_32 = arith.constant 0 : index
    %c0_33 = arith.constant 0 : index
    %43 = vector.load %arg2[%c0_30, %c2_31, %c0_32, %c0_33] : memref<1x3x16x16xf32, #tpu.memory_space<vmem>>, vector<1x1x16x16xf32>
    %44 = vector.shape_cast %43 : vector<1x1x16x16xf32> to vector<16x16xf32>
    %45 = vector.shape_cast %44 : vector<16x16xf32> to vector<1x16x16xf32>
    %46 = vector.broadcast %45 : vector<1x16x16xf32> to vector<8x16x16xf32>
    "tpu.trace_start"() <{level = 10 : i32, message = "lwv,lvc->lwc"}> : () -> ()
    %cst_34 = arith.constant dense<0.000000e+00> : vector<8x16x4xf32>
    %47 = tpu.matmul %46, %1, %cst_34 {dimension_numbers = #tpu.dot_dimension_numbers<[2], [1], [1], [2], [0, 0, 0, 1, 1, 2], [0], [0]>} : vector<8x16x16xf32>, vector<8x16x4xf32>, vector<8x16x4xf32> -> vector<8x16x4xf32>
    "tpu.trace_stop"() : () -> ()
    %c5 = arith.constant 5 : index
    %c0_35 = arith.constant 0 : index
    %c0_36 = arith.constant 0 : index
    %48 = vector.load %arg3[%c5, %c0_35, %c0_36] : memref<7x4x32xf32, #tpu.memory_space<vmem>>, vector<1x4x32xf32>
    %49 = vector.shape_cast %48 : vector<1x4x32xf32> to vector<4x32xf32>
    %50 = vector.shape_cast %49 : vector<4x32xf32> to vector<1x4x32xf32>
    %51 = vector.broadcast %50 : vector<1x4x32xf32> to vector<8x4x32xf32>
    "tpu.trace_start"() <{level = 10 : i32, message = "lvc,lco->lvo"}> : () -> ()
    %cst_37 = arith.constant dense<0.000000e+00> : vector<8x16x32xf32>
    %52 = tpu.matmul %47, %51, %cst_37 {dimension_numbers = #tpu.dot_dimension_numbers<[2], [1], [1], [2], [0, 0, 0, 1, 1, 2], [0], [0]>} : vector<8x16x4xf32>, vector<8x4x32xf32>, vector<8x16x32xf32> -> vector<8x16x32xf32>
    "tpu.trace_stop"() : () -> ()
    %53 = arith.addf %42, %52 : vector<8x16x32xf32>
    "tpu.trace_start"() <{level = 10 : i32, message = "lwv,lvc->lwc"}> : () -> ()
    %cst_38 = arith.constant dense<0.000000e+00> : vector<8x16x4xf32>
    %54 = tpu.matmul %46, %47, %cst_38 {dimension_numbers = #tpu.dot_dimension_numbers<[2], [1], [1], [2], [0, 0, 0, 1, 1, 2], [0], [0]>} : vector<8x16x16xf32>, vector<8x16x4xf32>, vector<8x16x4xf32> -> vector<8x16x4xf32>
    "tpu.trace_stop"() : () -> ()
    %c6 = arith.constant 6 : index
    %c0_39 = arith.constant 0 : index
    %c0_40 = arith.constant 0 : index
    %55 = vector.load %arg3[%c6, %c0_39, %c0_40] : memref<7x4x32xf32, #tpu.memory_space<vmem>>, vector<1x4x32xf32>
    %56 = vector.shape_cast %55 : vector<1x4x32xf32> to vector<4x32xf32>
    %57 = vector.shape_cast %56 : vector<4x32xf32> to vector<1x4x32xf32>
    %58 = vector.broadcast %57 : vector<1x4x32xf32> to vector<8x4x32xf32>
    "tpu.trace_start"() <{level = 10 : i32, message = "lvc,lco->lvo"}> : () -> ()
    %cst_41 = arith.constant dense<0.000000e+00> : vector<8x16x32xf32>
    %59 = tpu.matmul %54, %58, %cst_41 {dimension_numbers = #tpu.dot_dimension_numbers<[2], [1], [1], [2], [0, 0, 0, 1, 1, 2], [0], [0]>} : vector<8x16x4xf32>, vector<8x4x32xf32>, vector<8x16x32xf32> -> vector<8x16x32xf32>
    "tpu.trace_stop"() : () -> ()
    %60 = arith.addf %53, %59 : vector<8x16x32xf32>
    %c0_42 = arith.constant 0 : index
    %c0_43 = arith.constant 0 : index
    %c0_44 = arith.constant 0 : index
    %61 = vector.load %arg4[%c0_42, %c0_43, %c0_44] : memref<1x1x32xf32, #tpu.memory_space<vmem>>, vector<1x1x32xf32>
    %62 = vector.broadcast %61 : vector<1x1x32xf32> to vector<8x16x32xf32>
    %63 = arith.addf %60, %62 : vector<8x16x32xf32>
    %c0_45 = arith.constant 0 : index
    %c0_46 = arith.constant 0 : index
    %c0_47 = arith.constant 0 : index
    %c0_48 = arith.constant 0 : index
    %64 = vector.load %arg5[%c0_45, %c0_46, %c0_47, %c0_48] : memref<1x8x16x32xf32, #tpu.memory_space<vmem>>, vector<1x8x16x32xf32>
    %65 = vector.shape_cast %64 : vector<1x8x16x32xf32> to vector<8x16x32xf32>
    %66 = vector.shape_cast %63 : vector<8x16x32xf32> to vector<1x8x16x32xf32>
    tpu.vector_store %arg5[%c0_45, %c0_46, %c0_47, %c0_48], %66 {strides = array<i32>} : memref<1x8x16x32xf32, #tpu.memory_space<vmem>>, vector<1x8x16x32xf32>,
    return
  }
  func.func @transform_0(%arg0: i32) -> (i32, i32, i32, i32) {
    %c0_i32 = arith.constant 0 : i32
    %c0_i32_0 = arith.constant 0 : i32
    %c0_i32_1 = arith.constant 0 : i32
    %c0_i32_2 = arith.constant 0 : i32
    return %arg0, %c0_i32, %c0_i32_0, %c0_i32_1 : i32, i32, i32, i32
  }
  func.func @transform_1(%arg0: i32) -> (i32, i32, i32, i32) {
    %c0_i32 = arith.constant 0 : i32
    %c0_i32_0 = arith.constant 0 : i32
    %c0_i32_1 = arith.constant 0 : i32
    %c0_i32_2 = arith.constant 0 : i32
    return %arg0, %c0_i32, %c0_i32_0, %c0_i32_1 : i32, i32, i32, i32
  }
  func.func @transform_2(%arg0: i32) -> (i32, i32, i32) {
    %c0_i32 = arith.constant 0 : i32
    %c0_i32_0 = arith.constant 0 : i32
    %c0_i32_1 = arith.constant 0 : i32
    %c0_i32_2 = arith.constant 0 : i32
    return %c0_i32, %c0_i32_0, %c0_i32_1 : i32, i32, i32
  }
  func.func @transform_3(%arg0: i32) -> (i32, i32, i32) {
    %c0_i32 = arith.constant 0 : i32
    %c0_i32_0 = arith.constant 0 : i32
    %c0_i32_1 = arith.constant 0 : i32
    %c0_i32_2 = arith.constant 0 : i32
    return %c0_i32, %c0_i32_0, %c0_i32_1 : i32, i32, i32
  }
  func.func @transform_4(%arg0: i32) -> (i32, i32, i32, i32) {
    %c0_i32 = arith.constant 0 : i32
    %c0_i32_0 = arith.constant 0 : i32
    %c0_i32_1 = arith.constant 0 : i32
    %c0_i32_2 = arith.constant 0 : i32
    return %arg0, %c0_i32, %c0_i32_0, %c0_i32_1 : i32, i32, i32, i32
  }
}

</mosaic_0001>

<llo_original>
// kernel: tpu_custom_call.1
$region0: #{tpu_custom_call.1}
  #allocation0 [shape = 'u32[]', space=smem, size = 0x4, offset = 0x4, fixed_abs, tag = 'smem constant byte address 0x4 - core index']
  #allocation1 [shape = 'u32[144,128]{1,0:T(1,128)}', space=vmem, size = 0x12000, scoped, tag = 'internal scratch']
  %s0 = inlined_call_operand.vmem [shape: f32[2,8,16,4], index: 0, kind: input, shape index: {}]
  %s1 = inlined_call_operand.vmem [shape: f32[2,3,16,16], index: 1, kind: input, shape index: {}]
  %s2 = inlined_call_operand.vmem [shape: f32[7,4,32], index: 2, kind: input, shape index: {}]
  %s3 = inlined_call_operand.vmem [shape: f32[1,1,32], index: 3, kind: input, shape index: {}]
  %s4 = inlined_call_operand.hbm [shape: f32[2,8,16,32], index: 4, kind: output, shape index: {}]
  %s5 = sld [smem:[#allocation0]]
  $region49: #{tpu_custom_call.1} parent=0
    _
  %s7 = ssub.s32 1, %s5
  %s8 = scalar_select 0, %s7, %s5
  $region1: #{tpu_custom_call.1} parent=0
    #allocation2 [shape = 'u8[131072]{0}', space=vmem, size = 0x20000, scoped, tag = 'output window, operand 0']
    #allocation3 [shape = 's32[2]{0}', space=sflag, size = 0x8, scoped, tag = 'scoped memory for tpu_custom_call.1']
    %9 = vsyncpa [#allocation3], 0
    %s10 = scalar_lea.sflag [#allocation3], 1
    %11 = vsyncpa %s10, 0
    loop: start=0, step=1, limit=4
    $region2: #{tpu_custom_call.1} parent=1 // loop_pre_header
      _
    $region3: #{tpu_custom_call.1} parent=1 // loop_header
      %s13 = sphi 0, %s17
      %p14 = scmp.ge.s32.totalorder %s13, 4
      %s23 = sphi 0, %s25
      %s26 = sphi 0, %s23
      %s27 = sphi 0, %s26
      %s43 = sphi 0, %s27
      %s49 = sphi 0, %s51
      %s52 = sphi 0, %s49
      %s53 = sphi 0, %s52
      %s69 = sphi 0, %s53
      %s73 = sphi 0, %s73
      %s75 = sphi 0, %s73
      %s76 = sphi 0, %s75
      %s90 = sphi 0, %s76
      %s94 = sphi 0, %s94
      %s96 = sphi 0, %s94
      %s97 = sphi 0, %s96
      %s111 = sphi 0, %s97
      %s117 = sphi 0, %s119
      %s120 = sphi 0, %s117
      %s121 = sphi 0, %s120
      %s137 = sphi 0, %s121
    $region4: #{tpu_custom_call.1} parent=1 // loop_header_branch
      %16 = sbr.rel (%p14) target = $region8
    $region5: #{tpu_custom_call.1} parent=1 // loop_body
      %s18 = ssub.s32 %s13, 1
      %s19 = ssub.s32 %s13, 2
      %s20 = sadd.s32 %s13, 1
      %s21 = ssub.s32 %s13, %s20
      %p22 = scmp.eq.s32.totalorder %s21, 0
      %s24 = sadd.s32 %s23, 1
      %s25 = scalar_select %p22, %s23, %s24
      %p28 = pneg %p22
      %p29 = scmp.eq.s32.totalorder %s13, 1
      %p30 = por %p28, %p29
      %p31 = scmp.ne.s32.totalorder %s23, %s26
      %p32 = scmp.eq.s32.totalorder %s13, 0
      %p33 = por %p31, %p32
      %p34 = scmp.ne.s32.totalorder %s23, %s26
      %p35 = scmp.eq.s32.totalorder %s18, 1
      %p36 = por %p34, %p35
      %p37 = scmp.ne.s32.totalorder %s26, %s27
      %p38 = scmp.eq.s32.totalorder %s18, 0
      %p39 = por %p37, %p38
      %p40 = scmp.ne.s32.totalorder %s26, %s27
      %p41 = scmp.eq.s32.totalorder %s19, 1
      %p42 = por %p40, %p41
      %p44 = scmp.ne.s32.totalorder %s27, %s43
      %p45 = scmp.eq.s32.totalorder %s19, 0
      %p46 = por %p44, %p45
      %s47 = ssub.s32 %s13, %s20
      %p48 = scmp.eq.s32.totalorder %s47, 0
      %s50 = sadd.s32 %s49, 1
      %s51 = scalar_select %p48, %s49, %s50
      %p54 = pneg %p48
      %p55 = scmp.eq.s32.totalorder %s13, 1
      %p56 = por %p54, %p55
      %p57 = scmp.ne.s32.totalorder %s49, %s52
      %p58 = scmp.eq.s32.totalorder %s13, 0
      %p59 = por %p57, %p58
      %p60 = scmp.ne.s32.totalorder %s49, %s52
      %p61 = scmp.eq.s32.totalorder %s18, 1
      %p62 = por %p60, %p61
      %p63 = scmp.ne.s32.totalorder %s52, %s53
      %p64 = scmp.eq.s32.totalorder %s18, 0
      %p65 = por %p63, %p64
      %p66 = scmp.ne.s32.totalorder %s52, %s53
      %p67 = scmp.eq.s32.totalorder %s19, 1
      %p68 = por %p66, %p67
      %p70 = scmp.ne.s32.totalorder %s53, %s69
      %p71 = scmp.eq.s32.totalorder %s19, 0
      %p72 = por %p70, %p71
      %s74 = sadd.s32 %s73, 1
      %p77 = scmp.eq.s32.totalorder %s13, 1
      %p78 = scmp.ne.s32.totalorder %s73, %s75
      %p79 = scmp.eq.s32.totalorder %s13, 0
      %p80 = por %p78, %p79
      %p81 = scmp.ne.s32.totalorder %s73, %s75
      %p82 = scmp.eq.s32.totalorder %s18, 1
      %p83 = por %p81, %p82
      %p84 = scmp.ne.s32.totalorder %s75, %s76
      %p85 = scmp.eq.s32.totalorder %s18, 0
      %p86 = por %p84, %p85
      %p87 = scmp.ne.s32.totalorder %s75, %s76
      %p88 = scmp.eq.s32.totalorder %s19, 1
      %p89 = por %p87, %p88
      %p91 = scmp.ne.s32.totalorder %s76, %s90
      %p92 = scmp.eq.s32.totalorder %s19, 0
      %p93 = por %p91, %p92
      %s95 = sadd.s32 %s94, 1
      %p98 = scmp.eq.s32.totalorder %s13, 1
      %p99 = scmp.ne.s32.totalorder %s94, %s96
      %p100 = scmp.eq.s32.totalorder %s13, 0
      %p101 = por %p99, %p100
      %p102 = scmp.ne.s32.totalorder %s94, %s96
      %p103 = scmp.eq.s32.totalorder %s18, 1
      %p104 = por %p102, %p103
      %p105 = scmp.ne.s32.totalorder %s96, %s97
      %p106 = scmp.eq.s32.totalorder %s18, 0
      %p107 = por %p105, %p106
      %p108 = scmp.ne.s32.totalorder %s96, %s97
      %p109 = scmp.eq.s32.totalorder %s19, 1
      %p110 = por %p108, %p109
      %p112 = scmp.ne.s32.totalorder %s97, %s111
      %p113 = scmp.eq.s32.totalorder %s19, 0
      %p114 = por %p112, %p113
      %s115 = ssub.s32 %s13, %s20
      %p116 = scmp.eq.s32.totalorder %s115, 0
      %s118 = sadd.s32 %s117, 1
      %s119 = scalar_select %p116, %s117, %s118
      %p122 = pneg %p116
      %p123 = scmp.eq.s32.totalorder %s13, 1
      %p124 = por %p122, %p123
      %p125 = scmp.ne.s32.totalorder %s117, %s120
      %p126 = scmp.eq.s32.totalorder %s13, 0
      %p127 = por %p125, %p126
      %p128 = scmp.ne.s32.totalorder %s117, %s120
      %p129 = scmp.eq.s32.totalorder %s18, 1
      %p130 = por %p128, %p129
      %p131 = scmp.ne.s32.totalorder %s120, %s121
      %p132 = scmp.eq.s32.totalorder %s18, 0
      %p133 = por %p131, %p132
      %p134 = scmp.ne.s32.totalorder %s120, %s121
      %p135 = scmp.eq.s32.totalorder %s19, 1
      %p136 = por %p134, %p135
      %p138 = scmp.ne.s32.totalorder %s121, %s137
      %p139 = scmp.eq.s32.totalorder %s19, 0
      %p140 = por %p138, %p139
      %p141 = scmp.le.s32.totalorder 1, %s13
      %p142 = scmp.lt.s32.totalorder %s13, 3
      %p143 = pnand %p141, %p142
      %p144 = pneg %p143
      // Predicated region
      $region9: #{tpu_custom_call.1} parent=5 // pred_check
        _
      $region10: #{tpu_custom_call.1} parent=5 // pred_check_branch
        %146 = sbr.rel (%p143) target = $region12
      $region11: #{tpu_custom_call.1} parent=5 // pred_region
        %s147 = ssub.s32 %s13, 1
        // Predicated region
        $region13: #{tpu_custom_call.1} parent=11 // pred_check
          %p148 = pneg %p86
        $region14: #{tpu_custom_call.1} parent=11 // pred_check_branch
          %150 = sbr.rel (%p148) target = $region16
        $region15: #{tpu_custom_call.1} parent=11 // pred_region
          _
        $region16: #{tpu_custom_call.1} parent=11 // pred_fallthru
          _
        // Predicated region
        $region17: #{tpu_custom_call.1} parent=11 // pred_check
          %p151 = pneg %p107
        $region18: #{tpu_custom_call.1} parent=11 // pred_check_branch
          %153 = sbr.rel (%p151) target = $region20
        $region19: #{tpu_custom_call.1} parent=11 // pred_region
          _
        $region20: #{tpu_custom_call.1} parent=11 // pred_fallthru
          _
      $region12: #{tpu_custom_call.1} parent=5 // pred_fallthru
        _
      %p154 = scmp.lt.s32.totalorder %s13, 2
      // Predicated region
      $region21: #{tpu_custom_call.1} parent=5 // pred_check
        %p155 = pneg %p154
      $region22: #{tpu_custom_call.1} parent=5 // pred_check_branch
        %157 = sbr.rel (%p155) target = $region24
      $region23: #{tpu_custom_call.1} parent=5 // pred_region
        // Predicated region
        $region25: #{tpu_custom_call.1} parent=23 // pred_check
          %p158 = pneg %p33
        $region26: #{tpu_custom_call.1} parent=23 // pred_check_branch
          %160 = sbr.rel (%p158) target = $region28
        $region27: #{tpu_custom_call.1} parent=23 // pred_region
          %p161 = scmp.lt.s32.totalorder %s13, 1
          %s162 = scalar_select %p161, %s13, 1
          %s163 = smul.addr %s162, 16
          %s164 = smul.addr %s163, 8
          %s165 = scalar_lea.vmem %s0, %s164
        $region28: #{tpu_custom_call.1} parent=23 // pred_fallthru
          _
        // Predicated region
        $region29: #{tpu_custom_call.1} parent=23 // pred_check
          %p166 = pneg %p59
        $region30: #{tpu_custom_call.1} parent=23 // pred_check_branch
          %168 = sbr.rel (%p166) target = $region32
        $region31: #{tpu_custom_call.1} parent=23 // pred_region
          %p169 = scmp.lt.s32.totalorder %s13, 1
          %s170 = scalar_select %p169, %s13, 1
          %s171 = smul.addr %s170, 6
          %s172 = smul.addr %s171, 8
          %s173 = scalar_lea.vmem %s1, %s172
        $region32: #{tpu_custom_call.1} parent=23 // pred_fallthru
          _
      $region24: #{tpu_custom_call.1} parent=5 // pred_fallthru
        _
      %p174 = scmp.le.s32.totalorder 1, %s13
      %p175 = scmp.lt.s32.totalorder %s13, 3
      %p176 = pnand %p174, %p175
      %p177 = pneg %p176
      // Predicated region
      $region33: #{tpu_custom_call.1} parent=5 // pred_check
        _
      $region34: #{tpu_custom_call.1} parent=5 // pred_check_branch
        %179 = sbr.rel (%p176) target = $region36
      $region35: #{tpu_custom_call.1} parent=5 // pred_region
        %s180 = ssub.s32 %s13, 1
        %p181 = scmp.lt.s32.totalorder %s18, 1
        %s182 = scalar_select %p181, %s18, 1
        %s183 = smul.addr %s182, 16
        %s184 = smul.addr %s183, 8
        %s185 = scalar_lea.vmem %s0, %s184
        %p186 = pneg %p39
        %p187 = pneg %p36
        %p188 = scmp.lt.s32.totalorder %s18, 1
        %s189 = scalar_select %p188, %s18, 1
        %s190 = smul.addr %s189, 6
        %s191 = smul.addr %s190, 8
        %s192 = scalar_lea.vmem %s1, %s191
        %p193 = pneg %p65
        %p194 = pneg %p62
        %p195 = pneg %p86
        %p196 = pneg %p83
        %p197 = pneg %p107
        %p198 = pneg %p104
        %p199 = pneg %p133
        %p200 = pneg %p130
        %s201 = sand.u32 %s120, 1
        %s202 = scalar_lea.sflag [#allocation3], %s201
        %s203 = sand.u32 %s120, 1
        %s204 = smul.addr %s203, 128
        %s205 = scalar_lea.vmem [#allocation2], %s204
        %p206 = scmp.lt.s32.totalorder %s18, 1
        %s207 = scalar_select %p206, %s18, 1
        %s208 = smul.addr %s207, 16
        %s209 = smul.addr %s208, 8
        %s210 = scalar_lea.vmem %s0, %s209
        %p211 = scmp.lt.s32.totalorder %s18, 1
        %s212 = scalar_select %p211, %s18, 1
        %s213 = smul.addr %s212, 6
        %s214 = smul.addr %s213, 8
        %s215 = scalar_lea.vmem %s1, %s214
        %v216 = vld [vmem:[%s210] sm:$0xff]
        %v217 = vld [vmem:[%s210 + $0x8] sm:$0xff]
        %v218 = vld [vmem:[%s210 + $0x10] sm:$0xff]
        %v219 = vld [vmem:[%s210 + $0x18] sm:$0xff]
        %v220 = vld [vmem:[%s210 + $0x20] sm:$0xff]
        %v221 = vld [vmem:[%s210 + $0x28] sm:$0xff]
        %v222 = vld [vmem:[%s210 + $0x30] sm:$0xff]
        %v223 = vld [vmem:[%s210 + $0x38] sm:$0xff]
        %v224 = vld [vmem:[%s210 + $0x40] sm:$0xff]
        %v225 = vld [vmem:[%s210 + $0x48] sm:$0xff]
        %v226 = vld [vmem:[%s210 + $0x50] sm:$0xff]
        %v227 = vld [vmem:[%s210 + $0x58] sm:$0xff]
        %v228 = vld [vmem:[%s210 + $0x60] sm:$0xff]
        %v229 = vld [vmem:[%s210 + $0x68] sm:$0xff]
        %v230 = vld [vmem:[%s210 + $0x70] sm:$0xff]
        %v231 = vld [vmem:[%s210 + $0x78] sm:$0xff]
        %v232 = vld [vmem:[%s2] sm:$0xf]
        %v233 = vld [vmem:[%s215] sm:$0xff]
        %v234 = vld [vmem:[%s215 + $0x8] sm:$0xff]
        %vm235 = vcmask 130048
        %v237 = vsel %vm235, %v233, 0
        %v240 = vsel %vm235, %v234, 0
        %242 = vmatprep.subr.mxu0 0.0
        %243 = vmatpush1.msra.mxu0 %v216
        %244 = vmatprep.subr.mxu0 0.0
        %245 = vmatpush1.msra.mxu0 %v217
        %246 = vmatprep.subr.mxu0 0.0
        %247 = vmatpush1.msra.mxu0 0.0
        %248 = vmatprep.subr.mxu0 0.0
        %249 = vmatpush1.msra.mxu0 0.0
        %250 = vmatprep.subr.mxu0 0.0
        %251 = vmatpush1.msra.mxu0 0.0
        %252 = vmatprep.subr.mxu0 0.0
        %253 = vmatpush1.msra.mxu0 0.0
        %254 = vmatprep.subr.mxu0 0.0
        %255 = vmatpush1.msra.mxu0 0.0
        %256 = vmatprep.subr.mxu0 0.0
        %257 = vmatpush1.msra.mxu0 0.0
        %258 = vmatprep.subr.mxu0 0.0
        %259 = vmatpush1.msra.mxu0 0.0
        %260 = vmatprep.subr.mxu0 0.0
        %261 = vmatpush1.msra.mxu0 0.0
        %262 = vmatprep.subr.mxu0 0.0
        %263 = vmatpush1.msra.mxu0 0.0
        %264 = vmatprep.subr.mxu0 0.0
        %265 = vmatpush1.msra.mxu0 0.0
        %266 = vmatprep.subr.mxu0 0.0
        %267 = vmatpush1.msra.mxu0 0.0
        %268 = vmatprep.subr.mxu0 0.0
        %269 = vmatpush1.msra.mxu0 0.0
        %270 = vmatprep.subr.mxu0 0.0
        %271 = vmatpush1.msra.mxu0 0.0
        %272 = vmatprep.subr.mxu0 0.0
        %273 = vmatpush1.msra.mxu0 0.0
        %274 = vmatprep.subr.mxu0 0.0
        %275 = vmatpush1.msra.mxu0 0.0
        %276 = vmatprep.subr.mxu0 0.0
        %277 = vmatpush1.msra.mxu0 0.0
        %278 = vmatprep.subr.mxu0 0.0
        %279 = vmatpush1.msra.mxu0 0.0
        %280 = vmatprep.subr.mxu0 0.0
        %281 = vmatpush1.msra.mxu0 0.0
        %282 = vmatprep.subr.mxu0 0.0
        %283 = vmatpush1.msra.mxu0 0.0
        %284 = vmatprep.subr.mxu0 0.0
        %285 = vmatpush1.msra.mxu0 0.0
        %286 = vmatprep.subr.mxu0 0.0
        %287 = vmatpush1.msra.mxu0 0.0
        %288 = vmatprep.subr.mxu0 0.0
        %289 = vmatpush1.msra.mxu0 0.0
        %290 = vmatprep.subr.mxu0 0.0
        %291 = vmatpush1.msra.mxu0 0.0
        %292 = vmatprep.subr.mxu0 0.0
        %293 = vmatpush1.msra.mxu0 0.0
        %294 = vmatprep.subr.mxu0 0.0
        %295 = vmatpush1.msra.mxu0 0.0
        %296 = vmatprep.subr.mxu0 0.0
        %297 = vmatpush1.msra.mxu0 0.0
        %298 = vmatprep.subr.mxu0 0.0
        %299 = vmatpush1.msra.mxu0 0.0
        %300 = vmatprep.subr.mxu0 0.0
        %301 = vmatpush1.msra.mxu0 0.0
        %302 = vmatprep.subr.mxu0 0.0
        %303 = vmatpush1.msra.mxu0 0.0
        %304 = vmatprep.subr.mxu0 0.0
        %305 = vmatpush1.msra.mxu0 0.0
        %306 = vmatprep.mubr.f32.mxu0 0.0
        %307 = vmatmul.mubr.f32.gmra.mrb[0].mxu0 %v237
        %v308 = vpop.f32.mrb[0].mxu0
        %v309 = vadd.f32 0.0, %v308
        %v310 = vpop.f32.mrb[0].mxu0
        %311 = vmatprep.mubr.f32.mxu0 0.0
        %312 = vmatmul.mubr.f32.gmra.mrb[0].mxu0 %v240
        %v313 = vpop.f32.mrb[0].mxu0
        %v314 = vadd.f32 0.0, %v313
        %v315 = vpop.f32.mrb[0].mxu0
        %316 = vdwg.mxu0
        %317 = vmatprep.subr.mxu0 0.0
        %318 = vmatpush1.msra.mxu0 %v218
        %319 = vmatprep.subr.mxu0 0.0
        %320 = vmatpush1.msra.mxu0 %v219
        %321 = vmatprep.subr.mxu0 0.0
        %322 = vmatpush1.msra.mxu0 0.0
        %323 = vmatprep.subr.mxu0 0.0
        %324 = vmatpush1.msra.mxu0 0.0
        %325 = vmatprep.subr.mxu0 0.0
        %326 = vmatpush1.msra.mxu0 0.0
        %327 = vmatprep.subr.mxu0 0.0
        %328 = vmatpush1.msra.mxu0 0.0
        %329 = vmatprep.subr.mxu0 0.0
        %330 = vmatpush1.msra.mxu0 0.0
        %331 = vmatprep.subr.mxu0 0.0
        %332 = vmatpush1.msra.mxu0 0.0
        %333 = vmatprep.subr.mxu0 0.0
        %334 = vmatpush1.msra.mxu0 0.0
        %335 = vmatprep.subr.mxu0 0.0
        %336 = vmatpush1.msra.mxu0 0.0
        %337 = vmatprep.subr.mxu0 0.0
        %338 = vmatpush1.msra.mxu0 0.0
        %339 = vmatprep.subr.mxu0 0.0
        %340 = vmatpush1.msra.mxu0 0.0
        %341 = vmatprep.subr.mxu0 0.0
        %342 = vmatpush1.msra.mxu0 0.0
        %343 = vmatprep.subr.mxu0 0.0
        %344 = vmatpush1.msra.mxu0 0.0
        %345 = vmatprep.subr.mxu0 0.0
        %346 = vmatpush1.msra.mxu0 0.0
        %347 = vmatprep.subr.mxu0 0.0
        %348 = vmatpush1.msra.mxu0 0.0
        %349 = vmatprep.subr.mxu0 0.0
        %350 = vmatpush1.msra.mxu0 0.0
        %351 = vmatprep.subr.mxu0 0.0
        %352 = vmatpush1.msra.mxu0 0.0
        %353 = vmatprep.subr.mxu0 0.0
        %354 = vmatpush1.msra.mxu0 0.0
        %355 = vmatprep.subr.mxu0 0.0
        %356 = vmatpush1.msra.mxu0 0.0
        %357 = vmatprep.subr.mxu0 0.0
        %358 = vmatpush1.msra.mxu0 0.0
        %359 = vmatprep.subr.mxu0 0.0
        %360 = vmatpush1.msra.mxu0 0.0
        %361 = vmatprep.subr.mxu0 0.0
        %362 = vmatpush1.msra.mxu0 0.0
        %363 = vmatprep.subr.mxu0 0.0
        %364 = vmatpush1.msra.mxu0 0.0
        %365 = vmatprep.subr.mxu0 0.0
        %366 = vmatpush1.msra.mxu0 0.0
        %367 = vmatprep.subr.mxu0 0.0
        %368 = vmatpush1.msra.mxu0 0.0
        %369 = vmatprep.subr.mxu0 0.0
        %370 = vmatpush1.msra.mxu0 0.0
        %371 = vmatprep.subr.mxu0 0.0
        %372 = vmatpush1.msra.mxu0 0.0
        %373 = vmatprep.subr.mxu0 0.0
        %374 = vmatpush1.msra.mxu0 0.0
        %375 = vmatprep.subr.mxu0 0.0
        %376 = vmatpush1.msra.mxu0 0.0
        %377 = vmatprep.subr.mxu0 0.0
        %378 = vmatpush1.msra.mxu0 0.0
        %379 = vmatprep.subr.mxu0 0.0
        %380 = vmatpush1.msra.mxu0 0.0
        %381 = vmatprep.mubr.f32.mxu0 0.0
        %382 = vmatmul.mubr.f32.gmra.mrb[0].mxu0 %v237
        %v383 = vpop.f32.mrb[0].mxu0
        %v384 = vadd.f32 0.0, %v383
        %v385 = vpop.f32.mrb[0].mxu0
        %386 = vmatprep.mubr.f32.mxu0 0.0
        %387 = vmatmul.mubr.f32.gmra.mrb[0].mxu0 %v240
        %v388 = vpop.f32.mrb[0].mxu0
        %v389 = vadd.f32 0.0, %v388
        %v390 = vpop.f32.mrb[0].mxu0
        %391 = vdwg.mxu0
        %392 = vmatprep.subr.mxu0 0.0
        %393 = vmatpush1.msra.mxu0 %v220
        %394 = vmatprep.subr.mxu0 0.0
        %395 = vmatpush1.msra.mxu0 %v221
        %396 = vmatprep.subr.mxu0 0.0
        %397 = vmatpush1.msra.mxu0 0.0
        %398 = vmatprep.subr.mxu0 0.0
        %399 = vmatpush1.msra.mxu0 0.0
        %400 = vmatprep.subr.mxu0 0.0
        %401 = vmatpush1.msra.mxu0 0.0
        %402 = vmatprep.subr.mxu0 0.0
        %403 = vmatpush1.msra.mxu0 0.0
        %404 = vmatprep.subr.mxu0 0.0
        %405 = vmatpush1.msra.mxu0 0.0
        %406 = vmatprep.subr.mxu0 0.0
        %407 = vmatpush1.msra.mxu0 0.0
        %408 = vmatprep.subr.mxu0 0.0
        %409 = vmatpush1.msra.mxu0 0.0
        %410 = vmatprep.subr.mxu0 0.0
        %411 = vmatpush1.msra.mxu0 0.0
        %412 = vmatprep.subr.mxu0 0.0
        %413 = vmatpush1.msra.mxu0 0.0
        %414 = vmatprep.subr.mxu0 0.0
        %415 = vmatpush1.msra.mxu0 0.0
        %416 = vmatprep.subr.mxu0 0.0
        %417 = vmatpush1.msra.mxu0 0.0
        %418 = vmatprep.subr.mxu0 0.0
        %419 = vmatpush1.msra.mxu0 0.0
        %420 = vmatprep.subr.mxu0 0.0
        %421 = vmatpush1.msra.mxu0 0.0
        %422 = vmatprep.subr.mxu0 0.0
        %423 = vmatpush1.msra.mxu0 0.0
        %424 = vmatprep.subr.mxu0 0.0
        %425 = vmatpush1.msra.mxu0 0.0
        %426 = vmatprep.subr.mxu0 0.0
        %427 = vmatpush1.msra.mxu0 0.0
        %428 = vmatprep.subr.mxu0 0.0
        %429 = vmatpush1.msra.mxu0 0.0
        %430 = vmatprep.subr.mxu0 0.0
        %431 = vmatpush1.msra.mxu0 0.0
        %432 = vmatprep.subr.mxu0 0.0
        %433 = vmatpush1.msra.mxu0 0.0
        %434 = vmatprep.subr.mxu0 0.0
        %435 = vmatpush1.msra.mxu0 0.0
        %436 = vmatprep.subr.mxu0 0.0
        %437 = vmatpush1.msra.mxu0 0.0
        %438 = vmatprep.subr.mxu0 0.0
        %439 = vmatpush1.msra.mxu0 0.0
        %440 = vmatprep.subr.mxu0 0.0
        %441 = vmatpush1.msra.mxu0 0.0
        %442 = vmatprep.subr.mxu0 0.0
        %443 = vmatpush1.msra.mxu0 0.0
        %444 = vmatprep.subr.mxu0 0.0
        %445 = vmatpush1.msra.mxu0 0.0
        %446 = vmatprep.subr.mxu0 0.0
        %447 = vmatpush1.msra.mxu0 0.0
        %448 = vmatprep.subr.mxu0 0.0
        %449 = vmatpush1.msra.mxu0 0.0
        %450 = vmatprep.subr.mxu0 0.0
        %451 = vmatpush1.msra.mxu0 0.0
        %452 = vmatprep.subr.mxu0 0.0
        %453 = vmatpush1.msra.mxu0 0.0
        %454 = vmatprep.subr.mxu0 0.0
        %455 = vmatpush1.msra.mxu0 0.0
        %456 = vmatprep.mubr.f32.mxu0 0.0
        %457 = vmatmul.mubr.f32.gmra.mrb[0].mxu0 %v237
        %v458 = vpop.f32.mrb[0].mxu0
        %v459 = vadd.f32 0.0, %v458
        %v460 = vpop.f32.mrb[0].mxu0
        %461 = vmatprep.mubr.f32.mxu0 0.0
        %462 = vmatmul.mubr.f32.gmra.mrb[0].mxu0 %v240
        %v463 = vpop.f32.mrb[0].mxu0
        %v464 = vadd.f32 0.0, %v463
        %v465 = vpop.f32.mrb[0].mxu0
        %466 = vdwg.mxu0
        %467 = vmatprep.subr.mxu0 0.0
        %468 = vmatpush1.msra.mxu0 %v222
        %469 = vmatprep.subr.mxu0 0.0
        %470 = vmatpush1.msra.mxu0 %v223
        %471 = vmatprep.subr.mxu0 0.0
        %472 = vmatpush1.msra.mxu0 0.0
        %473 = vmatprep.subr.mxu0 0.0
        %474 = vmatpush1.msra.mxu0 0.0
        %475 = vmatprep.subr.mxu0 0.0
        %476 = vmatpush1.msra.mxu0 0.0
        %477 = vmatprep.subr.mxu0 0.0
        %478 = vmatpush1.msra.mxu0 0.0
        %479 = vmatprep.subr.mxu0 0.0
        %480 = vmatpush1.msra.mxu0 0.0
        %481 = vmatprep.subr.mxu0 0.0
        %482 = vmatpush1.msra.mxu0 0.0
        %483 = vmatprep.subr.mxu0 0.0
        %484 = vmatpush1.msra.mxu0 0.0
        %485 = vmatprep.subr.mxu0 0.0
        %486 = vmatpush1.msra.mxu0 0.0
        %487 = vmatprep.subr.mxu0 0.0
        %488 = vmatpush1.msra.mxu0 0.0
        %489 = vmatprep.subr.mxu0 0.0
        %490 = vmatpush1.msra.mxu0 0.0
        %491 = vmatprep.subr.mxu0 0.0
        %492 = vmatpush1.msra.mxu0 0.0
        %493 = vmatprep.subr.mxu0 0.0
        %494 = vmatpush1.msra.mxu0 0.0
        %495 = vmatprep.subr.mxu0 0.0
        %496 = vmatpush1.msra.mxu0 0.0
        %497 = vmatprep.subr.mxu0 0.0
        %498 = vmatpush1.msra.mxu0 0.0
        %499 = vmatprep.subr.mxu0 0.0
        %500 = vmatpush1.msra.mxu0 0.0
        %501 = vmatprep.subr.mxu0 0.0
        %502 = vmatpush1.msra.mxu0 0.0
        %503 = vmatprep.subr.mxu0 0.0
        %504 = vmatpush1.msra.mxu0 0.0
        %505 = vmatprep.subr.mxu0 0.0
        %506 = vmatpush1.msra.mxu0 0.0
        %507 = vmatprep.subr.mxu0 0.0
        %508 = vmatpush1.msra.mxu0 0.0
        %509 = vmatprep.subr.mxu0 0.0
        %510 = vmatpush1.msra.mxu0 0.0
        %511 = vmatprep.subr.mxu0 0.0
        %512 = vmatpush1.msra.mxu0 0.0
        %513 = vmatprep.subr.mxu0 0.0
        %514 = vmatpush1.msra.mxu0 0.0
        %515 = vmatprep.subr.mxu0 0.0
        %516 = vmatpush1.msra.mxu0 0.0
        %517 = vmatprep.subr.mxu0 0.0
        %518 = vmatpush1.msra.mxu0 0.0
        %519 = vmatprep.subr.mxu0 0.0
        %520 = vmatpush1.msra.mxu0 0.0
        %521 = vmatprep.subr.mxu0 0.0
        %522 = vmatpush1.msra.mxu0 0.0
        %523 = vmatprep.subr.mxu0 0.0
        %524 = vmatpush1.msra.mxu0 0.0
        %525 = vmatprep.subr.mxu0 0.0
        %526 = vmatpush1.msra.mxu0 0.0
        %527 = vmatprep.subr.mxu0 0.0
        %528 = vmatpush1.msra.mxu0 0.0
        %529 = vmatprep.subr.mxu0 0.0
        %530 = vmatpush1.msra.mxu0 0.0
        %531 = vmatprep.mubr.f32.mxu0 0.0
        %532 = vmatmul.mubr.f32.gmra.mrb[0].mxu0 %v237
        %v533 = vpop.f32.mrb[0].mxu0
        %v534 = vadd.f32 0.0, %v533
        %v535 = vpop.f32.mrb[0].mxu0
        %536 = vmatprep.mubr.f32.mxu0 0.0
        %537 = vmatmul.mubr.f32.gmra.mrb[0].mxu0 %v240
        %v538 = vpop.f32.mrb[0].mxu0
        %v539 = vadd.f32 0.0, %v538
        %v540 = vpop.f32.mrb[0].mxu0
        %541 = vdwg.mxu0
        %542 = vmatprep.subr.mxu0 0.0
        %543 = vmatpush1.msra.mxu0 %v224
        %544 = vmatprep.subr.mxu0 0.0
        %545 = vmatpush1.msra.mxu0 %v225
        %546 = vmatprep.subr.mxu0 0.0
        %547 = vmatpush1.msra.mxu0 0.0
        %548 = vmatprep.subr.mxu0 0.0
        %549 = vmatpush1.msra.mxu0 0.0
        %550 = vmatprep.subr.mxu0 0.0
        %551 = vmatpush1.msra.mxu0 0.0
        %552 = vmatprep.subr.mxu0 0.0
        %553 = vmatpush1.msra.mxu0 0.0
        %554 = vmatprep.subr.mxu0 0.0
        %555 = vmatpush1.msra.mxu0 0.0
        %556 = vmatprep.subr.mxu0 0.0
        %557 = vmatpush1.msra.mxu0 0.0
        %558 = vmatprep.subr.mxu0 0.0
        %559 = vmatpush1.msra.mxu0 0.0
        %560 = vmatprep.subr.mxu0 0.0
        %561 = vmatpush1.msra.mxu0 0.0
        %562 = vmatprep.subr.mxu0 0.0
        %563 = vmatpush1.msra.mxu0 0.0
        %564 = vmatprep.subr.mxu0 0.0
        %565 = vmatpush1.msra.mxu0 0.0
        %566 = vmatprep.subr.mxu0 0.0
        %567 = vmatpush1.msra.mxu0 0.0
        %568 = vmatprep.subr.mxu0 0.0
        %569 = vmatpush1.msra.mxu0 0.0
        %570 = vmatprep.subr.mxu0 0.0
        %571 = vmatpush1.msra.mxu0 0.0
        %572 = vmatprep.subr.mxu0 0.0
        %573 = vmatpush1.msra.mxu0 0.0
        %574 = vmatprep.subr.mxu0 0.0
        %575 = vmatpush1.msra.mxu0 0.0
        %576 = vmatprep.subr.mxu0 0.0
        %577 = vmatpush1.msra.mxu0 0.0
        %578 = vmatprep.subr.mxu0 0.0
        %579 = vmatpush1.msra.mxu0 0.0
        %580 = vmatprep.subr.mxu0 0.0
        %581 = vmatpush1.msra.mxu0 0.0
        %582 = vmatprep.subr.mxu0 0.0
        %583 = vmatpush1.msra.mxu0 0.0
        %584 = vmatprep.subr.mxu0 0.0
        %585 = vmatpush1.msra.mxu0 0.0
        %586 = vmatprep.subr.mxu0 0.0
        %587 = vmatpush1.msra.mxu0 0.0
        %588 = vmatprep.subr.mxu0 0.0
        %589 = vmatpush1.msra.mxu0 0.0
        %590 = vmatprep.subr.mxu0 0.0
        %591 = vmatpush1.msra.mxu0 0.0
        %592 = vmatprep.subr.mxu0 0.0
        %593 = vmatpush1.msra.mxu0 0.0
        %594 = vmatprep.subr.mxu0 0.0
        %595 = vmatpush1.msra.mxu0 0.0
        %596 = vmatprep.subr.mxu0 0.0
        %597 = vmatpush1.msra.mxu0 0.0
        %598 = vmatprep.subr.mxu0 0.0
        %599 = vmatpush1.msra.mxu0 0.0
        %600 = vmatprep.subr.mxu0 0.0
        %601 = vmatpush1.msra.mxu0 0.0
        %602 = vmatprep.subr.mxu0 0.0
        %603 = vmatpush1.msra.mxu0 0.0
        %604 = vmatprep.subr.mxu0 0.0
        %605 = vmatpush1.msra.mxu0 0.0
        %606 = vmatprep.mubr.f32.mxu0 0.0
        %607 = vmatmul.mubr.f32.gmra.mrb[0].mxu0 %v237
        %v608 = vpop.f32.mrb[0].mxu0
        %v609 = vadd.f32 0.0, %v608
        %v610 = vpop.f32.mrb[0].mxu0
        %611 = vmatprep.mubr.f32.mxu0 0.0
        %612 = vmatmul.mubr.f32.gmra.mrb[0].mxu0 %v240
        %v613 = vpop.f32.mrb[0].mxu0
        %v614 = vadd.f32 0.0, %v613
        %v615 = vpop.f32.mrb[0].mxu0
        %616 = vdwg.mxu0
        %617 = vmatprep.subr.mxu0 0.0
        %618 = vmatpush1.msra.mxu0 %v226
        %619 = vmatprep.subr.mxu0 0.0
        %620 = vmatpush1.msra.mxu0 %v227
        %621 = vmatprep.subr.mxu0 0.0
        %622 = vmatpush1.msra.mxu0 0.0
        %623 = vmatprep.subr.mxu0 0.0
        %624 = vmatpush1.msra.mxu0 0.0
        %625 = vmatprep.subr.mxu0 0.0
        %626 = vmatpush1.msra.mxu0 0.0
        %627 = vmatprep.subr.mxu0 0.0
        %628 = vmatpush1.msra.mxu0 0.0
        %629 = vmatprep.subr.mxu0 0.0
        %630 = vmatpush1.msra.mxu0 0.0
        %631 = vmatprep.subr.mxu0 0.0
        %632 = vmatpush1.msra.mxu0 0.0
        %633 = vmatprep.subr.mxu0 0.0
        %634 = vmatpush1.msra.mxu0 0.0
        %635 = vmatprep.subr.mxu0 0.0
        %636 = vmatpush1.msra.mxu0 0.0
        %637 = vmatprep.subr.mxu0 0.0
        %638 = vmatpush1.msra.mxu0 0.0
        %639 = vmatprep.subr.mxu0 0.0
        %640 = vmatpush1.msra.mxu0 0.0
        %641 = vmatprep.subr.mxu0 0.0
        %642 = vmatpush1.msra.mxu0 0.0
        %643 = vmatprep.subr.mxu0 0.0
        %644 = vmatpush1.msra.mxu0 0.0
        %645 = vmatprep.subr.mxu0 0.0
        %646 = vmatpush1.msra.mxu0 0.0
        %647 = vmatprep.subr.mxu0 0.0
        %648 = vmatpush1.msra.mxu0 0.0
        %649 = vmatprep.subr.mxu0 0.0
        %650 = vmatpush1.msra.mxu0 0.0
        %651 = vmatprep.subr.mxu0 0.0
        %652 = vmatpush1.msra.mxu0 0.0
        %653 = vmatprep.subr.mxu0 0.0
        %654 = vmatpush1.msra.mxu0 0.0
        %655 = vmatprep.subr.mxu0 0.0
        %656 = vmatpush1.msra.mxu0 0.0
        %657 = vmatprep.subr.mxu0 0.0
        %658 = vmatpush1.msra.mxu0 0.0
        %659 = vmatprep.subr.mxu0 0.0
        %660 = vmatpush1.msra.mxu0 0.0
        %661 = vmatprep.subr.mxu0 0.0
        %662 = vmatpush1.msra.mxu0 0.0
        %663 = vmatprep.subr.mxu0 0.0
        %664 = vmatpush1.msra.mxu0 0.0
        %665 = vmatprep.subr.mxu0 0.0
        %666 = vmatpush1.msra.mxu0 0.0
        %667 = vmatprep.subr.mxu0 0.0
        %668 = vmatpush1.msra.mxu0 0.0
        %669 = vmatprep.subr.mxu0 0.0
        %670 = vmatpush1.msra.mxu0 0.0
        %671 = vmatprep.subr.mxu0 0.0
        %672 = vmatpush1.msra.mxu0 0.0
        %673 = vmatprep.subr.mxu0 0.0
        %674 = vmatpush1.msra.mxu0 0.0
        %675 = vmatprep.subr.mxu0 0.0
        %676 = vmatpush1.msra.mxu0 0.0
        %677 = vmatprep.subr.mxu0 0.0
        %678 = vmatpush1.msra.mxu0 0.0
        %679 = vmatprep.subr.mxu0 0.0
        %680 = vmatpush1.msra.mxu0 0.0
        %681 = vmatprep.mubr.f32.mxu0 0.0
        %682 = vmatmul.mubr.f32.gmra.mrb[0].mxu0 %v237
        %v683 = vpop.f32.mrb[0].mxu0
        %v684 = vadd.f32 0.0, %v683
        %v685 = vpop.f32.mrb[0].mxu0
        %686 = vmatprep.mubr.f32.mxu0 0.0
        %687 = vmatmul.mubr.f32.gmra.mrb[0].mxu0 %v240
        %v688 = vpop.f32.mrb[0].mxu0
        %v689 = vadd.f32 0.0, %v688
        %v690 = vpop.f32.mrb[0].mxu0
        %691 = vdwg.mxu0
        %692 = vmatprep.subr.mxu0 0.0
        %693 = vmatpush1.msra.mxu0 %v228
        %694 = vmatprep.subr.mxu0 0.0
        %695 = vmatpush1.msra.mxu0 %v229
        %696 = vmatprep.subr.mxu0 0.0
        %697 = vmatpush1.msra.mxu0 0.0
        %698 = vmatprep.subr.mxu0 0.0
        %699 = vmatpush1.msra.mxu0 0.0
        %700 = vmatprep.subr.mxu0 0.0
        %701 = vmatpush1.msra.mxu0 0.0
        %702 = vmatprep.subr.mxu0 0.0
        %703 = vmatpush1.msra.mxu0 0.0
        %704 = vmatprep.subr.mxu0 0.0
        %705 = vmatpush1.msra.mxu0 0.0
        %706 = vmatprep.subr.mxu0 0.0
        %707 = vmatpush1.msra.mxu0 0.0
        %708 = vmatprep.subr.mxu0 0.0
        %709 = vmatpush1.msra.mxu0 0.0
        %710 = vmatprep.subr.mxu0 0.0
        %711 = vmatpush1.msra.mxu0 0.0
        %712 = vmatprep.subr.mxu0 0.0
        %713 = vmatpush1.msra.mxu0 0.0
        %714 = vmatprep.subr.mxu0 0.0
        %715 = vmatpush1.msra.mxu0 0.0
        %716 = vmatprep.subr.mxu0 0.0
        %717 = vmatpush1.msra.mxu0 0.0
        %718 = vmatprep.subr.mxu0 0.0
        %719 = vmatpush1.msra.mxu0 0.0
        %720 = vmatprep.subr.mxu0 0.0
        %721 = vmatpush1.msra.mxu0 0.0
        %722 = vmatprep.subr.mxu0 0.0
        %723 = vmatpush1.msra.mxu0 0.0
        %724 = vmatprep.subr.mxu0 0.0
        %725 = vmatpush1.msra.mxu0 0.0
        %726 = vmatprep.subr.mxu0 0.0
        %727 = vmatpush1.msra.mxu0 0.0
        %728 = vmatprep.subr.mxu0 0.0
        %729 = vmatpush1.msra.mxu0 0.0
        %730 = vmatprep.subr.mxu0 0.0
        %731 = vmatpush1.msra.mxu0 0.0
        %732 = vmatprep.subr.mxu0 0.0
        %733 = vmatpush1.msra.mxu0 0.0
        %734 = vmatprep.subr.mxu0 0.0
        %735 = vmatpush1.msra.mxu0 0.0
        %736 = vmatprep.subr.mxu0 0.0
        %737 = vmatpush1.msra.mxu0 0.0
        %738 = vmatprep.subr.mxu0 0.0
        %739 = vmatpush1.msra.mxu0 0.0
        %740 = vmatprep.subr.mxu0 0.0
        %741 = vmatpush1.msra.mxu0 0.0
        %742 = vmatprep.subr.mxu0 0.0
        %743 = vmatpush1.msra.mxu0 0.0
        %744 = vmatprep.subr.mxu0 0.0
        %745 = vmatpush1.msra.mxu0 0.0
        %746 = vmatprep.subr.mxu0 0.0
        %747 = vmatpush1.msra.mxu0 0.0
        %748 = vmatprep.subr.mxu0 0.0
        %749 = vmatpush1.msra.mxu0 0.0
        %750 = vmatprep.subr.mxu0 0.0
        %751 = vmatpush1.msra.mxu0 0.0
        %752 = vmatprep.subr.mxu0 0.0
        %753 = vmatpush1.msra.mxu0 0.0
        %754 = vmatprep.subr.mxu0 0.0
        %755 = vmatpush1.msra.mxu0 0.0
        %756 = vmatprep.mubr.f32.mxu0 0.0
        %757 = vmatmul.mubr.f32.gmra.mrb[0].mxu0 %v237
        %v758 = vpop.f32.mrb[0].mxu0
        %v759 = vadd.f32 0.0, %v758
        %v760 = vpop.f32.mrb[0].mxu0
        %761 = vmatprep.mubr.f32.mxu0 0.0
        %762 = vmatmul.mubr.f32.gmra.mrb[0].mxu0 %v240
        %v763 = vpop.f32.mrb[0].mxu0
        %v764 = vadd.f32 0.0, %v763
        %v765 = vpop.f32.mrb[0].mxu0
        %766 = vdwg.mxu0
        %767 = vmatprep.subr.mxu0 0.0
        %768 = vmatpush1.msra.mxu0 %v230
        %769 = vmatprep.subr.mxu0 0.0
        %770 = vmatpush1.msra.mxu0 %v231
        %771 = vmatprep.subr.mxu0 0.0
        %772 = vmatpush1.msra.mxu0 0.0
        %773 = vmatprep.subr.mxu0 0.0
        %774 = vmatpush1.msra.mxu0 0.0
        %775 = vmatprep.subr.mxu0 0.0
        %776 = vmatpush1.msra.mxu0 0.0
        %777 = vmatprep.subr.mxu0 0.0
        %778 = vmatpush1.msra.mxu0 0.0
        %779 = vmatprep.subr.mxu0 0.0
        %780 = vmatpush1.msra.mxu0 0.0
        %781 = vmatprep.subr.mxu0 0.0
        %782 = vmatpush1.msra.mxu0 0.0
        %783 = vmatprep.subr.mxu0 0.0
        %784 = vmatpush1.msra.mxu0 0.0
        %785 = vmatprep.subr.mxu0 0.0
        %786 = vmatpush1.msra.mxu0 0.0
        %787 = vmatprep.subr.mxu0 0.0
        %788 = vmatpush1.msra.mxu0 0.0
        %789 = vmatprep.subr.mxu0 0.0
        %790 = vmatpush1.msra.mxu0 0.0
        %791 = vmatprep.subr.mxu0 0.0
        %792 = vmatpush1.msra.mxu0 0.0
        %793 = vmatprep.subr.mxu0 0.0
        %794 = vmatpush1.msra.mxu0 0.0
        %795 = vmatprep.subr.mxu0 0.0
        %796 = vmatpush1.msra.mxu0 0.0
        %797 = vmatprep.subr.mxu0 0.0
        %798 = vmatpush1.msra.mxu0 0.0
        %799 = vmatprep.subr.mxu0 0.0
        %800 = vmatpush1.msra.mxu0 0.0
        %801 = vmatprep.subr.mxu0 0.0
        %802 = vmatpush1.msra.mxu0 0.0
        %803 = vmatprep.subr.mxu0 0.0
        %804 = vmatpush1.msra.mxu0 0.0
        %805 = vmatprep.subr.mxu0 0.0
        %806 = vmatpush1.msra.mxu0 0.0
        %807 = vmatprep.subr.mxu0 0.0
        %808 = vmatpush1.msra.mxu0 0.0
        %809 = vmatprep.subr.mxu0 0.0
        %810 = vmatpush1.msra.mxu0 0.0
        %811 = vmatprep.subr.mxu0 0.0
        %812 = vmatpush1.msra.mxu0 0.0
        %813 = vmatprep.subr.mxu0 0.0
        %814 = vmatpush1.msra.mxu0 0.0
        %815 = vmatprep.subr.mxu0 0.0
        %816 = vmatpush1.msra.mxu0 0.0
        %817 = vmatprep.subr.mxu0 0.0
        %818 = vmatpush1.msra.mxu0 0.0
        %819 = vmatprep.subr.mxu0 0.0
        %820 = vmatpush1.msra.mxu0 0.0
        %821 = vmatprep.subr.mxu0 0.0
        %822 = vmatpush1.msra.mxu0 0.0
        %823 = vmatprep.subr.mxu0 0.0
        %824 = vmatpush1.msra.mxu0 0.0
        %825 = vmatprep.subr.mxu0 0.0
        %826 = vmatpush1.msra.mxu0 0.0
        %827 = vmatprep.subr.mxu0 0.0
        %828 = vmatpush1.msra.mxu0 0.0
        %829 = vmatprep.subr.mxu0 0.0
        %830 = vmatpush1.msra.mxu0 0.0
        %831 = vmatprep.mubr.f32.mxu0 0.0
        %832 = vmatmul.mubr.f32.gmra.mrb[0].mxu0 %v237
        %v833 = vpop.f32.mrb[0].mxu0
        %v834 = vadd.f32 0.0, %v833
        %v835 = vpop.f32.mrb[0].mxu0
        %836 = vmatprep.mubr.f32.mxu0 0.0
        %837 = vmatmul.mubr.f32.gmra.mrb[0].mxu0 %v240
        %v838 = vpop.f32.mrb[0].mxu0
        %v839 = vadd.f32 0.0, %v838
        %v840 = vpop.f32.mrb[0].mxu0
        %841 = vdwg.mxu0
        %s842 = scalar_lea.vmem %s2, 4
        %v843 = vld [vmem:[%s842] sm:$0xf]
        %vm844 = vcmask 31744
        %v846 = vsel %vm844, %v309, 0
        %v849 = vsel %vm844, %v314, 0
        %vm851 = vcmask 1043456
        %v853 = vsel %vm851, %v843, 0
        %855 = vmatprep.subr.mxu0 0.0
        %856 = vmatpush1.msra.mxu0 %v853
        %857 = vmatprep.subr.mxu0 0.0
        %858 = vmatpush1.msra.mxu0 0.0
        %859 = vmatprep.subr.mxu0 0.0
        %860 = vmatpush1.msra.mxu0 0.0
        %861 = vmatprep.subr.mxu0 0.0
        %862 = vmatpush1.msra.mxu0 0.0
        %863 = vmatprep.subr.mxu0 0.0
        %864 = vmatpush1.msra.mxu0 0.0
        %865 = vmatprep.subr.mxu0 0.0
        %866 = vmatpush1.msra.mxu0 0.0
        %867 = vmatprep.subr.mxu0 0.0
        %868 = vmatpush1.msra.mxu0 0.0
        %869 = vmatprep.subr.mxu0 0.0
        %870 = vmatpush1.msra.mxu0 0.0
        %871 = vmatprep.subr.mxu0 0.0
        %872 = vmatpush1.msra.mxu0 0.0
        %873 = vmatprep.subr.mxu0 0.0
        %874 = vmatpush1.msra.mxu0 0.0
        %875 = vmatprep.subr.mxu0 0.0
        %876 = vmatpush1.msra.mxu0 0.0
        %877 = vmatprep.subr.mxu0 0.0
        %878 = vmatpush1.msra.mxu0 0.0
        %879 = vmatprep.subr.mxu0 0.0
        %880 = vmatpush1.msra.mxu0 0.0
        %881 = vmatprep.subr.mxu0 0.0
        %882 = vmatpush1.msra.mxu0 0.0
        %883 = vmatprep.subr.mxu0 0.0
        %884 = vmatpush1.msra.mxu0 0.0
        %885 = vmatprep.subr.mxu0 0.0
        %886 = vmatpush1.msra.mxu0 0.0
        %887 = vmatprep.subr.mxu0 0.0
        %888 = vmatpush1.msra.mxu0 0.0
        %889 = vmatprep.subr.mxu0 0.0
        %890 = vmatpush1.msra.mxu0 0.0
        %891 = vmatprep.subr.mxu0 0.0
        %892 = vmatpush1.msra.mxu0 0.0
        %893 = vmatprep.subr.mxu0 0.0
        %894 = vmatpush1.msra.mxu0 0.0
        %895 = vmatprep.subr.mxu0 0.0
        %896 = vmatpush1.msra.mxu0 0.0
        %897 = vmatprep.subr.mxu0 0.0
        %898 = vmatpush1.msra.mxu0 0.0
        %899 = vmatprep.subr.mxu0 0.0
        %900 = vmatpush1.msra.mxu0 0.0
        %901 = vmatprep.subr.mxu0 0.0
        %902 = vmatpush1.msra.mxu0 0.0
        %903 = vmatprep.subr.mxu0 0.0
        %904 = vmatpush1.msra.mxu0 0.0
        %905 = vmatprep.subr.mxu0 0.0
        %906 = vmatpush1.msra.mxu0 0.0
        %907 = vmatprep.subr.mxu0 0.0
        %908 = vmatpush1.msra.mxu0 0.0
        %909 = vmatprep.subr.mxu0 0.0
        %910 = vmatpush1.msra.mxu0 0.0
        %911 = vmatprep.subr.mxu0 0.0
        %912 = vmatpush1.msra.mxu0 0.0
        %913 = vmatprep.subr.mxu0 0.0
        %914 = vmatpush1.msra.mxu0 0.0
        %915 = vmatprep.subr.mxu0 0.0
        %916 = vmatpush1.msra.mxu0 0.0
        %917 = vmatprep.subr.mxu0 0.0
        %918 = vmatpush1.msra.mxu0 0.0
        %919 = vmatprep.mubr.f32.mxu0 0.0
        %920 = vmatmul.mubr.f32.gmra.mrb[0].mxu0 %v846
        %v921 = vpop.f32.mrb[0].mxu0
        %v922 = vadd.f32 0.0, %v921
        %v923 = vpop.f32.mrb[0].mxu0
        %924 = vmatprep.mubr.f32.mxu0 0.0
        %925 = vmatmul.mubr.f32.gmra.mrb[0].mxu0 %v849
        %v926 = vpop.f32.mrb[0].mxu0
        %v927 = vadd.f32 0.0, %v926
        %v928 = vpop.f32.mrb[0].mxu0
        %929 = vdwg.mxu0
        %v931 = vsel %vm844, %v384, 0
        %v934 = vsel %vm844, %v389, 0
        %936 = vmatprep.subr.mxu0 0.0
        %937 = vmatpush1.msra.mxu0 %v853
        %938 = vmatprep.subr.mxu0 0.0
        %939 = vmatpush1.msra.mxu0 0.0
        %940 = vmatprep.subr.mxu0 0.0
        %941 = vmatpush1.msra.mxu0 0.0
        %942 = vmatprep.subr.mxu0 0.0
        %943 = vmatpush1.msra.mxu0 0.0
        %944 = vmatprep.subr.mxu0 0.0
        %945 = vmatpush1.msra.mxu0 0.0
        %946 = vmatprep.subr.mxu0 0.0
        %947 = vmatpush1.msra.mxu0 0.0
        %948 = vmatprep.subr.mxu0 0.0
        %949 = vmatpush1.msra.mxu0 0.0
        %950 = vmatprep.subr.mxu0 0.0
        %951 = vmatpush1.msra.mxu0 0.0
        %952 = vmatprep.subr.mxu0 0.0
        %953 = vmatpush1.msra.mxu0 0.0
        %954 = vmatprep.subr.mxu0 0.0
        %955 = vmatpush1.msra.mxu0 0.0
        %956 = vmatprep.subr.mxu0 0.0
        %957 = vmatpush1.msra.mxu0 0.0
        %958 = vmatprep.subr.mxu0 0.0
        %959 = vmatpush1.msra.mxu0 0.0
        %960 = vmatprep.subr.mxu0 0.0
        %961 = vmatpush1.msra.mxu0 0.0
        %962 = vmatprep.subr.mxu0 0.0
        %963 = vmatpush1.msra.mxu0 0.0
        %964 = vmatprep.subr.mxu0 0.0
        %965 = vmatpush1.msra.mxu0 0.0
        %966 = vmatprep.subr.mxu0 0.0
        %967 = vmatpush1.msra.mxu0 0.0
        %968 = vmatprep.subr.mxu0 0.0
        %969 = vmatpush1.msra.mxu0 0.0
        %970 = vmatprep.subr.mxu0 0.0
        %971 = vmatpush1.msra.mxu0 0.0
        %972 = vmatprep.subr.mxu0 0.0
        %973 = vmatpush1.msra.mxu0 0.0
        %974 = vmatprep.subr.mxu0 0.0
        %975 = vmatpush1.msra.mxu0 0.0
        %976 = vmatprep.subr.mxu0 0.0
        %977 = vmatpush1.msra.mxu0 0.0
        %978 = vmatprep.subr.mxu0 0.0
        %979 = vmatpush1.msra.mxu0 0.0
        %980 = vmatprep.subr.mxu0 0.0
        %981 = vmatpush1.msra.mxu0 0.0
        %982 = vmatprep.subr.mxu0 0.0
        %983 = vmatpush1.msra.mxu0 0.0
        %984 = vmatprep.subr.mxu0 0.0
        %985 = vmatpush1.msra.mxu0 0.0
        %986 = vmatprep.subr.mxu0 0.0
        %987 = vmatpush1.msra.mxu0 0.0
        %988 = vmatprep.subr.mxu0 0.0
        %989 = vmatpush1.msra.mxu0 0.0
        %990 = vmatprep.subr.mxu0 0.0
        %991 = vmatpush1.msra.mxu0 0.0
        %992 = vmatprep.subr.mxu0 0.0
        %993 = vmatpush1.msra.mxu0 0.0
        %994 = vmatprep.subr.mxu0 0.0
        %995 = vmatpush1.msra.mxu0 0.0
        %996 = vmatprep.subr.mxu0 0.0
        %997 = vmatpush1.msra.mxu0 0.0
        %998 = vmatprep.subr.mxu0 0.0
        %999 = vmatpush1.msra.mxu0 0.0
        %1000 = vmatprep.mubr.f32.mxu0 0.0
        %1001 = vmatmul.mubr.f32.gmra.mrb[0].mxu0 %v931
        %v1002 = vpop.f32.mrb[0].mxu0
        %v1003 = vadd.f32 0.0, %v1002
        %v1004 = vpop.f32.mrb[0].mxu0
        %1005 = vmatprep.mubr.f32.mxu0 0.0
        %1006 = vmatmul.mubr.f32.gmra.mrb[0].mxu0 %v934
        %v1007 = vpop.f32.mrb[0].mxu0
        %v1008 = vadd.f32 0.0, %v1007
        %v1009 = vpop.f32.mrb[0].mxu0
        %1010 = vdwg.mxu0
        %v1012 = vsel %vm844, %v459, 0
        %v1015 = vsel %vm844, %v464, 0
        %1017 = vmatprep.subr.mxu0 0.0
        %1018 = vmatpush1.msra.mxu0 %v853
        %1019 = vmatprep.subr.mxu0 0.0
        %1020 = vmatpush1.msra.mxu0 0.0
        %1021 = vmatprep.subr.mxu0 0.0
        %1022 = vmatpush1.msra.mxu0 0.0
        %1023 = vmatprep.subr.mxu0 0.0
        %1024 = vmatpush1.msra.mxu0 0.0
        %1025 = vmatprep.subr.mxu0 0.0
        %1026 = vmatpush1.msra.mxu0 0.0
        %1027 = vmatprep.subr.mxu0 0.0
        %1028 = vmatpush1.msra.mxu0 0.0
        %1029 = vmatprep.subr.mxu0 0.0
        %1030 = vmatpush1.msra.mxu0 0.0
        %1031 = vmatprep.subr.mxu0 0.0
        %1032 = vmatpush1.msra.mxu0 0.0
        %1033 = vmatprep.subr.mxu0 0.0
        %1034 = vmatpush1.msra.mxu0 0.0
        %1035 = vmatprep.subr.mxu0 0.0
        %1036 = vmatpush1.msra.mxu0 0.0
        %1037 = vmatprep.subr.mxu0 0.0
        %1038 = vmatpush1.msra.mxu0 0.0
        %1039 = vmatprep.subr.mxu0 0.0
        %1040 = vmatpush1.msra.mxu0 0.0
        %1041 = vmatprep.subr.mxu0 0.0
        %1042 = vmatpush1.msra.mxu0 0.0
        %1043 = vmatprep.subr.mxu0 0.0
        %1044 = vmatpush1.msra.mxu0 0.0
        %1045 = vmatprep.subr.mxu0 0.0
        %1046 = vmatpush1.msra.mxu0 0.0
        %1047 = vmatprep.subr.mxu0 0.0
        %1048 = vmatpush1.msra.mxu0 0.0
        %1049 = vmatprep.subr.mxu0 0.0
        %1050 = vmatpush1.msra.mxu0 0.0
        %1051 = vmatprep.subr.mxu0 0.0
        %1052 = vmatpush1.msra.mxu0 0.0
        %1053 = vmatprep.subr.mxu0 0.0
        %1054 = vmatpush1.msra.mxu0 0.0
        %1055 = vmatprep.subr.mxu0 0.0
        %1056 = vmatpush1.msra.mxu0 0.0
        %1057 = vmatprep.subr.mxu0 0.0
        %1058 = vmatpush1.msra.mxu0 0.0
        %1059 = vmatprep.subr.mxu0 0.0
        %1060 = vmatpush1.msra.mxu0 0.0
        %1061 = vmatprep.subr.mxu0 0.0
        %1062 = vmatpush1.msra.mxu0 0.0
        %1063 = vmatprep.subr.mxu0 0.0
        %1064 = vmatpush1.msra.mxu0 0.0
        %1065 = vmatprep.subr.mxu0 0.0
        %1066 = vmatpush1.msra.mxu0 0.0
        %1067 = vmatprep.subr.mxu0 0.0
        %1068 = vmatpush1.msra.mxu0 0.0
        %1069 = vmatprep.subr.mxu0 0.0
        %1070 = vmatpush1.msra.mxu0 0.0
        %1071 = vmatprep.subr.mxu0 0.0
        %1072 = vmatpush1.msra.mxu0 0.0
        %1073 = vmatprep.subr.mxu0 0.0
        %1074 = vmatpush1.msra.mxu0 0.0
        %1075 = vmatprep.subr.mxu0 0.0
        %1076 = vmatpush1.msra.mxu0 0.0
        %1077 = vmatprep.subr.mxu0 0.0
        %1078 = vmatpush1.msra.mxu0 0.0
        %1079 = vmatprep.subr.mxu0 0.0
        %1080 = vmatpush1.msra.mxu0 0.0
        %1081 = vmatprep.mubr.f32.mxu0 0.0
        %1082 = vmatmul.mubr.f32.gmra.mrb[0].mxu0 %v1012
        %v1083 = vpop.f32.mrb[0].mxu0
        %v1084 = vadd.f32 0.0, %v1083
        %v1085 = vpop.f32.mrb[0].mxu0
        %1086 = vmatprep.mubr.f32.mxu0 0.0
        %1087 = vmatmul.mubr.f32.gmra.mrb[0].mxu0 %v1015
        %v1088 = vpop.f32.mrb[0].mxu0
        %v1089 = vadd.f32 0.0, %v1088
        %v1090 = vpop.f32.mrb[0].mxu0
        %1091 = vdwg.mxu0
        %v1093 = vsel %vm844, %v534, 0
        %v1096 = vsel %vm844, %v539, 0
        %1098 = vmatprep.subr.mxu0 0.0
        %1099 = vmatpush1.msra.mxu0 %v853
        %1100 = vmatprep.subr.mxu0 0.0
        %1101 = vmatpush1.msra.mxu0 0.0
        %1102 = vmatprep.subr.mxu0 0.0
        %1103 = vmatpush1.msra.mxu0 0.0
        %1104 = vmatprep.subr.mxu0 0.0
        %1105 = vmatpush1.msra.mxu0 0.0
        %1106 = vmatprep.subr.mxu0 0.0
        %1107 = vmatpush1.msra.mxu0 0.0
        %1108 = vmatprep.subr.mxu0 0.0
        %1109 = vmatpush1.msra.mxu0 0.0
        %1110 = vmatprep.subr.mxu0 0.0
        %1111 = vmatpush1.msra.mxu0 0.0
        %1112 = vmatprep.subr.mxu0 0.0
        %1113 = vmatpush1.msra.mxu0 0.0
        %1114 = vmatprep.subr.mxu0 0.0
        %1115 = vmatpush1.msra.mxu0 0.0
        %1116 = vmatprep.subr.mxu0 0.0
        %1117 = vmatpush1.msra.mxu0 0.0
        %1118 = vmatprep.subr.mxu0 0.0
        %1119 = vmatpush1.msra.mxu0 0.0
        %1120 = vmatprep.subr.mxu0 0.0
        %1121 = vmatpush1.msra.mxu0 0.0
        %1122 = vmatprep.subr.mxu0 0.0
        %1123 = vmatpush1.msra.mxu0 0.0
        %1124 = vmatprep.subr.mxu0 0.0
        %1125 = vmatpush1.msra.mxu0 0.0
        %1126 = vmatprep.subr.mxu0 0.0
        %1127 = vmatpush1.msra.mxu0 0.0
        %1128 = vmatprep.subr.mxu0 0.0
        %1129 = vmatpush1.msra.mxu0 0.0
        %1130 = vmatprep.subr.mxu0 0.0
        %1131 = vmatpush1.msra.mxu0 0.0
        %1132 = vmatprep.subr.mxu0 0.0
        %1133 = vmatpush1.msra.mxu0 0.0
        %1134 = vmatprep.subr.mxu0 0.0
        %1135 = vmatpush1.msra.mxu0 0.0
        %1136 = vmatprep.subr.mxu0 0.0
        %1137 = vmatpush1.msra.mxu0 0.0
        %1138 = vmatprep.subr.mxu0 0.0
        %1139 = vmatpush1.msra.mxu0 0.0
        %1140 = vmatprep.subr.mxu0 0.0
        %1141 = vmatpush1.msra.mxu0 0.0
        %1142 = vmatprep.subr.mxu0 0.0
        %1143 = vmatpush1.msra.mxu0 0.0
        %1144 = vmatprep.subr.mxu0 0.0
        %1145 = vmatpush1.msra.mxu0 0.0
        %1146 = vmatprep.subr.mxu0 0.0
        %1147 = vmatpush1.msra.mxu0 0.0
        %1148 = vmatprep.subr.mxu0 0.0
        %1149 = vmatpush1.msra.mxu0 0.0
        %1150 = vmatprep.subr.mxu0 0.0
        %1151 = vmatpush1.msra.mxu0 0.0
        %1152 = vmatprep.subr.mxu0 0.0
        %1153 = vmatpush1.msra.mxu0 0.0
        %1154 = vmatprep.subr.mxu0 0.0
        %1155 = vmatpush1.msra.mxu0 0.0
        %1156 = vmatprep.subr.mxu0 0.0
        %1157 = vmatpush1.msra.mxu0 0.0
        %1158 = vmatprep.subr.mxu0 0.0
        %1159 = vmatpush1.msra.mxu0 0.0
        %1160 = vmatprep.subr.mxu0 0.0
        %1161 = vmatpush1.msra.mxu0 0.0
        %1162 = vmatprep.mubr.f32.mxu0 0.0
        %1163 = vmatmul.mubr.f32.gmra.mrb[0].mxu0 %v1093
        %v1164 = vpop.f32.mrb[0].mxu0
        %v1165 = vadd.f32 0.0, %v1164
        %v1166 = vpop.f32.mrb[0].mxu0
        %1167 = vmatprep.mubr.f32.mxu0 0.0
        %1168 = vmatmul.mubr.f32.gmra.mrb[0].mxu0 %v1096
        %v1169 = vpop.f32.mrb[0].mxu0
        %v1170 = vadd.f32 0.0, %v1169
        %v1171 = vpop.f32.mrb[0].mxu0
        %1172 = vdwg.mxu0
        %v1174 = vsel %vm844, %v609, 0
        %v1177 = vsel %vm844, %v614, 0
        %1179 = vmatprep.subr.mxu0 0.0
        %1180 = vmatpush1.msra.mxu0 %v853
        %1181 = vmatprep.subr.mxu0 0.0
        %1182 = vmatpush1.msra.mxu0 0.0
        %1183 = vmatprep.subr.mxu0 0.0
        %1184 = vmatpush1.msra.mxu0 0.0
        %1185 = vmatprep.subr.mxu0 0.0
        %1186 = vmatpush1.msra.mxu0 0.0
        %1187 = vmatprep.subr.mxu0 0.0
        %1188 = vmatpush1.msra.mxu0 0.0
        %1189 = vmatprep.subr.mxu0 0.0
        %1190 = vmatpush1.msra.mxu0 0.0
        %1191 = vmatprep.subr.mxu0 0.0
        %1192 = vmatpush1.msra.mxu0 0.0
        %1193 = vmatprep.subr.mxu0 0.0
        %1194 = vmatpush1.msra.mxu0 0.0
        %1195 = vmatprep.subr.mxu0 0.0
        %1196 = vmatpush1.msra.mxu0 0.0
        %1197 = vmatprep.subr.mxu0 0.0
        %1198 = vmatpush1.msra.mxu0 0.0
        %1199 = vmatprep.subr.mxu0 0.0
        %1200 = vmatpush1.msra.mxu0 0.0
        %1201 = vmatprep.subr.mxu0 0.0
        %1202 = vmatpush1.msra.mxu0 0.0
        %1203 = vmatprep.subr.mxu0 0.0
        %1204 = vmatpush1.msra.mxu0 0.0
        %1205 = vmatprep.subr.mxu0 0.0
        %1206 = vmatpush1.msra.mxu0 0.0
        %1207 = vmatprep.subr.mxu0 0.0
        %1208 = vmatpush1.msra.mxu0 0.0
        %1209 = vmatprep.subr.mxu0 0.0
        %1210 = vmatpush1.msra.mxu0 0.0
        %1211 = vmatprep.subr.mxu0 0.0
        %1212 = vmatpush1.msra.mxu0 0.0
        %1213 = vmatprep.subr.mxu0 0.0
        %1214 = vmatpush1.msra.mxu0 0.0
        %1215 = vmatprep.subr.mxu0 0.0
        %1216 = vmatpush1.msra.mxu0 0.0
        %1217 = vmatprep.subr.mxu0 0.0
        %1218 = vmatpush1.msra.mxu0 0.0
        %1219 = vmatprep.subr.mxu0 0.0
        %1220 = vmatpush1.msra.mxu0 0.0
        %1221 = vmatprep.subr.mxu0 0.0
        %1222 = vmatpush1.msra.mxu0 0.0
        %1223 = vmatprep.subr.mxu0 0.0
        %1224 = vmatpush1.msra.mxu0 0.0
        %1225 = vmatprep.subr.mxu0 0.0
        %1226 = vmatpush1.msra.mxu0 0.0
        %1227 = vmatprep.subr.mxu0 0.0
        %1228 = vmatpush1.msra.mxu0 0.0
        %1229 = vmatprep.subr.mxu0 0.0
        %1230 = vmatpush1.msra.mxu0 0.0
        %1231 = vmatprep.subr.mxu0 0.0
        %1232 = vmatpush1.msra.mxu0 0.0
        %1233 = vmatprep.subr.mxu0 0.0
        %1234 = vmatpush1.msra.mxu0 0.0
        %1235 = vmatprep.subr.mxu0 0.0
        %1236 = vmatpush1.msra.mxu0 0.0
        %1237 = vmatprep.subr.mxu0 0.0
        %1238 = vmatpush1.msra.mxu0 0.0
        %1239 = vmatprep.subr.mxu0 0.0
        %1240 = vmatpush1.msra.mxu0 0.0
        %1241 = vmatprep.subr.mxu0 0.0
        %1242 = vmatpush1.msra.mxu0 0.0
        %1243 = vmatprep.mubr.f32.mxu0 0.0
        %1244 = vmatmul.mubr.f32.gmra.mrb[0].mxu0 %v1174
        %v1245 = vpop.f32.mrb[0].mxu0
        %v1246 = vadd.f32 0.0, %v1245
        %v1247 = vpop.f32.mrb[0].mxu0
        %1248 = vmatprep.mubr.f32.mxu0 0.0
        %1249 = vmatmul.mubr.f32.gmra.mrb[0].mxu0 %v1177
        %v1250 = vpop.f32.mrb[0].mxu0
        %v1251 = vadd.f32 0.0, %v1250
        %v1252 = vpop.f32.mrb[0].mxu0
        %1253 = vdwg.mxu0
        %v1255 = vsel %vm844, %v684, 0
        %v1258 = vsel %vm844, %v689, 0
        %1260 = vmatprep.subr.mxu0 0.0
        %1261 = vmatpush1.msra.mxu0 %v853
        %1262 = vmatprep.subr.mxu0 0.0
        %1263 = vmatpush1.msra.mxu0 0.0
        %1264 = vmatprep.subr.mxu0 0.0
        %1265 = vmatpush1.msra.mxu0 0.0
        %1266 = vmatprep.subr.mxu0 0.0
        %1267 = vmatpush1.msra.mxu0 0.0
        %1268 = vmatprep.subr.mxu0 0.0
        %1269 = vmatpush1.msra.mxu0 0.0
        %1270 = vmatprep.subr.mxu0 0.0
        %1271 = vmatpush1.msra.mxu0 0.0
        %1272 = vmatprep.subr.mxu0 0.0
        %1273 = vmatpush1.msra.mxu0 0.0
        %1274 = vmatprep.subr.mxu0 0.0
        %1275 = vmatpush1.msra.mxu0 0.0
        %1276 = vmatprep.subr.mxu0 0.0
        %1277 = vmatpush1.msra.mxu0 0.0
        %1278 = vmatprep.subr.mxu0 0.0
        %1279 = vmatpush1.msra.mxu0 0.0
        %1280 = vmatprep.subr.mxu0 0.0
        %1281 = vmatpush1.msra.mxu0 0.0
        %1282 = vmatprep.subr.mxu0 0.0
        %1283 = vmatpush1.msra.mxu0 0.0
        %1284 = vmatprep.subr.mxu0 0.0
        %1285 = vmatpush1.msra.mxu0 0.0
        %1286 = vmatprep.subr.mxu0 0.0
        %1287 = vmatpush1.msra.mxu0 0.0
        %1288 = vmatprep.subr.mxu0 0.0
        %1289 = vmatpush1.msra.mxu0 0.0
        %1290 = vmatprep.subr.mxu0 0.0
        %1291 = vmatpush1.msra.mxu0 0.0
        %1292 = vmatprep.subr.mxu0 0.0
        %1293 = vmatpush1.msra.mxu0 0.0
        %1294 = vmatprep.subr.mxu0 0.0
        %1295 = vmatpush1.msra.mxu0 0.0
        %1296 = vmatprep.subr.mxu0 0.0
        %1297 = vmatpush1.msra.mxu0 0.0
        %1298 = vmatprep.subr.mxu0 0.0
        %1299 = vmatpush1.msra.mxu0 0.0
        %1300 = vmatprep.subr.mxu0 0.0
        %1301 = vmatpush1.msra.mxu0 0.0
        %1302 = vmatprep.subr.mxu0 0.0
        %1303 = vmatpush1.msra.mxu0 0.0
        %1304 = vmatprep.subr.mxu0 0.0
        %1305 = vmatpush1.msra.mxu0 0.0
        %1306 = vmatprep.subr.mxu0 0.0
        %1307 = vmatpush1.msra.mxu0 0.0
        %1308 = vmatprep.subr.mxu0 0.0
        %1309 = vmatpush1.msra.mxu0 0.0
        %1310 = vmatprep.subr.mxu0 0.0
        %1311 = vmatpush1.msra.mxu0 0.0
        %1312 = vmatprep.subr.mxu0 0.0
        %1313 = vmatpush1.msra.mxu0 0.0
        %1314 = vmatprep.subr.mxu0 0.0
        %1315 = vmatpush1.msra.mxu0 0.0
        %1316 = vmatprep.subr.mxu0 0.0
        %1317 = vmatpush1.msra.mxu0 0.0
        %1318 = vmatprep.subr.mxu0 0.0
        %1319 = vmatpush1.msra.mxu0 0.0
        %1320 = vmatprep.subr.mxu0 0.0
        %1321 = vmatpush1.msra.mxu0 0.0
        %1322 = vmatprep.subr.mxu0 0.0
        %1323 = vmatpush1.msra.mxu0 0.0
        %1324 = vmatprep.mubr.f32.mxu0 0.0
        %1325 = vmatmul.mubr.f32.gmra.mrb[0].mxu0 %v1255
        %v1326 = vpop.f32.mrb[0].mxu0
        %v1327 = vadd.f32 0.0, %v1326
        %v1328 = vpop.f32.mrb[0].mxu0
        %1329 = vmatprep.mubr.f32.mxu0 0.0
        %1330 = vmatmul.mubr.f32.gmra.mrb[0].mxu0 %v1258
        %v1331 = vpop.f32.mrb[0].mxu0
        %v1332 = vadd.f32 0.0, %v1331
        %v1333 = vpop.f32.mrb[0].mxu0
        %1334 = vdwg.mxu0
        %v1336 = vsel %vm844, %v759, 0
        %v1339 = vsel %vm844, %v764, 0
        %1341 = vmatprep.subr.mxu0 0.0
        %1342 = vmatpush1.msra.mxu0 %v853
        %1343 = vmatprep.subr.mxu0 0.0
        %1344 = vmatpush1.msra.mxu0 0.0
        %1345 = vmatprep.subr.mxu0 0.0
        %1346 = vmatpush1.msra.mxu0 0.0
        %1347 = vmatprep.subr.mxu0 0.0
        %1348 = vmatpush1.msra.mxu0 0.0
        %1349 = vmatprep.subr.mxu0 0.0
        %1350 = vmatpush1.msra.mxu0 0.0
        %1351 = vmatprep.subr.mxu0 0.0
        %1352 = vmatpush1.msra.mxu0 0.0
        %1353 = vmatprep.subr.mxu0 0.0
        %1354 = vmatpush1.msra.mxu0 0.0
        %1355 = vmatprep.subr.mxu0 0.0
        %1356 = vmatpush1.msra.mxu0 0.0
        %1357 = vmatprep.subr.mxu0 0.0
        %1358 = vmatpush1.msra.mxu0 0.0
        %1359 = vmatprep.subr.mxu0 0.0
        %1360 = vmatpush1.msra.mxu0 0.0
        %1361 = vmatprep.subr.mxu0 0.0
        %1362 = vmatpush1.msra.mxu0 0.0
        %1363 = vmatprep.subr.mxu0 0.0
        %1364 = vmatpush1.msra.mxu0 0.0
        %1365 = vmatprep.subr.mxu0 0.0
        %1366 = vmatpush1.msra.mxu0 0.0
        %1367 = vmatprep.subr.mxu0 0.0
        %1368 = vmatpush1.msra.mxu0 0.0
        %1369 = vmatprep.subr.mxu0 0.0
        %1370 = vmatpush1.msra.mxu0 0.0
        %1371 = vmatprep.subr.mxu0 0.0
        %1372 = vmatpush1.msra.mxu0 0.0
        %1373 = vmatprep.subr.mxu0 0.0
        %1374 = vmatpush1.msra.mxu0 0.0
        %1375 = vmatprep.subr.mxu0 0.0
        %1376 = vmatpush1.msra.mxu0 0.0
        %1377 = vmatprep.subr.mxu0 0.0
        %1378 = vmatpush1.msra.mxu0 0.0
        %1379 = vmatprep.subr.mxu0 0.0
        %1380 = vmatpush1.msra.mxu0 0.0
        %1381 = vmatprep.subr.mxu0 0.0
        %1382 = vmatpush1.msra.mxu0 0.0
        %1383 = vmatprep.subr.mxu0 0.0
        %1384 = vmatpush1.msra.mxu0 0.0
        %1385 = vmatprep.subr.mxu0 0.0
        %1386 = vmatpush1.msra.mxu0 0.0
        %1387 = vmatprep.subr.mxu0 0.0
        %1388 = vmatpush1.msra.mxu0 0.0
        %1389 = vmatprep.subr.mxu0 0.0
        %1390 = vmatpush1.msra.mxu0 0.0
        %1391 = vmatprep.subr.mxu0 0.0
        %1392 = vmatpush1.msra.mxu0 0.0
        %1393 = vmatprep.subr.mxu0 0.0
        %1394 = vmatpush1.msra.mxu0 0.0
        %1395 = vmatprep.subr.mxu0 0.0
        %1396 = vmatpush1.msra.mxu0 0.0
        %1397 = vmatprep.subr.mxu0 0.0
        %1398 = vmatpush1.msra.mxu0 0.0
        %1399 = vmatprep.subr.mxu0 0.0
        %1400 = vmatpush1.msra.mxu0 0.0
        %1401 = vmatprep.subr.mxu0 0.0
        %1402 = vmatpush1.msra.mxu0 0.0
        %1403 = vmatprep.subr.mxu0 0.0
        %1404 = vmatpush1.msra.mxu0 0.0
        %1405 = vmatprep.mubr.f32.mxu0 0.0
        %1406 = vmatmul.mubr.f32.gmra.mrb[0].mxu0 %v1336
        %v1407 = vpop.f32.mrb[0].mxu0
        %v1408 = vadd.f32 0.0, %v1407
        %v1409 = vpop.f32.mrb[0].mxu0
        %1410 = vmatprep.mubr.f32.mxu0 0.0
        %1411 = vmatmul.mubr.f32.gmra.mrb[0].mxu0 %v1339
        %v1412 = vpop.f32.mrb[0].mxu0
        %v1413 = vadd.f32 0.0, %v1412
        %v1414 = vpop.f32.mrb[0].mxu0
        %1415 = vdwg.mxu0
        %v1417 = vsel %vm844, %v834, 0
        %v1420 = vsel %vm844, %v839, 0
        %1422 = vmatprep.subr.mxu0 0.0
        %1423 = vmatpush1.msra.mxu0 %v853
        %1424 = vmatprep.subr.mxu0 0.0
        %1425 = vmatpush1.msra.mxu0 0.0
        %1426 = vmatprep.subr.mxu0 0.0
        %1427 = vmatpush1.msra.mxu0 0.0
        %1428 = vmatprep.subr.mxu0 0.0
        %1429 = vmatpush1.msra.mxu0 0.0
        %1430 = vmatprep.subr.mxu0 0.0
        %1431 = vmatpush1.msra.mxu0 0.0
        %1432 = vmatprep.subr.mxu0 0.0
        %1433 = vmatpush1.msra.mxu0 0.0
        %1434 = vmatprep.subr.mxu0 0.0
        %1435 = vmatpush1.msra.mxu0 0.0
        %1436 = vmatprep.subr.mxu0 0.0
        %1437 = vmatpush1.msra.mxu0 0.0
        %1438 = vmatprep.subr.mxu0 0.0
        %1439 = vmatpush1.msra.mxu0 0.0
        %1440 = vmatprep.subr.mxu0 0.0
        %1441 = vmatpush1.msra.mxu0 0.0
        %1442 = vmatprep.subr.mxu0 0.0
        %1443 = vmatpush1.msra.mxu0 0.0
        %1444 = vmatprep.subr.mxu0 0.0
        %1445 = vmatpush1.msra.mxu0 0.0
        %1446 = vmatprep.subr.mxu0 0.0
        %1447 = vmatpush1.msra.mxu0 0.0
        %1448 = vmatprep.subr.mxu0 0.0
        %1449 = vmatpush1.msra.mxu0 0.0
        %1450 = vmatprep.subr.mxu0 0.0
        %1451 = vmatpush1.msra.mxu0 0.0
        %1452 = vmatprep.subr.mxu0 0.0
        %1453 = vmatpush1.msra.mxu0 0.0
        %1454 = vmatprep.subr.mxu0 0.0
        %1455 = vmatpush1.msra.mxu0 0.0
        %1456 = vmatprep.subr.mxu0 0.0
        %1457 = vmatpush1.msra.mxu0 0.0
        %1458 = vmatprep.subr.mxu0 0.0
        %1459 = vmatpush1.msra.mxu0 0.0
        %1460 = vmatprep.subr.mxu0 0.0
        %1461 = vmatpush1.msra.mxu0 0.0
        %1462 = vmatprep.subr.mxu0 0.0
        %1463 = vmatpush1.msra.mxu0 0.0
        %1464 = vmatprep.subr.mxu0 0.0
        %1465 = vmatpush1.msra.mxu0 0.0
        %1466 = vmatprep.subr.mxu0 0.0
        %1467 = vmatpush1.msra.mxu0 0.0
        %1468 = vmatprep.subr.mxu0 0.0
        %1469 = vmatpush1.msra.mxu0 0.0
        %1470 = vmatprep.subr.mxu0 0.0
        %1471 = vmatpush1.msra.mxu0 0.0
        %1472 = vmatprep.subr.mxu0 0.0
        %1473 = vmatpush1.msra.mxu0 0.0
        %1474 = vmatprep.subr.mxu0 0.0
        %1475 = vmatpush1.msra.mxu0 0.0
        %1476 = vmatprep.subr.mxu0 0.0
        %1477 = vmatpush1.msra.mxu0 0.0
        %1478 = vmatprep.subr.mxu0 0.0
        %1479 = vmatpush1.msra.mxu0 0.0
        %1480 = vmatprep.subr.mxu0 0.0
        %1481 = vmatpush1.msra.mxu0 0.0
        %1482 = vmatprep.subr.mxu0 0.0
        %1483 = vmatpush1.msra.mxu0 0.0
        %1484 = vmatprep.subr.mxu0 0.0
        %1485 = vmatpush1.msra.mxu0 0.0
        %1486 = vmatprep.mubr.f32.mxu0 0.0
        %1487 = vmatmul.mubr.f32.gmra.mrb[0].mxu0 %v1417
        %v1488 = vpop.f32.mrb[0].mxu0
        %v1489 = vadd.f32 0.0, %v1488
        %v1490 = vpop.f32.mrb[0].mxu0
        %1491 = vmatprep.mubr.f32.mxu0 0.0
        %1492 = vmatmul.mubr.f32.gmra.mrb[0].mxu0 %v1420
        %v1493 = vpop.f32.mrb[0].mxu0
        %v1494 = vadd.f32 0.0, %v1493
        %v1495 = vpop.f32.mrb[0].mxu0
        %1496 = vdwg.mxu0
        %v1498 = vsel %vm844, %v216, 0
        %v1501 = vsel %vm844, %v217, 0
        %v1504 = vsel %vm851, %v232, 0
        %1506 = vmatprep.subr.mxu0 0.0
        %1507 = vmatpush1.msra.mxu0 %v1504
        %1508 = vmatprep.subr.mxu0 0.0
        %1509 = vmatpush1.msra.mxu0 0.0
        %1510 = vmatprep.subr.mxu0 0.0
        %1511 = vmatpush1.msra.mxu0 0.0
        %1512 = vmatprep.subr.mxu0 0.0
        %1513 = vmatpush1.msra.mxu0 0.0
        %1514 = vmatprep.subr.mxu0 0.0
        %1515 = vmatpush1.msra.mxu0 0.0
        %1516 = vmatprep.subr.mxu0 0.0
        %1517 = vmatpush1.msra.mxu0 0.0
        %1518 = vmatprep.subr.mxu0 0.0
        %1519 = vmatpush1.msra.mxu0 0.0
        %1520 = vmatprep.subr.mxu0 0.0
        %1521 = vmatpush1.msra.mxu0 0.0
        %1522 = vmatprep.subr.mxu0 0.0
        %1523 = vmatpush1.msra.mxu0 0.0
        %1524 = vmatprep.subr.mxu0 0.0
        %1525 = vmatpush1.msra.mxu0 0.0
        %1526 = vmatprep.subr.mxu0 0.0
        %1527 = vmatpush1.msra.mxu0 0.0
        %1528 = vmatprep.subr.mxu0 0.0
        %1529 = vmatpush1.msra.mxu0 0.0
        %1530 = vmatprep.subr.mxu0 0.0
        %1531 = vmatpush1.msra.mxu0 0.0
        %1532 = vmatprep.subr.mxu0 0.0
        %1533 = vmatpush1.msra.mxu0 0.0
        %1534 = vmatprep.subr.mxu0 0.0
        %1535 = vmatpush1.msra.mxu0 0.0
        %1536 = vmatprep.subr.mxu0 0.0
        %1537 = vmatpush1.msra.mxu0 0.0
        %1538 = vmatprep.subr.mxu0 0.0
        %1539 = vmatpush1.msra.mxu0 0.0
        %1540 = vmatprep.subr.mxu0 0.0
        %1541 = vmatpush1.msra.mxu0 0.0
        %1542 = vmatprep.subr.mxu0 0.0
        %1543 = vmatpush1.msra.mxu0 0.0
        %1544 = vmatprep.subr.mxu0 0.0
        %1545 = vmatpush1.msra.mxu0 0.0
        %1546 = vmatprep.subr.mxu0 0.0
        %1547 = vmatpush1.msra.mxu0 0.0
        %1548 = vmatprep.subr.mxu0 0.0
        %1549 = vmatpush1.msra.mxu0 0.0
        %1550 = vmatprep.subr.mxu0 0.0
        %1551 = vmatpush1.msra.mxu0 0.0
        %1552 = vmatprep.subr.mxu0 0.0
        %1553 = vmatpush1.msra.mxu0 0.0
        %1554 = vmatprep.subr.mxu0 0.0
        %1555 = vmatpush1.msra.mxu0 0.0
        %1556 = vmatprep.subr.mxu0 0.0
        %1557 = vmatpush1.msra.mxu0 0.0
        %1558 = vmatprep.subr.mxu0 0.0
        %1559 = vmatpush1.msra.mxu0 0.0
        %1560 = vmatprep.subr.mxu0 0.0
        %1561 = vmatpush1.msra.mxu0 0.0
        %1562 = vmatprep.subr.mxu0 0.0
        %1563 = vmatpush1.msra.mxu0 0.0
        %1564 = vmatprep.subr.mxu0 0.0
        %1565 = vmatpush1.msra.mxu0 0.0
        %1566 = vmatprep.subr.mxu0 0.0
        %1567 = vmatpush1.msra.mxu0 0.0
        %1568 = vmatprep.subr.mxu0 0.0
        %1569 = vmatpush1.msra.mxu0 0.0
        %1570 = vmatprep.mubr.f32.mxu0 0.0
        %1571 = vmatmul.mubr.f32.gmra.mrb[0].mxu0 %v1498
        %v1572 = vpop.f32.mrb[0].mxu0
        %v1573 = vadd.f32 %v922, %v1572
        %v1574 = vpop.f32.mrb[0].mxu0
        %1575 = vmatprep.mubr.f32.mxu0 0.0
        %1576 = vmatmul.mubr.f32.gmra.mrb[0].mxu0 %v1501
        %v1577 = vpop.f32.mrb[0].mxu0
        %v1578 = vadd.f32 %v927, %v1577
        %v1579 = vpop.f32.mrb[0].mxu0
        %1580 = vdwg.mxu0
        %v1582 = vsel %vm844, %v218, 0
        %v1585 = vsel %vm844, %v219, 0
        %1587 = vmatprep.subr.mxu0 0.0
        %1588 = vmatpush1.msra.mxu0 %v1504
        %1589 = vmatprep.subr.mxu0 0.0
        %1590 = vmatpush1.msra.mxu0 0.0
        %1591 = vmatprep.subr.mxu0 0.0
        %1592 = vmatpush1.msra.mxu0 0.0
        %1593 = vmatprep.subr.mxu0 0.0
        %1594 = vmatpush1.msra.mxu0 0.0
        %1595 = vmatprep.subr.mxu0 0.0
        %1596 = vmatpush1.msra.mxu0 0.0
        %1597 = vmatprep.subr.mxu0 0.0
        %1598 = vmatpush1.msra.mxu0 0.0
        %1599 = vmatprep.subr.mxu0 0.0
        %1600 = vmatpush1.msra.mxu0 0.0
        %1601 = vmatprep.subr.mxu0 0.0
        %1602 = vmatpush1.msra.mxu0 0.0
        %1603 = vmatprep.subr.mxu0 0.0
        %1604 = vmatpush1.msra.mxu0 0.0
        %1605 = vmatprep.subr.mxu0 0.0
        %1606 = vmatpush1.msra.mxu0 0.0
        %1607 = vmatprep.subr.mxu0 0.0
        %1608 = vmatpush1.msra.mxu0 0.0
        %1609 = vmatprep.subr.mxu0 0.0
        %1610 = vmatpush1.msra.mxu0 0.0
        %1611 = vmatprep.subr.mxu0 0.0
        %1612 = vmatpush1.msra.mxu0 0.0
        %1613 = vmatprep.subr.mxu0 0.0
        %1614 = vmatpush1.msra.mxu0 0.0
        %1615 = vmatprep.subr.mxu0 0.0
        %1616 = vmatpush1.msra.mxu0 0.0
        %1617 = vmatprep.subr.mxu0 0.0
        %1618 = vmatpush1.msra.mxu0 0.0
        %1619 = vmatprep.subr.mxu0 0.0
        %1620 = vmatpush1.msra.mxu0 0.0
        %1621 = vmatprep.subr.mxu0 0.0
        %1622 = vmatpush1.msra.mxu0 0.0
        %1623 = vmatprep.subr.mxu0 0.0
        %1624 = vmatpush1.msra.mxu0 0.0
        %1625 = vmatprep.subr.mxu0 0.0
        %1626 = vmatpush1.msra.mxu0 0.0
        %1627 = vmatprep.subr.mxu0 0.0
        %1628 = vmatpush1.msra.mxu0 0.0
        %1629 = vmatprep.subr.mxu0 0.0
        %1630 = vmatpush1.msra.mxu0 0.0
        %1631 = vmatprep.subr.mxu0 0.0
        %1632 = vmatpush1.msra.mxu0 0.0
        %1633 = vmatprep.subr.mxu0 0.0
        %1634 = vmatpush1.msra.mxu0 0.0
        %1635 = vmatprep.subr.mxu0 0.0
        %1636 = vmatpush1.msra.mxu0 0.0
        %1637 = vmatprep.subr.mxu0 0.0
        %1638 = vmatpush1.msra.mxu0 0.0
        %1639 = vmatprep.subr.mxu0 0.0
        %1640 = vmatpush1.msra.mxu0 0.0
        %1641 = vmatprep.subr.mxu0 0.0
        %1642 = vmatpush1.msra.mxu0 0.0
        %1643 = vmatprep.subr.mxu0 0.0
        %1644 = vmatpush1.msra.mxu0 0.0
        %1645 = vmatprep.subr.mxu0 0.0
        %1646 = vmatpush1.msra.mxu0 0.0
        %1647 = vmatprep.subr.mxu0 0.0
        %1648 = vmatpush1.msra.mxu0 0.0
        %1649 = vmatprep.subr.mxu0 0.0
        %1650 = vmatpush1.msra.mxu0 0.0
        %1651 = vmatprep.mubr.f32.mxu0 0.0
        %1652 = vmatmul.mubr.f32.gmra.mrb[0].mxu0 %v1582
        %v1653 = vpop.f32.mrb[0].mxu0
        %v1654 = vadd.f32 %v1003, %v1653
        %v1655 = vpop.f32.mrb[0].mxu0
        %1656 = vmatprep.mubr.f32.mxu0 0.0
        %1657 = vmatmul.mubr.f32.gmra.mrb[0].mxu0 %v1585
        %v1658 = vpop.f32.mrb[0].mxu0
        %v1659 = vadd.f32 %v1008, %v1658
        %v1660 = vpop.f32.mrb[0].mxu0
        %1661 = vdwg.mxu0
        %v1663 = vsel %vm844, %v220, 0
        %v1666 = vsel %vm844, %v221, 0
        %1668 = vmatprep.subr.mxu0 0.0
        %1669 = vmatpush1.msra.mxu0 %v1504
        %1670 = vmatprep.subr.mxu0 0.0
        %1671 = vmatpush1.msra.mxu0 0.0
        %1672 = vmatprep.subr.mxu0 0.0
        %1673 = vmatpush1.msra.mxu0 0.0
        %1674 = vmatprep.subr.mxu0 0.0
        %1675 = vmatpush1.msra.mxu0 0.0
        %1676 = vmatprep.subr.mxu0 0.0
        %1677 = vmatpush1.msra.mxu0 0.0
        %1678 = vmatprep.subr.mxu0 0.0
        %1679 = vmatpush1.msra.mxu0 0.0
        %1680 = vmatprep.subr.mxu0 0.0
        %1681 = vmatpush1.msra.mxu0 0.0
        %1682 = vmatprep.subr.mxu0 0.0
        %1683 = vmatpush1.msra.mxu0 0.0
        %1684 = vmatprep.subr.mxu0 0.0
        %1685 = vmatpush1.msra.mxu0 0.0
        %1686 = vmatprep.subr.mxu0 0.0
        %1687 = vmatpush1.msra.mxu0 0.0
        %1688 = vmatprep.subr.mxu0 0.0
        %1689 = vmatpush1.msra.mxu0 0.0
        %1690 = vmatprep.subr.mxu0 0.0
        %1691 = vmatpush1.msra.mxu0 0.0
        %1692 = vmatprep.subr.mxu0 0.0
        %1693 = vmatpush1.msra.mxu0 0.0
        %1694 = vmatprep.subr.mxu0 0.0
        %1695 = vmatpush1.msra.mxu0 0.0
        %1696 = vmatprep.subr.mxu0 0.0
        %1697 = vmatpush1.msra.mxu0 0.0
        %1698 = vmatprep.subr.mxu0 0.0
        %1699 = vmatpush1.msra.mxu0 0.0
        %1700 = vmatprep.subr.mxu0 0.0
        %1701 = vmatpush1.msra.mxu0 0.0
        %1702 = vmatprep.subr.mxu0 0.0
        %1703 = vmatpush1.msra.mxu0 0.0
        %1704 = vmatprep.subr.mxu0 0.0
        %1705 = vmatpush1.msra.mxu0 0.0
        %1706 = vmatprep.subr.mxu0 0.0
        %1707 = vmatpush1.msra.mxu0 0.0
        %1708 = vmatprep.subr.mxu0 0.0
        %1709 = vmatpush1.msra.mxu0 0.0
        %1710 = vmatprep.subr.mxu0 0.0
        %1711 = vmatpush1.msra.mxu0 0.0
        %1712 = vmatprep.subr.mxu0 0.0
        %1713 = vmatpush1.msra.mxu0 0.0
        %1714 = vmatprep.subr.mxu0 0.0
        %1715 = vmatpush1.msra.mxu0 0.0
        %1716 = vmatprep.subr.mxu0 0.0
        %1717 = vmatpush1.msra.mxu0 0.0
        %1718 = vmatprep.subr.mxu0 0.0
        %1719 = vmatpush1.msra.mxu0 0.0
        %1720 = vmatprep.subr.mxu0 0.0
        %1721 = vmatpush1.msra.mxu0 0.0
        %1722 = vmatprep.subr.mxu0 0.0
        %1723 = vmatpush1.msra.mxu0 0.0
        %1724 = vmatprep.subr.mxu0 0.0
        %1725 = vmatpush1.msra.mxu0 0.0
        %1726 = vmatprep.subr.mxu0 0.0
        %1727 = vmatpush1.msra.mxu0 0.0
        %1728 = vmatprep.subr.mxu0 0.0
        %1729 = vmatpush1.msra.mxu0 0.0
        %1730 = vmatprep.subr.mxu0 0.0
        %1731 = vmatpush1.msra.mxu0 0.0
        %1732 = vmatprep.mubr.f32.mxu0 0.0
        %1733 = vmatmul.mubr.f32.gmra.mrb[0].mxu0 %v1663
        %v1734 = vpop.f32.mrb[0].mxu0
        %v1735 = vadd.f32 %v1084, %v1734
        %v1736 = vpop.f32.mrb[0].mxu0
        %1737 = vmatprep.mubr.f32.mxu0 0.0
        %1738 = vmatmul.mubr.f32.gmra.mrb[0].mxu0 %v1666
        %v1739 = vpop.f32.mrb[0].mxu0
        %v1740 = vadd.f32 %v1089, %v1739
        %v1741 = vpop.f32.mrb[0].mxu0
        %1742 = vdwg.mxu0
        %v1744 = vsel %vm844, %v222, 0
        %v1747 = vsel %vm844, %v223, 0
        %1749 = vmatprep.subr.mxu0 0.0
        %1750 = vmatpush1.msra.mxu0 %v1504
        %1751 = vmatprep.subr.mxu0 0.0
        %1752 = vmatpush1.msra.mxu0 0.0
        %1753 = vmatprep.subr.mxu0 0.0
        %1754 = vmatpush1.msra.mxu0 0.0
        %1755 = vmatprep.subr.mxu0 0.0
        %1756 = vmatpush1.msra.mxu0 0.0
        %1757 = vmatprep.subr.mxu0 0.0
        %1758 = vmatpush1.msra.mxu0 0.0
        %1759 = vmatprep.subr.mxu0 0.0
        %1760 = vmatpush1.msra.mxu0 0.0
        %1761 = vmatprep.subr.mxu0 0.0
        %1762 = vmatpush1.msra.mxu0 0.0
        %1763 = vmatprep.subr.mxu0 0.0
        %1764 = vmatpush1.msra.mxu0 0.0
        %1765 = vmatprep.subr.mxu0 0.0
        %1766 = vmatpush1.msra.mxu0 0.0
        %1767 = vmatprep.subr.mxu0 0.0
        %1768 = vmatpush1.msra.mxu0 0.0
        %1769 = vmatprep.subr.mxu0 0.0
        %1770 = vmatpush1.msra.mxu0 0.0
        %1771 = vmatprep.subr.mxu0 0.0
        %1772 = vmatpush1.msra.mxu0 0.0
        %1773 = vmatprep.subr.mxu0 0.0
        %1774 = vmatpush1.msra.mxu0 0.0
        %1775 = vmatprep.subr.mxu0 0.0
        %1776 = vmatpush1.msra.mxu0 0.0
        %1777 = vmatprep.subr.mxu0 0.0
        %1778 = vmatpush1.msra.mxu0 0.0
        %1779 = vmatprep.subr.mxu0 0.0
        %1780 = vmatpush1.msra.mxu0 0.0
        %1781 = vmatprep.subr.mxu0 0.0
        %1782 = vmatpush1.msra.mxu0 0.0
        %1783 = vmatprep.subr.mxu0 0.0
        %1784 = vmatpush1.msra.mxu0 0.0
        %1785 = vmatprep.subr.mxu0 0.0
        %1786 = vmatpush1.msra.mxu0 0.0
        %1787 = vmatprep.subr.mxu0 0.0
        %1788 = vmatpush1.msra.mxu0 0.0
        %1789 = vmatprep.subr.mxu0 0.0
        %1790 = vmatpush1.msra.mxu0 0.0
        %1791 = vmatprep.subr.mxu0 0.0
        %1792 = vmatpush1.msra.mxu0 0.0
        %1793 = vmatprep.subr.mxu0 0.0
        %1794 = vmatpush1.msra.mxu0 0.0
        %1795 = vmatprep.subr.mxu0 0.0
        %1796 = vmatpush1.msra.mxu0 0.0
        %1797 = vmatprep.subr.mxu0 0.0
        %1798 = vmatpush1.msra.mxu0 0.0
        %1799 = vmatprep.subr.mxu0 0.0
        %1800 = vmatpush1.msra.mxu0 0.0
        %1801 = vmatprep.subr.mxu0 0.0
        %1802 = vmatpush1.msra.mxu0 0.0
        %1803 = vmatprep.subr.mxu0 0.0
        %1804 = vmatpush1.msra.mxu0 0.0
        %1805 = vmatprep.subr.mxu0 0.0
        %1806 = vmatpush1.msra.mxu0 0.0
        %1807 = vmatprep.subr.mxu0 0.0
        %1808 = vmatpush1.msra.mxu0 0.0
        %1809 = vmatprep.subr.mxu0 0.0
        %1810 = vmatpush1.msra.mxu0 0.0
        %1811 = vmatprep.subr.mxu0 0.0
        %1812 = vmatpush1.msra.mxu0 0.0
        %1813 = vmatprep.mubr.f32.mxu0 0.0
        %1814 = vmatmul.mubr.f32.gmra.mrb[0].mxu0 %v1744
        %v1815 = vpop.f32.mrb[0].mxu0
        %v1816 = vadd.f32 %v1165, %v1815
        %v1817 = vpop.f32.mrb[0].mxu0
        %1818 = vmatprep.mubr.f32.mxu0 0.0
        %1819 = vmatmul.mubr.f32.gmra.mrb[0].mxu0 %v1747
        %v1820 = vpop.f32.mrb[0].mxu0
        %v1821 = vadd.f32 %v1170, %v1820
        %v1822 = vpop.f32.mrb[0].mxu0
        %1823 = vdwg.mxu0
        %v1825 = vsel %vm844, %v224, 0
        %v1828 = vsel %vm844, %v225, 0
        %1830 = vmatprep.subr.mxu0 0.0
        %1831 = vmatpush1.msra.mxu0 %v1504
        %1832 = vmatprep.subr.mxu0 0.0
        %1833 = vmatpush1.msra.mxu0 0.0
        %1834 = vmatprep.subr.mxu0 0.0
        %1835 = vmatpush1.msra.mxu0 0.0
        %1836 = vmatprep.subr.mxu0 0.0
        %1837 = vmatpush1.msra.mxu0 0.0
        %1838 = vmatprep.subr.mxu0 0.0
        %1839 = vmatpush1.msra.mxu0 0.0
        %1840 = vmatprep.subr.mxu0 0.0
        %1841 = vmatpush1.msra.mxu0 0.0
        %1842 = vmatprep.subr.mxu0 0.0
        %1843 = vmatpush1.msra.mxu0 0.0
        %1844 = vmatprep.subr.mxu0 0.0
        %1845 = vmatpush1.msra.mxu0 0.0
        %1846 = vmatprep.subr.mxu0 0.0
        %1847 = vmatpush1.msra.mxu0 0.0
        %1848 = vmatprep.subr.mxu0 0.0
        %1849 = vmatpush1.msra.mxu0 0.0
        %1850 = vmatprep.subr.mxu0 0.0
        %1851 = vmatpush1.msra.mxu0 0.0
        %1852 = vmatprep.subr.mxu0 0.0
        %1853 = vmatpush1.msra.mxu0 0.0
        %1854 = vmatprep.subr.mxu0 0.0
        %1855 = vmatpush1.msra.mxu0 0.0
        %1856 = vmatprep.subr.mxu0 0.0
        %1857 = vmatpush1.msra.mxu0 0.0
        %1858 = vmatprep.subr.mxu0 0.0
        %1859 = vmatpush1.msra.mxu0 0.0
        %1860 = vmatprep.subr.mxu0 0.0
        %1861 = vmatpush1.msra.mxu0 0.0
        %1862 = vmatprep.subr.mxu0 0.0
        %1863 = vmatpush1.msra.mxu0 0.0
        %1864 = vmatprep.subr.mxu0 0.0
        %1865 = vmatpush1.msra.mxu0 0.0
        %1866 = vmatprep.subr.mxu0 0.0
        %1867 = vmatpush1.msra.mxu0 0.0
        %1868 = vmatprep.subr.mxu0 0.0
        %1869 = vmatpush1.msra.mxu0 0.0
        %1870 = vmatprep.subr.mxu0 0.0
        %1871 = vmatpush1.msra.mxu0 0.0
        %1872 = vmatprep.subr.mxu0 0.0
        %1873 = vmatpush1.msra.mxu0 0.0
        %1874 = vmatprep.subr.mxu0 0.0
        %1875 = vmatpush1.msra.mxu0 0.0
        %1876 = vmatprep.subr.mxu0 0.0
        %1877 = vmatpush1.msra.mxu0 0.0
        %1878 = vmatprep.subr.mxu0 0.0
        %1879 = vmatpush1.msra.mxu0 0.0
        %1880 = vmatprep.subr.mxu0 0.0
        %1881 = vmatpush1.msra.mxu0 0.0
        %1882 = vmatprep.subr.mxu0 0.0
        %1883 = vmatpush1.msra.mxu0 0.0
        %1884 = vmatprep.subr.mxu0 0.0
        %1885 = vmatpush1.msra.mxu0 0.0
        %1886 = vmatprep.subr.mxu0 0.0
        %1887 = vmatpush1.msra.mxu0 0.0
        %1888 = vmatprep.subr.mxu0 0.0
        %1889 = vmatpush1.msra.mxu0 0.0
        %1890 = vmatprep.subr.mxu0 0.0
        %1891 = vmatpush1.msra.mxu0 0.0
        %1892 = vmatprep.subr.mxu0 0.0
        %1893 = vmatpush1.msra.mxu0 0.0
        %1894 = vmatprep.mubr.f32.mxu0 0.0
        %1895 = vmatmul.mubr.f32.gmra.mrb[0].mxu0 %v1825
        %v1896 = vpop.f32.mrb[0].mxu0
        %v1897 = vadd.f32 %v1246, %v1896
        %v1898 = vpop.f32.mrb[0].mxu0
        %1899 = vmatprep.mubr.f32.mxu0 0.0
        %1900 = vmatmul.mubr.f32.gmra.mrb[0].mxu0 %v1828
        %v1901 = vpop.f32.mrb[0].mxu0
        %v1902 = vadd.f32 %v1251, %v1901
        %v1903 = vpop.f32.mrb[0].mxu0
        %1904 = vdwg.mxu0
        %v1906 = vsel %vm844, %v226, 0
        %v1909 = vsel %vm844, %v227, 0
        %1911 = vmatprep.subr.mxu0 0.0
        %1912 = vmatpush1.msra.mxu0 %v1504
        %1913 = vmatprep.subr.mxu0 0.0
        %1914 = vmatpush1.msra.mxu0 0.0
        %1915 = vmatprep.subr.mxu0 0.0
        %1916 = vmatpush1.msra.mxu0 0.0
        %1917 = vmatprep.subr.mxu0 0.0
        %1918 = vmatpush1.msra.mxu0 0.0
        %1919 = vmatprep.subr.mxu0 0.0
        %1920 = vmatpush1.msra.mxu0 0.0
        %1921 = vmatprep.subr.mxu0 0.0
        %1922 = vmatpush1.msra.mxu0 0.0
        %1923 = vmatprep.subr.mxu0 0.0
        %1924 = vmatpush1.msra.mxu0 0.0
        %1925 = vmatprep.subr.mxu0 0.0
        %1926 = vmatpush1.msra.mxu0 0.0
        %1927 = vmatprep.subr.mxu0 0.0
        %1928 = vmatpush1.msra.mxu0 0.0
        %1929 = vmatprep.subr.mxu0 0.0
        %1930 = vmatpush1.msra.mxu0 0.0
        %1931 = vmatprep.subr.mxu0 0.0
        %1932 = vmatpush1.msra.mxu0 0.0
        %1933 = vmatprep.subr.mxu0 0.0
        %1934 = vmatpush1.msra.mxu0 0.0
        %1935 = vmatprep.subr.mxu0 0.0
        %1936 = vmatpush1.msra.mxu0 0.0
        %1937 = vmatprep.subr.mxu0 0.0
        %1938 = vmatpush1.msra.mxu0 0.0
        %1939 = vmatprep.subr.mxu0 0.0
        %1940 = vmatpush1.msra.mxu0 0.0
        %1941 = vmatprep.subr.mxu0 0.0
        %1942 = vmatpush1.msra.mxu0 0.0
        %1943 = vmatprep.subr.mxu0 0.0
        %1944 = vmatpush1.msra.mxu0 0.0
        %1945 = vmatprep.subr.mxu0 0.0
        %1946 = vmatpush1.msra.mxu0 0.0
        %1947 = vmatprep.subr.mxu0 0.0
        %1948 = vmatpush1.msra.mxu0 0.0
        %1949 = vmatprep.subr.mxu0 0.0
        %1950 = vmatpush1.msra.mxu0 0.0
        %1951 = vmatprep.subr.mxu0 0.0
        %1952 = vmatpush1.msra.mxu0 0.0
        %1953 = vmatprep.subr.mxu0 0.0
        %1954 = vmatpush1.msra.mxu0 0.0
        %1955 = vmatprep.subr.mxu0 0.0
        %1956 = vmatpush1.msra.mxu0 0.0
        %1957 = vmatprep.subr.mxu0 0.0
        %1958 = vmatpush1.msra.mxu0 0.0
        %1959 = vmatprep.subr.mxu0 0.0
        %1960 = vmatpush1.msra.mxu0 0.0
        %1961 = vmatprep.subr.mxu0 0.0
        %1962 = vmatpush1.msra.mxu0 0.0
        %1963 = vmatprep.subr.mxu0 0.0
        %1964 = vmatpush1.msra.mxu0 0.0
        %1965 = vmatprep.subr.mxu0 0.0
        %1966 = vmatpush1.msra.mxu0 0.0
        %1967 = vmatprep.subr.mxu0 0.0
        %1968 = vmatpush1.msra.mxu0 0.0
        %1969 = vmatprep.subr.mxu0 0.0
        %1970 = vmatpush1.msra.mxu0 0.0
        %1971 = vmatprep.subr.mxu0 0.0
        %1972 = vmatpush1.msra.mxu0 0.0
        %1973 = vmatprep.subr.mxu0 0.0
        %1974 = vmatpush1.msra.mxu0 0.0
        %1975 = vmatprep.mubr.f32.mxu0 0.0
        %1976 = vmatmul.mubr.f32.gmra.mrb[0].mxu0 %v1906
        %v1977 = vpop.f32.mrb[0].mxu0
        %v1978 = vadd.f32 %v1327, %v1977
        %v1979 = vpop.f32.mrb[0].mxu0
        %1980 = vmatprep.mubr.f32.mxu0 0.0
        %1981 = vmatmul.mubr.f32.gmra.mrb[0].mxu0 %v1909
        %v1982 = vpop.f32.mrb[0].mxu0
        %v1983 = vadd.f32 %v1332, %v1982
        %v1984 = vpop.f32.mrb[0].mxu0
        %1985 = vdwg.mxu0
        %v1987 = vsel %vm844, %v228, 0
        %v1990 = vsel %vm844, %v229, 0
        %1992 = vmatprep.subr.mxu0 0.0
        %1993 = vmatpush1.msra.mxu0 %v1504
        %1994 = vmatprep.subr.mxu0 0.0
        %1995 = vmatpush1.msra.mxu0 0.0
        %1996 = vmatprep.subr.mxu0 0.0
        %1997 = vmatpush1.msra.mxu0 0.0
        %1998 = vmatprep.subr.mxu0 0.0
        %1999 = vmatpush1.msra.mxu0 0.0
        %2000 = vmatprep.subr.mxu0 0.0
        %2001 = vmatpush1.msra.mxu0 0.0
        %2002 = vmatprep.subr.mxu0 0.0
        %2003 = vmatpush1.msra.mxu0 0.0
        %2004 = vmatprep.subr.mxu0 0.0
        %2005 = vmatpush1.msra.mxu0 0.0
        %2006 = vmatprep.subr.mxu0 0.0
        %2007 = vmatpush1.msra.mxu0 0.0
        %2008 = vmatprep.subr.mxu0 0.0
        %2009 = vmatpush1.msra.mxu0 0.0
        %2010 = vmatprep.subr.mxu0 0.0
        %2011 = vmatpush1.msra.mxu0 0.0
        %2012 = vmatprep.subr.mxu0 0.0
        %2013 = vmatpush1.msra.mxu0 0.0
        %2014 = vmatprep.subr.mxu0 0.0
        %2015 = vmatpush1.msra.mxu0 0.0
        %2016 = vmatprep.subr.mxu0 0.0
        %2017 = vmatpush1.msra.mxu0 0.0
        %2018 = vmatprep.subr.mxu0 0.0
        %2019 = vmatpush1.msra.mxu0 0.0
        %2020 = vmatprep.subr.mxu0 0.0
        %2021 = vmatpush1.msra.mxu0 0.0
        %2022 = vmatprep.subr.mxu0 0.0
        %2023 = vmatpush1.msra.mxu0 0.0
        %2024 = vmatprep.subr.mxu0 0.0
        %2025 = vmatpush1.msra.mxu0 0.0
        %2026 = vmatprep.subr.mxu0 0.0
        %2027 = vmatpush1.msra.mxu0 0.0
        %2028 = vmatprep.subr.mxu0 0.0
        %2029 = vmatpush1.msra.mxu0 0.0
        %2030 = vmatprep.subr.mxu0 0.0
        %2031 = vmatpush1.msra.mxu0 0.0
        %2032 = vmatprep.subr.mxu0 0.0
        %2033 = vmatpush1.msra.mxu0 0.0
        %2034 = vmatprep.subr.mxu0 0.0
        %2035 = vmatpush1.msra.mxu0 0.0
        %2036 = vmatprep.subr.mxu0 0.0
        %2037 = vmatpush1.msra.mxu0 0.0
        %2038 = vmatprep.subr.mxu0 0.0
        %2039 = vmatpush1.msra.mxu0 0.0
        %2040 = vmatprep.subr.mxu0 0.0
        %2041 = vmatpush1.msra.mxu0 0.0
        %2042 = vmatprep.subr.mxu0 0.0
        %2043 = vmatpush1.msra.mxu0 0.0
        %2044 = vmatprep.subr.mxu0 0.0
        %2045 = vmatpush1.msra.mxu0 0.0
        %2046 = vmatprep.subr.mxu0 0.0
        %2047 = vmatpush1.msra.mxu0 0.0
        %2048 = vmatprep.subr.mxu0 0.0
        %2049 = vmatpush1.msra.mxu0 0.0
        %2050 = vmatprep.subr.mxu0 0.0
        %2051 = vmatpush1.msra.mxu0 0.0
        %2052 = vmatprep.subr.mxu0 0.0
        %2053 = vmatpush1.msra.mxu0 0.0
        %2054 = vmatprep.subr.mxu0 0.0
        %2055 = vmatpush1.msra.mxu0 0.0
        %2056 = vmatprep.mubr.f32.mxu0 0.0
        %2057 = vmatmul.mubr.f32.gmra.mrb[0].mxu0 %v1987
        %v2058 = vpop.f32.mrb[0].mxu0
        %v2059 = vadd.f32 %v1408, %v2058
        %v2060 = vpop.f32.mrb[0].mxu0
        %2061 = vmatprep.mubr.f32.mxu0 0.0
        %2062 = vmatmul.mubr.f32.gmra.mrb[0].mxu0 %v1990
        %v2063 = vpop.f32.mrb[0].mxu0
        %v2064 = vadd.f32 %v1413, %v2063
        %v2065 = vpop.f32.mrb[0].mxu0
        %2066 = vdwg.mxu0
        %v2068 = vsel %vm844, %v230, 0
        %v2071 = vsel %vm844, %v231, 0
        %2073 = vmatprep.subr.mxu0 0.0
        %2074 = vmatpush1.msra.mxu0 %v1504
        %2075 = vmatprep.subr.mxu0 0.0
        %2076 = vmatpush1.msra.mxu0 0.0
        %2077 = vmatprep.subr.mxu0 0.0
        %2078 = vmatpush1.msra.mxu0 0.0
        %2079 = vmatprep.subr.mxu0 0.0
        %2080 = vmatpush1.msra.mxu0 0.0
        %2081 = vmatprep.subr.mxu0 0.0
        %2082 = vmatpush1.msra.mxu0 0.0
        %2083 = vmatprep.subr.mxu0 0.0
        %2084 = vmatpush1.msra.mxu0 0.0
        %2085 = vmatprep.subr.mxu0 0.0
        %2086 = vmatpush1.msra.mxu0 0.0
        %2087 = vmatprep.subr.mxu0 0.0
        %2088 = vmatpush1.msra.mxu0 0.0
        %2089 = vmatprep.subr.mxu0 0.0
        %2090 = vmatpush1.msra.mxu0 0.0
        %2091 = vmatprep.subr.mxu0 0.0
        %2092 = vmatpush1.msra.mxu0 0.0
        %2093 = vmatprep.subr.mxu0 0.0
        %2094 = vmatpush1.msra.mxu0 0.0
        %2095 = vmatprep.subr.mxu0 0.0
        %2096 = vmatpush1.msra.mxu0 0.0
        %2097 = vmatprep.subr.mxu0 0.0
        %2098 = vmatpush1.msra.mxu0 0.0
        %2099 = vmatprep.subr.mxu0 0.0
        %2100 = vmatpush1.msra.mxu0 0.0
        %2101 = vmatprep.subr.mxu0 0.0
        %2102 = vmatpush1.msra.mxu0 0.0
        %2103 = vmatprep.subr.mxu0 0.0
        %2104 = vmatpush1.msra.mxu0 0.0
        %2105 = vmatprep.subr.mxu0 0.0
        %2106 = vmatpush1.msra.mxu0 0.0
        %2107 = vmatprep.subr.mxu0 0.0
        %2108 = vmatpush1.msra.mxu0 0.0
        %2109 = vmatprep.subr.mxu0 0.0
        %2110 = vmatpush1.msra.mxu0 0.0
        %2111 = vmatprep.subr.mxu0 0.0
        %2112 = vmatpush1.msra.mxu0 0.0
        %2113 = vmatprep.subr.mxu0 0.0
        %2114 = vmatpush1.msra.mxu0 0.0
        %2115 = vmatprep.subr.mxu0 0.0
        %2116 = vmatpush1.msra.mxu0 0.0
        %2117 = vmatprep.subr.mxu0 0.0
        %2118 = vmatpush1.msra.mxu0 0.0
        %2119 = vmatprep.subr.mxu0 0.0
        %2120 = vmatpush1.msra.mxu0 0.0
        %2121 = vmatprep.subr.mxu0 0.0
        %2122 = vmatpush1.msra.mxu0 0.0
        %2123 = vmatprep.subr.mxu0 0.0
        %2124 = vmatpush1.msra.mxu0 0.0
        %2125 = vmatprep.subr.mxu0 0.0
        %2126 = vmatpush1.msra.mxu0 0.0
        %2127 = vmatprep.subr.mxu0 0.0
        %2128 = vmatpush1.msra.mxu0 0.0
        %2129 = vmatprep.subr.mxu0 0.0
        %2130 = vmatpush1.msra.mxu0 0.0
        %2131 = vmatprep.subr.mxu0 0.0
        %2132 = vmatpush1.msra.mxu0 0.0
        %2133 = vmatprep.subr.mxu0 0.0
        %2134 = vmatpush1.msra.mxu0 0.0
        %2135 = vmatprep.subr.mxu0 0.0
        %2136 = vmatpush1.msra.mxu0 0.0
        %2137 = vmatprep.mubr.f32.mxu0 0.0
        %2138 = vmatmul.mubr.f32.gmra.mrb[0].mxu0 %v2068
        %v2139 = vpop.f32.mrb[0].mxu0
        %v2140 = vadd.f32 %v1489, %v2139
        %v2141 = vpop.f32.mrb[0].mxu0
        %2142 = vmatprep.mubr.f32.mxu0 0.0
        %2143 = vmatmul.mubr.f32.gmra.mrb[0].mxu0 %v2071
        %v2144 = vpop.f32.mrb[0].mxu0
        %v2145 = vadd.f32 %v1494, %v2144
        %v2146 = vpop.f32.mrb[0].mxu0
        %2147 = vdwg.mxu0
        %2148 = vmatprep.subr.mxu0 0.0
        %2149 = vmatpush1.msra.mxu0 %v309
        %2150 = vmatprep.subr.mxu0 0.0
        %2151 = vmatpush1.msra.mxu0 %v314
        %2152 = vmatprep.subr.mxu0 0.0
        %2153 = vmatpush1.msra.mxu0 0.0
        %2154 = vmatprep.subr.mxu0 0.0
        %2155 = vmatpush1.msra.mxu0 0.0
        %2156 = vmatprep.subr.mxu0 0.0
        %2157 = vmatpush1.msra.mxu0 0.0
        %2158 = vmatprep.subr.mxu0 0.0
        %2159 = vmatpush1.msra.mxu0 0.0
        %2160 = vmatprep.subr.mxu0 0.0
        %2161 = vmatpush1.msra.mxu0 0.0
        %2162 = vmatprep.subr.mxu0 0.0
        %2163 = vmatpush1.msra.mxu0 0.0
        %2164 = vmatprep.subr.mxu0 0.0
        %2165 = vmatpush1.msra.mxu0 0.0
        %2166 = vmatprep.subr.mxu0 0.0
        %2167 = vmatpush1.msra.mxu0 0.0
        %2168 = vmatprep.subr.mxu0 0.0
        %2169 = vmatpush1.msra.mxu0 0.0
        %2170 = vmatprep.subr.mxu0 0.0
        %2171 = vmatpush1.msra.mxu0 0.0
        %2172 = vmatprep.subr.mxu0 0.0
        %2173 = vmatpush1.msra.mxu0 0.0
        %2174 = vmatprep.subr.mxu0 0.0
        %2175 = vmatpush1.msra.mxu0 0.0
        %2176 = vmatprep.subr.mxu0 0.0
        %2177 = vmatpush1.msra.mxu0 0.0
        %2178 = vmatprep.subr.mxu0 0.0
        %2179 = vmatpush1.msra.mxu0 0.0
        %2180 = vmatprep.subr.mxu0 0.0
        %2181 = vmatpush1.msra.mxu0 0.0
        %2182 = vmatprep.subr.mxu0 0.0
        %2183 = vmatpush1.msra.mxu0 0.0
        %2184 = vmatprep.subr.mxu0 0.0
        %2185 = vmatpush1.msra.mxu0 0.0
        %2186 = vmatprep.subr.mxu0 0.0
        %2187 = vmatpush1.msra.mxu0 0.0
        %2188 = vmatprep.subr.mxu0 0.0
        %2189 = vmatpush1.msra.mxu0 0.0
        %2190 = vmatprep.subr.mxu0 0.0
        %2191 = vmatpush1.msra.mxu0 0.0
        %2192 = vmatprep.subr.mxu0 0.0
        %2193 = vmatpush1.msra.mxu0 0.0
        %2194 = vmatprep.subr.mxu0 0.0
        %2195 = vmatpush1.msra.mxu0 0.0
        %2196 = vmatprep.subr.mxu0 0.0
        %2197 = vmatpush1.msra.mxu0 0.0
        %2198 = vmatprep.subr.mxu0 0.0
        %2199 = vmatpush1.msra.mxu0 0.0
        %2200 = vmatprep.subr.mxu0 0.0
        %2201 = vmatpush1.msra.mxu0 0.0
        %2202 = vmatprep.subr.mxu0 0.0
        %2203 = vmatpush1.msra.mxu0 0.0
        %2204 = vmatprep.subr.mxu0 0.0
        %2205 = vmatpush1.msra.mxu0 0.0
        %2206 = vmatprep.subr.mxu0 0.0
        %2207 = vmatpush1.msra.mxu0 0.0
        %2208 = vmatprep.subr.mxu0 0.0
        %2209 = vmatpush1.msra.mxu0 0.0
        %2210 = vmatprep.subr.mxu0 0.0
        %2211 = vmatpush1.msra.mxu0 0.0
        %2212 = vmatprep.mubr.f32.mxu0 0.0
        %2213 = vmatmul.mubr.f32.gmra.mrb[0].mxu0 %v237
        %v2214 = vpop.f32.mrb[0].mxu0
        %v2215 = vadd.f32 0.0, %v2214
        %v2216 = vpop.f32.mrb[0].mxu0
        %2217 = vmatprep.mubr.f32.mxu0 0.0
        %2218 = vmatmul.mubr.f32.gmra.mrb[0].mxu0 %v240
        %v2219 = vpop.f32.mrb[0].mxu0
        %v2220 = vadd.f32 0.0, %v2219
        %v2221 = vpop.f32.mrb[0].mxu0
        %2222 = vdwg.mxu0
        %2223 = vmatprep.subr.mxu0 0.0
        %2224 = vmatpush1.msra.mxu0 %v384
        %2225 = vmatprep.subr.mxu0 0.0
        %2226 = vmatpush1.msra.mxu0 %v389
        %2227 = vmatprep.subr.mxu0 0.0
        %2228 = vmatpush1.msra.mxu0 0.0
        %2229 = vmatprep.subr.mxu0 0.0
        %2230 = vmatpush1.msra.mxu0 0.0
        %2231 = vmatprep.subr.mxu0 0.0
        %2232 = vmatpush1.msra.mxu0 0.0
        %2233 = vmatprep.subr.mxu0 0.0
        %2234 = vmatpush1.msra.mxu0 0.0
        %2235 = vmatprep.subr.mxu0 0.0
        %2236 = vmatpush1.msra.mxu0 0.0
        %2237 = vmatprep.subr.mxu0 0.0
        %2238 = vmatpush1.msra.mxu0 0.0
        %2239 = vmatprep.subr.mxu0 0.0
        %2240 = vmatpush1.msra.mxu0 0.0
        %2241 = vmatprep.subr.mxu0 0.0
        %2242 = vmatpush1.msra.mxu0 0.0
        %2243 = vmatprep.subr.mxu0 0.0
        %2244 = vmatpush1.msra.mxu0 0.0
        %2245 = vmatprep.subr.mxu0 0.0
        %2246 = vmatpush1.msra.mxu0 0.0
        %2247 = vmatprep.subr.mxu0 0.0
        %2248 = vmatpush1.msra.mxu0 0.0
        %2249 = vmatprep.subr.mxu0 0.0
        %2250 = vmatpush1.msra.mxu0 0.0
        %2251 = vmatprep.subr.mxu0 0.0
        %2252 = vmatpush1.msra.mxu0 0.0
        %2253 = vmatprep.subr.mxu0 0.0
        %2254 = vmatpush1.msra.mxu0 0.0
        %2255 = vmatprep.subr.mxu0 0.0
        %2256 = vmatpush1.msra.mxu0 0.0
        %2257 = vmatprep.subr.mxu0 0.0
        %2258 = vmatpush1.msra.mxu0 0.0
        %2259 = vmatprep.subr.mxu0 0.0
        %2260 = vmatpush1.msra.mxu0 0.0
        %2261 = vmatprep.subr.mxu0 0.0
        %2262 = vmatpush1.msra.mxu0 0.0
        %2263 = vmatprep.subr.mxu0 0.0
        %2264 = vmatpush1.msra.mxu0 0.0
        %2265 = vmatprep.subr.mxu0 0.0
        %2266 = vmatpush1.msra.mxu0 0.0
        %2267 = vmatprep.subr.mxu0 0.0
        %2268 = vmatpush1.msra.mxu0 0.0
        %2269 = vmatprep.subr.mxu0 0.0
        %2270 = vmatpush1.msra.mxu0 0.0
        %2271 = vmatprep.subr.mxu0 0.0
        %2272 = vmatpush1.msra.mxu0 0.0
        %2273 = vmatprep.subr.mxu0 0.0
        %2274 = vmatpush1.msra.mxu0 0.0
        %2275 = vmatprep.subr.mxu0 0.0
        %2276 = vmatpush1.msra.mxu0 0.0
        %2277 = vmatprep.subr.mxu0 0.0
        %2278 = vmatpush1.msra.mxu0 0.0
        %2279 = vmatprep.subr.mxu0 0.0
        %2280 = vmatpush1.msra.mxu0 0.0
        %2281 = vmatprep.subr.mxu0 0.0
        %2282 = vmatpush1.msra.mxu0 0.0
        %2283 = vmatprep.subr.mxu0 0.0
        %2284 = vmatpush1.msra.mxu0 0.0
        %2285 = vmatprep.subr.mxu0 0.0
        %2286 = vmatpush1.msra.mxu0 0.0
        %2287 = vmatprep.mubr.f32.mxu0 0.0
        %2288 = vmatmul.mubr.f32.gmra.mrb[0].mxu0 %v237
        %v2289 = vpop.f32.mrb[0].mxu0
        %v2290 = vadd.f32 0.0, %v2289
        %v2291 = vpop.f32.mrb[0].mxu0
        %2292 = vmatprep.mubr.f32.mxu0 0.0
        %2293 = vmatmul.mubr.f32.gmra.mrb[0].mxu0 %v240
        %v2294 = vpop.f32.mrb[0].mxu0
        %v2295 = vadd.f32 0.0, %v2294
        %v2296 = vpop.f32.mrb[0].mxu0
        %2297 = vdwg.mxu0
        %2298 = vmatprep.subr.mxu0 0.0
        %2299 = vmatpush1.msra.mxu0 %v459
        %2300 = vmatprep.subr.mxu0 0.0
        %2301 = vmatpush1.msra.mxu0 %v464
        %2302 = vmatprep.subr.mxu0 0.0
        %2303 = vmatpush1.msra.mxu0 0.0
        %2304 = vmatprep.subr.mxu0 0.0
        %2305 = vmatpush1.msra.mxu0 0.0
        %2306 = vmatprep.subr.mxu0 0.0
        %2307 = vmatpush1.msra.mxu0 0.0
        %2308 = vmatprep.subr.mxu0 0.0
        %2309 = vmatpush1.msra.mxu0 0.0
        %2310 = vmatprep.subr.mxu0 0.0
        %2311 = vmatpush1.msra.mxu0 0.0
        %2312 = vmatprep.subr.mxu0 0.0
        %2313 = vmatpush1.msra.mxu0 0.0
        %2314 = vmatprep.subr.mxu0 0.0
        %2315 = vmatpush1.msra.mxu0 0.0
        %2316 = vmatprep.subr.mxu0 0.0
        %2317 = vmatpush1.msra.mxu0 0.0
        %2318 = vmatprep.subr.mxu0 0.0
        %2319 = vmatpush1.msra.mxu0 0.0
        %2320 = vmatprep.subr.mxu0 0.0
        %2321 = vmatpush1.msra.mxu0 0.0
        %2322 = vmatprep.subr.mxu0 0.0
        %2323 = vmatpush1.msra.mxu0 0.0
        %2324 = vmatprep.subr.mxu0 0.0
        %2325 = vmatpush1.msra.mxu0 0.0
        %2326 = vmatprep.subr.mxu0 0.0
        %2327 = vmatpush1.msra.mxu0 0.0
        %2328 = vmatprep.subr.mxu0 0.0
        %2329 = vmatpush1.msra.mxu0 0.0
        %2330 = vmatprep.subr.mxu0 0.0
        %2331 = vmatpush1.msra.mxu0 0.0
        %2332 = vmatprep.subr.mxu0 0.0
        %2333 = vmatpush1.msra.mxu0 0.0
        %2334 = vmatprep.subr.mxu0 0.0
        %2335 = vmatpush1.msra.mxu0 0.0
        %2336 = vmatprep.subr.mxu0 0.0
        %2337 = vmatpush1.msra.mxu0 0.0
        %2338 = vmatprep.subr.mxu0 0.0
        %2339 = vmatpush1.msra.mxu0 0.0
        %2340 = vmatprep.subr.mxu0 0.0
        %2341 = vmatpush1.msra.mxu0 0.0
        %2342 = vmatprep.subr.mxu0 0.0
        %2343 = vmatpush1.msra.mxu0 0.0
        %2344 = vmatprep.subr.mxu0 0.0
        %2345 = vmatpush1.msra.mxu0 0.0
        %2346 = vmatprep.subr.mxu0 0.0
        %2347 = vmatpush1.msra.mxu0 0.0
        %2348 = vmatprep.subr.mxu0 0.0
        %2349 = vmatpush1.msra.mxu0 0.0
        %2350 = vmatprep.subr.mxu0 0.0
        %2351 = vmatpush1.msra.mxu0 0.0
        %2352 = vmatprep.subr.mxu0 0.0
        %2353 = vmatpush1.msra.mxu0 0.0
        %2354 = vmatprep.subr.mxu0 0.0
        %2355 = vmatpush1.msra.mxu0 0.0
        %2356 = vmatprep.subr.mxu0 0.0
        %2357 = vmatpush1.msra.mxu0 0.0
        %2358 = vmatprep.subr.mxu0 0.0
        %2359 = vmatpush1.msra.mxu0 0.0
        %2360 = vmatprep.subr.mxu0 0.0
        %2361 = vmatpush1.msra.mxu0 0.0
        %2362 = vmatprep.mubr.f32.mxu0 0.0
        %2363 = vmatmul.mubr.f32.gmra.mrb[0].mxu0 %v237
        %v2364 = vpop.f32.mrb[0].mxu0
        %v2365 = vadd.f32 0.0, %v2364
        %v2366 = vpop.f32.mrb[0].mxu0
        %2367 = vmatprep.mubr.f32.mxu0 0.0
        %2368 = vmatmul.mubr.f32.gmra.mrb[0].mxu0 %v240
        %v2369 = vpop.f32.mrb[0].mxu0
        %v2370 = vadd.f32 0.0, %v2369
        %v2371 = vpop.f32.mrb[0].mxu0
        %2372 = vdwg.mxu0
        %2373 = vmatprep.subr.mxu0 0.0
        %2374 = vmatpush1.msra.mxu0 %v534
        %2375 = vmatprep.subr.mxu0 0.0
        %2376 = vmatpush1.msra.mxu0 %v539
        %2377 = vmatprep.subr.mxu0 0.0
        %2378 = vmatpush1.msra.mxu0 0.0
        %2379 = vmatprep.subr.mxu0 0.0
        %2380 = vmatpush1.msra.mxu0 0.0
        %2381 = vmatprep.subr.mxu0 0.0
        %2382 = vmatpush1.msra.mxu0 0.0
        %2383 = vmatprep.subr.mxu0 0.0
        %2384 = vmatpush1.msra.mxu0 0.0
        %2385 = vmatprep.subr.mxu0 0.0
        %2386 = vmatpush1.msra.mxu0 0.0
        %2387 = vmatprep.subr.mxu0 0.0
        %2388 = vmatpush1.msra.mxu0 0.0
        %2389 = vmatprep.subr.mxu0 0.0
        %2390 = vmatpush1.msra.mxu0 0.0
        %2391 = vmatprep.subr.mxu0 0.0
        %2392 = vmatpush1.msra.mxu0 0.0
        %2393 = vmatprep.subr.mxu0 0.0
        %2394 = vmatpush1.msra.mxu0 0.0
        %2395 = vmatprep.subr.mxu0 0.0
        %2396 = vmatpush1.msra.mxu0 0.0
        %2397 = vmatprep.subr.mxu0 0.0
        %2398 = vmatpush1.msra.mxu0 0.0
        %2399 = vmatprep.subr.mxu0 0.0
        %2400 = vmatpush1.msra.mxu0 0.0
        %2401 = vmatprep.subr.mxu0 0.0
        %2402 = vmatpush1.msra.mxu0 0.0
        %2403 = vmatprep.subr.mxu0 0.0
        %2404 = vmatpush1.msra.mxu0 0.0
        %2405 = vmatprep.subr.mxu0 0.0
        %2406 = vmatpush1.msra.mxu0 0.0
        %2407 = vmatprep.subr.mxu0 0.0
        %2408 = vmatpush1.msra.mxu0 0.0
        %2409 = vmatprep.subr.mxu0 0.0
        %2410 = vmatpush1.msra.mxu0 0.0
        %2411 = vmatprep.subr.mxu0 0.0
        %2412 = vmatpush1.msra.mxu0 0.0
        %2413 = vmatprep.subr.mxu0 0.0
        %2414 = vmatpush1.msra.mxu0 0.0
        %2415 = vmatprep.subr.mxu0 0.0
        %2416 = vmatpush1.msra.mxu0 0.0
        %2417 = vmatprep.subr.mxu0 0.0
        %2418 = vmatpush1.msra.mxu0 0.0
        %2419 = vmatprep.subr.mxu0 0.0
        %2420 = vmatpush1.msra.mxu0 0.0
        %2421 = vmatprep.subr.mxu0 0.0
        %2422 = vmatpush1.msra.mxu0 0.0
        %2423 = vmatprep.subr.mxu0 0.0
        %2424 = vmatpush1.msra.mxu0 0.0
        %2425 = vmatprep.subr.mxu0 0.0
        %2426 = vmatpush1.msra.mxu0 0.0
        %2427 = vmatprep.subr.mxu0 0.0
        %2428 = vmatpush1.msra.mxu0 0.0
        %2429 = vmatprep.subr.mxu0 0.0
        %2430 = vmatpush1.msra.mxu0 0.0
        %2431 = vmatprep.subr.mxu0 0.0
        %2432 = vmatpush1.msra.mxu0 0.0
        %2433 = vmatprep.subr.mxu0 0.0
        %2434 = vmatpush1.msra.mxu0 0.0
        %2435 = vmatprep.subr.mxu0 0.0
        %2436 = vmatpush1.msra.mxu0 0.0
        %2437 = vmatprep.mubr.f32.mxu0 0.0
        %2438 = vmatmul.mubr.f32.gmra.mrb[0].mxu0 %v237
        %v2439 = vpop.f32.mrb[0].mxu0
        %v2440 = vadd.f32 0.0, %v2439
        %v2441 = vpop.f32.mrb[0].mxu0
        %2442 = vmatprep.mubr.f32.mxu0 0.0
        %2443 = vmatmul.mubr.f32.gmra.mrb[0].mxu0 %v240
        %v2444 = vpop.f32.mrb[0].mxu0
        %v2445 = vadd.f32 0.0, %v2444
        %v2446 = vpop.f32.mrb[0].mxu0
        %2447 = vdwg.mxu0
        %2448 = vmatprep.subr.mxu0 0.0
        %2449 = vmatpush1.msra.mxu0 %v609
        %2450 = vmatprep.subr.mxu0 0.0
        %2451 = vmatpush1.msra.mxu0 %v614
        %2452 = vmatprep.subr.mxu0 0.0
        %2453 = vmatpush1.msra.mxu0 0.0
        %2454 = vmatprep.subr.mxu0 0.0
        %2455 = vmatpush1.msra.mxu0 0.0
        %2456 = vmatprep.subr.mxu0 0.0
        %2457 = vmatpush1.msra.mxu0 0.0
        %2458 = vmatprep.subr.mxu0 0.0
        %2459 = vmatpush1.msra.mxu0 0.0
        %2460 = vmatprep.subr.mxu0 0.0
        %2461 = vmatpush1.msra.mxu0 0.0
        %2462 = vmatprep.subr.mxu0 0.0
        %2463 = vmatpush1.msra.mxu0 0.0
        %2464 = vmatprep.subr.mxu0 0.0
        %2465 = vmatpush1.msra.mxu0 0.0
        %2466 = vmatprep.subr.mxu0 0.0
        %2467 = vmatpush1.msra.mxu0 0.0
        %2468 = vmatprep.subr.mxu0 0.0
        %2469 = vmatpush1.msra.mxu0 0.0
        %2470 = vmatprep.subr.mxu0 0.0
        %2471 = vmatpush1.msra.mxu0 0.0
        %2472 = vmatprep.subr.mxu0 0.0
        %2473 = vmatpush1.msra.mxu0 0.0
        %2474 = vmatprep.subr.mxu0 0.0
        %2475 = vmatpush1.msra.mxu0 0.0
        %2476 = vmatprep.subr.mxu0 0.0
        %2477 = vmatpush1.msra.mxu0 0.0
        %2478 = vmatprep.subr.mxu0 0.0
        %2479 = vmatpush1.msra.mxu0 0.0
        %2480 = vmatprep.subr.mxu0 0.0
        %2481 = vmatpush1.msra.mxu0 0.0
        %2482 = vmatprep.subr.mxu0 0.0
        %2483 = vmatpush1.msra.mxu0 0.0
        %2484 = vmatprep.subr.mxu0 0.0
        %2485 = vmatpush1.msra.mxu0 0.0
        %2486 = vmatprep.subr.mxu0 0.0
        %2487 = vmatpush1.msra.mxu0 0.0
        %2488 = vmatprep.subr.mxu0 0.0
        %2489 = vmatpush1.msra.mxu0 0.0
        %2490 = vmatprep.subr.mxu0 0.0
        %2491 = vmatpush1.msra.mxu0 0.0
        %2492 = vmatprep.subr.mxu0 0.0
        %2493 = vmatpush1.msra.mxu0 0.0
        %2494 = vmatprep.subr.mxu0 0.0
        %2495 = vmatpush1.msra.mxu0 0.0
        %2496 = vmatprep.subr.mxu0 0.0
        %2497 = vmatpush1.msra.mxu0 0.0
        %2498 = vmatprep.subr.mxu0 0.0
        %2499 = vmatpush1.msra.mxu0 0.0
        %2500 = vmatprep.subr.mxu0 0.0
        %2501 = vmatpush1.msra.mxu0 0.0
        %2502 = vmatprep.subr.mxu0 0.0
        %2503 = vmatpush1.msra.mxu0 0.0
        %2504 = vmatprep.subr.mxu0 0.0
        %2505 = vmatpush1.msra.mxu0 0.0
        %2506 = vmatprep.subr.mxu0 0.0
        %2507 = vmatpush1.msra.mxu0 0.0
        %2508 = vmatprep.subr.mxu0 0.0
        %2509 = vmatpush1.msra.mxu0 0.0
        %2510 = vmatprep.subr.mxu0 0.0
        %2511 = vmatpush1.msra.mxu0 0.0
        %2512 = vmatprep.mubr.f32.mxu0 0.0
        %2513 = vmatmul.mubr.f32.gmra.mrb[0].mxu0 %v237
        %v2514 = vpop.f32.mrb[0].mxu0
        %v2515 = vadd.f32 0.0, %v2514
        %v2516 = vpop.f32.mrb[0].mxu0
        %2517 = vmatprep.mubr.f32.mxu0 0.0
        %2518 = vmatmul.mubr.f32.gmra.mrb[0].mxu0 %v240
        %v2519 = vpop.f32.mrb[0].mxu0
        %v2520 = vadd.f32 0.0, %v2519
        %v2521 = vpop.f32.mrb[0].mxu0
        %2522 = vdwg.mxu0
        %2523 = vmatprep.subr.mxu0 0.0
        %2524 = vmatpush1.msra.mxu0 %v684
        %2525 = vmatprep.subr.mxu0 0.0
        %2526 = vmatpush1.msra.mxu0 %v689
        %2527 = vmatprep.subr.mxu0 0.0
        %2528 = vmatpush1.msra.mxu0 0.0
        %2529 = vmatprep.subr.mxu0 0.0
        %2530 = vmatpush1.msra.mxu0 0.0
        %2531 = vmatprep.subr.mxu0 0.0
        %2532 = vmatpush1.msra.mxu0 0.0
        %2533 = vmatprep.subr.mxu0 0.0
        %2534 = vmatpush1.msra.mxu0 0.0
        %2535 = vmatprep.subr.mxu0 0.0
        %2536 = vmatpush1.msra.mxu0 0.0
        %2537 = vmatprep.subr.mxu0 0.0
        %2538 = vmatpush1.msra.mxu0 0.0
        %2539 = vmatprep.subr.mxu0 0.0
        %2540 = vmatpush1.msra.mxu0 0.0
        %2541 = vmatprep.subr.mxu0 0.0
        %2542 = vmatpush1.msra.mxu0 0.0
        %2543 = vmatprep.subr.mxu0 0.0
        %2544 = vmatpush1.msra.mxu0 0.0
        %2545 = vmatprep.subr.mxu0 0.0
        %2546 = vmatpush1.msra.mxu0 0.0
        %2547 = vmatprep.subr.mxu0 0.0
        %2548 = vmatpush1.msra.mxu0 0.0
        %2549 = vmatprep.subr.mxu0 0.0
        %2550 = vmatpush1.msra.mxu0 0.0
        %2551 = vmatprep.subr.mxu0 0.0
        %2552 = vmatpush1.msra.mxu0 0.0
        %2553 = vmatprep.subr.mxu0 0.0
        %2554 = vmatpush1.msra.mxu0 0.0
        %2555 = vmatprep.subr.mxu0 0.0
        %2556 = vmatpush1.msra.mxu0 0.0
        %2557 = vmatprep.subr.mxu0 0.0
        %2558 = vmatpush1.msra.mxu0 0.0
        %2559 = vmatprep.subr.mxu0 0.0
        %2560 = vmatpush1.msra.mxu0 0.0
        %2561 = vmatprep.subr.mxu0 0.0
        %2562 = vmatpush1.msra.mxu0 0.0
        %2563 = vmatprep.subr.mxu0 0.0
        %2564 = vmatpush1.msra.mxu0 0.0
        %2565 = vmatprep.subr.mxu0 0.0
        %2566 = vmatpush1.msra.mxu0 0.0
        %2567 = vmatprep.subr.mxu0 0.0
        %2568 = vmatpush1.msra.mxu0 0.0
        %2569 = vmatprep.subr.mxu0 0.0
        %2570 = vmatpush1.msra.mxu0 0.0
        %2571 = vmatprep.subr.mxu0 0.0
        %2572 = vmatpush1.msra.mxu0 0.0
        %2573 = vmatprep.subr.mxu0 0.0
        %2574 = vmatpush1.msra.mxu0 0.0
        %2575 = vmatprep.subr.mxu0 0.0
        %2576 = vmatpush1.msra.mxu0 0.0
        %2577 = vmatprep.subr.mxu0 0.0
        %2578 = vmatpush1.msra.mxu0 0.0
        %2579 = vmatprep.subr.mxu0 0.0
        %2580 = vmatpush1.msra.mxu0 0.0
        %2581 = vmatprep.subr.mxu0 0.0
        %2582 = vmatpush1.msra.mxu0 0.0
        %2583 = vmatprep.subr.mxu0 0.0
        %2584 = vmatpush1.msra.mxu0 0.0
        %2585 = vmatprep.subr.mxu0 0.0
        %2586 = vmatpush1.msra.mxu0 0.0
        %2587 = vmatprep.mubr.f32.mxu0 0.0
        %2588 = vmatmul.mubr.f32.gmra.mrb[0].mxu0 %v237
        %v2589 = vpop.f32.mrb[0].mxu0
        %v2590 = vadd.f32 0.0, %v2589
        %v2591 = vpop.f32.mrb[0].mxu0
        %2592 = vmatprep.mubr.f32.mxu0 0.0
        %2593 = vmatmul.mubr.f32.gmra.mrb[0].mxu0 %v240
        %v2594 = vpop.f32.mrb[0].mxu0
        %v2595 = vadd.f32 0.0, %v2594
        %v2596 = vpop.f32.mrb[0].mxu0
        %2597 = vdwg.mxu0
        %2598 = vmatprep.subr.mxu0 0.0
        %2599 = vmatpush1.msra.mxu0 %v759
        %2600 = vmatprep.subr.mxu0 0.0
        %2601 = vmatpush1.msra.mxu0 %v764
        %2602 = vmatprep.subr.mxu0 0.0
        %2603 = vmatpush1.msra.mxu0 0.0
        %2604 = vmatprep.subr.mxu0 0.0
        %2605 = vmatpush1.msra.mxu0 0.0
        %2606 = vmatprep.subr.mxu0 0.0
        %2607 = vmatpush1.msra.mxu0 0.0
        %2608 = vmatprep.subr.mxu0 0.0
        %2609 = vmatpush1.msra.mxu0 0.0
        %2610 = vmatprep.subr.mxu0 0.0
        %2611 = vmatpush1.msra.mxu0 0.0
        %2612 = vmatprep.subr.mxu0 0.0
        %2613 = vmatpush1.msra.mxu0 0.0
        %2614 = vmatprep.subr.mxu0 0.0
        %2615 = vmatpush1.msra.mxu0 0.0
        %2616 = vmatprep.subr.mxu0 0.0
        %2617 = vmatpush1.msra.mxu0 0.0
        %2618 = vmatprep.subr.mxu0 0.0
        %2619 = vmatpush1.msra.mxu0 0.0
        %2620 = vmatprep.subr.mxu0 0.0
        %2621 = vmatpush1.msra.mxu0 0.0
        %2622 = vmatprep.subr.mxu0 0.0
        %2623 = vmatpush1.msra.mxu0 0.0
        %2624 = vmatprep.subr.mxu0 0.0
        %2625 = vmatpush1.msra.mxu0 0.0
        %2626 = vmatprep.subr.mxu0 0.0
        %2627 = vmatpush1.msra.mxu0 0.0
        %2628 = vmatprep.subr.mxu0 0.0
        %2629 = vmatpush1.msra.mxu0 0.0
        %2630 = vmatprep.subr.mxu0 0.0
        %2631 = vmatpush1.msra.mxu0 0.0
        %2632 = vmatprep.subr.mxu0 0.0
        %2633 = vmatpush1.msra.mxu0 0.0
        %2634 = vmatprep.subr.mxu0 0.0
        %2635 = vmatpush1.msra.mxu0 0.0
        %2636 = vmatprep.subr.mxu0 0.0
        %2637 = vmatpush1.msra.mxu0 0.0
        %2638 = vmatprep.subr.mxu0 0.0
        %2639 = vmatpush1.msra.mxu0 0.0
        %2640 = vmatprep.subr.mxu0 0.0
        %2641 = vmatpush1.msra.mxu0 0.0
        %2642 = vmatprep.subr.mxu0 0.0
        %2643 = vmatpush1.msra.mxu0 0.0
        %2644 = vmatprep.subr.mxu0 0.0
        %2645 = vmatpush1.msra.mxu0 0.0
        %2646 = vmatprep.subr.mxu0 0.0
        %2647 = vmatpush1.msra.mxu0 0.0
        %2648 = vmatprep.subr.mxu0 0.0
        %2649 = vmatpush1.msra.mxu0 0.0
        %2650 = vmatprep.subr.mxu0 0.0
        %2651 = vmatpush1.msra.mxu0 0.0
        %2652 = vmatprep.subr.mxu0 0.0
        %2653 = vmatpush1.msra.mxu0 0.0
        %2654 = vmatprep.subr.mxu0 0.0
        %2655 = vmatpush1.msra.mxu0 0.0
        %2656 = vmatprep.subr.mxu0 0.0
        %2657 = vmatpush1.msra.mxu0 0.0
        %2658 = vmatprep.subr.mxu0 0.0
        %2659 = vmatpush1.msra.mxu0 0.0
        %2660 = vmatprep.subr.mxu0 0.0
        %2661 = vmatpush1.msra.mxu0 0.0
        %2662 = vmatprep.mubr.f32.mxu0 0.0
        %2663 = vmatmul.mubr.f32.gmra.mrb[0].mxu0 %v237
        %v2664 = vpop.f32.mrb[0].mxu0
        %v2665 = vadd.f32 0.0, %v2664
        %v2666 = vpop.f32.mrb[0].mxu0
        %2667 = vmatprep.mubr.f32.mxu0 0.0
        %2668 = vmatmul.mubr.f32.gmra.mrb[0].mxu0 %v240
        %v2669 = vpop.f32.mrb[0].mxu0
        %v2670 = vadd.f32 0.0, %v2669
        %v2671 = vpop.f32.mrb[0].mxu0
        %2672 = vdwg.mxu0
        %2673 = vmatprep.subr.mxu0 0.0
        %2674 = vmatpush1.msra.mxu0 %v834
        %2675 = vmatprep.subr.mxu0 0.0
        %2676 = vmatpush1.msra.mxu0 %v839
        %2677 = vmatprep.subr.mxu0 0.0
        %2678 = vmatpush1.msra.mxu0 0.0
        %2679 = vmatprep.subr.mxu0 0.0
        %2680 = vmatpush1.msra.mxu0 0.0
        %2681 = vmatprep.subr.mxu0 0.0
        %2682 = vmatpush1.msra.mxu0 0.0
        %2683 = vmatprep.subr.mxu0 0.0
        %2684 = vmatpush1.msra.mxu0 0.0
        %2685 = vmatprep.subr.mxu0 0.0
        %2686 = vmatpush1.msra.mxu0 0.0
        %2687 = vmatprep.subr.mxu0 0.0
        %2688 = vmatpush1.msra.mxu0 0.0
        %2689 = vmatprep.subr.mxu0 0.0
        %2690 = vmatpush1.msra.mxu0 0.0
        %2691 = vmatprep.subr.mxu0 0.0
        %2692 = vmatpush1.msra.mxu0 0.0
        %2693 = vmatprep.subr.mxu0 0.0
        %2694 = vmatpush1.msra.mxu0 0.0
        %2695 = vmatprep.subr.mxu0 0.0
        %2696 = vmatpush1.msra.mxu0 0.0
        %2697 = vmatprep.subr.mxu0 0.0
        %2698 = vmatpush1.msra.mxu0 0.0
        %2699 = vmatprep.subr.mxu0 0.0
        %2700 = vmatpush1.msra.mxu0 0.0
        %2701 = vmatprep.subr.mxu0 0.0
        %2702 = vmatpush1.msra.mxu0 0.0
        %2703 = vmatprep.subr.mxu0 0.0
        %2704 = vmatpush1.msra.mxu0 0.0
        %2705 = vmatprep.subr.mxu0 0.0
        %2706 = vmatpush1.msra.mxu0 0.0
        %2707 = vmatprep.subr.mxu0 0.0
        %2708 = vmatpush1.msra.mxu0 0.0
        %2709 = vmatprep.subr.mxu0 0.0
        %2710 = vmatpush1.msra.mxu0 0.0
        %2711 = vmatprep.subr.mxu0 0.0
        %2712 = vmatpush1.msra.mxu0 0.0
        %2713 = vmatprep.subr.mxu0 0.0
        %2714 = vmatpush1.msra.mxu0 0.0
        %2715 = vmatprep.subr.mxu0 0.0
        %2716 = vmatpush1.msra.mxu0 0.0
        %2717 = vmatprep.subr.mxu0 0.0
        %2718 = vmatpush1.msra.mxu0 0.0
        %2719 = vmatprep.subr.mxu0 0.0
        %2720 = vmatpush1.msra.mxu0 0.0
        %2721 = vmatprep.subr.mxu0 0.0
        %2722 = vmatpush1.msra.mxu0 0.0
        %2723 = vmatprep.subr.mxu0 0.0
        %2724 = vmatpush1.msra.mxu0 0.0
        %2725 = vmatprep.subr.mxu0 0.0
        %2726 = vmatpush1.msra.mxu0 0.0
        %2727 = vmatprep.subr.mxu0 0.0
        %2728 = vmatpush1.msra.mxu0 0.0
        %2729 = vmatprep.subr.mxu0 0.0
        %2730 = vmatpush1.msra.mxu0 0.0
        %2731 = vmatprep.subr.mxu0 0.0
        %2732 = vmatpush1.msra.mxu0 0.0
        %2733 = vmatprep.subr.mxu0 0.0
        %2734 = vmatpush1.msra.mxu0 0.0
        %2735 = vmatprep.subr.mxu0 0.0
        %2736 = vmatpush1.msra.mxu0 0.0
        %2737 = vmatprep.mubr.f32.mxu0 0.0
        %2738 = vmatmul.mubr.f32.gmra.mrb[0].mxu0 %v237
        %v2739 = vpop.f32.mrb[0].mxu0
        %v2740 = vadd.f32 0.0, %v2739
        %v2741 = vpop.f32.mrb[0].mxu0
        %2742 = vmatprep.mubr.f32.mxu0 0.0
        %2743 = vmatmul.mubr.f32.gmra.mrb[0].mxu0 %v240
        %v2744 = vpop.f32.mrb[0].mxu0
        %v2745 = vadd.f32 0.0, %v2744
        %v2746 = vpop.f32.mrb[0].mxu0
        %2747 = vdwg.mxu0
        %s2748 = scalar_lea.vmem %s2, 8
        %v2749 = vld [vmem:[%s2748] sm:$0xf]
        %v2751 = vsel %vm844, %v2215, 0
        %v2754 = vsel %vm844, %v2220, 0
        %v2757 = vsel %vm851, %v2749, 0
        %2759 = vmatprep.subr.mxu0 0.0
        %2760 = vmatpush1.msra.mxu0 %v2757
        %2761 = vmatprep.subr.mxu0 0.0
        %2762 = vmatpush1.msra.mxu0 0.0
        %2763 = vmatprep.subr.mxu0 0.0
        %2764 = vmatpush1.msra.mxu0 0.0
        %2765 = vmatprep.subr.mxu0 0.0
        %2766 = vmatpush1.msra.mxu0 0.0
        %2767 = vmatprep.subr.mxu0 0.0
        %2768 = vmatpush1.msra.mxu0 0.0
        %2769 = vmatprep.subr.mxu0 0.0
        %2770 = vmatpush1.msra.mxu0 0.0
        %2771 = vmatprep.subr.mxu0 0.0
        %2772 = vmatpush1.msra.mxu0 0.0
        %2773 = vmatprep.subr.mxu0 0.0
        %2774 = vmatpush1.msra.mxu0 0.0
        %2775 = vmatprep.subr.mxu0 0.0
        %2776 = vmatpush1.msra.mxu0 0.0
        %2777 = vmatprep.subr.mxu0 0.0
        %2778 = vmatpush1.msra.mxu0 0.0
        %2779 = vmatprep.subr.mxu0 0.0
        %2780 = vmatpush1.msra.mxu0 0.0
        %2781 = vmatprep.subr.mxu0 0.0
        %2782 = vmatpush1.msra.mxu0 0.0
        %2783 = vmatprep.subr.mxu0 0.0
        %2784 = vmatpush1.msra.mxu0 0.0
        %2785 = vmatprep.subr.mxu0 0.0
        %2786 = vmatpush1.msra.mxu0 0.0
        %2787 = vmatprep.subr.mxu0 0.0
        %2788 = vmatpush1.msra.mxu0 0.0
        %2789 = vmatprep.subr.mxu0 0.0
        %2790 = vmatpush1.msra.mxu0 0.0
        %2791 = vmatprep.subr.mxu0 0.0
        %2792 = vmatpush1.msra.mxu0 0.0
        %2793 = vmatprep.subr.mxu0 0.0
        %2794 = vmatpush1.msra.mxu0 0.0
        %2795 = vmatprep.subr.mxu0 0.0
        %2796 = vmatpush1.msra.mxu0 0.0
        %2797 = vmatprep.subr.mxu0 0.0
        %2798 = vmatpush1.msra.mxu0 0.0
        %2799 = vmatprep.subr.mxu0 0.0
        %2800 = vmatpush1.msra.mxu0 0.0
        %2801 = vmatprep.subr.mxu0 0.0
        %2802 = vmatpush1.msra.mxu0 0.0
        %2803 = vmatprep.subr.mxu0 0.0
        %2804 = vmatpush1.msra.mxu0 0.0
        %2805 = vmatprep.subr.mxu0 0.0
        %2806 = vmatpush1.msra.mxu0 0.0
        %2807 = vmatprep.subr.mxu0 0.0
        %2808 = vmatpush1.msra.mxu0 0.0
        %2809 = vmatprep.subr.mxu0 0.0
        %2810 = vmatpush1.msra.mxu0 0.0
        %2811 = vmatprep.subr.mxu0 0.0
        %2812 = vmatpush1.msra.mxu0 0.0
        %2813 = vmatprep.subr.mxu0 0.0
        %2814 = vmatpush1.msra.mxu0 0.0
        %2815 = vmatprep.subr.mxu0 0.0
        %2816 = vmatpush1.msra.mxu0 0.0
        %2817 = vmatprep.subr.mxu0 0.0
        %2818 = vmatpush1.msra.mxu0 0.0
        %2819 = vmatprep.subr.mxu0 0.0
        %2820 = vmatpush1.msra.mxu0 0.0
        %2821 = vmatprep.subr.mxu0 0.0
        %2822 = vmatpush1.msra.mxu0 0.0
        %2823 = vmatprep.mubr.f32.mxu0 0.0
        %2824 = vmatmul.mubr.f32.gmra.mrb[0].mxu0 %v2751
        %v2825 = vpop.f32.mrb[0].mxu0
        %v2826 = vadd.f32 0.0, %v2825
        %v2827 = vpop.f32.mrb[0].mxu0
        %2828 = vmatprep.mubr.f32.mxu0 0.0
        %2829 = vmatmul.mubr.f32.gmra.mrb[0].mxu0 %v2754
        %v2830 = vpop.f32.mrb[0].mxu0
        %v2831 = vadd.f32 0.0, %v2830
        %v2832 = vpop.f32.mrb[0].mxu0
        %2833 = vdwg.mxu0
        %v2835 = vsel %vm844, %v2290, 0
        %v2838 = vsel %vm844, %v2295, 0
        %2840 = vmatprep.subr.mxu0 0.0
        %2841 = vmatpush1.msra.mxu0 %v2757
        %2842 = vmatprep.subr.mxu0 0.0
        %2843 = vmatpush1.msra.mxu0 0.0
        %2844 = vmatprep.subr.mxu0 0.0
        %2845 = vmatpush1.msra.mxu0 0.0
        %2846 = vmatprep.subr.mxu0 0.0
        %2847 = vmatpush1.msra.mxu0 0.0
        %2848 = vmatprep.subr.mxu0 0.0
        %2849 = vmatpush1.msra.mxu0 0.0
        %2850 = vmatprep.subr.mxu0 0.0
        %2851 = vmatpush1.msra.mxu0 0.0
        %2852 = vmatprep.subr.mxu0 0.0
        %2853 = vmatpush1.msra.mxu0 0.0
        %2854 = vmatprep.subr.mxu0 0.0
        %2855 = vmatpush1.msra.mxu0 0.0
        %2856 = vmatprep.subr.mxu0 0.0
        %2857 = vmatpush1.msra.mxu0 0.0
        %2858 = vmatprep.subr.mxu0 0.0
        %2859 = vmatpush1.msra.mxu0 0.0
        %2860 = vmatprep.subr.mxu0 0.0
        %2861 = vmatpush1.msra.mxu0 0.0
        %2862 = vmatprep.subr.mxu0 0.0
        %2863 = vmatpush1.msra.mxu0 0.0
        %2864 = vmatprep.subr.mxu0 0.0
        %2865 = vmatpush1.msra.mxu0 0.0
        %2866 = vmatprep.subr.mxu0 0.0
        %2867 = vmatpush1.msra.mxu0 0.0
        %2868 = vmatprep.subr.mxu0 0.0
        %2869 = vmatpush1.msra.mxu0 0.0
        %2870 = vmatprep.subr.mxu0 0.0
        %2871 = vmatpush1.msra.mxu0 0.0
        %2872 = vmatprep.subr.mxu0 0.0
        %2873 = vmatpush1.msra.mxu0 0.0
        %2874 = vmatprep.subr.mxu0 0.0
        %2875 = vmatpush1.msra.mxu0 0.0
        %2876 = vmatprep.subr.mxu0 0.0
        %2877 = vmatpush1.msra.mxu0 0.0
        %2878 = vmatprep.subr.mxu0 0.0
        %2879 = vmatpush1.msra.mxu0 0.0
        %2880 = vmatprep.subr.mxu0 0.0
        %2881 = vmatpush1.msra.mxu0 0.0
        %2882 = vmatprep.subr.mxu0 0.0
        %2883 = vmatpush1.msra.mxu0 0.0
        %2884 = vmatprep.subr.mxu0 0.0
        %2885 = vmatpush1.msra.mxu0 0.0
        %2886 = vmatprep.subr.mxu0 0.0
        %2887 = vmatpush1.msra.mxu0 0.0
        %2888 = vmatprep.subr.mxu0 0.0
        %2889 = vmatpush1.msra.mxu0 0.0
        %2890 = vmatprep.subr.mxu0 0.0
        %2891 = vmatpush1.msra.mxu0 0.0
        %2892 = vmatprep.subr.mxu0 0.0
        %2893 = vmatpush1.msra.mxu0 0.0
        %2894 = vmatprep.subr.mxu0 0.0
        %2895 = vmatpush1.msra.mxu0 0.0
        %2896 = vmatprep.subr.mxu0 0.0
        %2897 = vmatpush1.msra.mxu0 0.0
        %2898 = vmatprep.subr.mxu0 0.0
        %2899 = vmatpush1.msra.mxu0 0.0
        %2900 = vmatprep.subr.mxu0 0.0
        %2901 = vmatpush1.msra.mxu0 0.0
        %2902 = vmatprep.subr.mxu0 0.0
        %2903 = vmatpush1.msra.mxu0 0.0
        %2904 = vmatprep.mubr.f32.mxu0 0.0
        %2905 = vmatmul.mubr.f32.gmra.mrb[0].mxu0 %v2835
        %v2906 = vpop.f32.mrb[0].mxu0
        %v2907 = vadd.f32 0.0, %v2906
        %v2908 = vpop.f32.mrb[0].mxu0
        %2909 = vmatprep.mubr.f32.mxu0 0.0
        %2910 = vmatmul.mubr.f32.gmra.mrb[0].mxu0 %v2838
        %v2911 = vpop.f32.mrb[0].mxu0
        %v2912 = vadd.f32 0.0, %v2911
        %v2913 = vpop.f32.mrb[0].mxu0
        %2914 = vdwg.mxu0
        %v2916 = vsel %vm844, %v2365, 0
        %v2919 = vsel %vm844, %v2370, 0
        %2921 = vmatprep.subr.mxu0 0.0
        %2922 = vmatpush1.msra.mxu0 %v2757
        %2923 = vmatprep.subr.mxu0 0.0
        %2924 = vmatpush1.msra.mxu0 0.0
        %2925 = vmatprep.subr.mxu0 0.0
        %2926 = vmatpush1.msra.mxu0 0.0
        %2927 = vmatprep.subr.mxu0 0.0
        %2928 = vmatpush1.msra.mxu0 0.0
        %2929 = vmatprep.subr.mxu0 0.0
        %2930 = vmatpush1.msra.mxu0 0.0
        %2931 = vmatprep.subr.mxu0 0.0
        %2932 = vmatpush1.msra.mxu0 0.0
        %2933 = vmatprep.subr.mxu0 0.0
        %2934 = vmatpush1.msra.mxu0 0.0
        %2935 = vmatprep.subr.mxu0 0.0
        %2936 = vmatpush1.msra.mxu0 0.0
        %2937 = vmatprep.subr.mxu0 0.0
        %2938 = vmatpush1.msra.mxu0 0.0
        %2939 = vmatprep.subr.mxu0 0.0
        %2940 = vmatpush1.msra.mxu0 0.0
        %2941 = vmatprep.subr.mxu0 0.0
        %2942 = vmatpush1.msra.mxu0 0.0
        %2943 = vmatprep.subr.mxu0 0.0
        %2944 = vmatpush1.msra.mxu0 0.0
        %2945 = vmatprep.subr.mxu0 0.0
        %2946 = vmatpush1.msra.mxu0 0.0
        %2947 = vmatprep.subr.mxu0 0.0
        %2948 = vmatpush1.msra.mxu0 0.0
        %2949 = vmatprep.subr.mxu0 0.0
        %2950 = vmatpush1.msra.mxu0 0.0
        %2951 = vmatprep.subr.mxu0 0.0
        %2952 = vmatpush1.msra.mxu0 0.0
        %2953 = vmatprep.subr.mxu0 0.0
        %2954 = vmatpush1.msra.mxu0 0.0
        %2955 = vmatprep.subr.mxu0 0.0
        %2956 = vmatpush1.msra.mxu0 0.0
        %2957 = vmatprep.subr.mxu0 0.0
        %2958 = vmatpush1.msra.mxu0 0.0
        %2959 = vmatprep.subr.mxu0 0.0
        %2960 = vmatpush1.msra.mxu0 0.0
        %2961 = vmatprep.subr.mxu0 0.0
        %2962 = vmatpush1.msra.mxu0 0.0
        %2963 = vmatprep.subr.mxu0 0.0
        %2964 = vmatpush1.msra.mxu0 0.0
        %2965 = vmatprep.subr.mxu0 0.0
        %2966 = vmatpush1.msra.mxu0 0.0
        %2967 = vmatprep.subr.mxu0 0.0
        %2968 = vmatpush1.msra.mxu0 0.0
        %2969 = vmatprep.subr.mxu0 0.0
        %2970 = vmatpush1.msra.mxu0 0.0
        %2971 = vmatprep.subr.mxu0 0.0
        %2972 = vmatpush1.msra.mxu0 0.0
        %2973 = vmatprep.subr.mxu0 0.0
        %2974 = vmatpush1.msra.mxu0 0.0
        %2975 = vmatprep.subr.mxu0 0.0
        %2976 = vmatpush1.msra.mxu0 0.0
        %2977 = vmatprep.subr.mxu0 0.0
        %2978 = vmatpush1.msra.mxu0 0.0
        %2979 = vmatprep.subr.mxu0 0.0
        %2980 = vmatpush1.msra.mxu0 0.0
        %2981 = vmatprep.subr.mxu0 0.0
        %2982 = vmatpush1.msra.mxu0 0.0
        %2983 = vmatprep.subr.mxu0 0.0
        %2984 = vmatpush1.msra.mxu0 0.0
        %2985 = vmatprep.mubr.f32.mxu0 0.0
        %2986 = vmatmul.mubr.f32.gmra.mrb[0].mxu0 %v2916
        %v2987 = vpop.f32.mrb[0].mxu0
        %v2988 = vadd.f32 0.0, %v2987
        %v2989 = vpop.f32.mrb[0].mxu0
        %2990 = vmatprep.mubr.f32.mxu0 0.0
        %2991 = vmatmul.mubr.f32.gmra.mrb[0].mxu0 %v2919
        %v2992 = vpop.f32.mrb[0].mxu0
        %v2993 = vadd.f32 0.0, %v2992
        %v2994 = vpop.f32.mrb[0].mxu0
        %2995 = vdwg.mxu0
        %v2997 = vsel %vm844, %v2440, 0
        %v3000 = vsel %vm844, %v2445, 0
        %3002 = vmatprep.subr.mxu0 0.0
        %3003 = vmatpush1.msra.mxu0 %v2757
        %3004 = vmatprep.subr.mxu0 0.0
        %3005 = vmatpush1.msra.mxu0 0.0
        %3006 = vmatprep.subr.mxu0 0.0
        %3007 = vmatpush1.msra.mxu0 0.0
        %3008 = vmatprep.subr.mxu0 0.0
        %3009 = vmatpush1.msra.mxu0 0.0
        %3010 = vmatprep.subr.mxu0 0.0
        %3011 = vmatpush1.msra.mxu0 0.0
        %3012 = vmatprep.subr.mxu0 0.0
        %3013 = vmatpush1.msra.mxu0 0.0
        %3014 = vmatprep.subr.mxu0 0.0
        %3015 = vmatpush1.msra.mxu0 0.0
        %3016 = vmatprep.subr.mxu0 0.0
        %3017 = vmatpush1.msra.mxu0 0.0
        %3018 = vmatprep.subr.mxu0 0.0
        %3019 = vmatpush1.msra.mxu0 0.0
        %3020 = vmatprep.subr.mxu0 0.0
        %3021 = vmatpush1.msra.mxu0 0.0
        %3022 = vmatprep.subr.mxu0 0.0
        %3023 = vmatpush1.msra.mxu0 0.0
        %3024 = vmatprep.subr.mxu0 0.0
        %3025 = vmatpush1.msra.mxu0 0.0
        %3026 = vmatprep.subr.mxu0 0.0
        %3027 = vmatpush1.msra.mxu0 0.0
        %3028 = vmatprep.subr.mxu0 0.0
        %3029 = vmatpush1.msra.mxu0 0.0
        %3030 = vmatprep.subr.mxu0 0.0
        %3031 = vmatpush1.msra.mxu0 0.0
        %3032 = vmatprep.subr.mxu0 0.0
        %3033 = vmatpush1.msra.mxu0 0.0
        %3034 = vmatprep.subr.mxu0 0.0
        %3035 = vmatpush1.msra.mxu0 0.0
        %3036 = vmatprep.subr.mxu0 0.0
        %3037 = vmatpush1.msra.mxu0 0.0
        %3038 = vmatprep.subr.mxu0 0.0
        %3039 = vmatpush1.msra.mxu0 0.0
        %3040 = vmatprep.subr.mxu0 0.0
        %3041 = vmatpush1.msra.mxu0 0.0
        %3042 = vmatprep.subr.mxu0 0.0
        %3043 = vmatpush1.msra.mxu0 0.0
        %3044 = vmatprep.subr.mxu0 0.0
        %3045 = vmatpush1.msra.mxu0 0.0
        %3046 = vmatprep.subr.mxu0 0.0
        %3047 = vmatpush1.msra.mxu0 0.0
        %3048 = vmatprep.subr.mxu0 0.0
        %3049 = vmatpush1.msra.mxu0 0.0
        %3050 = vmatprep.subr.mxu0 0.0
        %3051 = vmatpush1.msra.mxu0 0.0
        %3052 = vmatprep.subr.mxu0 0.0
        %3053 = vmatpush1.msra.mxu0 0.0
        %3054 = vmatprep.subr.mxu0 0.0
        %3055 = vmatpush1.msra.mxu0 0.0
        %3056 = vmatprep.subr.mxu0 0.0
        %3057 = vmatpush1.msra.mxu0 0.0
        %3058 = vmatprep.subr.mxu0 0.0
        %3059 = vmatpush1.msra.mxu0 0.0
        %3060 = vmatprep.subr.mxu0 0.0
        %3061 = vmatpush1.msra.mxu0 0.0
        %3062 = vmatprep.subr.mxu0 0.0
        %3063 = vmatpush1.msra.mxu0 0.0
        %3064 = vmatprep.subr.mxu0 0.0
        %3065 = vmatpush1.msra.mxu0 0.0
        %3066 = vmatprep.mubr.f32.mxu0 0.0
        %3067 = vmatmul.mubr.f32.gmra.mrb[0].mxu0 %v2997
        %v3068 = vpop.f32.mrb[0].mxu0
        %v3069 = vadd.f32 0.0, %v3068
        %v3070 = vpop.f32.mrb[0].mxu0
        %3071 = vmatprep.mubr.f32.mxu0 0.0
        %3072 = vmatmul.mubr.f32.gmra.mrb[0].mxu0 %v3000
        %v3073 = vpop.f32.mrb[0].mxu0
        %v3074 = vadd.f32 0.0, %v3073
        %v3075 = vpop.f32.mrb[0].mxu0
        %3076 = vdwg.mxu0
        %v3078 = vsel %vm844, %v2515, 0
        %v3081 = vsel %vm844, %v2520, 0
        %3083 = vmatprep.subr.mxu0 0.0
        %3084 = vmatpush1.msra.mxu0 %v2757
        %3085 = vmatprep.subr.mxu0 0.0
        %3086 = vmatpush1.msra.mxu0 0.0
        %3087 = vmatprep.subr.mxu0 0.0
        %3088 = vmatpush1.msra.mxu0 0.0
        %3089 = vmatprep.subr.mxu0 0.0
        %3090 = vmatpush1.msra.mxu0 0.0
        %3091 = vmatprep.subr.mxu0 0.0
        %3092 = vmatpush1.msra.mxu0 0.0
        %3093 = vmatprep.subr.mxu0 0.0
        %3094 = vmatpush1.msra.mxu0 0.0
        %3095 = vmatprep.subr.mxu0 0.0
        %3096 = vmatpush1.msra.mxu0 0.0
        %3097 = vmatprep.subr.mxu0 0.0
        %3098 = vmatpush1.msra.mxu0 0.0
        %3099 = vmatprep.subr.mxu0 0.0
        %3100 = vmatpush1.msra.mxu0 0.0
        %3101 = vmatprep.subr.mxu0 0.0
        %3102 = vmatpush1.msra.mxu0 0.0
        %3103 = vmatprep.subr.mxu0 0.0
        %3104 = vmatpush1.msra.mxu0 0.0
        %3105 = vmatprep.subr.mxu0 0.0
        %3106 = vmatpush1.msra.mxu0 0.0
        %3107 = vmatprep.subr.mxu0 0.0
        %3108 = vmatpush1.msra.mxu0 0.0
        %3109 = vmatprep.subr.mxu0 0.0
        %3110 = vmatpush1.msra.mxu0 0.0
        %3111 = vmatprep.subr.mxu0 0.0
        %3112 = vmatpush1.msra.mxu0 0.0
        %3113 = vmatprep.subr.mxu0 0.0
        %3114 = vmatpush1.msra.mxu0 0.0
        %3115 = vmatprep.subr.mxu0 0.0
        %3116 = vmatpush1.msra.mxu0 0.0
        %3117 = vmatprep.subr.mxu0 0.0
        %3118 = vmatpush1.msra.mxu0 0.0
        %3119 = vmatprep.subr.mxu0 0.0
        %3120 = vmatpush1.msra.mxu0 0.0
        %3121 = vmatprep.subr.mxu0 0.0
        %3122 = vmatpush1.msra.mxu0 0.0
        %3123 = vmatprep.subr.mxu0 0.0
        %3124 = vmatpush1.msra.mxu0 0.0
        %3125 = vmatprep.subr.mxu0 0.0
        %3126 = vmatpush1.msra.mxu0 0.0
        %3127 = vmatprep.subr.mxu0 0.0
        %3128 = vmatpush1.msra.mxu0 0.0
        %3129 = vmatprep.subr.mxu0 0.0
        %3130 = vmatpush1.msra.mxu0 0.0
        %3131 = vmatprep.subr.mxu0 0.0
        %3132 = vmatpush1.msra.mxu0 0.0
        %3133 = vmatprep.subr.mxu0 0.0
        %3134 = vmatpush1.msra.mxu0 0.0
        %3135 = vmatprep.subr.mxu0 0.0
        %3136 = vmatpush1.msra.mxu0 0.0
        %3137 = vmatprep.subr.mxu0 0.0
        %3138 = vmatpush1.msra.mxu0 0.0
        %3139 = vmatprep.subr.mxu0 0.0
        %3140 = vmatpush1.msra.mxu0 0.0
        %3141 = vmatprep.subr.mxu0 0.0
        %3142 = vmatpush1.msra.mxu0 0.0
        %3143 = vmatprep.subr.mxu0 0.0
        %3144 = vmatpush1.msra.mxu0 0.0
        %3145 = vmatprep.subr.mxu0 0.0
        %3146 = vmatpush1.msra.mxu0 0.0
        %3147 = vmatprep.mubr.f32.mxu0 0.0
        %3148 = vmatmul.mubr.f32.gmra.mrb[0].mxu0 %v3078
        %v3149 = vpop.f32.mrb[0].mxu0
        %v3150 = vadd.f32 0.0, %v3149
        %v3151 = vpop.f32.mrb[0].mxu0
        %3152 = vmatprep.mubr.f32.mxu0 0.0
        %3153 = vmatmul.mubr.f32.gmra.mrb[0].mxu0 %v3081
        %v3154 = vpop.f32.mrb[0].mxu0
        %v3155 = vadd.f32 0.0, %v3154
        %v3156 = vpop.f32.mrb[0].mxu0
        %3157 = vdwg.mxu0
        %v3159 = vsel %vm844, %v2590, 0
        %v3162 = vsel %vm844, %v2595, 0
        %3164 = vmatprep.subr.mxu0 0.0
        %3165 = vmatpush1.msra.mxu0 %v2757
        %3166 = vmatprep.subr.mxu0 0.0
        %3167 = vmatpush1.msra.mxu0 0.0
        %3168 = vmatprep.subr.mxu0 0.0
        %3169 = vmatpush1.msra.mxu0 0.0
        %3170 = vmatprep.subr.mxu0 0.0
        %3171 = vmatpush1.msra.mxu0 0.0
        %3172 = vmatprep.subr.mxu0 0.0
        %3173 = vmatpush1.msra.mxu0 0.0
        %3174 = vmatprep.subr.mxu0 0.0
        %3175 = vmatpush1.msra.mxu0 0.0
        %3176 = vmatprep.subr.mxu0 0.0
        %3177 = vmatpush1.msra.mxu0 0.0
        %3178 = vmatprep.subr.mxu0 0.0
        %3179 = vmatpush1.msra.mxu0 0.0
        %3180 = vmatprep.subr.mxu0 0.0
        %3181 = vmatpush1.msra.mxu0 0.0
        %3182 = vmatprep.subr.mxu0 0.0
        %3183 = vmatpush1.msra.mxu0 0.0
        %3184 = vmatprep.subr.mxu0 0.0
        %3185 = vmatpush1.msra.mxu0 0.0
        %3186 = vmatprep.subr.mxu0 0.0
        %3187 = vmatpush1.msra.mxu0 0.0
        %3188 = vmatprep.subr.mxu0 0.0
        %3189 = vmatpush1.msra.mxu0 0.0
        %3190 = vmatprep.subr.mxu0 0.0
        %3191 = vmatpush1.msra.mxu0 0.0
        %3192 = vmatprep.subr.mxu0 0.0
        %3193 = vmatpush1.msra.mxu0 0.0
        %3194 = vmatprep.subr.mxu0 0.0
        %3195 = vmatpush1.msra.mxu0 0.0
        %3196 = vmatprep.subr.mxu0 0.0
        %3197 = vmatpush1.msra.mxu0 0.0
        %3198 = vmatprep.subr.mxu0 0.0
        %3199 = vmatpush1.msra.mxu0 0.0
        %3200 = vmatprep.subr.mxu0 0.0
        %3201 = vmatpush1.msra.mxu0 0.0
        %3202 = vmatprep.subr.mxu0 0.0
        %3203 = vmatpush1.msra.mxu0 0.0
        %3204 = vmatprep.subr.mxu0 0.0
        %3205 = vmatpush1.msra.mxu0 0.0
        %3206 = vmatprep.subr.mxu0 0.0
        %3207 = vmatpush1.msra.mxu0 0.0
        %3208 = vmatprep.subr.mxu0 0.0
        %3209 = vmatpush1.msra.mxu0 0.0
        %3210 = vmatprep.subr.mxu0 0.0
        %3211 = vmatpush1.msra.mxu0 0.0
        %3212 = vmatprep.subr.mxu0 0.0
        %3213 = vmatpush1.msra.mxu0 0.0
        %3214 = vmatprep.subr.mxu0 0.0
        %3215 = vmatpush1.msra.mxu0 0.0
        %3216 = vmatprep.subr.mxu0 0.0
        %3217 = vmatpush1.msra.mxu0 0.0
        %3218 = vmatprep.subr.mxu0 0.0
        %3219 = vmatpush1.msra.mxu0 0.0
        %3220 = vmatprep.subr.mxu0 0.0
        %3221 = vmatpush1.msra.mxu0 0.0
        %3222 = vmatprep.subr.mxu0 0.0
        %3223 = vmatpush1.msra.mxu0 0.0
        %3224 = vmatprep.subr.mxu0 0.0
        %3225 = vmatpush1.msra.mxu0 0.0
        %3226 = vmatprep.subr.mxu0 0.0
        %3227 = vmatpush1.msra.mxu0 0.0
        %3228 = vmatprep.mubr.f32.mxu0 0.0
        %3229 = vmatmul.mubr.f32.gmra.mrb[0].mxu0 %v3159
        %v3230 = vpop.f32.mrb[0].mxu0
        %v3231 = vadd.f32 0.0, %v3230
        %v3232 = vpop.f32.mrb[0].mxu0
        %3233 = vmatprep.mubr.f32.mxu0 0.0
        %3234 = vmatmul.mubr.f32.gmra.mrb[0].mxu0 %v3162
        %v3235 = vpop.f32.mrb[0].mxu0
        %v3236 = vadd.f32 0.0, %v3235
        %v3237 = vpop.f32.mrb[0].mxu0
        %3238 = vdwg.mxu0
        %v3240 = vsel %vm844, %v2665, 0
        %v3243 = vsel %vm844, %v2670, 0
        %3245 = vmatprep.subr.mxu0 0.0
        %3246 = vmatpush1.msra.mxu0 %v2757
        %3247 = vmatprep.subr.mxu0 0.0
        %3248 = vmatpush1.msra.mxu0 0.0
        %3249 = vmatprep.subr.mxu0 0.0
        %3250 = vmatpush1.msra.mxu0 0.0
        %3251 = vmatprep.subr.mxu0 0.0
        %3252 = vmatpush1.msra.mxu0 0.0
        %3253 = vmatprep.subr.mxu0 0.0
        %3254 = vmatpush1.msra.mxu0 0.0
        %3255 = vmatprep.subr.mxu0 0.0
        %3256 = vmatpush1.msra.mxu0 0.0
        %3257 = vmatprep.subr.mxu0 0.0
        %3258 = vmatpush1.msra.mxu0 0.0
        %3259 = vmatprep.subr.mxu0 0.0
        %3260 = vmatpush1.msra.mxu0 0.0
        %3261 = vmatprep.subr.mxu0 0.0
        %3262 = vmatpush1.msra.mxu0 0.0
        %3263 = vmatprep.subr.mxu0 0.0
        %3264 = vmatpush1.msra.mxu0 0.0
        %3265 = vmatprep.subr.mxu0 0.0
        %3266 = vmatpush1.msra.mxu0 0.0
        %3267 = vmatprep.subr.mxu0 0.0
        %3268 = vmatpush1.msra.mxu0 0.0
        %3269 = vmatprep.subr.mxu0 0.0
        %3270 = vmatpush1.msra.mxu0 0.0
        %3271 = vmatprep.subr.mxu0 0.0
        %3272 = vmatpush1.msra.mxu0 0.0
        %3273 = vmatprep.subr.mxu0 0.0
        %3274 = vmatpush1.msra.mxu0 0.0
        %3275 = vmatprep.subr.mxu0 0.0
        %3276 = vmatpush1.msra.mxu0 0.0
        %3277 = vmatprep.subr.mxu0 0.0
        %3278 = vmatpush1.msra.mxu0 0.0
        %3279 = vmatprep.subr.mxu0 0.0
        %3280 = vmatpush1.msra.mxu0 0.0
        %3281 = vmatprep.subr.mxu0 0.0
        %3282 = vmatpush1.msra.mxu0 0.0
        %3283 = vmatprep.subr.mxu0 0.0
        %3284 = vmatpush1.msra.mxu0 0.0
        %3285 = vmatprep.subr.mxu0 0.0
        %3286 = vmatpush1.msra.mxu0 0.0
        %3287 = vmatprep.subr.mxu0 0.0
        %3288 = vmatpush1.msra.mxu0 0.0
        %3289 = vmatprep.subr.mxu0 0.0
        %3290 = vmatpush1.msra.mxu0 0.0
        %3291 = vmatprep.subr.mxu0 0.0
        %3292 = vmatpush1.msra.mxu0 0.0
        %3293 = vmatprep.subr.mxu0 0.0
        %3294 = vmatpush1.msra.mxu0 0.0
        %3295 = vmatprep.subr.mxu0 0.0
        %3296 = vmatpush1.msra.mxu0 0.0
        %3297 = vmatprep.subr.mxu0 0.0
        %3298 = vmatpush1.msra.mxu0 0.0
        %3299 = vmatprep.subr.mxu0 0.0
        %3300 = vmatpush1.msra.mxu0 0.0
        %3301 = vmatprep.subr.mxu0 0.0
        %3302 = vmatpush1.msra.mxu0 0.0
        %3303 = vmatprep.subr.mxu0 0.0
        %3304 = vmatpush1.msra.mxu0 0.0
        %3305 = vmatprep.subr.mxu0 0.0
        %3306 = vmatpush1.msra.mxu0 0.0
        %3307 = vmatprep.subr.mxu0 0.0
        %3308 = vmatpush1.msra.mxu0 0.0
        %3309 = vmatprep.mubr.f32.mxu0 0.0
        %3310 = vmatmul.mubr.f32.gmra.mrb[0].mxu0 %v3240
        %v3311 = vpop.f32.mrb[0].mxu0
        %v3312 = vadd.f32 0.0, %v3311
        %v3313 = vpop.f32.mrb[0].mxu0
        %3314 = vmatprep.mubr.f32.mxu0 0.0
        %3315 = vmatmul.mubr.f32.gmra.mrb[0].mxu0 %v3243
        %v3316 = vpop.f32.mrb[0].mxu0
        %v3317 = vadd.f32 0.0, %v3316
        %v3318 = vpop.f32.mrb[0].mxu0
        %3319 = vdwg.mxu0
        %v3321 = vsel %vm844, %v2740, 0
        %v3324 = vsel %vm844, %v2745, 0
        %3326 = vmatprep.subr.mxu0 0.0
        %3327 = vmatpush1.msra.mxu0 %v2757
        %3328 = vmatprep.subr.mxu0 0.0
        %3329 = vmatpush1.msra.mxu0 0.0
        %3330 = vmatprep.subr.mxu0 0.0
        %3331 = vmatpush1.msra.mxu0 0.0
        %3332 = vmatprep.subr.mxu0 0.0
        %3333 = vmatpush1.msra.mxu0 0.0
        %3334 = vmatprep.subr.mxu0 0.0
        %3335 = vmatpush1.msra.mxu0 0.0
        %3336 = vmatprep.subr.mxu0 0.0
        %3337 = vmatpush1.msra.mxu0 0.0
        %3338 = vmatprep.subr.mxu0 0.0
        %3339 = vmatpush1.msra.mxu0 0.0
        %3340 = vmatprep.subr.mxu0 0.0
        %3341 = vmatpush1.msra.mxu0 0.0
        %3342 = vmatprep.subr.mxu0 0.0
        %3343 = vmatpush1.msra.mxu0 0.0
        %3344 = vmatprep.subr.mxu0 0.0
        %3345 = vmatpush1.msra.mxu0 0.0
        %3346 = vmatprep.subr.mxu0 0.0
        %3347 = vmatpush1.msra.mxu0 0.0
        %3348 = vmatprep.subr.mxu0 0.0
        %3349 = vmatpush1.msra.mxu0 0.0
        %3350 = vmatprep.subr.mxu0 0.0
        %3351 = vmatpush1.msra.mxu0 0.0
        %3352 = vmatprep.subr.mxu0 0.0
        %3353 = vmatpush1.msra.mxu0 0.0
        %3354 = vmatprep.subr.mxu0 0.0
        %3355 = vmatpush1.msra.mxu0 0.0
        %3356 = vmatprep.subr.mxu0 0.0
        %3357 = vmatpush1.msra.mxu0 0.0
        %3358 = vmatprep.subr.mxu0 0.0
        %3359 = vmatpush1.msra.mxu0 0.0
        %3360 = vmatprep.subr.mxu0 0.0
        %3361 = vmatpush1.msra.mxu0 0.0
        %3362 = vmatprep.subr.mxu0 0.0
        %3363 = vmatpush1.msra.mxu0 0.0
        %3364 = vmatprep.subr.mxu0 0.0
        %3365 = vmatpush1.msra.mxu0 0.0
        %3366 = vmatprep.subr.mxu0 0.0
        %3367 = vmatpush1.msra.mxu0 0.0
        %3368 = vmatprep.subr.mxu0 0.0
        %3369 = vmatpush1.msra.mxu0 0.0
        %3370 = vmatprep.subr.mxu0 0.0
        %3371 = vmatpush1.msra.mxu0 0.0
        %3372 = vmatprep.subr.mxu0 0.0
        %3373 = vmatpush1.msra.mxu0 0.0
        %3374 = vmatprep.subr.mxu0 0.0
        %3375 = vmatpush1.msra.mxu0 0.0
        %3376 = vmatprep.subr.mxu0 0.0
        %3377 = vmatpush1.msra.mxu0 0.0
        %3378 = vmatprep.subr.mxu0 0.0
        %3379 = vmatpush1.msra.mxu0 0.0
        %3380 = vmatprep.subr.mxu0 0.0
        %3381 = vmatpush1.msra.mxu0 0.0
        %3382 = vmatprep.subr.mxu0 0.0
        %3383 = vmatpush1.msra.mxu0 0.0
        %3384 = vmatprep.subr.mxu0 0.0
        %3385 = vmatpush1.msra.mxu0 0.0
        %3386 = vmatprep.subr.mxu0 0.0
        %3387 = vmatpush1.msra.mxu0 0.0
        %3388 = vmatprep.subr.mxu0 0.0
        %3389 = vmatpush1.msra.mxu0 0.0
        %3390 = vmatprep.mubr.f32.mxu0 0.0
        %3391 = vmatmul.mubr.f32.gmra.mrb[0].mxu0 %v3321
        %v3392 = vpop.f32.mrb[0].mxu0
        %v3393 = vadd.f32 0.0, %v3392
        %v3394 = vpop.f32.mrb[0].mxu0
        %3395 = vmatprep.mubr.f32.mxu0 0.0
        %3396 = vmatmul.mubr.f32.gmra.mrb[0].mxu0 %v3324
        %v3397 = vpop.f32.mrb[0].mxu0
        %v3398 = vadd.f32 0.0, %v3397
        %v3399 = vpop.f32.mrb[0].mxu0
        %3400 = vdwg.mxu0
        %v3401 = vadd.f32 %v1573, %v2826
        %v3402 = vadd.f32 %v1578, %v2831
        %v3403 = vadd.f32 %v1654, %v2907
        %v3404 = vadd.f32 %v1659, %v2912
        %v3405 = vadd.f32 %v1735, %v2988
        %v3406 = vadd.f32 %v1740, %v2993
        %v3407 = vadd.f32 %v1816, %v3069
        %v3408 = vadd.f32 %v1821, %v3074
        %v3409 = vadd.f32 %v1897, %v3150
        %v3410 = vadd.f32 %v1902, %v3155
        %v3411 = vadd.f32 %v1978, %v3231
        %v3412 = vadd.f32 %v1983, %v3236
        %v3413 = vadd.f32 %v2059, %v3312
        %v3414 = vadd.f32 %v2064, %v3317
        %v3415 = vadd.f32 %v2140, %v3393
        %v3416 = vadd.f32 %v2145, %v3398
        %s3417 = scalar_lea.vmem %s215, 16
        %v3418 = vld [vmem:[%s3417] sm:$0xff]
        %v3419 = vld [vmem:[%s3417 + $0x8] sm:$0xff]
        %v3421 = vsel %vm235, %v3418, 0
        %v3424 = vsel %vm235, %v3419, 0
        %3426 = vmatprep.subr.mxu0 0.0
        %3427 = vmatpush1.msra.mxu0 %v216
        %3428 = vmatprep.subr.mxu0 0.0
        %3429 = vmatpush1.msra.mxu0 %v217
        %3430 = vmatprep.subr.mxu0 0.0
        %3431 = vmatpush1.msra.mxu0 0.0
        %3432 = vmatprep.subr.mxu0 0.0
        %3433 = vmatpush1.msra.mxu0 0.0
        %3434 = vmatprep.subr.mxu0 0.0
        %3435 = vmatpush1.msra.mxu0 0.0
        %3436 = vmatprep.subr.mxu0 0.0
        %3437 = vmatpush1.msra.mxu0 0.0
        %3438 = vmatprep.subr.mxu0 0.0
        %3439 = vmatpush1.msra.mxu0 0.0
        %3440 = vmatprep.subr.mxu0 0.0
        %3441 = vmatpush1.msra.mxu0 0.0
        %3442 = vmatprep.subr.mxu0 0.0
        %3443 = vmatpush1.msra.mxu0 0.0
        %3444 = vmatprep.subr.mxu0 0.0
        %3445 = vmatpush1.msra.mxu0 0.0
        %3446 = vmatprep.subr.mxu0 0.0
        %3447 = vmatpush1.msra.mxu0 0.0
        %3448 = vmatprep.subr.mxu0 0.0
        %3449 = vmatpush1.msra.mxu0 0.0
        %3450 = vmatprep.subr.mxu0 0.0
        %3451 = vmatpush1.msra.mxu0 0.0
        %3452 = vmatprep.subr.mxu0 0.0
        %3453 = vmatpush1.msra.mxu0 0.0
        %3454 = vmatprep.subr.mxu0 0.0
        %3455 = vmatpush1.msra.mxu0 0.0
        %3456 = vmatprep.subr.mxu0 0.0
        %3457 = vmatpush1.msra.mxu0 0.0
        %3458 = vmatprep.subr.mxu0 0.0
        %3459 = vmatpush1.msra.mxu0 0.0
        %3460 = vmatprep.subr.mxu0 0.0
        %3461 = vmatpush1.msra.mxu0 0.0
        %3462 = vmatprep.subr.mxu0 0.0
        %3463 = vmatpush1.msra.mxu0 0.0
        %3464 = vmatprep.subr.mxu0 0.0
        %3465 = vmatpush1.msra.mxu0 0.0
        %3466 = vmatprep.subr.mxu0 0.0
        %3467 = vmatpush1.msra.mxu0 0.0
        %3468 = vmatprep.subr.mxu0 0.0
        %3469 = vmatpush1.msra.mxu0 0.0
        %3470 = vmatprep.subr.mxu0 0.0
        %3471 = vmatpush1.msra.mxu0 0.0
        %3472 = vmatprep.subr.mxu0 0.0
        %3473 = vmatpush1.msra.mxu0 0.0
        %3474 = vmatprep.subr.mxu0 0.0
        %3475 = vmatpush1.msra.mxu0 0.0
        %3476 = vmatprep.subr.mxu0 0.0
        %3477 = vmatpush1.msra.mxu0 0.0
        %3478 = vmatprep.subr.mxu0 0.0
        %3479 = vmatpush1.msra.mxu0 0.0
        %3480 = vmatprep.subr.mxu0 0.0
        %3481 = vmatpush1.msra.mxu0 0.0
        %3482 = vmatprep.subr.mxu0 0.0
        %3483 = vmatpush1.msra.mxu0 0.0
        %3484 = vmatprep.subr.mxu0 0.0
        %3485 = vmatpush1.msra.mxu0 0.0
        %3486 = vmatprep.subr.mxu0 0.0
        %3487 = vmatpush1.msra.mxu0 0.0
        %3488 = vmatprep.subr.mxu0 0.0
        %3489 = vmatpush1.msra.mxu0 0.0
        %3490 = vmatprep.mubr.f32.mxu0 0.0
        %3491 = vmatmul.mubr.f32.gmra.mrb[0].mxu0 %v3421
        %v3492 = vpop.f32.mrb[0].mxu0
        %v3493 = vadd.f32 0.0, %v3492
        %v3494 = vpop.f32.mrb[0].mxu0
        %3495 = vmatprep.mubr.f32.mxu0 0.0
        %3496 = vmatmul.mubr.f32.gmra.mrb[0].mxu0 %v3424
        %v3497 = vpop.f32.mrb[0].mxu0
        %v3498 = vadd.f32 0.0, %v3497
        %v3499 = vpop.f32.mrb[0].mxu0
        %3500 = vdwg.mxu0
        %3501 = vmatprep.subr.mxu0 0.0
        %3502 = vmatpush1.msra.mxu0 %v218
        %3503 = vmatprep.subr.mxu0 0.0
        %3504 = vmatpush1.msra.mxu0 %v219
        %3505 = vmatprep.subr.mxu0 0.0
        %3506 = vmatpush1.msra.mxu0 0.0
        %3507 = vmatprep.subr.mxu0 0.0
        %3508 = vmatpush1.msra.mxu0 0.0
        %3509 = vmatprep.subr.mxu0 0.0
        %3510 = vmatpush1.msra.mxu0 0.0
        %3511 = vmatprep.subr.mxu0 0.0
        %3512 = vmatpush1.msra.mxu0 0.0
        %3513 = vmatprep.subr.mxu0 0.0
        %3514 = vmatpush1.msra.mxu0 0.0
        %3515 = vmatprep.subr.mxu0 0.0
        %3516 = vmatpush1.msra.mxu0 0.0
        %3517 = vmatprep.subr.mxu0 0.0
        %3518 = vmatpush1.msra.mxu0 0.0
        %3519 = vmatprep.subr.mxu0 0.0
        %3520 = vmatpush1.msra.mxu0 0.0
        %3521 = vmatprep.subr.mxu0 0.0
        %3522 = vmatpush1.msra.mxu0 0.0
        %3523 = vmatprep.subr.mxu0 0.0
        %3524 = vmatpush1.msra.mxu0 0.0
        %3525 = vmatprep.subr.mxu0 0.0
        %3526 = vmatpush1.msra.mxu0 0.0
        %3527 = vmatprep.subr.mxu0 0.0
        %3528 = vmatpush1.msra.mxu0 0.0
        %3529 = vmatprep.subr.mxu0 0.0
        %3530 = vmatpush1.msra.mxu0 0.0
        %3531 = vmatprep.subr.mxu0 0.0
        %3532 = vmatpush1.msra.mxu0 0.0
        %3533 = vmatprep.subr.mxu0 0.0
        %3534 = vmatpush1.msra.mxu0 0.0
        %3535 = vmatprep.subr.mxu0 0.0
        %3536 = vmatpush1.msra.mxu0 0.0
        %3537 = vmatprep.subr.mxu0 0.0
        %3538 = vmatpush1.msra.mxu0 0.0
        %3539 = vmatprep.subr.mxu0 0.0
        %3540 = vmatpush1.msra.mxu0 0.0
        %3541 = vmatprep.subr.mxu0 0.0
        %3542 = vmatpush1.msra.mxu0 0.0
        %3543 = vmatprep.subr.mxu0 0.0
        %3544 = vmatpush1.msra.mxu0 0.0
        %3545 = vmatprep.subr.mxu0 0.0
        %3546 = vmatpush1.msra.mxu0 0.0
        %3547 = vmatprep.subr.mxu0 0.0
        %3548 = vmatpush1.msra.mxu0 0.0
        %3549 = vmatprep.subr.mxu0 0.0
        %3550 = vmatpush1.msra.mxu0 0.0
        %3551 = vmatprep.subr.mxu0 0.0
        %3552 = vmatpush1.msra.mxu0 0.0
        %3553 = vmatprep.subr.mxu0 0.0
        %3554 = vmatpush1.msra.mxu0 0.0
        %3555 = vmatprep.subr.mxu0 0.0
        %3556 = vmatpush1.msra.mxu0 0.0
        %3557 = vmatprep.subr.mxu0 0.0
        %3558 = vmatpush1.msra.mxu0 0.0
        %3559 = vmatprep.subr.mxu0 0.0
        %3560 = vmatpush1.msra.mxu0 0.0
        %3561 = vmatprep.subr.mxu0 0.0
        %3562 = vmatpush1.msra.mxu0 0.0
        %3563 = vmatprep.subr.mxu0 0.0
        %3564 = vmatpush1.msra.mxu0 0.0
        %3565 = vmatprep.mubr.f32.mxu0 0.0
        %3566 = vmatmul.mubr.f32.gmra.mrb[0].mxu0 %v3421
        %v3567 = vpop.f32.mrb[0].mxu0
        %v3568 = vadd.f32 0.0, %v3567
        %v3569 = vpop.f32.mrb[0].mxu0
        %3570 = vmatprep.mubr.f32.mxu0 0.0
        %3571 = vmatmul.mubr.f32.gmra.mrb[0].mxu0 %v3424
        %v3572 = vpop.f32.mrb[0].mxu0
        %v3573 = vadd.f32 0.0, %v3572
        %v3574 = vpop.f32.mrb[0].mxu0
        %3575 = vdwg.mxu0
        %3576 = vmatprep.subr.mxu0 0.0
        %3577 = vmatpush1.msra.mxu0 %v220
        %3578 = vmatprep.subr.mxu0 0.0
        %3579 = vmatpush1.msra.mxu0 %v221
        %3580 = vmatprep.subr.mxu0 0.0
        %3581 = vmatpush1.msra.mxu0 0.0
        %3582 = vmatprep.subr.mxu0 0.0
        %3583 = vmatpush1.msra.mxu0 0.0
        %3584 = vmatprep.subr.mxu0 0.0
        %3585 = vmatpush1.msra.mxu0 0.0
        %3586 = vmatprep.subr.mxu0 0.0
        %3587 = vmatpush1.msra.mxu0 0.0
        %3588 = vmatprep.subr.mxu0 0.0
        %3589 = vmatpush1.msra.mxu0 0.0
        %3590 = vmatprep.subr.mxu0 0.0
        %3591 = vmatpush1.msra.mxu0 0.0
        %3592 = vmatprep.subr.mxu0 0.0
        %3593 = vmatpush1.msra.mxu0 0.0
        %3594 = vmatprep.subr.mxu0 0.0
        %3595 = vmatpush1.msra.mxu0 0.0
        %3596 = vmatprep.subr.mxu0 0.0
        %3597 = vmatpush1.msra.mxu0 0.0
        %3598 = vmatprep.subr.mxu0 0.0
        %3599 = vmatpush1.msra.mxu0 0.0
        %3600 = vmatprep.subr.mxu0 0.0
        %3601 = vmatpush1.msra.mxu0 0.0
        %3602 = vmatprep.subr.mxu0 0.0
        %3603 = vmatpush1.msra.mxu0 0.0
        %3604 = vmatprep.subr.mxu0 0.0
        %3605 = vmatpush1.msra.mxu0 0.0
        %3606 = vmatprep.subr.mxu0 0.0
        %3607 = vmatpush1.msra.mxu0 0.0
        %3608 = vmatprep.subr.mxu0 0.0
        %3609 = vmatpush1.msra.mxu0 0.0
        %3610 = vmatprep.subr.mxu0 0.0
        %3611 = vmatpush1.msra.mxu0 0.0
        %3612 = vmatprep.subr.mxu0 0.0
        %3613 = vmatpush1.msra.mxu0 0.0
        %3614 = vmatprep.subr.mxu0 0.0
        %3615 = vmatpush1.msra.mxu0 0.0
        %3616 = vmatprep.subr.mxu0 0.0
        %3617 = vmatpush1.msra.mxu0 0.0
        %3618 = vmatprep.subr.mxu0 0.0
        %3619 = vmatpush1.msra.mxu0 0.0
        %3620 = vmatprep.subr.mxu0 0.0
        %3621 = vmatpush1.msra.mxu0 0.0
        %3622 = vmatprep.subr.mxu0 0.0
        %3623 = vmatpush1.msra.mxu0 0.0
        %3624 = vmatprep.subr.mxu0 0.0
        %3625 = vmatpush1.msra.mxu0 0.0
        %3626 = vmatprep.subr.mxu0 0.0
        %3627 = vmatpush1.msra.mxu0 0.0
        %3628 = vmatprep.subr.mxu0 0.0
        %3629 = vmatpush1.msra.mxu0 0.0
        %3630 = vmatprep.subr.mxu0 0.0
        %3631 = vmatpush1.msra.mxu0 0.0
        %3632 = vmatprep.subr.mxu0 0.0
        %3633 = vmatpush1.msra.mxu0 0.0
        %3634 = vmatprep.subr.mxu0 0.0
        %3635 = vmatpush1.msra.mxu0 0.0
        %3636 = vmatprep.subr.mxu0 0.0
        %3637 = vmatpush1.msra.mxu0 0.0
        %3638 = vmatprep.subr.mxu0 0.0
        %3639 = vmatpush1.msra.mxu0 0.0
        %3640 = vmatprep.mubr.f32.mxu0 0.0
        %3641 = vmatmul.mubr.f32.gmra.mrb[0].mxu0 %v3421
        %v3642 = vpop.f32.mrb[0].mxu0
        %v3643 = vadd.f32 0.0, %v3642
        %v3644 = vpop.f32.mrb[0].mxu0
        %3645 = vmatprep.mubr.f32.mxu0 0.0
        %3646 = vmatmul.mubr.f32.gmra.mrb[0].mxu0 %v3424
        %v3647 = vpop.f32.mrb[0].mxu0
        %v3648 = vadd.f32 0.0, %v3647
        %v3649 = vpop.f32.mrb[0].mxu0
        %3650 = vdwg.mxu0
        %3651 = vmatprep.subr.mxu0 0.0
        %3652 = vmatpush1.msra.mxu0 %v222
        %3653 = vmatprep.subr.mxu0 0.0
        %3654 = vmatpush1.msra.mxu0 %v223
        %3655 = vmatprep.subr.mxu0 0.0
        %3656 = vmatpush1.msra.mxu0 0.0
        %3657 = vmatprep.subr.mxu0 0.0
        %3658 = vmatpush1.msra.mxu0 0.0
        %3659 = vmatprep.subr.mxu0 0.0
        %3660 = vmatpush1.msra.mxu0 0.0
        %3661 = vmatprep.subr.mxu0 0.0
        %3662 = vmatpush1.msra.mxu0 0.0
        %3663 = vmatprep.subr.mxu0 0.0
        %3664 = vmatpush1.msra.mxu0 0.0
        %3665 = vmatprep.subr.mxu0 0.0
        %3666 = vmatpush1.msra.mxu0 0.0
        %3667 = vmatprep.subr.mxu0 0.0
        %3668 = vmatpush1.msra.mxu0 0.0
        %3669 = vmatprep.subr.mxu0 0.0
        %3670 = vmatpush1.msra.mxu0 0.0
        %3671 = vmatprep.subr.mxu0 0.0
        %3672 = vmatpush1.msra.mxu0 0.0
        %3673 = vmatprep.subr.mxu0 0.0
        %3674 = vmatpush1.msra.mxu0 0.0
        %3675 = vmatprep.subr.mxu0 0.0
        %3676 = vmatpush1.msra.mxu0 0.0
        %3677 = vmatprep.subr.mxu0 0.0
        %3678 = vmatpush1.msra.mxu0 0.0
        %3679 = vmatprep.subr.mxu0 0.0
        %3680 = vmatpush1.msra.mxu0 0.0
        %3681 = vmatprep.subr.mxu0 0.0
        %3682 = vmatpush1.msra.mxu0 0.0
        %3683 = vmatprep.subr.mxu0 0.0
        %3684 = vmatpush1.msra.mxu0 0.0
        %3685 = vmatprep.subr.mxu0 0.0
        %3686 = vmatpush1.msra.mxu0 0.0
        %3687 = vmatprep.subr.mxu0 0.0
        %3688 = vmatpush1.msra.mxu0 0.0
        %3689 = vmatprep.subr.mxu0 0.0
        %3690 = vmatpush1.msra.mxu0 0.0
        %3691 = vmatprep.subr.mxu0 0.0
        %3692 = vmatpush1.msra.mxu0 0.0
        %3693 = vmatprep.subr.mxu0 0.0
        %3694 = vmatpush1.msra.mxu0 0.0
        %3695 = vmatprep.subr.mxu0 0.0
        %3696 = vmatpush1.msra.mxu0 0.0
        %3697 = vmatprep.subr.mxu0 0.0
        %3698 = vmatpush1.msra.mxu0 0.0
        %3699 = vmatprep.subr.mxu0 0.0
        %3700 = vmatpush1.msra.mxu0 0.0
        %3701 = vmatprep.subr.mxu0 0.0
        %3702 = vmatpush1.msra.mxu0 0.0
        %3703 = vmatprep.subr.mxu0 0.0
        %3704 = vmatpush1.msra.mxu0 0.0
        %3705 = vmatprep.subr.mxu0 0.0
        %3706 = vmatpush1.msra.mxu0 0.0
        %3707 = vmatprep.subr.mxu0 0.0
        %3708 = vmatpush1.msra.mxu0 0.0
        %3709 = vmatprep.subr.mxu0 0.0
        %3710 = vmatpush1.msra.mxu0 0.0
        %3711 = vmatprep.subr.mxu0 0.0
        %3712 = vmatpush1.msra.mxu0 0.0
        %3713 = vmatprep.subr.mxu0 0.0
        %3714 = vmatpush1.msra.mxu0 0.0
        %3715 = vmatprep.mubr.f32.mxu0 0.0
        %3716 = vmatmul.mubr.f32.gmra.mrb[0].mxu0 %v3421
        %v3717 = vpop.f32.mrb[0].mxu0
        %v3718 = vadd.f32 0.0, %v3717
        %v3719 = vpop.f32.mrb[0].mxu0
        %3720 = vmatprep.mubr.f32.mxu0 0.0
        %3721 = vmatmul.mubr.f32.gmra.mrb[0].mxu0 %v3424
        %v3722 = vpop.f32.mrb[0].mxu0
        %v3723 = vadd.f32 0.0, %v3722
        %v3724 = vpop.f32.mrb[0].mxu0
        %3725 = vdwg.mxu0
        %3726 = vmatprep.subr.mxu0 0.0
        %3727 = vmatpush1.msra.mxu0 %v224
        %3728 = vmatprep.subr.mxu0 0.0
        %3729 = vmatpush1.msra.mxu0 %v225
        %3730 = vmatprep.subr.mxu0 0.0
        %3731 = vmatpush1.msra.mxu0 0.0
        %3732 = vmatprep.subr.mxu0 0.0
        %3733 = vmatpush1.msra.mxu0 0.0
        %3734 = vmatprep.subr.mxu0 0.0
        %3735 = vmatpush1.msra.mxu0 0.0
        %3736 = vmatprep.subr.mxu0 0.0
        %3737 = vmatpush1.msra.mxu0 0.0
        %3738 = vmatprep.subr.mxu0 0.0
        %3739 = vmatpush1.msra.mxu0 0.0
        %3740 = vmatprep.subr.mxu0 0.0
        %3741 = vmatpush1.msra.mxu0 0.0
        %3742 = vmatprep.subr.mxu0 0.0
        %3743 = vmatpush1.msra.mxu0 0.0
        %3744 = vmatprep.subr.mxu0 0.0
        %3745 = vmatpush1.msra.mxu0 0.0
        %3746 = vmatprep.subr.mxu0 0.0
        %3747 = vmatpush1.msra.mxu0 0.0
        %3748 = vmatprep.subr.mxu0 0.0
        %3749 = vmatpush1.msra.mxu0 0.0
        %3750 = vmatprep.subr.mxu0 0.0
        %3751 = vmatpush1.msra.mxu0 0.0
        %3752 = vmatprep.subr.mxu0 0.0
        %3753 = vmatpush1.msra.mxu0 0.0
        %3754 = vmatprep.subr.mxu0 0.0
        %3755 = vmatpush1.msra.mxu0 0.0
        %3756 = vmatprep.subr.mxu0 0.0
        %3757 = vmatpush1.msra.mxu0 0.0
        %3758 = vmatprep.subr.mxu0 0.0
        %3759 = vmatpush1.msra.mxu0 0.0
        %3760 = vmatprep.subr.mxu0 0.0
        %3761 = vmatpush1.msra.mxu0 0.0
        %3762 = vmatprep.subr.mxu0 0.0
        %3763 = vmatpush1.msra.mxu0 0.0
        %3764 = vmatprep.subr.mxu0 0.0
        %3765 = vmatpush1.msra.mxu0 0.0
        %3766 = vmatprep.subr.mxu0 0.0
        %3767 = vmatpush1.msra.mxu0 0.0
        %3768 = vmatprep.subr.mxu0 0.0
        %3769 = vmatpush1.msra.mxu0 0.0
        %3770 = vmatprep.subr.mxu0 0.0
        %3771 = vmatpush1.msra.mxu0 0.0
        %3772 = vmatprep.subr.mxu0 0.0
        %3773 = vmatpush1.msra.mxu0 0.0
        %3774 = vmatprep.subr.mxu0 0.0
        %3775 = vmatpush1.msra.mxu0 0.0
        %3776 = vmatprep.subr.mxu0 0.0
        %3777 = vmatpush1.msra.mxu0 0.0
        %3778 = vmatprep.subr.mxu0 0.0
        %3779 = vmatpush1.msra.mxu0 0.0
        %3780 = vmatprep.subr.mxu0 0.0
        %3781 = vmatpush1.msra.mxu0 0.0
        %3782 = vmatprep.subr.mxu0 0.0
        %3783 = vmatpush1.msra.mxu0 0.0
        %3784 = vmatprep.subr.mxu0 0.0
        %3785 = vmatpush1.msra.mxu0 0.0
        %3786 = vmatprep.subr.mxu0 0.0
        %3787 = vmatpush1.msra.mxu0 0.0
        %3788 = vmatprep.subr.mxu0 0.0
        %3789 = vmatpush1.msra.mxu0 0.0
        %3790 = vmatprep.mubr.f32.mxu0 0.0
        %3791 = vmatmul.mubr.f32.gmra.mrb[0].mxu0 %v3421
        %v3792 = vpop.f32.mrb[0].mxu0
        %v3793 = vadd.f32 0.0, %v3792
        %v3794 = vpop.f32.mrb[0].mxu0
        %3795 = vmatprep.mubr.f32.mxu0 0.0
        %3796 = vmatmul.mubr.f32.gmra.mrb[0].mxu0 %v3424
        %v3797 = vpop.f32.mrb[0].mxu0
        %v3798 = vadd.f32 0.0, %v3797
        %v3799 = vpop.f32.mrb[0].mxu0
        %3800 = vdwg.mxu0
        %3801 = vmatprep.subr.mxu0 0.0
        %3802 = vmatpush1.msra.mxu0 %v226
        %3803 = vmatprep.subr.mxu0 0.0
        %3804 = vmatpush1.msra.mxu0 %v227
        %3805 = vmatprep.subr.mxu0 0.0
        %3806 = vmatpush1.msra.mxu0 0.0
        %3807 = vmatprep.subr.mxu0 0.0
        %3808 = vmatpush1.msra.mxu0 0.0
        %3809 = vmatprep.subr.mxu0 0.0
        %3810 = vmatpush1.msra.mxu0 0.0
        %3811 = vmatprep.subr.mxu0 0.0
        %3812 = vmatpush1.msra.mxu0 0.0
        %3813 = vmatprep.subr.mxu0 0.0
        %3814 = vmatpush1.msra.mxu0 0.0
        %3815 = vmatprep.subr.mxu0 0.0
        %3816 = vmatpush1.msra.mxu0 0.0
        %3817 = vmatprep.subr.mxu0 0.0
        %3818 = vmatpush1.msra.mxu0 0.0
        %3819 = vmatprep.subr.mxu0 0.0
        %3820 = vmatpush1.msra.mxu0 0.0
        %3821 = vmatprep.subr.mxu0 0.0
        %3822 = vmatpush1.msra.mxu0 0.0
        %3823 = vmatprep.subr.mxu0 0.0
        %3824 = vmatpush1.msra.mxu0 0.0
        %3825 = vmatprep.subr.mxu0 0.0
        %3826 = vmatpush1.msra.mxu0 0.0
        %3827 = vmatprep.subr.mxu0 0.0
        %3828 = vmatpush1.msra.mxu0 0.0
        %3829 = vmatprep.subr.mxu0 0.0
        %3830 = vmatpush1.msra.mxu0 0.0
        %3831 = vmatprep.subr.mxu0 0.0
        %3832 = vmatpush1.msra.mxu0 0.0
        %3833 = vmatprep.subr.mxu0 0.0
        %3834 = vmatpush1.msra.mxu0 0.0
        %3835 = vmatprep.subr.mxu0 0.0
        %3836 = vmatpush1.msra.mxu0 0.0
        %3837 = vmatprep.subr.mxu0 0.0
        %3838 = vmatpush1.msra.mxu0 0.0
        %3839 = vmatprep.subr.mxu0 0.0
        %3840 = vmatpush1.msra.mxu0 0.0
        %3841 = vmatprep.subr.mxu0 0.0
        %3842 = vmatpush1.msra.mxu0 0.0
        %3843 = vmatprep.subr.mxu0 0.0
        %3844 = vmatpush1.msra.mxu0 0.0
        %3845 = vmatprep.subr.mxu0 0.0
        %3846 = vmatpush1.msra.mxu0 0.0
        %3847 = vmatprep.subr.mxu0 0.0
        %3848 = vmatpush1.msra.mxu0 0.0
        %3849 = vmatprep.subr.mxu0 0.0
        %3850 = vmatpush1.msra.mxu0 0.0
        %3851 = vmatprep.subr.mxu0 0.0
        %3852 = vmatpush1.msra.mxu0 0.0
        %3853 = vmatprep.subr.mxu0 0.0
        %3854 = vmatpush1.msra.mxu0 0.0
        %3855 = vmatprep.subr.mxu0 0.0
        %3856 = vmatpush1.msra.mxu0 0.0
        %3857 = vmatprep.subr.mxu0 0.0
        %3858 = vmatpush1.msra.mxu0 0.0
        %3859 = vmatprep.subr.mxu0 0.0
        %3860 = vmatpush1.msra.mxu0 0.0
        %3861 = vmatprep.subr.mxu0 0.0
        %3862 = vmatpush1.msra.mxu0 0.0
        %3863 = vmatprep.subr.mxu0 0.0
        %3864 = vmatpush1.msra.mxu0 0.0
        %3865 = vmatprep.mubr.f32.mxu0 0.0
        %3866 = vmatmul.mubr.f32.gmra.mrb[0].mxu0 %v3421
        %v3867 = vpop.f32.mrb[0].mxu0
        %v3868 = vadd.f32 0.0, %v3867
        %v3869 = vpop.f32.mrb[0].mxu0
        %3870 = vmatprep.mubr.f32.mxu0 0.0
        %3871 = vmatmul.mubr.f32.gmra.mrb[0].mxu0 %v3424
        %v3872 = vpop.f32.mrb[0].mxu0
        %v3873 = vadd.f32 0.0, %v3872
        %v3874 = vpop.f32.mrb[0].mxu0
        %3875 = vdwg.mxu0
        %3876 = vmatprep.subr.mxu0 0.0
        %3877 = vmatpush1.msra.mxu0 %v228
        %3878 = vmatprep.subr.mxu0 0.0
        %3879 = vmatpush1.msra.mxu0 %v229
        %3880 = vmatprep.subr.mxu0 0.0
        %3881 = vmatpush1.msra.mxu0 0.0
        %3882 = vmatprep.subr.mxu0 0.0
        %3883 = vmatpush1.msra.mxu0 0.0
        %3884 = vmatprep.subr.mxu0 0.0
        %3885 = vmatpush1.msra.mxu0 0.0
        %3886 = vmatprep.subr.mxu0 0.0
        %3887 = vmatpush1.msra.mxu0 0.0
        %3888 = vmatprep.subr.mxu0 0.0
        %3889 = vmatpush1.msra.mxu0 0.0
        %3890 = vmatprep.subr.mxu0 0.0
        %3891 = vmatpush1.msra.mxu0 0.0
        %3892 = vmatprep.subr.mxu0 0.0
        %3893 = vmatpush1.msra.mxu0 0.0
        %3894 = vmatprep.subr.mxu0 0.0
        %3895 = vmatpush1.msra.mxu0 0.0
        %3896 = vmatprep.subr.mxu0 0.0
        %3897 = vmatpush1.msra.mxu0 0.0
        %3898 = vmatprep.subr.mxu0 0.0
        %3899 = vmatpush1.msra.mxu0 0.0
        %3900 = vmatprep.subr.mxu0 0.0
        %3901 = vmatpush1.msra.mxu0 0.0
        %3902 = vmatprep.subr.mxu0 0.0
        %3903 = vmatpush1.msra.mxu0 0.0
        %3904 = vmatprep.subr.mxu0 0.0
        %3905 = vmatpush1.msra.mxu0 0.0
        %3906 = vmatprep.subr.mxu0 0.0
        %3907 = vmatpush1.msra.mxu0 0.0
        %3908 = vmatprep.subr.mxu0 0.0
        %3909 = vmatpush1.msra.mxu0 0.0
        %3910 = vmatprep.subr.mxu0 0.0
        %3911 = vmatpush1.msra.mxu0 0.0
        %3912 = vmatprep.subr.mxu0 0.0
        %3913 = vmatpush1.msra.mxu0 0.0
        %3914 = vmatprep.subr.mxu0 0.0
        %3915 = vmatpush1.msra.mxu0 0.0
        %3916 = vmatprep.subr.mxu0 0.0
        %3917 = vmatpush1.msra.mxu0 0.0
        %3918 = vmatprep.subr.mxu0 0.0
        %3919 = vmatpush1.msra.mxu0 0.0
        %3920 = vmatprep.subr.mxu0 0.0
        %3921 = vmatpush1.msra.mxu0 0.0
        %3922 = vmatprep.subr.mxu0 0.0
        %3923 = vmatpush1.msra.mxu0 0.0
        %3924 = vmatprep.subr.mxu0 0.0
        %3925 = vmatpush1.msra.mxu0 0.0
        %3926 = vmatprep.subr.mxu0 0.0
        %3927 = vmatpush1.msra.mxu0 0.0
        %3928 = vmatprep.subr.mxu0 0.0
        %3929 = vmatpush1.msra.mxu0 0.0
        %3930 = vmatprep.subr.mxu0 0.0
        %3931 = vmatpush1.msra.mxu0 0.0
        %3932 = vmatprep.subr.mxu0 0.0
        %3933 = vmatpush1.msra.mxu0 0.0
        %3934 = vmatprep.subr.mxu0 0.0
        %3935 = vmatpush1.msra.mxu0 0.0
        %3936 = vmatprep.subr.mxu0 0.0
        %3937 = vmatpush1.msra.mxu0 0.0
        %3938 = vmatprep.subr.mxu0 0.0
        %3939 = vmatpush1.msra.mxu0 0.0
        %3940 = vmatprep.mubr.f32.mxu0 0.0
        %3941 = vmatmul.mubr.f32.gmra.mrb[0].mxu0 %v3421
        %v3942 = vpop.f32.mrb[0].mxu0
        %v3943 = vadd.f32 0.0, %v3942
        %v3944 = vpop.f32.mrb[0].mxu0
        %3945 = vmatprep.mubr.f32.mxu0 0.0
        %3946 = vmatmul.mubr.f32.gmra.mrb[0].mxu0 %v3424
        %v3947 = vpop.f32.mrb[0].mxu0
        %v3948 = vadd.f32 0.0, %v3947
        %v3949 = vpop.f32.mrb[0].mxu0
        %3950 = vdwg.mxu0
        %3951 = vmatprep.subr.mxu0 0.0
        %3952 = vmatpush1.msra.mxu0 %v230
        %3953 = vmatprep.subr.mxu0 0.0
        %3954 = vmatpush1.msra.mxu0 %v231
        %3955 = vmatprep.subr.mxu0 0.0
        %3956 = vmatpush1.msra.mxu0 0.0
        %3957 = vmatprep.subr.mxu0 0.0
        %3958 = vmatpush1.msra.mxu0 0.0
        %3959 = vmatprep.subr.mxu0 0.0
        %3960 = vmatpush1.msra.mxu0 0.0
        %3961 = vmatprep.subr.mxu0 0.0
        %3962 = vmatpush1.msra.mxu0 0.0
        %3963 = vmatprep.subr.mxu0 0.0
        %3964 = vmatpush1.msra.mxu0 0.0
        %3965 = vmatprep.subr.mxu0 0.0
        %3966 = vmatpush1.msra.mxu0 0.0
        %3967 = vmatprep.subr.mxu0 0.0
        %3968 = vmatpush1.msra.mxu0 0.0
        %3969 = vmatprep.subr.mxu0 0.0
        %3970 = vmatpush1.msra.mxu0 0.0
        %3971 = vmatprep.subr.mxu0 0.0
        %3972 = vmatpush1.msra.mxu0 0.0
        %3973 = vmatprep.subr.mxu0 0.0
        %3974 = vmatpush1.msra.mxu0 0.0
        %3975 = vmatprep.subr.mxu0 0.0
        %3976 = vmatpush1.msra.mxu0 0.0
        %3977 = vmatprep.subr.mxu0 0.0
        %3978 = vmatpush1.msra.mxu0 0.0
        %3979 = vmatprep.subr.mxu0 0.0
        %3980 = vmatpush1.msra.mxu0 0.0
        %3981 = vmatprep.subr.mxu0 0.0
        %3982 = vmatpush1.msra.mxu0 0.0
        %3983 = vmatprep.subr.mxu0 0.0
        %3984 = vmatpush1.msra.mxu0 0.0
        %3985 = vmatprep.subr.mxu0 0.0
        %3986 = vmatpush1.msra.mxu0 0.0
        %3987 = vmatprep.subr.mxu0 0.0
        %3988 = vmatpush1.msra.mxu0 0.0
        %3989 = vmatprep.subr.mxu0 0.0
        %3990 = vmatpush1.msra.mxu0 0.0
        %3991 = vmatprep.subr.mxu0 0.0
        %3992 = vmatpush1.msra.mxu0 0.0
        %3993 = vmatprep.subr.mxu0 0.0
        %3994 = vmatpush1.msra.mxu0 0.0
        %3995 = vmatprep.subr.mxu0 0.0
        %3996 = vmatpush1.msra.mxu0 0.0
        %3997 = vmatprep.subr.mxu0 0.0
        %3998 = vmatpush1.msra.mxu0 0.0
        %3999 = vmatprep.subr.mxu0 0.0
        %4000 = vmatpush1.msra.mxu0 0.0
        %4001 = vmatprep.subr.mxu0 0.0
        %4002 = vmatpush1.msra.mxu0 0.0
        %4003 = vmatprep.subr.mxu0 0.0
        %4004 = vmatpush1.msra.mxu0 0.0
        %4005 = vmatprep.subr.mxu0 0.0
        %4006 = vmatpush1.msra.mxu0 0.0
        %4007 = vmatprep.subr.mxu0 0.0
        %4008 = vmatpush1.msra.mxu0 0.0
        %4009 = vmatprep.subr.mxu0 0.0
        %4010 = vmatpush1.msra.mxu0 0.0
        %4011 = vmatprep.subr.mxu0 0.0
        %4012 = vmatpush1.msra.mxu0 0.0
        %4013 = vmatprep.subr.mxu0 0.0
        %4014 = vmatpush1.msra.mxu0 0.0
        %4015 = vmatprep.mubr.f32.mxu0 0.0
        %4016 = vmatmul.mubr.f32.gmra.mrb[0].mxu0 %v3421
        %v4017 = vpop.f32.mrb[0].mxu0
        %v4018 = vadd.f32 0.0, %v4017
        %v4019 = vpop.f32.mrb[0].mxu0
        %4020 = vmatprep.mubr.f32.mxu0 0.0
        %4021 = vmatmul.mubr.f32.gmra.mrb[0].mxu0 %v3424
        %v4022 = vpop.f32.mrb[0].mxu0
        %v4023 = vadd.f32 0.0, %v4022
        %v4024 = vpop.f32.mrb[0].mxu0
        %4025 = vdwg.mxu0
        %s4026 = scalar_lea.vmem %s2, 12
        %v4027 = vld [vmem:[%s4026] sm:$0xf]
        %v4029 = vsel %vm844, %v3493, 0
        %v4032 = vsel %vm844, %v3498, 0
        %v4035 = vsel %vm851, %v4027, 0
        %4037 = vmatprep.subr.mxu0 0.0
        %4038 = vmatpush1.msra.mxu0 %v4035
        %4039 = vmatprep.subr.mxu0 0.0
        %4040 = vmatpush1.msra.mxu0 0.0
        %4041 = vmatprep.subr.mxu0 0.0
        %4042 = vmatpush1.msra.mxu0 0.0
        %4043 = vmatprep.subr.mxu0 0.0
        %4044 = vmatpush1.msra.mxu0 0.0
        %4045 = vmatprep.subr.mxu0 0.0
        %4046 = vmatpush1.msra.mxu0 0.0
        %4047 = vmatprep.subr.mxu0 0.0
        %4048 = vmatpush1.msra.mxu0 0.0
        %4049 = vmatprep.subr.mxu0 0.0
        %4050 = vmatpush1.msra.mxu0 0.0
        %4051 = vmatprep.subr.mxu0 0.0
        %4052 = vmatpush1.msra.mxu0 0.0
        %4053 = vmatprep.subr.mxu0 0.0
        %4054 = vmatpush1.msra.mxu0 0.0
        %4055 = vmatprep.subr.mxu0 0.0
        %4056 = vmatpush1.msra.mxu0 0.0
        %4057 = vmatprep.subr.mxu0 0.0
        %4058 = vmatpush1.msra.mxu0 0.0
        %4059 = vmatprep.subr.mxu0 0.0
        %4060 = vmatpush1.msra.mxu0 0.0
        %4061 = vmatprep.subr.mxu0 0.0
        %4062 = vmatpush1.msra.mxu0 0.0
        %4063 = vmatprep.subr.mxu0 0.0
        %4064 = vmatpush1.msra.mxu0 0.0
        %4065 = vmatprep.subr.mxu0 0.0
        %4066 = vmatpush1.msra.mxu0 0.0
        %4067 = vmatprep.subr.mxu0 0.0
        %4068 = vmatpush1.msra.mxu0 0.0
        %4069 = vmatprep.subr.mxu0 0.0
        %4070 = vmatpush1.msra.mxu0 0.0
        %4071 = vmatprep.subr.mxu0 0.0
        %4072 = vmatpush1.msra.mxu0 0.0
        %4073 = vmatprep.subr.mxu0 0.0
        %4074 = vmatpush1.msra.mxu0 0.0
        %4075 = vmatprep.subr.mxu0 0.0
        %4076 = vmatpush1.msra.mxu0 0.0
        %4077 = vmatprep.subr.mxu0 0.0
        %4078 = vmatpush1.msra.mxu0 0.0
        %4079 = vmatprep.subr.mxu0 0.0
        %4080 = vmatpush1.msra.mxu0 0.0
        %4081 = vmatprep.subr.mxu0 0.0
        %4082 = vmatpush1.msra.mxu0 0.0
        %4083 = vmatprep.subr.mxu0 0.0
        %4084 = vmatpush1.msra.mxu0 0.0
        %4085 = vmatprep.subr.mxu0 0.0
        %4086 = vmatpush1.msra.mxu0 0.0
        %4087 = vmatprep.subr.mxu0 0.0
        %4088 = vmatpush1.msra.mxu0 0.0
        %4089 = vmatprep.subr.mxu0 0.0
        %4090 = vmatpush1.msra.mxu0 0.0
        %4091 = vmatprep.subr.mxu0 0.0
        %4092 = vmatpush1.msra.mxu0 0.0
        %4093 = vmatprep.subr.mxu0 0.0
        %4094 = vmatpush1.msra.mxu0 0.0
        %4095 = vmatprep.subr.mxu0 0.0
        %4096 = vmatpush1.msra.mxu0 0.0
        %4097 = vmatprep.subr.mxu0 0.0
        %4098 = vmatpush1.msra.mxu0 0.0
        %4099 = vmatprep.subr.mxu0 0.0
        %4100 = vmatpush1.msra.mxu0 0.0
        %4101 = vmatprep.mubr.f32.mxu0 0.0
        %4102 = vmatmul.mubr.f32.gmra.mrb[0].mxu0 %v4029
        %v4103 = vpop.f32.mrb[0].mxu0
        %v4104 = vadd.f32 0.0, %v4103
        %v4105 = vpop.f32.mrb[0].mxu0
        %4106 = vmatprep.mubr.f32.mxu0 0.0
        %4107 = vmatmul.mubr.f32.gmra.mrb[0].mxu0 %v4032
        %v4108 = vpop.f32.mrb[0].mxu0
        %v4109 = vadd.f32 0.0, %v4108
        %v4110 = vpop.f32.mrb[0].mxu0
        %4111 = vdwg.mxu0
        %v4113 = vsel %vm844, %v3568, 0
        %v4116 = vsel %vm844, %v3573, 0
        %4118 = vmatprep.subr.mxu0 0.0
        %4119 = vmatpush1.msra.mxu0 %v4035
        %4120 = vmatprep.subr.mxu0 0.0
        %4121 = vmatpush1.msra.mxu0 0.0
        %4122 = vmatprep.subr.mxu0 0.0
        %4123 = vmatpush1.msra.mxu0 0.0
        %4124 = vmatprep.subr.mxu0 0.0
        %4125 = vmatpush1.msra.mxu0 0.0
        %4126 = vmatprep.subr.mxu0 0.0
        %4127 = vmatpush1.msra.mxu0 0.0
        %4128 = vmatprep.subr.mxu0 0.0
        %4129 = vmatpush1.msra.mxu0 0.0
        %4130 = vmatprep.subr.mxu0 0.0
        %4131 = vmatpush1.msra.mxu0 0.0
        %4132 = vmatprep.subr.mxu0 0.0
        %4133 = vmatpush1.msra.mxu0 0.0
        %4134 = vmatprep.subr.mxu0 0.0
        %4135 = vmatpush1.msra.mxu0 0.0
        %4136 = vmatprep.subr.mxu0 0.0
        %4137 = vmatpush1.msra.mxu0 0.0
        %4138 = vmatprep.subr.mxu0 0.0
        %4139 = vmatpush1.msra.mxu0 0.0
        %4140 = vmatprep.subr.mxu0 0.0
        %4141 = vmatpush1.msra.mxu0 0.0
        %4142 = vmatprep.subr.mxu0 0.0
        %4143 = vmatpush1.msra.mxu0 0.0
        %4144 = vmatprep.subr.mxu0 0.0
        %4145 = vmatpush1.msra.mxu0 0.0
        %4146 = vmatprep.subr.mxu0 0.0
        %4147 = vmatpush1.msra.mxu0 0.0
        %4148 = vmatprep.subr.mxu0 0.0
        %4149 = vmatpush1.msra.mxu0 0.0
        %4150 = vmatprep.subr.mxu0 0.0
        %4151 = vmatpush1.msra.mxu0 0.0
        %4152 = vmatprep.subr.mxu0 0.0
        %4153 = vmatpush1.msra.mxu0 0.0
        %4154 = vmatprep.subr.mxu0 0.0
        %4155 = vmatpush1.msra.mxu0 0.0
        %4156 = vmatprep.subr.mxu0 0.0
        %4157 = vmatpush1.msra.mxu0 0.0
        %4158 = vmatprep.subr.mxu0 0.0
        %4159 = vmatpush1.msra.mxu0 0.0
        %4160 = vmatprep.subr.mxu0 0.0
        %4161 = vmatpush1.msra.mxu0 0.0
        %4162 = vmatprep.subr.mxu0 0.0
        %4163 = vmatpush1.msra.mxu0 0.0
        %4164 = vmatprep.subr.mxu0 0.0
        %4165 = vmatpush1.msra.mxu0 0.0
        %4166 = vmatprep.subr.mxu0 0.0
        %4167 = vmatpush1.msra.mxu0 0.0
        %4168 = vmatprep.subr.mxu0 0.0
        %4169 = vmatpush1.msra.mxu0 0.0
        %4170 = vmatprep.subr.mxu0 0.0
        %4171 = vmatpush1.msra.mxu0 0.0
        %4172 = vmatprep.subr.mxu0 0.0
        %4173 = vmatpush1.msra.mxu0 0.0
        %4174 = vmatprep.subr.mxu0 0.0
        %4175 = vmatpush1.msra.mxu0 0.0
        %4176 = vmatprep.subr.mxu0 0.0
        %4177 = vmatpush1.msra.mxu0 0.0
        %4178 = vmatprep.subr.mxu0 0.0
        %4179 = vmatpush1.msra.mxu0 0.0
        %4180 = vmatprep.subr.mxu0 0.0
        %4181 = vmatpush1.msra.mxu0 0.0
        %4182 = vmatprep.mubr.f32.mxu0 0.0
        %4183 = vmatmul.mubr.f32.gmra.mrb[0].mxu0 %v4113
        %v4184 = vpop.f32.mrb[0].mxu0
        %v4185 = vadd.f32 0.0, %v4184
        %v4186 = vpop.f32.mrb[0].mxu0
        %4187 = vmatprep.mubr.f32.mxu0 0.0
        %4188 = vmatmul.mubr.f32.gmra.mrb[0].mxu0 %v4116
        %v4189 = vpop.f32.mrb[0].mxu0
        %v4190 = vadd.f32 0.0, %v4189
        %v4191 = vpop.f32.mrb[0].mxu0
        %4192 = vdwg.mxu0
        %v4194 = vsel %vm844, %v3643, 0
        %v4197 = vsel %vm844, %v3648, 0
        %4199 = vmatprep.subr.mxu0 0.0
        %4200 = vmatpush1.msra.mxu0 %v4035
        %4201 = vmatprep.subr.mxu0 0.0
        %4202 = vmatpush1.msra.mxu0 0.0
        %4203 = vmatprep.subr.mxu0 0.0
        %4204 = vmatpush1.msra.mxu0 0.0
        %4205 = vmatprep.subr.mxu0 0.0
        %4206 = vmatpush1.msra.mxu0 0.0
        %4207 = vmatprep.subr.mxu0 0.0
        %4208 = vmatpush1.msra.mxu0 0.0
        %4209 = vmatprep.subr.mxu0 0.0
        %4210 = vmatpush1.msra.mxu0 0.0
        %4211 = vmatprep.subr.mxu0 0.0
        %4212 = vmatpush1.msra.mxu0 0.0
        %4213 = vmatprep.subr.mxu0 0.0
        %4214 = vmatpush1.msra.mxu0 0.0
        %4215 = vmatprep.subr.mxu0 0.0
        %4216 = vmatpush1.msra.mxu0 0.0
        %4217 = vmatprep.subr.mxu0 0.0
        %4218 = vmatpush1.msra.mxu0 0.0
        %4219 = vmatprep.subr.mxu0 0.0
        %4220 = vmatpush1.msra.mxu0 0.0
        %4221 = vmatprep.subr.mxu0 0.0
        %4222 = vmatpush1.msra.mxu0 0.0
        %4223 = vmatprep.subr.mxu0 0.0
        %4224 = vmatpush1.msra.mxu0 0.0
        %4225 = vmatprep.subr.mxu0 0.0
        %4226 = vmatpush1.msra.mxu0 0.0
        %4227 = vmatprep.subr.mxu0 0.0
        %4228 = vmatpush1.msra.mxu0 0.0
        %4229 = vmatprep.subr.mxu0 0.0
        %4230 = vmatpush1.msra.mxu0 0.0
        %4231 = vmatprep.subr.mxu0 0.0
        %4232 = vmatpush1.msra.mxu0 0.0
        %4233 = vmatprep.subr.mxu0 0.0
        %4234 = vmatpush1.msra.mxu0 0.0
        %4235 = vmatprep.subr.mxu0 0.0
        %4236 = vmatpush1.msra.mxu0 0.0
        %4237 = vmatprep.subr.mxu0 0.0
        %4238 = vmatpush1.msra.mxu0 0.0
        %4239 = vmatprep.subr.mxu0 0.0
        %4240 = vmatpush1.msra.mxu0 0.0
        %4241 = vmatprep.subr.mxu0 0.0
        %4242 = vmatpush1.msra.mxu0 0.0
        %4243 = vmatprep.subr.mxu0 0.0
        %4244 = vmatpush1.msra.mxu0 0.0
        %4245 = vmatprep.subr.mxu0 0.0
        %4246 = vmatpush1.msra.mxu0 0.0
        %4247 = vmatprep.subr.mxu0 0.0
        %4248 = vmatpush1.msra.mxu0 0.0
        %4249 = vmatprep.subr.mxu0 0.0
        %4250 = vmatpush1.msra.mxu0 0.0
        %4251 = vmatprep.subr.mxu0 0.0
        %4252 = vmatpush1.msra.mxu0 0.0
        %4253 = vmatprep.subr.mxu0 0.0
        %4254 = vmatpush1.msra.mxu0 0.0
        %4255 = vmatprep.subr.mxu0 0.0
        %4256 = vmatpush1.msra.mxu0 0.0
        %4257 = vmatprep.subr.mxu0 0.0
        %4258 = vmatpush1.msra.mxu0 0.0
        %4259 = vmatprep.subr.mxu0 0.0
        %4260 = vmatpush1.msra.mxu0 0.0
        %4261 = vmatprep.subr.mxu0 0.0
        %4262 = vmatpush1.msra.mxu0 0.0
        %4263 = vmatprep.mubr.f32.mxu0 0.0
        %4264 = vmatmul.mubr.f32.gmra.mrb[0].mxu0 %v4194
        %v4265 = vpop.f32.mrb[0].mxu0
        %v4266 = vadd.f32 0.0, %v4265
        %v4267 = vpop.f32.mrb[0].mxu0
        %4268 = vmatprep.mubr.f32.mxu0 0.0
        %4269 = vmatmul.mubr.f32.gmra.mrb[0].mxu0 %v4197
        %v4270 = vpop.f32.mrb[0].mxu0
        %v4271 = vadd.f32 0.0, %v4270
        %v4272 = vpop.f32.mrb[0].mxu0
        %4273 = vdwg.mxu0
        %v4275 = vsel %vm844, %v3718, 0
        %v4278 = vsel %vm844, %v3723, 0
        %4280 = vmatprep.subr.mxu0 0.0
        %4281 = vmatpush1.msra.mxu0 %v4035
        %4282 = vmatprep.subr.mxu0 0.0
        %4283 = vmatpush1.msra.mxu0 0.0
        %4284 = vmatprep.subr.mxu0 0.0
        %4285 = vmatpush1.msra.mxu0 0.0
        %4286 = vmatprep.subr.mxu0 0.0
        %4287 = vmatpush1.msra.mxu0 0.0
        %4288 = vmatprep.subr.mxu0 0.0
        %4289 = vmatpush1.msra.mxu0 0.0
        %4290 = vmatprep.subr.mxu0 0.0
        %4291 = vmatpush1.msra.mxu0 0.0
        %4292 = vmatprep.subr.mxu0 0.0
        %4293 = vmatpush1.msra.mxu0 0.0
        %4294 = vmatprep.subr.mxu0 0.0
        %4295 = vmatpush1.msra.mxu0 0.0
        %4296 = vmatprep.subr.mxu0 0.0
        %4297 = vmatpush1.msra.mxu0 0.0
        %4298 = vmatprep.subr.mxu0 0.0
        %4299 = vmatpush1.msra.mxu0 0.0
        %4300 = vmatprep.subr.mxu0 0.0
        %4301 = vmatpush1.msra.mxu0 0.0
        %4302 = vmatprep.subr.mxu0 0.0
        %4303 = vmatpush1.msra.mxu0 0.0
        %4304 = vmatprep.subr.mxu0 0.0
        %4305 = vmatpush1.msra.mxu0 0.0
        %4306 = vmatprep.subr.mxu0 0.0
        %4307 = vmatpush1.msra.mxu0 0.0
        %4308 = vmatprep.subr.mxu0 0.0
        %4309 = vmatpush1.msra.mxu0 0.0
        %4310 = vmatprep.subr.mxu0 0.0
        %4311 = vmatpush1.msra.mxu0 0.0
        %4312 = vmatprep.subr.mxu0 0.0
        %4313 = vmatpush1.msra.mxu0 0.0
        %4314 = vmatprep.subr.mxu0 0.0
        %4315 = vmatpush1.msra.mxu0 0.0
        %4316 = vmatprep.subr.mxu0 0.0
        %4317 = vmatpush1.msra.mxu0 0.0
        %4318 = vmatprep.subr.mxu0 0.0
        %4319 = vmatpush1.msra.mxu0 0.0
        %4320 = vmatprep.subr.mxu0 0.0
        %4321 = vmatpush1.msra.mxu0 0.0
        %4322 = vmatprep.subr.mxu0 0.0
        %4323 = vmatpush1.msra.mxu0 0.0
        %4324 = vmatprep.subr.mxu0 0.0
        %4325 = vmatpush1.msra.mxu0 0.0
        %4326 = vmatprep.subr.mxu0 0.0
        %4327 = vmatpush1.msra.mxu0 0.0
        %4328 = vmatprep.subr.mxu0 0.0
        %4329 = vmatpush1.msra.mxu0 0.0
        %4330 = vmatprep.subr.mxu0 0.0
        %4331 = vmatpush1.msra.mxu0 0.0
        %4332 = vmatprep.subr.mxu0 0.0
        %4333 = vmatpush1.msra.mxu0 0.0
        %4334 = vmatprep.subr.mxu0 0.0
        %4335 = vmatpush1.msra.mxu0 0.0
        %4336 = vmatprep.subr.mxu0 0.0
        %4337 = vmatpush1.msra.mxu0 0.0
        %4338 = vmatprep.subr.mxu0 0.0
        %4339 = vmatpush1.msra.mxu0 0.0
        %4340 = vmatprep.subr.mxu0 0.0
        %4341 = vmatpush1.msra.mxu0 0.0
        %4342 = vmatprep.subr.mxu0 0.0
        %4343 = vmatpush1.msra.mxu0 0.0
        %4344 = vmatprep.mubr.f32.mxu0 0.0
        %4345 = vmatmul.mubr.f32.gmra.mrb[0].mxu0 %v4275
        %v4346 = vpop.f32.mrb[0].mxu0
        %v4347 = vadd.f32 0.0, %v4346
        %v4348 = vpop.f32.mrb[0].mxu0
        %4349 = vmatprep.mubr.f32.mxu0 0.0
        %4350 = vmatmul.mubr.f32.gmra.mrb[0].mxu0 %v4278
        %v4351 = vpop.f32.mrb[0].mxu0
        %v4352 = vadd.f32 0.0, %v4351
        %v4353 = vpop.f32.mrb[0].mxu0
        %4354 = vdwg.mxu0
        %v4356 = vsel %vm844, %v3793, 0
        %v4359 = vsel %vm844, %v3798, 0
        %4361 = vmatprep.subr.mxu0 0.0
        %4362 = vmatpush1.msra.mxu0 %v4035
        %4363 = vmatprep.subr.mxu0 0.0
        %4364 = vmatpush1.msra.mxu0 0.0
        %4365 = vmatprep.subr.mxu0 0.0
        %4366 = vmatpush1.msra.mxu0 0.0
        %4367 = vmatprep.subr.mxu0 0.0
        %4368 = vmatpush1.msra.mxu0 0.0
        %4369 = vmatprep.subr.mxu0 0.0
        %4370 = vmatpush1.msra.mxu0 0.0
        %4371 = vmatprep.subr.mxu0 0.0
        %4372 = vmatpush1.msra.mxu0 0.0
        %4373 = vmatprep.subr.mxu0 0.0
        %4374 = vmatpush1.msra.mxu0 0.0
        %4375 = vmatprep.subr.mxu0 0.0
        %4376 = vmatpush1.msra.mxu0 0.0
        %4377 = vmatprep.subr.mxu0 0.0
        %4378 = vmatpush1.msra.mxu0 0.0
        %4379 = vmatprep.subr.mxu0 0.0
        %4380 = vmatpush1.msra.mxu0 0.0
        %4381 = vmatprep.subr.mxu0 0.0
        %4382 = vmatpush1.msra.mxu0 0.0
        %4383 = vmatprep.subr.mxu0 0.0
        %4384 = vmatpush1.msra.mxu0 0.0
        %4385 = vmatprep.subr.mxu0 0.0
        %4386 = vmatpush1.msra.mxu0 0.0
        %4387 = vmatprep.subr.mxu0 0.0
        %4388 = vmatpush1.msra.mxu0 0.0
        %4389 = vmatprep.subr.mxu0 0.0
        %4390 = vmatpush1.msra.mxu0 0.0
        %4391 = vmatprep.subr.mxu0 0.0
        %4392 = vmatpush1.msra.mxu0 0.0
        %4393 = vmatprep.subr.mxu0 0.0
        %4394 = vmatpush1.msra.mxu0 0.0
        %4395 = vmatprep.subr.mxu0 0.0
        %4396 = vmatpush1.msra.mxu0 0.0
        %4397 = vmatprep.subr.mxu0 0.0
        %4398 = vmatpush1.msra.mxu0 0.0
        %4399 = vmatprep.subr.mxu0 0.0
        %4400 = vmatpush1.msra.mxu0 0.0
        %4401 = vmatprep.subr.mxu0 0.0
        %4402 = vmatpush1.msra.mxu0 0.0
        %4403 = vmatprep.subr.mxu0 0.0
        %4404 = vmatpush1.msra.mxu0 0.0
        %4405 = vmatprep.subr.mxu0 0.0
        %4406 = vmatpush1.msra.mxu0 0.0
        %4407 = vmatprep.subr.mxu0 0.0
        %4408 = vmatpush1.msra.mxu0 0.0
        %4409 = vmatprep.subr.mxu0 0.0
        %4410 = vmatpush1.msra.mxu0 0.0
        %4411 = vmatprep.subr.mxu0 0.0
        %4412 = vmatpush1.msra.mxu0 0.0
        %4413 = vmatprep.subr.mxu0 0.0
        %4414 = vmatpush1.msra.mxu0 0.0
        %4415 = vmatprep.subr.mxu0 0.0
        %4416 = vmatpush1.msra.mxu0 0.0
        %4417 = vmatprep.subr.mxu0 0.0
        %4418 = vmatpush1.msra.mxu0 0.0
        %4419 = vmatprep.subr.mxu0 0.0
        %4420 = vmatpush1.msra.mxu0 0.0
        %4421 = vmatprep.subr.mxu0 0.0
        %4422 = vmatpush1.msra.mxu0 0.0
        %4423 = vmatprep.subr.mxu0 0.0
        %4424 = vmatpush1.msra.mxu0 0.0
        %4425 = vmatprep.mubr.f32.mxu0 0.0
        %4426 = vmatmul.mubr.f32.gmra.mrb[0].mxu0 %v4356
        %v4427 = vpop.f32.mrb[0].mxu0
        %v4428 = vadd.f32 0.0, %v4427
        %v4429 = vpop.f32.mrb[0].mxu0
        %4430 = vmatprep.mubr.f32.mxu0 0.0
        %4431 = vmatmul.mubr.f32.gmra.mrb[0].mxu0 %v4359
        %v4432 = vpop.f32.mrb[0].mxu0
        %v4433 = vadd.f32 0.0, %v4432
        %v4434 = vpop.f32.mrb[0].mxu0
        %4435 = vdwg.mxu0
        %v4437 = vsel %vm844, %v3868, 0
        %v4440 = vsel %vm844, %v3873, 0
        %4442 = vmatprep.subr.mxu0 0.0
        %4443 = vmatpush1.msra.mxu0 %v4035
        %4444 = vmatprep.subr.mxu0 0.0
        %4445 = vmatpush1.msra.mxu0 0.0
        %4446 = vmatprep.subr.mxu0 0.0
        %4447 = vmatpush1.msra.mxu0 0.0
        %4448 = vmatprep.subr.mxu0 0.0
        %4449 = vmatpush1.msra.mxu0 0.0
        %4450 = vmatprep.subr.mxu0 0.0
        %4451 = vmatpush1.msra.mxu0 0.0
        %4452 = vmatprep.subr.mxu0 0.0
        %4453 = vmatpush1.msra.mxu0 0.0
        %4454 = vmatprep.subr.mxu0 0.0
        %4455 = vmatpush1.msra.mxu0 0.0
        %4456 = vmatprep.subr.mxu0 0.0
        %4457 = vmatpush1.msra.mxu0 0.0
        %4458 = vmatprep.subr.mxu0 0.0
        %4459 = vmatpush1.msra.mxu0 0.0
        %4460 = vmatprep.subr.mxu0 0.0
        %4461 = vmatpush1.msra.mxu0 0.0
        %4462 = vmatprep.subr.mxu0 0.0
        %4463 = vmatpush1.msra.mxu0 0.0
        %4464 = vmatprep.subr.mxu0 0.0
        %4465 = vmatpush1.msra.mxu0 0.0
        %4466 = vmatprep.subr.mxu0 0.0
        %4467 = vmatpush1.msra.mxu0 0.0
        %4468 = vmatprep.subr.mxu0 0.0
        %4469 = vmatpush1.msra.mxu0 0.0
        %4470 = vmatprep.subr.mxu0 0.0
        %4471 = vmatpush1.msra.mxu0 0.0
        %4472 = vmatprep.subr.mxu0 0.0
        %4473 = vmatpush1.msra.mxu0 0.0
        %4474 = vmatprep.subr.mxu0 0.0
        %4475 = vmatpush1.msra.mxu0 0.0
        %4476 = vmatprep.subr.mxu0 0.0
        %4477 = vmatpush1.msra.mxu0 0.0
        %4478 = vmatprep.subr.mxu0 0.0
        %4479 = vmatpush1.msra.mxu0 0.0
        %4480 = vmatprep.subr.mxu0 0.0
        %4481 = vmatpush1.msra.mxu0 0.0
        %4482 = vmatprep.subr.mxu0 0.0
        %4483 = vmatpush1.msra.mxu0 0.0
        %4484 = vmatprep.subr.mxu0 0.0
        %4485 = vmatpush1.msra.mxu0 0.0
        %4486 = vmatprep.subr.mxu0 0.0
        %4487 = vmatpush1.msra.mxu0 0.0
        %4488 = vmatprep.subr.mxu0 0.0
        %4489 = vmatpush1.msra.mxu0 0.0
        %4490 = vmatprep.subr.mxu0 0.0
        %4491 = vmatpush1.msra.mxu0 0.0
        %4492 = vmatprep.subr.mxu0 0.0
        %4493 = vmatpush1.msra.mxu0 0.0
        %4494 = vmatprep.subr.mxu0 0.0
        %4495 = vmatpush1.msra.mxu0 0.0
        %4496 = vmatprep.subr.mxu0 0.0
        %4497 = vmatpush1.msra.mxu0 0.0
        %4498 = vmatprep.subr.mxu0 0.0
        %4499 = vmatpush1.msra.mxu0 0.0
        %4500 = vmatprep.subr.mxu0 0.0
        %4501 = vmatpush1.msra.mxu0 0.0
        %4502 = vmatprep.subr.mxu0 0.0
        %4503 = vmatpush1.msra.mxu0 0.0
        %4504 = vmatprep.subr.mxu0 0.0
        %4505 = vmatpush1.msra.mxu0 0.0
        %4506 = vmatprep.mubr.f32.mxu0 0.0
        %4507 = vmatmul.mubr.f32.gmra.mrb[0].mxu0 %v4437
        %v4508 = vpop.f32.mrb[0].mxu0
        %v4509 = vadd.f32 0.0, %v4508
        %v4510 = vpop.f32.mrb[0].mxu0
        %4511 = vmatprep.mubr.f32.mxu0 0.0
        %4512 = vmatmul.mubr.f32.gmra.mrb[0].mxu0 %v4440
        %v4513 = vpop.f32.mrb[0].mxu0
        %v4514 = vadd.f32 0.0, %v4513
        %v4515 = vpop.f32.mrb[0].mxu0
        %4516 = vdwg.mxu0
        %v4518 = vsel %vm844, %v3943, 0
        %v4521 = vsel %vm844, %v3948, 0
        %4523 = vmatprep.subr.mxu0 0.0
        %4524 = vmatpush1.msra.mxu0 %v4035
        %4525 = vmatprep.subr.mxu0 0.0
        %4526 = vmatpush1.msra.mxu0 0.0
        %4527 = vmatprep.subr.mxu0 0.0
        %4528 = vmatpush1.msra.mxu0 0.0
        %4529 = vmatprep.subr.mxu0 0.0
        %4530 = vmatpush1.msra.mxu0 0.0
        %4531 = vmatprep.subr.mxu0 0.0
        %4532 = vmatpush1.msra.mxu0 0.0
        %4533 = vmatprep.subr.mxu0 0.0
        %4534 = vmatpush1.msra.mxu0 0.0
        %4535 = vmatprep.subr.mxu0 0.0
        %4536 = vmatpush1.msra.mxu0 0.0
        %4537 = vmatprep.subr.mxu0 0.0
        %4538 = vmatpush1.msra.mxu0 0.0
        %4539 = vmatprep.subr.mxu0 0.0
        %4540 = vmatpush1.msra.mxu0 0.0
        %4541 = vmatprep.subr.mxu0 0.0
        %4542 = vmatpush1.msra.mxu0 0.0
        %4543 = vmatprep.subr.mxu0 0.0
        %4544 = vmatpush1.msra.mxu0 0.0
        %4545 = vmatprep.subr.mxu0 0.0
        %4546 = vmatpush1.msra.mxu0 0.0
        %4547 = vmatprep.subr.mxu0 0.0
        %4548 = vmatpush1.msra.mxu0 0.0
        %4549 = vmatprep.subr.mxu0 0.0
        %4550 = vmatpush1.msra.mxu0 0.0
        %4551 = vmatprep.subr.mxu0 0.0
        %4552 = vmatpush1.msra.mxu0 0.0
        %4553 = vmatprep.subr.mxu0 0.0
        %4554 = vmatpush1.msra.mxu0 0.0
        %4555 = vmatprep.subr.mxu0 0.0
        %4556 = vmatpush1.msra.mxu0 0.0
        %4557 = vmatprep.subr.mxu0 0.0
        %4558 = vmatpush1.msra.mxu0 0.0
        %4559 = vmatprep.subr.mxu0 0.0
        %4560 = vmatpush1.msra.mxu0 0.0
        %4561 = vmatprep.subr.mxu0 0.0
        %4562 = vmatpush1.msra.mxu0 0.0
        %4563 = vmatprep.subr.mxu0 0.0
        %4564 = vmatpush1.msra.mxu0 0.0
        %4565 = vmatprep.subr.mxu0 0.0
        %4566 = vmatpush1.msra.mxu0 0.0
        %4567 = vmatprep.subr.mxu0 0.0
        %4568 = vmatpush1.msra.mxu0 0.0
        %4569 = vmatprep.subr.mxu0 0.0
        %4570 = vmatpush1.msra.mxu0 0.0
        %4571 = vmatprep.subr.mxu0 0.0
        %4572 = vmatpush1.msra.mxu0 0.0
        %4573 = vmatprep.subr.mxu0 0.0
        %4574 = vmatpush1.msra.mxu0 0.0
        %4575 = vmatprep.subr.mxu0 0.0
        %4576 = vmatpush1.msra.mxu0 0.0
        %4577 = vmatprep.subr.mxu0 0.0
        %4578 = vmatpush1.msra.mxu0 0.0
        %4579 = vmatprep.subr.mxu0 0.0
        %4580 = vmatpush1.msra.mxu0 0.0
        %4581 = vmatprep.subr.mxu0 0.0
        %4582 = vmatpush1.msra.mxu0 0.0
        %4583 = vmatprep.subr.mxu0 0.0
        %4584 = vmatpush1.msra.mxu0 0.0
        %4585 = vmatprep.subr.mxu0 0.0
        %4586 = vmatpush1.msra.mxu0 0.0
        %4587 = vmatprep.mubr.f32.mxu0 0.0
        %4588 = vmatmul.mubr.f32.gmra.mrb[0].mxu0 %v4518
        %v4589 = vpop.f32.mrb[0].mxu0
        %v4590 = vadd.f32 0.0, %v4589
        %v4591 = vpop.f32.mrb[0].mxu0
        %4592 = vmatprep.mubr.f32.mxu0 0.0
        %4593 = vmatmul.mubr.f32.gmra.mrb[0].mxu0 %v4521
        %v4594 = vpop.f32.mrb[0].mxu0
        %v4595 = vadd.f32 0.0, %v4594
        %v4596 = vpop.f32.mrb[0].mxu0
        %4597 = vdwg.mxu0
        %v4599 = vsel %vm844, %v4018, 0
        %v4602 = vsel %vm844, %v4023, 0
        %4604 = vmatprep.subr.mxu0 0.0
        %4605 = vmatpush1.msra.mxu0 %v4035
        %4606 = vmatprep.subr.mxu0 0.0
        %4607 = vmatpush1.msra.mxu0 0.0
        %4608 = vmatprep.subr.mxu0 0.0
        %4609 = vmatpush1.msra.mxu0 0.0
        %4610 = vmatprep.subr.mxu0 0.0
        %4611 = vmatpush1.msra.mxu0 0.0
        %4612 = vmatprep.subr.mxu0 0.0
        %4613 = vmatpush1.msra.mxu0 0.0
        %4614 = vmatprep.subr.mxu0 0.0
        %4615 = vmatpush1.msra.mxu0 0.0
        %4616 = vmatprep.subr.mxu0 0.0
        %4617 = vmatpush1.msra.mxu0 0.0
        %4618 = vmatprep.subr.mxu0 0.0
        %4619 = vmatpush1.msra.mxu0 0.0
        %4620 = vmatprep.subr.mxu0 0.0
        %4621 = vmatpush1.msra.mxu0 0.0
        %4622 = vmatprep.subr.mxu0 0.0
        %4623 = vmatpush1.msra.mxu0 0.0
        %4624 = vmatprep.subr.mxu0 0.0
        %4625 = vmatpush1.msra.mxu0 0.0
        %4626 = vmatprep.subr.mxu0 0.0
        %4627 = vmatpush1.msra.mxu0 0.0
        %4628 = vmatprep.subr.mxu0 0.0
        %4629 = vmatpush1.msra.mxu0 0.0
        %4630 = vmatprep.subr.mxu0 0.0
        %4631 = vmatpush1.msra.mxu0 0.0
        %4632 = vmatprep.subr.mxu0 0.0
        %4633 = vmatpush1.msra.mxu0 0.0
        %4634 = vmatprep.subr.mxu0 0.0
        %4635 = vmatpush1.msra.mxu0 0.0
        %4636 = vmatprep.subr.mxu0 0.0
        %4637 = vmatpush1.msra.mxu0 0.0
        %4638 = vmatprep.subr.mxu0 0.0
        %4639 = vmatpush1.msra.mxu0 0.0
        %4640 = vmatprep.subr.mxu0 0.0
        %4641 = vmatpush1.msra.mxu0 0.0
        %4642 = vmatprep.subr.mxu0 0.0
        %4643 = vmatpush1.msra.mxu0 0.0
        %4644 = vmatprep.subr.mxu0 0.0
        %4645 = vmatpush1.msra.mxu0 0.0
        %4646 = vmatprep.subr.mxu0 0.0
        %4647 = vmatpush1.msra.mxu0 0.0
        %4648 = vmatprep.subr.mxu0 0.0
        %4649 = vmatpush1.msra.mxu0 0.0
        %4650 = vmatprep.subr.mxu0 0.0
        %4651 = vmatpush1.msra.mxu0 0.0
        %4652 = vmatprep.subr.mxu0 0.0
        %4653 = vmatpush1.msra.mxu0 0.0
        %4654 = vmatprep.subr.mxu0 0.0
        %4655 = vmatpush1.msra.mxu0 0.0
        %4656 = vmatprep.subr.mxu0 0.0
        %4657 = vmatpush1.msra.mxu0 0.0
        %4658 = vmatprep.subr.mxu0 0.0
        %4659 = vmatpush1.msra.mxu0 0.0
        %4660 = vmatprep.subr.mxu0 0.0
        %4661 = vmatpush1.msra.mxu0 0.0
        %4662 = vmatprep.subr.mxu0 0.0
        %4663 = vmatpush1.msra.mxu0 0.0
        %4664 = vmatprep.subr.mxu0 0.0
        %4665 = vmatpush1.msra.mxu0 0.0
        %4666 = vmatprep.subr.mxu0 0.0
        %4667 = vmatpush1.msra.mxu0 0.0
        %4668 = vmatprep.mubr.f32.mxu0 0.0
        %4669 = vmatmul.mubr.f32.gmra.mrb[0].mxu0 %v4599
        %v4670 = vpop.f32.mrb[0].mxu0
        %v4671 = vadd.f32 0.0, %v4670
        %v4672 = vpop.f32.mrb[0].mxu0
        %4673 = vmatprep.mubr.f32.mxu0 0.0
        %4674 = vmatmul.mubr.f32.gmra.mrb[0].mxu0 %v4602
        %v4675 = vpop.f32.mrb[0].mxu0
        %v4676 = vadd.f32 0.0, %v4675
        %v4677 = vpop.f32.mrb[0].mxu0
        %4678 = vdwg.mxu0
        %v4679 = vadd.f32 %v3401, %v4104
        %v4680 = vadd.f32 %v3402, %v4109
        %v4681 = vadd.f32 %v3403, %v4185
        %v4682 = vadd.f32 %v3404, %v4190
        %v4683 = vadd.f32 %v3405, %v4266
        %v4684 = vadd.f32 %v3406, %v4271
        %v4685 = vadd.f32 %v3407, %v4347
        %v4686 = vadd.f32 %v3408, %v4352
        %v4687 = vadd.f32 %v3409, %v4428
        %v4688 = vadd.f32 %v3410, %v4433
        %v4689 = vadd.f32 %v3411, %v4509
        %v4690 = vadd.f32 %v3412, %v4514
        %v4691 = vadd.f32 %v3413, %v4590
        %v4692 = vadd.f32 %v3414, %v4595
        %v4693 = vadd.f32 %v3415, %v4671
        %v4694 = vadd.f32 %v3416, %v4676
        %4695 = vmatprep.subr.mxu0 0.0
        %4696 = vmatpush1.msra.mxu0 %v3493
        %4697 = vmatprep.subr.mxu0 0.0
        %4698 = vmatpush1.msra.mxu0 %v3498
        %4699 = vmatprep.subr.mxu0 0.0
        %4700 = vmatpush1.msra.mxu0 0.0
        %4701 = vmatprep.subr.mxu0 0.0
        %4702 = vmatpush1.msra.mxu0 0.0
        %4703 = vmatprep.subr.mxu0 0.0
        %4704 = vmatpush1.msra.mxu0 0.0
        %4705 = vmatprep.subr.mxu0 0.0
        %4706 = vmatpush1.msra.mxu0 0.0
        %4707 = vmatprep.subr.mxu0 0.0
        %4708 = vmatpush1.msra.mxu0 0.0
        %4709 = vmatprep.subr.mxu0 0.0
        %4710 = vmatpush1.msra.mxu0 0.0
        %4711 = vmatprep.subr.mxu0 0.0
        %4712 = vmatpush1.msra.mxu0 0.0
        %4713 = vmatprep.subr.mxu0 0.0
        %4714 = vmatpush1.msra.mxu0 0.0
        %4715 = vmatprep.subr.mxu0 0.0
        %4716 = vmatpush1.msra.mxu0 0.0
        %4717 = vmatprep.subr.mxu0 0.0
        %4718 = vmatpush1.msra.mxu0 0.0
        %4719 = vmatprep.subr.mxu0 0.0
        %4720 = vmatpush1.msra.mxu0 0.0
        %4721 = vmatprep.subr.mxu0 0.0
        %4722 = vmatpush1.msra.mxu0 0.0
        %4723 = vmatprep.subr.mxu0 0.0
        %4724 = vmatpush1.msra.mxu0 0.0
        %4725 = vmatprep.subr.mxu0 0.0
        %4726 = vmatpush1.msra.mxu0 0.0
        %4727 = vmatprep.subr.mxu0 0.0
        %4728 = vmatpush1.msra.mxu0 0.0
        %4729 = vmatprep.subr.mxu0 0.0
        %4730 = vmatpush1.msra.mxu0 0.0
        %4731 = vmatprep.subr.mxu0 0.0
        %4732 = vmatpush1.msra.mxu0 0.0
        %4733 = vmatprep.subr.mxu0 0.0
        %4734 = vmatpush1.msra.mxu0 0.0
        %4735 = vmatprep.subr.mxu0 0.0
        %4736 = vmatpush1.msra.mxu0 0.0
        %4737 = vmatprep.subr.mxu0 0.0
        %4738 = vmatpush1.msra.mxu0 0.0
        %4739 = vmatprep.subr.mxu0 0.0
        %4740 = vmatpush1.msra.mxu0 0.0
        %4741 = vmatprep.subr.mxu0 0.0
        %4742 = vmatpush1.msra.mxu0 0.0
        %4743 = vmatprep.subr.mxu0 0.0
        %4744 = vmatpush1.msra.mxu0 0.0
        %4745 = vmatprep.subr.mxu0 0.0
        %4746 = vmatpush1.msra.mxu0 0.0
        %4747 = vmatprep.subr.mxu0 0.0
        %4748 = vmatpush1.msra.mxu0 0.0
        %4749 = vmatprep.subr.mxu0 0.0
        %4750 = vmatpush1.msra.mxu0 0.0
        %4751 = vmatprep.subr.mxu0 0.0
        %4752 = vmatpush1.msra.mxu0 0.0
        %4753 = vmatprep.subr.mxu0 0.0
        %4754 = vmatpush1.msra.mxu0 0.0
        %4755 = vmatprep.subr.mxu0 0.0
        %4756 = vmatpush1.msra.mxu0 0.0
        %4757 = vmatprep.subr.mxu0 0.0
        %4758 = vmatpush1.msra.mxu0 0.0
        %4759 = vmatprep.mubr.f32.mxu0 0.0
        %4760 = vmatmul.mubr.f32.gmra.mrb[0].mxu0 %v3421
        %v4761 = vpop.f32.mrb[0].mxu0
        %v4762 = vadd.f32 0.0, %v4761
        %v4763 = vpop.f32.mrb[0].mxu0
        %4764 = vmatprep.mubr.f32.mxu0 0.0
        %4765 = vmatmul.mubr.f32.gmra.mrb[0].mxu0 %v3424
        %v4766 = vpop.f32.mrb[0].mxu0
        %v4767 = vadd.f32 0.0, %v4766
        %v4768 = vpop.f32.mrb[0].mxu0
        %4769 = vdwg.mxu0
        %4770 = vmatprep.subr.mxu0 0.0
        %4771 = vmatpush1.msra.mxu0 %v3568
        %4772 = vmatprep.subr.mxu0 0.0
        %4773 = vmatpush1.msra.mxu0 %v3573
        %4774 = vmatprep.subr.mxu0 0.0
        %4775 = vmatpush1.msra.mxu0 0.0
        %4776 = vmatprep.subr.mxu0 0.0
        %4777 = vmatpush1.msra.mxu0 0.0
        %4778 = vmatprep.subr.mxu0 0.0
        %4779 = vmatpush1.msra.mxu0 0.0
        %4780 = vmatprep.subr.mxu0 0.0
        %4781 = vmatpush1.msra.mxu0 0.0
        %4782 = vmatprep.subr.mxu0 0.0
        %4783 = vmatpush1.msra.mxu0 0.0
        %4784 = vmatprep.subr.mxu0 0.0
        %4785 = vmatpush1.msra.mxu0 0.0
        %4786 = vmatprep.subr.mxu0 0.0
        %4787 = vmatpush1.msra.mxu0 0.0
        %4788 = vmatprep.subr.mxu0 0.0
        %4789 = vmatpush1.msra.mxu0 0.0
        %4790 = vmatprep.subr.mxu0 0.0
        %4791 = vmatpush1.msra.mxu0 0.0
        %4792 = vmatprep.subr.mxu0 0.0
        %4793 = vmatpush1.msra.mxu0 0.0
        %4794 = vmatprep.subr.mxu0 0.0
        %4795 = vmatpush1.msra.mxu0 0.0
        %4796 = vmatprep.subr.mxu0 0.0
        %4797 = vmatpush1.msra.mxu0 0.0
        %4798 = vmatprep.subr.mxu0 0.0
        %4799 = vmatpush1.msra.mxu0 0.0
        %4800 = vmatprep.subr.mxu0 0.0
        %4801 = vmatpush1.msra.mxu0 0.0
        %4802 = vmatprep.subr.mxu0 0.0
        %4803 = vmatpush1.msra.mxu0 0.0
        %4804 = vmatprep.subr.mxu0 0.0
        %4805 = vmatpush1.msra.mxu0 0.0
        %4806 = vmatprep.subr.mxu0 0.0
        %4807 = vmatpush1.msra.mxu0 0.0
        %4808 = vmatprep.subr.mxu0 0.0
        %4809 = vmatpush1.msra.mxu0 0.0
        %4810 = vmatprep.subr.mxu0 0.0
        %4811 = vmatpush1.msra.mxu0 0.0
        %4812 = vmatprep.subr.mxu0 0.0
        %4813 = vmatpush1.msra.mxu0 0.0
        %4814 = vmatprep.subr.mxu0 0.0
        %4815 = vmatpush1.msra.mxu0 0.0
        %4816 = vmatprep.subr.mxu0 0.0
        %4817 = vmatpush1.msra.mxu0 0.0
        %4818 = vmatprep.subr.mxu0 0.0
        %4819 = vmatpush1.msra.mxu0 0.0
        %4820 = vmatprep.subr.mxu0 0.0
        %4821 = vmatpush1.msra.mxu0 0.0
        %4822 = vmatprep.subr.mxu0 0.0
        %4823 = vmatpush1.msra.mxu0 0.0
        %4824 = vmatprep.subr.mxu0 0.0
        %4825 = vmatpush1.msra.mxu0 0.0
        %4826 = vmatprep.subr.mxu0 0.0
        %4827 = vmatpush1.msra.mxu0 0.0
        %4828 = vmatprep.subr.mxu0 0.0
        %4829 = vmatpush1.msra.mxu0 0.0
        %4830 = vmatprep.subr.mxu0 0.0
        %4831 = vmatpush1.msra.mxu0 0.0
        %4832 = vmatprep.subr.mxu0 0.0
        %4833 = vmatpush1.msra.mxu0 0.0
        %4834 = vmatprep.mubr.f32.mxu0 0.0
        %4835 = vmatmul.mubr.f32.gmra.mrb[0].mxu0 %v3421
        %v4836 = vpop.f32.mrb[0].mxu0
        %v4837 = vadd.f32 0.0, %v4836
        %v4838 = vpop.f32.mrb[0].mxu0
        %4839 = vmatprep.mubr.f32.mxu0 0.0
        %4840 = vmatmul.mubr.f32.gmra.mrb[0].mxu0 %v3424
        %v4841 = vpop.f32.mrb[0].mxu0
        %v4842 = vadd.f32 0.0, %v4841
        %v4843 = vpop.f32.mrb[0].mxu0
        %4844 = vdwg.mxu0
        %4845 = vmatprep.subr.mxu0 0.0
        %4846 = vmatpush1.msra.mxu0 %v3643
        %4847 = vmatprep.subr.mxu0 0.0
        %4848 = vmatpush1.msra.mxu0 %v3648
        %4849 = vmatprep.subr.mxu0 0.0
        %4850 = vmatpush1.msra.mxu0 0.0
        %4851 = vmatprep.subr.mxu0 0.0
        %4852 = vmatpush1.msra.mxu0 0.0
        %4853 = vmatprep.subr.mxu0 0.0
        %4854 = vmatpush1.msra.mxu0 0.0
        %4855 = vmatprep.subr.mxu0 0.0
        %4856 = vmatpush1.msra.mxu0 0.0
        %4857 = vmatprep.subr.mxu0 0.0
        %4858 = vmatpush1.msra.mxu0 0.0
        %4859 = vmatprep.subr.mxu0 0.0
        %4860 = vmatpush1.msra.mxu0 0.0
        %4861 = vmatprep.subr.mxu0 0.0
        %4862 = vmatpush1.msra.mxu0 0.0
        %4863 = vmatprep.subr.mxu0 0.0
        %4864 = vmatpush1.msra.mxu0 0.0
        %4865 = vmatprep.subr.mxu0 0.0
        %4866 = vmatpush1.msra.mxu0 0.0
        %4867 = vmatprep.subr.mxu0 0.0
        %4868 = vmatpush1.msra.mxu0 0.0
        %4869 = vmatprep.subr.mxu0 0.0
        %4870 = vmatpush1.msra.mxu0 0.0
        %4871 = vmatprep.subr.mxu0 0.0
        %4872 = vmatpush1.msra.mxu0 0.0
        %4873 = vmatprep.subr.mxu0 0.0
        %4874 = vmatpush1.msra.mxu0 0.0
        %4875 = vmatprep.subr.mxu0 0.0
        %4876 = vmatpush1.msra.mxu0 0.0
        %4877 = vmatprep.subr.mxu0 0.0
        %4878 = vmatpush1.msra.mxu0 0.0
        %4879 = vmatprep.subr.mxu0 0.0
        %4880 = vmatpush1.msra.mxu0 0.0
        %4881 = vmatprep.subr.mxu0 0.0
        %4882 = vmatpush1.msra.mxu0 0.0
        %4883 = vmatprep.subr.mxu0 0.0
        %4884 = vmatpush1.msra.mxu0 0.0
        %4885 = vmatprep.subr.mxu0 0.0
        %4886 = vmatpush1.msra.mxu0 0.0
        %4887 = vmatprep.subr.mxu0 0.0
        %4888 = vmatpush1.msra.mxu0 0.0
        %4889 = vmatprep.subr.mxu0 0.0
        %4890 = vmatpush1.msra.mxu0 0.0
        %4891 = vmatprep.subr.mxu0 0.0
        %4892 = vmatpush1.msra.mxu0 0.0
        %4893 = vmatprep.subr.mxu0 0.0
        %4894 = vmatpush1.msra.mxu0 0.0
        %4895 = vmatprep.subr.mxu0 0.0
        %4896 = vmatpush1.msra.mxu0 0.0
        %4897 = vmatprep.subr.mxu0 0.0
        %4898 = vmatpush1.msra.mxu0 0.0
        %4899 = vmatprep.subr.mxu0 0.0
        %4900 = vmatpush1.msra.mxu0 0.0
        %4901 = vmatprep.subr.mxu0 0.0
        %4902 = vmatpush1.msra.mxu0 0.0
        %4903 = vmatprep.subr.mxu0 0.0
        %4904 = vmatpush1.msra.mxu0 0.0
        %4905 = vmatprep.subr.mxu0 0.0
        %4906 = vmatpush1.msra.mxu0 0.0
        %4907 = vmatprep.subr.mxu0 0.0
        %4908 = vmatpush1.msra.mxu0 0.0
        %4909 = vmatprep.mubr.f32.mxu0 0.0
        %4910 = vmatmul.mubr.f32.gmra.mrb[0].mxu0 %v3421
        %v4911 = vpop.f32.mrb[0].mxu0
        %v4912 = vadd.f32 0.0, %v4911
        %v4913 = vpop.f32.mrb[0].mxu0
        %4914 = vmatprep.mubr.f32.mxu0 0.0
        %4915 = vmatmul.mubr.f32.gmra.mrb[0].mxu0 %v3424
        %v4916 = vpop.f32.mrb[0].mxu0
        %v4917 = vadd.f32 0.0, %v4916
        %v4918 = vpop.f32.mrb[0].mxu0
        %4919 = vdwg.mxu0
        %4920 = vmatprep.subr.mxu0 0.0
        %4921 = vmatpush1.msra.mxu0 %v3718
        %4922 = vmatprep.subr.mxu0 0.0
        %4923 = vmatpush1.msra.mxu0 %v3723
        %4924 = vmatprep.subr.mxu0 0.0
        %4925 = vmatpush1.msra.mxu0 0.0
        %4926 = vmatprep.subr.mxu0 0.0
        %4927 = vmatpush1.msra.mxu0 0.0
        %4928 = vmatprep.subr.mxu0 0.0
        %4929 = vmatpush1.msra.mxu0 0.0
        %4930 = vmatprep.subr.mxu0 0.0
        %4931 = vmatpush1.msra.mxu0 0.0
        %4932 = vmatprep.subr.mxu0 0.0
        %4933 = vmatpush1.msra.mxu0 0.0
        %4934 = vmatprep.subr.mxu0 0.0
        %4935 = vmatpush1.msra.mxu0 0.0
        %4936 = vmatprep.subr.mxu0 0.0
        %4937 = vmatpush1.msra.mxu0 0.0
        %4938 = vmatprep.subr.mxu0 0.0
        %4939 = vmatpush1.msra.mxu0 0.0
        %4940 = vmatprep.subr.mxu0 0.0
        %4941 = vmatpush1.msra.mxu0 0.0
        %4942 = vmatprep.subr.mxu0 0.0
        %4943 = vmatpush1.msra.mxu0 0.0
        %4944 = vmatprep.subr.mxu0 0.0
        %4945 = vmatpush1.msra.mxu0 0.0
        %4946 = vmatprep.subr.mxu0 0.0
        %4947 = vmatpush1.msra.mxu0 0.0
        %4948 = vmatprep.subr.mxu0 0.0
        %4949 = vmatpush1.msra.mxu0 0.0
        %4950 = vmatprep.subr.mxu0 0.0
        %4951 = vmatpush1.msra.mxu0 0.0
        %4952 = vmatprep.subr.mxu0 0.0
        %4953 = vmatpush1.msra.mxu0 0.0
        %4954 = vmatprep.subr.mxu0 0.0
        %4955 = vmatpush1.msra.mxu0 0.0
        %4956 = vmatprep.subr.mxu0 0.0
        %4957 = vmatpush1.msra.mxu0 0.0
        %4958 = vmatprep.subr.mxu0 0.0
        %4959 = vmatpush1.msra.mxu0 0.0
        %4960 = vmatprep.subr.mxu0 0.0
        %4961 = vmatpush1.msra.mxu0 0.0
        %4962 = vmatprep.subr.mxu0 0.0
        %4963 = vmatpush1.msra.mxu0 0.0
        %4964 = vmatprep.subr.mxu0 0.0
        %4965 = vmatpush1.msra.mxu0 0.0
        %4966 = vmatprep.subr.mxu0 0.0
        %4967 = vmatpush1.msra.mxu0 0.0
        %4968 = vmatprep.subr.mxu0 0.0
        %4969 = vmatpush1.msra.mxu0 0.0
        %4970 = vmatprep.subr.mxu0 0.0
        %4971 = vmatpush1.msra.mxu0 0.0
        %4972 = vmatprep.subr.mxu0 0.0
        %4973 = vmatpush1.msra.mxu0 0.0
        %4974 = vmatprep.subr.mxu0 0.0
        %4975 = vmatpush1.msra.mxu0 0.0
        %4976 = vmatprep.subr.mxu0 0.0
        %4977 = vmatpush1.msra.mxu0 0.0
        %4978 = vmatprep.subr.mxu0 0.0
        %4979 = vmatpush1.msra.mxu0 0.0
        %4980 = vmatprep.subr.mxu0 0.0
        %4981 = vmatpush1.msra.mxu0 0.0
        %4982 = vmatprep.subr.mxu0 0.0
        %4983 = vmatpush1.msra.mxu0 0.0
        %4984 = vmatprep.mubr.f32.mxu0 0.0
        %4985 = vmatmul.mubr.f32.gmra.mrb[0].mxu0 %v3421
        %v4986 = vpop.f32.mrb[0].mxu0
        %v4987 = vadd.f32 0.0, %v4986
        %v4988 = vpop.f32.mrb[0].mxu0
        %4989 = vmatprep.mubr.f32.mxu0 0.0
        %4990 = vmatmul.mubr.f32.gmra.mrb[0].mxu0 %v3424
        %v4991 = vpop.f32.mrb[0].mxu0
        %v4992 = vadd.f32 0.0, %v4991
        %v4993 = vpop.f32.mrb[0].mxu0
        %4994 = vdwg.mxu0
        %4995 = vmatprep.subr.mxu0 0.0
        %4996 = vmatpush1.msra.mxu0 %v3793
        %4997 = vmatprep.subr.mxu0 0.0
        %4998 = vmatpush1.msra.mxu0 %v3798
        %4999 = vmatprep.subr.mxu0 0.0
        %5000 = vmatpush1.msra.mxu0 0.0
        %5001 = vmatprep.subr.mxu0 0.0
        %5002 = vmatpush1.msra.mxu0 0.0
        %5003 = vmatprep.subr.mxu0 0.0
        %5004 = vmatpush1.msra.mxu0 0.0
        %5005 = vmatprep.subr.mxu0 0.0
        %5006 = vmatpush1.msra.mxu0 0.0
        %5007 = vmatprep.subr.mxu0 0.0
        %5008 = vmatpush1.msra.mxu0 0.0
        %5009 = vmatprep.subr.mxu0 0.0
        %5010 = vmatpush1.msra.mxu0 0.0
        %5011 = vmatprep.subr.mxu0 0.0
        %5012 = vmatpush1.msra.mxu0 0.0
        %5013 = vmatprep.subr.mxu0 0.0
        %5014 = vmatpush1.msra.mxu0 0.0
        %5015 = vmatprep.subr.mxu0 0.0
        %5016 = vmatpush1.msra.mxu0 0.0
        %5017 = vmatprep.subr.mxu0 0.0
        %5018 = vmatpush1.msra.mxu0 0.0
        %5019 = vmatprep.subr.mxu0 0.0
        %5020 = vmatpush1.msra.mxu0 0.0
        %5021 = vmatprep.subr.mxu0 0.0
        %5022 = vmatpush1.msra.mxu0 0.0
        %5023 = vmatprep.subr.mxu0 0.0
        %5024 = vmatpush1.msra.mxu0 0.0
        %5025 = vmatprep.subr.mxu0 0.0
        %5026 = vmatpush1.msra.mxu0 0.0
        %5027 = vmatprep.subr.mxu0 0.0
        %5028 = vmatpush1.msra.mxu0 0.0
        %5029 = vmatprep.subr.mxu0 0.0
        %5030 = vmatpush1.msra.mxu0 0.0
        %5031 = vmatprep.subr.mxu0 0.0
        %5032 = vmatpush1.msra.mxu0 0.0
        %5033 = vmatprep.subr.mxu0 0.0
        %5034 = vmatpush1.msra.mxu0 0.0
        %5035 = vmatprep.subr.mxu0 0.0
        %5036 = vmatpush1.msra.mxu0 0.0
        %5037 = vmatprep.subr.mxu0 0.0
        %5038 = vmatpush1.msra.mxu0 0.0
        %5039 = vmatprep.subr.mxu0 0.0
        %5040 = vmatpush1.msra.mxu0 0.0
        %5041 = vmatprep.subr.mxu0 0.0
        %5042 = vmatpush1.msra.mxu0 0.0
        %5043 = vmatprep.subr.mxu0 0.0
        %5044 = vmatpush1.msra.mxu0 0.0
        %5045 = vmatprep.subr.mxu0 0.0
        %5046 = vmatpush1.msra.mxu0 0.0
        %5047 = vmatprep.subr.mxu0 0.0
        %5048 = vmatpush1.msra.mxu0 0.0
        %5049 = vmatprep.subr.mxu0 0.0
        %5050 = vmatpush1.msra.mxu0 0.0
        %5051 = vmatprep.subr.mxu0 0.0
        %5052 = vmatpush1.msra.mxu0 0.0
        %5053 = vmatprep.subr.mxu0 0.0
        %5054 = vmatpush1.msra.mxu0 0.0
        %5055 = vmatprep.subr.mxu0 0.0
        %5056 = vmatpush1.msra.mxu0 0.0
        %5057 = vmatprep.subr.mxu0 0.0
        %5058 = vmatpush1.msra.mxu0 0.0
        %5059 = vmatprep.mubr.f32.mxu0 0.0
        %5060 = vmatmul.mubr.f32.gmra.mrb[0].mxu0 %v3421
        %v5061 = vpop.f32.mrb[0].mxu0
        %v5062 = vadd.f32 0.0, %v5061
        %v5063 = vpop.f32.mrb[0].mxu0
        %5064 = vmatprep.mubr.f32.mxu0 0.0
        %5065 = vmatmul.mubr.f32.gmra.mrb[0].mxu0 %v3424
        %v5066 = vpop.f32.mrb[0].mxu0
        %v5067 = vadd.f32 0.0, %v5066
        %v5068 = vpop.f32.mrb[0].mxu0
        %5069 = vdwg.mxu0
        %5070 = vmatprep.subr.mxu0 0.0
        %5071 = vmatpush1.msra.mxu0 %v3868
        %5072 = vmatprep.subr.mxu0 0.0
        %5073 = vmatpush1.msra.mxu0 %v3873
        %5074 = vmatprep.subr.mxu0 0.0
        %5075 = vmatpush1.msra.mxu0 0.0
        %5076 = vmatprep.subr.mxu0 0.0
        %5077 = vmatpush1.msra.mxu0 0.0
        %5078 = vmatprep.subr.mxu0 0.0
        %5079 = vmatpush1.msra.mxu0 0.0
        %5080 = vmatprep.subr.mxu0 0.0
        %5081 = vmatpush1.msra.mxu0 0.0
        %5082 = vmatprep.subr.mxu0 0.0
        %5083 = vmatpush1.msra.mxu0 0.0
        %5084 = vmatprep.subr.mxu0 0.0
        %5085 = vmatpush1.msra.mxu0 0.0
        %5086 = vmatprep.subr.mxu0 0.0
        %5087 = vmatpush1.msra.mxu0 0.0
        %5088 = vmatprep.subr.mxu0 0.0
        %5089 = vmatpush1.msra.mxu0 0.0
        %5090 = vmatprep.subr.mxu0 0.0
        %5091 = vmatpush1.msra.mxu0 0.0
        %5092 = vmatprep.subr.mxu0 0.0
        %5093 = vmatpush1.msra.mxu0 0.0
        %5094 = vmatprep.subr.mxu0 0.0
        %5095 = vmatpush1.msra.mxu0 0.0
        %5096 = vmatprep.subr.mxu0 0.0
        %5097 = vmatpush1.msra.mxu0 0.0
        %5098 = vmatprep.subr.mxu0 0.0
        %5099 = vmatpush1.msra.mxu0 0.0
        %5100 = vmatprep.subr.mxu0 0.0
        %5101 = vmatpush1.msra.mxu0 0.0
        %5102 = vmatprep.subr.mxu0 0.0
        %5103 = vmatpush1.msra.mxu0 0.0
        %5104 = vmatprep.subr.mxu0 0.0
        %5105 = vmatpush1.msra.mxu0 0.0
        %5106 = vmatprep.subr.mxu0 0.0
        %5107 = vmatpush1.msra.mxu0 0.0
        %5108 = vmatprep.subr.mxu0 0.0
        %5109 = vmatpush1.msra.mxu0 0.0
        %5110 = vmatprep.subr.mxu0 0.0
        %5111 = vmatpush1.msra.mxu0 0.0
        %5112 = vmatprep.subr.mxu0 0.0
        %5113 = vmatpush1.msra.mxu0 0.0
        %5114 = vmatprep.subr.mxu0 0.0
        %5115 = vmatpush1.msra.mxu0 0.0
        %5116 = vmatprep.subr.mxu0 0.0
        %5117 = vmatpush1.msra.mxu0 0.0
        %5118 = vmatprep.subr.mxu0 0.0
        %5119 = vmatpush1.msra.mxu0 0.0
        %5120 = vmatprep.subr.mxu0 0.0
        %5121 = vmatpush1.msra.mxu0 0.0
        %5122 = vmatprep.subr.mxu0 0.0
        %5123 = vmatpush1.msra.mxu0 0.0
        %5124 = vmatprep.subr.mxu0 0.0
        %5125 = vmatpush1.msra.mxu0 0.0
        %5126 = vmatprep.subr.mxu0 0.0
        %5127 = vmatpush1.msra.mxu0 0.0
        %5128 = vmatprep.subr.mxu0 0.0
        %5129 = vmatpush1.msra.mxu0 0.0
        %5130 = vmatprep.subr.mxu0 0.0
        %5131 = vmatpush1.msra.mxu0 0.0
        %5132 = vmatprep.subr.mxu0 0.0
        %5133 = vmatpush1.msra.mxu0 0.0
        %5134 = vmatprep.mubr.f32.mxu0 0.0
        %5135 = vmatmul.mubr.f32.gmra.mrb[0].mxu0 %v3421
        %v5136 = vpop.f32.mrb[0].mxu0
        %v5137 = vadd.f32 0.0, %v5136
        %v5138 = vpop.f32.mrb[0].mxu0
        %5139 = vmatprep.mubr.f32.mxu0 0.0
        %5140 = vmatmul.mubr.f32.gmra.mrb[0].mxu0 %v3424
        %v5141 = vpop.f32.mrb[0].mxu0
        %v5142 = vadd.f32 0.0, %v5141
        %v5143 = vpop.f32.mrb[0].mxu0
        %5144 = vdwg.mxu0
        %5145 = vmatprep.subr.mxu0 0.0
        %5146 = vmatpush1.msra.mxu0 %v3943
        %5147 = vmatprep.subr.mxu0 0.0
        %5148 = vmatpush1.msra.mxu0 %v3948
        %5149 = vmatprep.subr.mxu0 0.0
        %5150 = vmatpush1.msra.mxu0 0.0
        %5151 = vmatprep.subr.mxu0 0.0
        %5152 = vmatpush1.msra.mxu0 0.0
        %5153 = vmatprep.subr.mxu0 0.0
        %5154 = vmatpush1.msra.mxu0 0.0
        %5155 = vmatprep.subr.mxu0 0.0
        %5156 = vmatpush1.msra.mxu0 0.0
        %5157 = vmatprep.subr.mxu0 0.0
        %5158 = vmatpush1.msra.mxu0 0.0
        %5159 = vmatprep.subr.mxu0 0.0
        %5160 = vmatpush1.msra.mxu0 0.0
        %5161 = vmatprep.subr.mxu0 0.0
        %5162 = vmatpush1.msra.mxu0 0.0
        %5163 = vmatprep.subr.mxu0 0.0
        %5164 = vmatpush1.msra.mxu0 0.0
        %5165 = vmatprep.subr.mxu0 0.0
        %5166 = vmatpush1.msra.mxu0 0.0
        %5167 = vmatprep.subr.mxu0 0.0
        %5168 = vmatpush1.msra.mxu0 0.0
        %5169 = vmatprep.subr.mxu0 0.0
        %5170 = vmatpush1.msra.mxu0 0.0
        %5171 = vmatprep.subr.mxu0 0.0
        %5172 = vmatpush1.msra.mxu0 0.0
        %5173 = vmatprep.subr.mxu0 0.0
        %5174 = vmatpush1.msra.mxu0 0.0
        %5175 = vmatprep.subr.mxu0 0.0
        %5176 = vmatpush1.msra.mxu0 0.0
        %5177 = vmatprep.subr.mxu0 0.0
        %5178 = vmatpush1.msra.mxu0 0.0
        %5179 = vmatprep.subr.mxu0 0.0
        %5180 = vmatpush1.msra.mxu0 0.0
        %5181 = vmatprep.subr.mxu0 0.0
        %5182 = vmatpush1.msra.mxu0 0.0
        %5183 = vmatprep.subr.mxu0 0.0
        %5184 = vmatpush1.msra.mxu0 0.0
        %5185 = vmatprep.subr.mxu0 0.0
        %5186 = vmatpush1.msra.mxu0 0.0
        %5187 = vmatprep.subr.mxu0 0.0
        %5188 = vmatpush1.msra.mxu0 0.0
        %5189 = vmatprep.subr.mxu0 0.0
        %5190 = vmatpush1.msra.mxu0 0.0
        %5191 = vmatprep.subr.mxu0 0.0
        %5192 = vmatpush1.msra.mxu0 0.0
        %5193 = vmatprep.subr.mxu0 0.0
        %5194 = vmatpush1.msra.mxu0 0.0
        %5195 = vmatprep.subr.mxu0 0.0
        %5196 = vmatpush1.msra.mxu0 0.0
        %5197 = vmatprep.subr.mxu0 0.0
        %5198 = vmatpush1.msra.mxu0 0.0
        %5199 = vmatprep.subr.mxu0 0.0
        %5200 = vmatpush1.msra.mxu0 0.0
        %5201 = vmatprep.subr.mxu0 0.0
        %5202 = vmatpush1.msra.mxu0 0.0
        %5203 = vmatprep.subr.mxu0 0.0
        %5204 = vmatpush1.msra.mxu0 0.0
        %5205 = vmatprep.subr.mxu0 0.0
        %5206 = vmatpush1.msra.mxu0 0.0
        %5207 = vmatprep.subr.mxu0 0.0
        %5208 = vmatpush1.msra.mxu0 0.0
        %5209 = vmatprep.mubr.f32.mxu0 0.0
        %5210 = vmatmul.mubr.f32.gmra.mrb[0].mxu0 %v3421
        %v5211 = vpop.f32.mrb[0].mxu0
        %v5212 = vadd.f32 0.0, %v5211
        %v5213 = vpop.f32.mrb[0].mxu0
        %5214 = vmatprep.mubr.f32.mxu0 0.0
        %5215 = vmatmul.mubr.f32.gmra.mrb[0].mxu0 %v3424
        %v5216 = vpop.f32.mrb[0].mxu0
        %v5217 = vadd.f32 0.0, %v5216
        %v5218 = vpop.f32.mrb[0].mxu0
        %5219 = vdwg.mxu0
        %5220 = vmatprep.subr.mxu0 0.0
        %5221 = vmatpush1.msra.mxu0 %v4018
        %5222 = vmatprep.subr.mxu0 0.0
        %5223 = vmatpush1.msra.mxu0 %v4023
        %5224 = vmatprep.subr.mxu0 0.0
        %5225 = vmatpush1.msra.mxu0 0.0
        %5226 = vmatprep.subr.mxu0 0.0
        %5227 = vmatpush1.msra.mxu0 0.0
        %5228 = vmatprep.subr.mxu0 0.0
        %5229 = vmatpush1.msra.mxu0 0.0
        %5230 = vmatprep.subr.mxu0 0.0
        %5231 = vmatpush1.msra.mxu0 0.0
        %5232 = vmatprep.subr.mxu0 0.0
        %5233 = vmatpush1.msra.mxu0 0.0
        %5234 = vmatprep.subr.mxu0 0.0
        %5235 = vmatpush1.msra.mxu0 0.0
        %5236 = vmatprep.subr.mxu0 0.0
        %5237 = vmatpush1.msra.mxu0 0.0
        %5238 = vmatprep.subr.mxu0 0.0
        %5239 = vmatpush1.msra.mxu0 0.0
        %5240 = vmatprep.subr.mxu0 0.0
        %5241 = vmatpush1.msra.mxu0 0.0
        %5242 = vmatprep.subr.mxu0 0.0
        %5243 = vmatpush1.msra.mxu0 0.0
        %5244 = vmatprep.subr.mxu0 0.0
        %5245 = vmatpush1.msra.mxu0 0.0
        %5246 = vmatprep.subr.mxu0 0.0
        %5247 = vmatpush1.msra.mxu0 0.0
        %5248 = vmatprep.subr.mxu0 0.0
        %5249 = vmatpush1.msra.mxu0 0.0
        %5250 = vmatprep.subr.mxu0 0.0
        %5251 = vmatpush1.msra.mxu0 0.0
        %5252 = vmatprep.subr.mxu0 0.0
        %5253 = vmatpush1.msra.mxu0 0.0
        %5254 = vmatprep.subr.mxu0 0.0
        %5255 = vmatpush1.msra.mxu0 0.0
        %5256 = vmatprep.subr.mxu0 0.0
        %5257 = vmatpush1.msra.mxu0 0.0
        %5258 = vmatprep.subr.mxu0 0.0
        %5259 = vmatpush1.msra.mxu0 0.0
        %5260 = vmatprep.subr.mxu0 0.0
        %5261 = vmatpush1.msra.mxu0 0.0
        %5262 = vmatprep.subr.mxu0 0.0
        %5263 = vmatpush1.msra.mxu0 0.0
        %5264 = vmatprep.subr.mxu0 0.0
        %5265 = vmatpush1.msra.mxu0 0.0
        %5266 = vmatprep.subr.mxu0 0.0
        %5267 = vmatpush1.msra.mxu0 0.0
        %5268 = vmatprep.subr.mxu0 0.0
        %5269 = vmatpush1.msra.mxu0 0.0
        %5270 = vmatprep.subr.mxu0 0.0
        %5271 = vmatpush1.msra.mxu0 0.0
        %5272 = vmatprep.subr.mxu0 0.0
        %5273 = vmatpush1.msra.mxu0 0.0
        %5274 = vmatprep.subr.mxu0 0.0
        %5275 = vmatpush1.msra.mxu0 0.0
        %5276 = vmatprep.subr.mxu0 0.0
        %5277 = vmatpush1.msra.mxu0 0.0
        %5278 = vmatprep.subr.mxu0 0.0
        %5279 = vmatpush1.msra.mxu0 0.0
        %5280 = vmatprep.subr.mxu0 0.0
        %5281 = vmatpush1.msra.mxu0 0.0
        %5282 = vmatprep.subr.mxu0 0.0
        %5283 = vmatpush1.msra.mxu0 0.0
        %5284 = vmatprep.mubr.f32.mxu0 0.0
        %5285 = vmatmul.mubr.f32.gmra.mrb[0].mxu0 %v3421
        %v5286 = vpop.f32.mrb[0].mxu0
        %v5287 = vadd.f32 0.0, %v5286
        %v5288 = vpop.f32.mrb[0].mxu0
        %5289 = vmatprep.mubr.f32.mxu0 0.0
        %5290 = vmatmul.mubr.f32.gmra.mrb[0].mxu0 %v3424
        %v5291 = vpop.f32.mrb[0].mxu0
        %v5292 = vadd.f32 0.0, %v5291
        %v5293 = vpop.f32.mrb[0].mxu0
        %5294 = vdwg.mxu0
        %s5295 = scalar_lea.vmem %s2, 16
        %v5296 = vld [vmem:[%s5295] sm:$0xf]
        %v5298 = vsel %vm844, %v4762, 0
        %v5301 = vsel %vm844, %v4767, 0
        %v5304 = vsel %vm851, %v5296, 0
        %5306 = vmatprep.subr.mxu0 0.0
        %5307 = vmatpush1.msra.mxu0 %v5304
        %5308 = vmatprep.subr.mxu0 0.0
        %5309 = vmatpush1.msra.mxu0 0.0
        %5310 = vmatprep.subr.mxu0 0.0
        %5311 = vmatpush1.msra.mxu0 0.0
        %5312 = vmatprep.subr.mxu0 0.0
        %5313 = vmatpush1.msra.mxu0 0.0
        %5314 = vmatprep.subr.mxu0 0.0
        %5315 = vmatpush1.msra.mxu0 0.0
        %5316 = vmatprep.subr.mxu0 0.0
        %5317 = vmatpush1.msra.mxu0 0.0
        %5318 = vmatprep.subr.mxu0 0.0
        %5319 = vmatpush1.msra.mxu0 0.0
        %5320 = vmatprep.subr.mxu0 0.0
        %5321 = vmatpush1.msra.mxu0 0.0
        %5322 = vmatprep.subr.mxu0 0.0
        %5323 = vmatpush1.msra.mxu0 0.0
        %5324 = vmatprep.subr.mxu0 0.0
        %5325 = vmatpush1.msra.mxu0 0.0
        %5326 = vmatprep.subr.mxu0 0.0
        %5327 = vmatpush1.msra.mxu0 0.0
        %5328 = vmatprep.subr.mxu0 0.0
        %5329 = vmatpush1.msra.mxu0 0.0
        %5330 = vmatprep.subr.mxu0 0.0
        %5331 = vmatpush1.msra.mxu0 0.0
        %5332 = vmatprep.subr.mxu0 0.0
        %5333 = vmatpush1.msra.mxu0 0.0
        %5334 = vmatprep.subr.mxu0 0.0
        %5335 = vmatpush1.msra.mxu0 0.0
        %5336 = vmatprep.subr.mxu0 0.0
        %5337 = vmatpush1.msra.mxu0 0.0
        %5338 = vmatprep.subr.mxu0 0.0
        %5339 = vmatpush1.msra.mxu0 0.0
        %5340 = vmatprep.subr.mxu0 0.0
        %5341 = vmatpush1.msra.mxu0 0.0
        %5342 = vmatprep.subr.mxu0 0.0
        %5343 = vmatpush1.msra.mxu0 0.0
        %5344 = vmatprep.subr.mxu0 0.0
        %5345 = vmatpush1.msra.mxu0 0.0
        %5346 = vmatprep.subr.mxu0 0.0
        %5347 = vmatpush1.msra.mxu0 0.0
        %5348 = vmatprep.subr.mxu0 0.0
        %5349 = vmatpush1.msra.mxu0 0.0
        %5350 = vmatprep.subr.mxu0 0.0
        %5351 = vmatpush1.msra.mxu0 0.0
        %5352 = vmatprep.subr.mxu0 0.0
        %5353 = vmatpush1.msra.mxu0 0.0
        %5354 = vmatprep.subr.mxu0 0.0
        %5355 = vmatpush1.msra.mxu0 0.0
        %5356 = vmatprep.subr.mxu0 0.0
        %5357 = vmatpush1.msra.mxu0 0.0
        %5358 = vmatprep.subr.mxu0 0.0
        %5359 = vmatpush1.msra.mxu0 0.0
        %5360 = vmatprep.subr.mxu0 0.0
        %5361 = vmatpush1.msra.mxu0 0.0
        %5362 = vmatprep.subr.mxu0 0.0
        %5363 = vmatpush1.msra.mxu0 0.0
        %5364 = vmatprep.subr.mxu0 0.0
        %5365 = vmatpush1.msra.mxu0 0.0
        %5366 = vmatprep.subr.mxu0 0.0
        %5367 = vmatpush1.msra.mxu0 0.0
        %5368 = vmatprep.subr.mxu0 0.0
        %5369 = vmatpush1.msra.mxu0 0.0
        %5370 = vmatprep.mubr.f32.mxu0 0.0
        %5371 = vmatmul.mubr.f32.gmra.mrb[0].mxu0 %v5298
        %v5372 = vpop.f32.mrb[0].mxu0
        %v5373 = vadd.f32 0.0, %v5372
        %v5374 = vpop.f32.mrb[0].mxu0
        %5375 = vmatprep.mubr.f32.mxu0 0.0
        %5376 = vmatmul.mubr.f32.gmra.mrb[0].mxu0 %v5301
        %v5377 = vpop.f32.mrb[0].mxu0
        %v5378 = vadd.f32 0.0, %v5377
        %v5379 = vpop.f32.mrb[0].mxu0
        %5380 = vdwg.mxu0
        %v5382 = vsel %vm844, %v4837, 0
        %v5385 = vsel %vm844, %v4842, 0
        %5387 = vmatprep.subr.mxu0 0.0
        %5388 = vmatpush1.msra.mxu0 %v5304
        %5389 = vmatprep.subr.mxu0 0.0
        %5390 = vmatpush1.msra.mxu0 0.0
        %5391 = vmatprep.subr.mxu0 0.0
        %5392 = vmatpush1.msra.mxu0 0.0
        %5393 = vmatprep.subr.mxu0 0.0
        %5394 = vmatpush1.msra.mxu0 0.0
        %5395 = vmatprep.subr.mxu0 0.0
        %5396 = vmatpush1.msra.mxu0 0.0
        %5397 = vmatprep.subr.mxu0 0.0
        %5398 = vmatpush1.msra.mxu0 0.0
        %5399 = vmatprep.subr.mxu0 0.0
        %5400 = vmatpush1.msra.mxu0 0.0
        %5401 = vmatprep.subr.mxu0 0.0
        %5402 = vmatpush1.msra.mxu0 0.0
        %5403 = vmatprep.subr.mxu0 0.0
        %5404 = vmatpush1.msra.mxu0 0.0
        %5405 = vmatprep.subr.mxu0 0.0
        %5406 = vmatpush1.msra.mxu0 0.0
        %5407 = vmatprep.subr.mxu0 0.0
        %5408 = vmatpush1.msra.mxu0 0.0
        %5409 = vmatprep.subr.mxu0 0.0
        %5410 = vmatpush1.msra.mxu0 0.0
        %5411 = vmatprep.subr.mxu0 0.0
        %5412 = vmatpush1.msra.mxu0 0.0
        %5413 = vmatprep.subr.mxu0 0.0
        %5414 = vmatpush1.msra.mxu0 0.0
        %5415 = vmatprep.subr.mxu0 0.0
        %5416 = vmatpush1.msra.mxu0 0.0
        %5417 = vmatprep.subr.mxu0 0.0
        %5418 = vmatpush1.msra.mxu0 0.0
        %5419 = vmatprep.subr.mxu0 0.0
        %5420 = vmatpush1.msra.mxu0 0.0
        %5421 = vmatprep.subr.mxu0 0.0
        %5422 = vmatpush1.msra.mxu0 0.0
        %5423 = vmatprep.subr.mxu0 0.0
        %5424 = vmatpush1.msra.mxu0 0.0
        %5425 = vmatprep.subr.mxu0 0.0
        %5426 = vmatpush1.msra.mxu0 0.0
        %5427 = vmatprep.subr.mxu0 0.0
        %5428 = vmatpush1.msra.mxu0 0.0
        %5429 = vmatprep.subr.mxu0 0.0
        %5430 = vmatpush1.msra.mxu0 0.0
        %5431 = vmatprep.subr.mxu0 0.0
        %5432 = vmatpush1.msra.mxu0 0.0
        %5433 = vmatprep.subr.mxu0 0.0
        %5434 = vmatpush1.msra.mxu0 0.0
        %5435 = vmatprep.subr.mxu0 0.0
        %5436 = vmatpush1.msra.mxu0 0.0
        %5437 = vmatprep.subr.mxu0 0.0
        %5438 = vmatpush1.msra.mxu0 0.0
        %5439 = vmatprep.subr.mxu0 0.0
        %5440 = vmatpush1.msra.mxu0 0.0
        %5441 = vmatprep.subr.mxu0 0.0
        %5442 = vmatpush1.msra.mxu0 0.0
        %5443 = vmatprep.subr.mxu0 0.0
        %5444 = vmatpush1.msra.mxu0 0.0
        %5445 = vmatprep.subr.mxu0 0.0
        %5446 = vmatpush1.msra.mxu0 0.0
        %5447 = vmatprep.subr.mxu0 0.0
        %5448 = vmatpush1.msra.mxu0 0.0
        %5449 = vmatprep.subr.mxu0 0.0
        %5450 = vmatpush1.msra.mxu0 0.0
        %5451 = vmatprep.mubr.f32.mxu0 0.0
        %5452 = vmatmul.mubr.f32.gmra.mrb[0].mxu0 %v5382
        %v5453 = vpop.f32.mrb[0].mxu0
        %v5454 = vadd.f32 0.0, %v5453
        %v5455 = vpop.f32.mrb[0].mxu0
        %5456 = vmatprep.mubr.f32.mxu0 0.0
        %5457 = vmatmul.mubr.f32.gmra.mrb[0].mxu0 %v5385
        %v5458 = vpop.f32.mrb[0].mxu0
        %v5459 = vadd.f32 0.0, %v5458
        %v5460 = vpop.f32.mrb[0].mxu0
        %5461 = vdwg.mxu0
        %v5463 = vsel %vm844, %v4912, 0
        %v5466 = vsel %vm844, %v4917, 0
        %5468 = vmatprep.subr.mxu0 0.0
        %5469 = vmatpush1.msra.mxu0 %v5304
        %5470 = vmatprep.subr.mxu0 0.0
        %5471 = vmatpush1.msra.mxu0 0.0
        %5472 = vmatprep.subr.mxu0 0.0
        %5473 = vmatpush1.msra.mxu0 0.0
        %5474 = vmatprep.subr.mxu0 0.0
        %5475 = vmatpush1.msra.mxu0 0.0
        %5476 = vmatprep.subr.mxu0 0.0
        %5477 = vmatpush1.msra.mxu0 0.0
        %5478 = vmatprep.subr.mxu0 0.0
        %5479 = vmatpush1.msra.mxu0 0.0
        %5480 = vmatprep.subr.mxu0 0.0
        %5481 = vmatpush1.msra.mxu0 0.0
        %5482 = vmatprep.subr.mxu0 0.0
        %5483 = vmatpush1.msra.mxu0 0.0
        %5484 = vmatprep.subr.mxu0 0.0
        %5485 = vmatpush1.msra.mxu0 0.0
        %5486 = vmatprep.subr.mxu0 0.0
        %5487 = vmatpush1.msra.mxu0 0.0
        %5488 = vmatprep.subr.mxu0 0.0
        %5489 = vmatpush1.msra.mxu0 0.0
        %5490 = vmatprep.subr.mxu0 0.0
        %5491 = vmatpush1.msra.mxu0 0.0
        %5492 = vmatprep.subr.mxu0 0.0
        %5493 = vmatpush1.msra.mxu0 0.0
        %5494 = vmatprep.subr.mxu0 0.0
        %5495 = vmatpush1.msra.mxu0 0.0
        %5496 = vmatprep.subr.mxu0 0.0
        %5497 = vmatpush1.msra.mxu0 0.0
        %5498 = vmatprep.subr.mxu0 0.0
        %5499 = vmatpush1.msra.mxu0 0.0
        %5500 = vmatprep.subr.mxu0 0.0
        %5501 = vmatpush1.msra.mxu0 0.0
        %5502 = vmatprep.subr.mxu0 0.0
        %5503 = vmatpush1.msra.mxu0 0.0
        %5504 = vmatprep.subr.mxu0 0.0
        %5505 = vmatpush1.msra.mxu0 0.0
        %5506 = vmatprep.subr.mxu0 0.0
        %5507 = vmatpush1.msra.mxu0 0.0
        %5508 = vmatprep.subr.mxu0 0.0
        %5509 = vmatpush1.msra.mxu0 0.0
        %5510 = vmatprep.subr.mxu0 0.0
        %5511 = vmatpush1.msra.mxu0 0.0
        %5512 = vmatprep.subr.mxu0 0.0
        %5513 = vmatpush1.msra.mxu0 0.0
        %5514 = vmatprep.subr.mxu0 0.0
        %5515 = vmatpush1.msra.mxu0 0.0
        %5516 = vmatprep.subr.mxu0 0.0
        %5517 = vmatpush1.msra.mxu0 0.0
        %5518 = vmatprep.subr.mxu0 0.0
        %5519 = vmatpush1.msra.mxu0 0.0
        %5520 = vmatprep.subr.mxu0 0.0
        %5521 = vmatpush1.msra.mxu0 0.0
        %5522 = vmatprep.subr.mxu0 0.0
        %5523 = vmatpush1.msra.mxu0 0.0
        %5524 = vmatprep.subr.mxu0 0.0
        %5525 = vmatpush1.msra.mxu0 0.0
        %5526 = vmatprep.subr.mxu0 0.0
        %5527 = vmatpush1.msra.mxu0 0.0
        %5528 = vmatprep.subr.mxu0 0.0
        %5529 = vmatpush1.msra.mxu0 0.0
        %5530 = vmatprep.subr.mxu0 0.0
        %5531 = vmatpush1.msra.mxu0 0.0
        %5532 = vmatprep.mubr.f32.mxu0 0.0
        %5533 = vmatmul.mubr.f32.gmra.mrb[0].mxu0 %v5463
        %v5534 = vpop.f32.mrb[0].mxu0
        %v5535 = vadd.f32 0.0, %v5534
        %v5536 = vpop.f32.mrb[0].mxu0
        %5537 = vmatprep.mubr.f32.mxu0 0.0
        %5538 = vmatmul.mubr.f32.gmra.mrb[0].mxu0 %v5466
        %v5539 = vpop.f32.mrb[0].mxu0
        %v5540 = vadd.f32 0.0, %v5539
        %v5541 = vpop.f32.mrb[0].mxu0
        %5542 = vdwg.mxu0
        %v5544 = vsel %vm844, %v4987, 0
        %v5547 = vsel %vm844, %v4992, 0
        %5549 = vmatprep.subr.mxu0 0.0
        %5550 = vmatpush1.msra.mxu0 %v5304
        %5551 = vmatprep.subr.mxu0 0.0
        %5552 = vmatpush1.msra.mxu0 0.0
        %5553 = vmatprep.subr.mxu0 0.0
        %5554 = vmatpush1.msra.mxu0 0.0
        %5555 = vmatprep.subr.mxu0 0.0
        %5556 = vmatpush1.msra.mxu0 0.0
        %5557 = vmatprep.subr.mxu0 0.0
        %5558 = vmatpush1.msra.mxu0 0.0
        %5559 = vmatprep.subr.mxu0 0.0
        %5560 = vmatpush1.msra.mxu0 0.0
        %5561 = vmatprep.subr.mxu0 0.0
        %5562 = vmatpush1.msra.mxu0 0.0
        %5563 = vmatprep.subr.mxu0 0.0
        %5564 = vmatpush1.msra.mxu0 0.0
        %5565 = vmatprep.subr.mxu0 0.0
        %5566 = vmatpush1.msra.mxu0 0.0
        %5567 = vmatprep.subr.mxu0 0.0
        %5568 = vmatpush1.msra.mxu0 0.0
        %5569 = vmatprep.subr.mxu0 0.0
        %5570 = vmatpush1.msra.mxu0 0.0
        %5571 = vmatprep.subr.mxu0 0.0
        %5572 = vmatpush1.msra.mxu0 0.0
        %5573 = vmatprep.subr.mxu0 0.0
        %5574 = vmatpush1.msra.mxu0 0.0
        %5575 = vmatprep.subr.mxu0 0.0
        %5576 = vmatpush1.msra.mxu0 0.0
        %5577 = vmatprep.subr.mxu0 0.0
        %5578 = vmatpush1.msra.mxu0 0.0
        %5579 = vmatprep.subr.mxu0 0.0
        %5580 = vmatpush1.msra.mxu0 0.0
        %5581 = vmatprep.subr.mxu0 0.0
        %5582 = vmatpush1.msra.mxu0 0.0
        %5583 = vmatprep.subr.mxu0 0.0
        %5584 = vmatpush1.msra.mxu0 0.0
        %5585 = vmatprep.subr.mxu0 0.0
        %5586 = vmatpush1.msra.mxu0 0.0
        %5587 = vmatprep.subr.mxu0 0.0
        %5588 = vmatpush1.msra.mxu0 0.0
        %5589 = vmatprep.subr.mxu0 0.0
        %5590 = vmatpush1.msra.mxu0 0.0
        %5591 = vmatprep.subr.mxu0 0.0
        %5592 = vmatpush1.msra.mxu0 0.0
        %5593 = vmatprep.subr.mxu0 0.0
        %5594 = vmatpush1.msra.mxu0 0.0
        %5595 = vmatprep.subr.mxu0 0.0
        %5596 = vmatpush1.msra.mxu0 0.0
        %5597 = vmatprep.subr.mxu0 0.0
        %5598 = vmatpush1.msra.mxu0 0.0
        %5599 = vmatprep.subr.mxu0 0.0
        %5600 = vmatpush1.msra.mxu0 0.0
        %5601 = vmatprep.subr.mxu0 0.0
        %5602 = vmatpush1.msra.mxu0 0.0
        %5603 = vmatprep.subr.mxu0 0.0
        %5604 = vmatpush1.msra.mxu0 0.0
        %5605 = vmatprep.subr.mxu0 0.0
        %5606 = vmatpush1.msra.mxu0 0.0
        %5607 = vmatprep.subr.mxu0 0.0
        %5608 = vmatpush1.msra.mxu0 0.0
        %5609 = vmatprep.subr.mxu0 0.0
        %5610 = vmatpush1.msra.mxu0 0.0
        %5611 = vmatprep.subr.mxu0 0.0
        %5612 = vmatpush1.msra.mxu0 0.0
        %5613 = vmatprep.mubr.f32.mxu0 0.0
        %5614 = vmatmul.mubr.f32.gmra.mrb[0].mxu0 %v5544
        %v5615 = vpop.f32.mrb[0].mxu0
        %v5616 = vadd.f32 0.0, %v5615
        %v5617 = vpop.f32.mrb[0].mxu0
        %5618 = vmatprep.mubr.f32.mxu0 0.0
        %5619 = vmatmul.mubr.f32.gmra.mrb[0].mxu0 %v5547
        %v5620 = vpop.f32.mrb[0].mxu0
        %v5621 = vadd.f32 0.0, %v5620
        %v5622 = vpop.f32.mrb[0].mxu0
        %5623 = vdwg.mxu0
        %v5625 = vsel %vm844, %v5062, 0
        %v5628 = vsel %vm844, %v5067, 0
        %5630 = vmatprep.subr.mxu0 0.0
        %5631 = vmatpush1.msra.mxu0 %v5304
        %5632 = vmatprep.subr.mxu0 0.0
        %5633 = vmatpush1.msra.mxu0 0.0
        %5634 = vmatprep.subr.mxu0 0.0
        %5635 = vmatpush1.msra.mxu0 0.0
        %5636 = vmatprep.subr.mxu0 0.0
        %5637 = vmatpush1.msra.mxu0 0.0
        %5638 = vmatprep.subr.mxu0 0.0
        %5639 = vmatpush1.msra.mxu0 0.0
        %5640 = vmatprep.subr.mxu0 0.0
        %5641 = vmatpush1.msra.mxu0 0.0
        %5642 = vmatprep.subr.mxu0 0.0
        %5643 = vmatpush1.msra.mxu0 0.0
        %5644 = vmatprep.subr.mxu0 0.0
        %5645 = vmatpush1.msra.mxu0 0.0
        %5646 = vmatprep.subr.mxu0 0.0
        %5647 = vmatpush1.msra.mxu0 0.0
        %5648 = vmatprep.subr.mxu0 0.0
        %5649 = vmatpush1.msra.mxu0 0.0
        %5650 = vmatprep.subr.mxu0 0.0
        %5651 = vmatpush1.msra.mxu0 0.0
        %5652 = vmatprep.subr.mxu0 0.0
        %5653 = vmatpush1.msra.mxu0 0.0
        %5654 = vmatprep.subr.mxu0 0.0
        %5655 = vmatpush1.msra.mxu0 0.0
        %5656 = vmatprep.subr.mxu0 0.0
        %5657 = vmatpush1.msra.mxu0 0.0
        %5658 = vmatprep.subr.mxu0 0.0
        %5659 = vmatpush1.msra.mxu0 0.0
        %5660 = vmatprep.subr.mxu0 0.0
        %5661 = vmatpush1.msra.mxu0 0.0
        %5662 = vmatprep.subr.mxu0 0.0
        %5663 = vmatpush1.msra.mxu0 0.0
        %5664 = vmatprep.subr.mxu0 0.0
        %5665 = vmatpush1.msra.mxu0 0.0
        %5666 = vmatprep.subr.mxu0 0.0
        %5667 = vmatpush1.msra.mxu0 0.0
        %5668 = vmatprep.subr.mxu0 0.0
        %5669 = vmatpush1.msra.mxu0 0.0
        %5670 = vmatprep.subr.mxu0 0.0
        %5671 = vmatpush1.msra.mxu0 0.0
        %5672 = vmatprep.subr.mxu0 0.0
        %5673 = vmatpush1.msra.mxu0 0.0
        %5674 = vmatprep.subr.mxu0 0.0
        %5675 = vmatpush1.msra.mxu0 0.0
        %5676 = vmatprep.subr.mxu0 0.0
        %5677 = vmatpush1.msra.mxu0 0.0
        %5678 = vmatprep.subr.mxu0 0.0
        %5679 = vmatpush1.msra.mxu0 0.0
        %5680 = vmatprep.subr.mxu0 0.0
        %5681 = vmatpush1.msra.mxu0 0.0
        %5682 = vmatprep.subr.mxu0 0.0
        %5683 = vmatpush1.msra.mxu0 0.0
        %5684 = vmatprep.subr.mxu0 0.0
        %5685 = vmatpush1.msra.mxu0 0.0
        %5686 = vmatprep.subr.mxu0 0.0
        %5687 = vmatpush1.msra.mxu0 0.0
        %5688 = vmatprep.subr.mxu0 0.0
        %5689 = vmatpush1.msra.mxu0 0.0
        %5690 = vmatprep.subr.mxu0 0.0
        %5691 = vmatpush1.msra.mxu0 0.0
        %5692 = vmatprep.subr.mxu0 0.0
        %5693 = vmatpush1.msra.mxu0 0.0
        %5694 = vmatprep.mubr.f32.mxu0 0.0
        %5695 = vmatmul.mubr.f32.gmra.mrb[0].mxu0 %v5625
        %v5696 = vpop.f32.mrb[0].mxu0
        %v5697 = vadd.f32 0.0, %v5696
        %v5698 = vpop.f32.mrb[0].mxu0
        %5699 = vmatprep.mubr.f32.mxu0 0.0
        %5700 = vmatmul.mubr.f32.gmra.mrb[0].mxu0 %v5628
        %v5701 = vpop.f32.mrb[0].mxu0
        %v5702 = vadd.f32 0.0, %v5701
        %v5703 = vpop.f32.mrb[0].mxu0
        %5704 = vdwg.mxu0
        %v5706 = vsel %vm844, %v5137, 0
        %v5709 = vsel %vm844, %v5142, 0
        %5711 = vmatprep.subr.mxu0 0.0
        %5712 = vmatpush1.msra.mxu0 %v5304
        %5713 = vmatprep.subr.mxu0 0.0
        %5714 = vmatpush1.msra.mxu0 0.0
        %5715 = vmatprep.subr.mxu0 0.0
        %5716 = vmatpush1.msra.mxu0 0.0
        %5717 = vmatprep.subr.mxu0 0.0
        %5718 = vmatpush1.msra.mxu0 0.0
        %5719 = vmatprep.subr.mxu0 0.0
        %5720 = vmatpush1.msra.mxu0 0.0
        %5721 = vmatprep.subr.mxu0 0.0
        %5722 = vmatpush1.msra.mxu0 0.0
        %5723 = vmatprep.subr.mxu0 0.0
        %5724 = vmatpush1.msra.mxu0 0.0
        %5725 = vmatprep.subr.mxu0 0.0
        %5726 = vmatpush1.msra.mxu0 0.0
        %5727 = vmatprep.subr.mxu0 0.0
        %5728 = vmatpush1.msra.mxu0 0.0
        %5729 = vmatprep.subr.mxu0 0.0
        %5730 = vmatpush1.msra.mxu0 0.0
        %5731 = vmatprep.subr.mxu0 0.0
        %5732 = vmatpush1.msra.mxu0 0.0
        %5733 = vmatprep.subr.mxu0 0.0
        %5734 = vmatpush1.msra.mxu0 0.0
        %5735 = vmatprep.subr.mxu0 0.0
        %5736 = vmatpush1.msra.mxu0 0.0
        %5737 = vmatprep.subr.mxu0 0.0
        %5738 = vmatpush1.msra.mxu0 0.0
        %5739 = vmatprep.subr.mxu0 0.0
        %5740 = vmatpush1.msra.mxu0 0.0
        %5741 = vmatprep.subr.mxu0 0.0
        %5742 = vmatpush1.msra.mxu0 0.0
        %5743 = vmatprep.subr.mxu0 0.0
        %5744 = vmatpush1.msra.mxu0 0.0
        %5745 = vmatprep.subr.mxu0 0.0
        %5746 = vmatpush1.msra.mxu0 0.0
        %5747 = vmatprep.subr.mxu0 0.0
        %5748 = vmatpush1.msra.mxu0 0.0
        %5749 = vmatprep.subr.mxu0 0.0
        %5750 = vmatpush1.msra.mxu0 0.0
        %5751 = vmatprep.subr.mxu0 0.0
        %5752 = vmatpush1.msra.mxu0 0.0
        %5753 = vmatprep.subr.mxu0 0.0
        %5754 = vmatpush1.msra.mxu0 0.0
        %5755 = vmatprep.subr.mxu0 0.0
        %5756 = vmatpush1.msra.mxu0 0.0
        %5757 = vmatprep.subr.mxu0 0.0
        %5758 = vmatpush1.msra.mxu0 0.0
        %5759 = vmatprep.subr.mxu0 0.0
        %5760 = vmatpush1.msra.mxu0 0.0
        %5761 = vmatprep.subr.mxu0 0.0
        %5762 = vmatpush1.msra.mxu0 0.0
        %5763 = vmatprep.subr.mxu0 0.0
        %5764 = vmatpush1.msra.mxu0 0.0
        %5765 = vmatprep.subr.mxu0 0.0
        %5766 = vmatpush1.msra.mxu0 0.0
        %5767 = vmatprep.subr.mxu0 0.0
        %5768 = vmatpush1.msra.mxu0 0.0
        %5769 = vmatprep.subr.mxu0 0.0
        %5770 = vmatpush1.msra.mxu0 0.0
        %5771 = vmatprep.subr.mxu0 0.0
        %5772 = vmatpush1.msra.mxu0 0.0
        %5773 = vmatprep.subr.mxu0 0.0
        %5774 = vmatpush1.msra.mxu0 0.0
        %5775 = vmatprep.mubr.f32.mxu0 0.0
        %5776 = vmatmul.mubr.f32.gmra.mrb[0].mxu0 %v5706
        %v5777 = vpop.f32.mrb[0].mxu0
        %v5778 = vadd.f32 0.0, %v5777
        %v5779 = vpop.f32.mrb[0].mxu0
        %5780 = vmatprep.mubr.f32.mxu0 0.0
        %5781 = vmatmul.mubr.f32.gmra.mrb[0].mxu0 %v5709
        %v5782 = vpop.f32.mrb[0].mxu0
        %v5783 = vadd.f32 0.0, %v5782
        %v5784 = vpop.f32.mrb[0].mxu0
        %5785 = vdwg.mxu0
        %v5787 = vsel %vm844, %v5212, 0
        %v5790 = vsel %vm844, %v5217, 0
        %5792 = vmatprep.subr.mxu0 0.0
        %5793 = vmatpush1.msra.mxu0 %v5304
        %5794 = vmatprep.subr.mxu0 0.0
        %5795 = vmatpush1.msra.mxu0 0.0
        %5796 = vmatprep.subr.mxu0 0.0
        %5797 = vmatpush1.msra.mxu0 0.0
        %5798 = vmatprep.subr.mxu0 0.0
        %5799 = vmatpush1.msra.mxu0 0.0
        %5800 = vmatprep.subr.mxu0 0.0
        %5801 = vmatpush1.msra.mxu0 0.0
        %5802 = vmatprep.subr.mxu0 0.0
        %5803 = vmatpush1.msra.mxu0 0.0
        %5804 = vmatprep.subr.mxu0 0.0
        %5805 = vmatpush1.msra.mxu0 0.0
        %5806 = vmatprep.subr.mxu0 0.0
        %5807 = vmatpush1.msra.mxu0 0.0
        %5808 = vmatprep.subr.mxu0 0.0
        %5809 = vmatpush1.msra.mxu0 0.0
        %5810 = vmatprep.subr.mxu0 0.0
        %5811 = vmatpush1.msra.mxu0 0.0
        %5812 = vmatprep.subr.mxu0 0.0
        %5813 = vmatpush1.msra.mxu0 0.0
        %5814 = vmatprep.subr.mxu0 0.0
        %5815 = vmatpush1.msra.mxu0 0.0
        %5816 = vmatprep.subr.mxu0 0.0
        %5817 = vmatpush1.msra.mxu0 0.0
        %5818 = vmatprep.subr.mxu0 0.0
        %5819 = vmatpush1.msra.mxu0 0.0
        %5820 = vmatprep.subr.mxu0 0.0
        %5821 = vmatpush1.msra.mxu0 0.0
        %5822 = vmatprep.subr.mxu0 0.0
        %5823 = vmatpush1.msra.mxu0 0.0
        %5824 = vmatprep.subr.mxu0 0.0
        %5825 = vmatpush1.msra.mxu0 0.0
        %5826 = vmatprep.subr.mxu0 0.0
        %5827 = vmatpush1.msra.mxu0 0.0
        %5828 = vmatprep.subr.mxu0 0.0
        %5829 = vmatpush1.msra.mxu0 0.0
        %5830 = vmatprep.subr.mxu0 0.0
        %5831 = vmatpush1.msra.mxu0 0.0
        %5832 = vmatprep.subr.mxu0 0.0
        %5833 = vmatpush1.msra.mxu0 0.0
        %5834 = vmatprep.subr.mxu0 0.0
        %5835 = vmatpush1.msra.mxu0 0.0
        %5836 = vmatprep.subr.mxu0 0.0
        %5837 = vmatpush1.msra.mxu0 0.0
        %5838 = vmatprep.subr.mxu0 0.0
        %5839 = vmatpush1.msra.mxu0 0.0
        %5840 = vmatprep.subr.mxu0 0.0
        %5841 = vmatpush1.msra.mxu0 0.0
        %5842 = vmatprep.subr.mxu0 0.0
        %5843 = vmatpush1.msra.mxu0 0.0
        %5844 = vmatprep.subr.mxu0 0.0
        %5845 = vmatpush1.msra.mxu0 0.0
        %5846 = vmatprep.subr.mxu0 0.0
        %5847 = vmatpush1.msra.mxu0 0.0
        %5848 = vmatprep.subr.mxu0 0.0
        %5849 = vmatpush1.msra.mxu0 0.0
        %5850 = vmatprep.subr.mxu0 0.0
        %5851 = vmatpush1.msra.mxu0 0.0
        %5852 = vmatprep.subr.mxu0 0.0
        %5853 = vmatpush1.msra.mxu0 0.0
        %5854 = vmatprep.subr.mxu0 0.0
        %5855 = vmatpush1.msra.mxu0 0.0
        %5856 = vmatprep.mubr.f32.mxu0 0.0
        %5857 = vmatmul.mubr.f32.gmra.mrb[0].mxu0 %v5787
        %v5858 = vpop.f32.mrb[0].mxu0
        %v5859 = vadd.f32 0.0, %v5858
        %v5860 = vpop.f32.mrb[0].mxu0
        %5861 = vmatprep.mubr.f32.mxu0 0.0
        %5862 = vmatmul.mubr.f32.gmra.mrb[0].mxu0 %v5790
        %v5863 = vpop.f32.mrb[0].mxu0
        %v5864 = vadd.f32 0.0, %v5863
        %v5865 = vpop.f32.mrb[0].mxu0
        %5866 = vdwg.mxu0
        %v5868 = vsel %vm844, %v5287, 0
        %v5871 = vsel %vm844, %v5292, 0
        %5873 = vmatprep.subr.mxu0 0.0
        %5874 = vmatpush1.msra.mxu0 %v5304
        %5875 = vmatprep.subr.mxu0 0.0
        %5876 = vmatpush1.msra.mxu0 0.0
        %5877 = vmatprep.subr.mxu0 0.0
        %5878 = vmatpush1.msra.mxu0 0.0
        %5879 = vmatprep.subr.mxu0 0.0
        %5880 = vmatpush1.msra.mxu0 0.0
        %5881 = vmatprep.subr.mxu0 0.0
        %5882 = vmatpush1.msra.mxu0 0.0
        %5883 = vmatprep.subr.mxu0 0.0
        %5884 = vmatpush1.msra.mxu0 0.0
        %5885 = vmatprep.subr.mxu0 0.0
        %5886 = vmatpush1.msra.mxu0 0.0
        %5887 = vmatprep.subr.mxu0 0.0
        %5888 = vmatpush1.msra.mxu0 0.0
        %5889 = vmatprep.subr.mxu0 0.0
        %5890 = vmatpush1.msra.mxu0 0.0
        %5891 = vmatprep.subr.mxu0 0.0
        %5892 = vmatpush1.msra.mxu0 0.0
        %5893 = vmatprep.subr.mxu0 0.0
        %5894 = vmatpush1.msra.mxu0 0.0
        %5895 = vmatprep.subr.mxu0 0.0
        %5896 = vmatpush1.msra.mxu0 0.0
        %5897 = vmatprep.subr.mxu0 0.0
        %5898 = vmatpush1.msra.mxu0 0.0
        %5899 = vmatprep.subr.mxu0 0.0
        %5900 = vmatpush1.msra.mxu0 0.0
        %5901 = vmatprep.subr.mxu0 0.0
        %5902 = vmatpush1.msra.mxu0 0.0
        %5903 = vmatprep.subr.mxu0 0.0
        %5904 = vmatpush1.msra.mxu0 0.0
        %5905 = vmatprep.subr.mxu0 0.0
        %5906 = vmatpush1.msra.mxu0 0.0
        %5907 = vmatprep.subr.mxu0 0.0
        %5908 = vmatpush1.msra.mxu0 0.0
        %5909 = vmatprep.subr.mxu0 0.0
        %5910 = vmatpush1.msra.mxu0 0.0
        %5911 = vmatprep.subr.mxu0 0.0
        %5912 = vmatpush1.msra.mxu0 0.0
        %5913 = vmatprep.subr.mxu0 0.0
        %5914 = vmatpush1.msra.mxu0 0.0
        %5915 = vmatprep.subr.mxu0 0.0
        %5916 = vmatpush1.msra.mxu0 0.0
        %5917 = vmatprep.subr.mxu0 0.0
        %5918 = vmatpush1.msra.mxu0 0.0
        %5919 = vmatprep.subr.mxu0 0.0
        %5920 = vmatpush1.msra.mxu0 0.0
        %5921 = vmatprep.subr.mxu0 0.0
        %5922 = vmatpush1.msra.mxu0 0.0
        %5923 = vmatprep.subr.mxu0 0.0
        %5924 = vmatpush1.msra.mxu0 0.0
        %5925 = vmatprep.subr.mxu0 0.0
        %5926 = vmatpush1.msra.mxu0 0.0
        %5927 = vmatprep.subr.mxu0 0.0
        %5928 = vmatpush1.msra.mxu0 0.0
        %5929 = vmatprep.subr.mxu0 0.0
        %5930 = vmatpush1.msra.mxu0 0.0
        %5931 = vmatprep.subr.mxu0 0.0
        %5932 = vmatpush1.msra.mxu0 0.0
        %5933 = vmatprep.subr.mxu0 0.0
        %5934 = vmatpush1.msra.mxu0 0.0
        %5935 = vmatprep.subr.mxu0 0.0
        %5936 = vmatpush1.msra.mxu0 0.0
        %5937 = vmatprep.mubr.f32.mxu0 0.0
        %5938 = vmatmul.mubr.f32.gmra.mrb[0].mxu0 %v5868
        %v5939 = vpop.f32.mrb[0].mxu0
        %v5940 = vadd.f32 0.0, %v5939
        %v5941 = vpop.f32.mrb[0].mxu0
        %5942 = vmatprep.mubr.f32.mxu0 0.0
        %5943 = vmatmul.mubr.f32.gmra.mrb[0].mxu0 %v5871
        %v5944 = vpop.f32.mrb[0].mxu0
        %v5945 = vadd.f32 0.0, %v5944
        %v5946 = vpop.f32.mrb[0].mxu0
        %5947 = vdwg.mxu0
        %v5948 = vadd.f32 %v4679, %v5373
        %v5949 = vadd.f32 %v4680, %v5378
        %v5950 = vadd.f32 %v4681, %v5454
        %v5951 = vadd.f32 %v4682, %v5459
        %v5952 = vadd.f32 %v4683, %v5535
        %v5953 = vadd.f32 %v4684, %v5540
        %v5954 = vadd.f32 %v4685, %v5616
        %v5955 = vadd.f32 %v4686, %v5621
        %v5956 = vadd.f32 %v4687, %v5697
        %v5957 = vadd.f32 %v4688, %v5702
        %v5958 = vadd.f32 %v4689, %v5778
        %v5959 = vadd.f32 %v4690, %v5783
        %v5960 = vadd.f32 %v4691, %v5859
        %v5961 = vadd.f32 %v4692, %v5864
        %v5962 = vadd.f32 %v4693, %v5940
        %v5963 = vadd.f32 %v4694, %v5945
        %s5964 = scalar_lea.vmem %s215, 32
        %v5965 = vld [vmem:[%s5964] sm:$0xff]
        %v5966 = vld [vmem:[%s5964 + $0x8] sm:$0xff]
        %v5968 = vsel %vm235, %v5965, 0
        %v5971 = vsel %vm235, %v5966, 0
        %5973 = vmatprep.subr.mxu0 0.0
        %5974 = vmatpush1.msra.mxu0 %v216
        %5975 = vmatprep.subr.mxu0 0.0
        %5976 = vmatpush1.msra.mxu0 %v217
        %5977 = vmatprep.subr.mxu0 0.0
        %5978 = vmatpush1.msra.mxu0 0.0
        %5979 = vmatprep.subr.mxu0 0.0
        %5980 = vmatpush1.msra.mxu0 0.0
        %5981 = vmatprep.subr.mxu0 0.0
        %5982 = vmatpush1.msra.mxu0 0.0
        %5983 = vmatprep.subr.mxu0 0.0
        %5984 = vmatpush1.msra.mxu0 0.0
        %5985 = vmatprep.subr.mxu0 0.0
        %5986 = vmatpush1.msra.mxu0 0.0
        %5987 = vmatprep.subr.mxu0 0.0
        %5988 = vmatpush1.msra.mxu0 0.0
        %5989 = vmatprep.subr.mxu0 0.0
        %5990 = vmatpush1.msra.mxu0 0.0
        %5991 = vmatprep.subr.mxu0 0.0
        %5992 = vmatpush1.msra.mxu0 0.0
        %5993 = vmatprep.subr.mxu0 0.0
        %5994 = vmatpush1.msra.mxu0 0.0
        %5995 = vmatprep.subr.mxu0 0.0
        %5996 = vmatpush1.msra.mxu0 0.0
        %5997 = vmatprep.subr.mxu0 0.0
        %5998 = vmatpush1.msra.mxu0 0.0
        %5999 = vmatprep.subr.mxu0 0.0
        %6000 = vmatpush1.msra.mxu0 0.0
        %6001 = vmatprep.subr.mxu0 0.0
        %6002 = vmatpush1.msra.mxu0 0.0
        %6003 = vmatprep.subr.mxu0 0.0
        %6004 = vmatpush1.msra.mxu0 0.0
        %6005 = vmatprep.subr.mxu0 0.0
        %6006 = vmatpush1.msra.mxu0 0.0
        %6007 = vmatprep.subr.mxu0 0.0
        %6008 = vmatpush1.msra.mxu0 0.0
        %6009 = vmatprep.subr.mxu0 0.0
        %6010 = vmatpush1.msra.mxu0 0.0
        %6011 = vmatprep.subr.mxu0 0.0
        %6012 = vmatpush1.msra.mxu0 0.0
        %6013 = vmatprep.subr.mxu0 0.0
        %6014 = vmatpush1.msra.mxu0 0.0
        %6015 = vmatprep.subr.mxu0 0.0
        %6016 = vmatpush1.msra.mxu0 0.0
        %6017 = vmatprep.subr.mxu0 0.0
        %6018 = vmatpush1.msra.mxu0 0.0
        %6019 = vmatprep.subr.mxu0 0.0
        %6020 = vmatpush1.msra.mxu0 0.0
        %6021 = vmatprep.subr.mxu0 0.0
        %6022 = vmatpush1.msra.mxu0 0.0
        %6023 = vmatprep.subr.mxu0 0.0
        %6024 = vmatpush1.msra.mxu0 0.0
        %6025 = vmatprep.subr.mxu0 0.0
        %6026 = vmatpush1.msra.mxu0 0.0
        %6027 = vmatprep.subr.mxu0 0.0
        %6028 = vmatpush1.msra.mxu0 0.0
        %6029 = vmatprep.subr.mxu0 0.0
        %6030 = vmatpush1.msra.mxu0 0.0
        %6031 = vmatprep.subr.mxu0 0.0
        %6032 = vmatpush1.msra.mxu0 0.0
        %6033 = vmatprep.subr.mxu0 0.0
        %6034 = vmatpush1.msra.mxu0 0.0
        %6035 = vmatprep.subr.mxu0 0.0
        %6036 = vmatpush1.msra.mxu0 0.0
        %6037 = vmatprep.mubr.f32.mxu0 0.0
        %6038 = vmatmul.mubr.f32.gmra.mrb[0].mxu0 %v5968
        %v6039 = vpop.f32.mrb[0].mxu0
        %v6040 = vadd.f32 0.0, %v6039
        %v6041 = vpop.f32.mrb[0].mxu0
        %6042 = vmatprep.mubr.f32.mxu0 0.0
        %6043 = vmatmul.mubr.f32.gmra.mrb[0].mxu0 %v5971
        %v6044 = vpop.f32.mrb[0].mxu0
        %v6045 = vadd.f32 0.0, %v6044
        %v6046 = vpop.f32.mrb[0].mxu0
        %6047 = vdwg.mxu0
        %6048 = vmatprep.subr.mxu0 0.0
        %6049 = vmatpush1.msra.mxu0 %v218
        %6050 = vmatprep.subr.mxu0 0.0
        %6051 = vmatpush1.msra.mxu0 %v219
        %6052 = vmatprep.subr.mxu0 0.0
        %6053 = vmatpush1.msra.mxu0 0.0
        %6054 = vmatprep.subr.mxu0 0.0
        %6055 = vmatpush1.msra.mxu0 0.0
        %6056 = vmatprep.subr.mxu0 0.0
        %6057 = vmatpush1.msra.mxu0 0.0
        %6058 = vmatprep.subr.mxu0 0.0
        %6059 = vmatpush1.msra.mxu0 0.0
        %6060 = vmatprep.subr.mxu0 0.0
        %6061 = vmatpush1.msra.mxu0 0.0
        %6062 = vmatprep.subr.mxu0 0.0
        %6063 = vmatpush1.msra.mxu0 0.0
        %6064 = vmatprep.subr.mxu0 0.0
        %6065 = vmatpush1.msra.mxu0 0.0
        %6066 = vmatprep.subr.mxu0 0.0
        %6067 = vmatpush1.msra.mxu0 0.0
        %6068 = vmatprep.subr.mxu0 0.0
        %6069 = vmatpush1.msra.mxu0 0.0
        %6070 = vmatprep.subr.mxu0 0.0
        %6071 = vmatpush1.msra.mxu0 0.0
        %6072 = vmatprep.subr.mxu0 0.0
        %6073 = vmatpush1.msra.mxu0 0.0
        %6074 = vmatprep.subr.mxu0 0.0
        %6075 = vmatpush1.msra.mxu0 0.0
        %6076 = vmatprep.subr.mxu0 0.0
        %6077 = vmatpush1.msra.mxu0 0.0
        %6078 = vmatprep.subr.mxu0 0.0
        %6079 = vmatpush1.msra.mxu0 0.0
        %6080 = vmatprep.subr.mxu0 0.0
        %6081 = vmatpush1.msra.mxu0 0.0
        %6082 = vmatprep.subr.mxu0 0.0
        %6083 = vmatpush1.msra.mxu0 0.0
        %6084 = vmatprep.subr.mxu0 0.0
        %6085 = vmatpush1.msra.mxu0 0.0
        %6086 = vmatprep.subr.mxu0 0.0
        %6087 = vmatpush1.msra.mxu0 0.0
        %6088 = vmatprep.subr.mxu0 0.0
        %6089 = vmatpush1.msra.mxu0 0.0
        %6090 = vmatprep.subr.mxu0 0.0
        %6091 = vmatpush1.msra.mxu0 0.0
        %6092 = vmatprep.subr.mxu0 0.0
        %6093 = vmatpush1.msra.mxu0 0.0
        %6094 = vmatprep.subr.mxu0 0.0
        %6095 = vmatpush1.msra.mxu0 0.0
        %6096 = vmatprep.subr.mxu0 0.0
        %6097 = vmatpush1.msra.mxu0 0.0
        %6098 = vmatprep.subr.mxu0 0.0
        %6099 = vmatpush1.msra.mxu0 0.0
        %6100 = vmatprep.subr.mxu0 0.0
        %6101 = vmatpush1.msra.mxu0 0.0
        %6102 = vmatprep.subr.mxu0 0.0
        %6103 = vmatpush1.msra.mxu0 0.0
        %6104 = vmatprep.subr.mxu0 0.0
        %6105 = vmatpush1.msra.mxu0 0.0
        %6106 = vmatprep.subr.mxu0 0.0
        %6107 = vmatpush1.msra.mxu0 0.0
        %6108 = vmatprep.subr.mxu0 0.0
        %6109 = vmatpush1.msra.mxu0 0.0
        %6110 = vmatprep.subr.mxu0 0.0
        %6111 = vmatpush1.msra.mxu0 0.0
        %6112 = vmatprep.mubr.f32.mxu0 0.0
        %6113 = vmatmul.mubr.f32.gmra.mrb[0].mxu0 %v5968
        %v6114 = vpop.f32.mrb[0].mxu0
        %v6115 = vadd.f32 0.0, %v6114
        %v6116 = vpop.f32.mrb[0].mxu0
        %6117 = vmatprep.mubr.f32.mxu0 0.0
        %6118 = vmatmul.mubr.f32.gmra.mrb[0].mxu0 %v5971
        %v6119 = vpop.f32.mrb[0].mxu0
        %v6120 = vadd.f32 0.0, %v6119
        %v6121 = vpop.f32.mrb[0].mxu0
        %6122 = vdwg.mxu0
        %6123 = vmatprep.subr.mxu0 0.0
        %6124 = vmatpush1.msra.mxu0 %v220
        %6125 = vmatprep.subr.mxu0 0.0
        %6126 = vmatpush1.msra.mxu0 %v221
        %6127 = vmatprep.subr.mxu0 0.0
        %6128 = vmatpush1.msra.mxu0 0.0
        %6129 = vmatprep.subr.mxu0 0.0
        %6130 = vmatpush1.msra.mxu0 0.0
        %6131 = vmatprep.subr.mxu0 0.0
        %6132 = vmatpush1.msra.mxu0 0.0
        %6133 = vmatprep.subr.mxu0 0.0
        %6134 = vmatpush1.msra.mxu0 0.0
        %6135 = vmatprep.subr.mxu0 0.0
        %6136 = vmatpush1.msra.mxu0 0.0
        %6137 = vmatprep.subr.mxu0 0.0
        %6138 = vmatpush1.msra.mxu0 0.0
        %6139 = vmatprep.subr.mxu0 0.0
        %6140 = vmatpush1.msra.mxu0 0.0
        %6141 = vmatprep.subr.mxu0 0.0
        %6142 = vmatpush1.msra.mxu0 0.0
        %6143 = vmatprep.subr.mxu0 0.0
        %6144 = vmatpush1.msra.mxu0 0.0
        %6145 = vmatprep.subr.mxu0 0.0
        %6146 = vmatpush1.msra.mxu0 0.0
        %6147 = vmatprep.subr.mxu0 0.0
        %6148 = vmatpush1.msra.mxu0 0.0
        %6149 = vmatprep.subr.mxu0 0.0
        %6150 = vmatpush1.msra.mxu0 0.0
        %6151 = vmatprep.subr.mxu0 0.0
        %6152 = vmatpush1.msra.mxu0 0.0
        %6153 = vmatprep.subr.mxu0 0.0
        %6154 = vmatpush1.msra.mxu0 0.0
        %6155 = vmatprep.subr.mxu0 0.0
        %6156 = vmatpush1.msra.mxu0 0.0
        %6157 = vmatprep.subr.mxu0 0.0
        %6158 = vmatpush1.msra.mxu0 0.0
        %6159 = vmatprep.subr.mxu0 0.0
        %6160 = vmatpush1.msra.mxu0 0.0
        %6161 = vmatprep.subr.mxu0 0.0
        %6162 = vmatpush1.msra.mxu0 0.0
        %6163 = vmatprep.subr.mxu0 0.0
        %6164 = vmatpush1.msra.mxu0 0.0
        %6165 = vmatprep.subr.mxu0 0.0
        %6166 = vmatpush1.msra.mxu0 0.0
        %6167 = vmatprep.subr.mxu0 0.0
        %6168 = vmatpush1.msra.mxu0 0.0
        %6169 = vmatprep.subr.mxu0 0.0
        %6170 = vmatpush1.msra.mxu0 0.0
        %6171 = vmatprep.subr.mxu0 0.0
        %6172 = vmatpush1.msra.mxu0 0.0
        %6173 = vmatprep.subr.mxu0 0.0
        %6174 = vmatpush1.msra.mxu0 0.0
        %6175 = vmatprep.subr.mxu0 0.0
        %6176 = vmatpush1.msra.mxu0 0.0
        %6177 = vmatprep.subr.mxu0 0.0
        %6178 = vmatpush1.msra.mxu0 0.0
        %6179 = vmatprep.subr.mxu0 0.0
        %6180 = vmatpush1.msra.mxu0 0.0
        %6181 = vmatprep.subr.mxu0 0.0
        %6182 = vmatpush1.msra.mxu0 0.0
        %6183 = vmatprep.subr.mxu0 0.0
        %6184 = vmatpush1.msra.mxu0 0.0
        %6185 = vmatprep.subr.mxu0 0.0
        %6186 = vmatpush1.msra.mxu0 0.0
        %6187 = vmatprep.mubr.f32.mxu0 0.0
        %6188 = vmatmul.mubr.f32.gmra.mrb[0].mxu0 %v5968
        %v6189 = vpop.f32.mrb[0].mxu0
        %v6190 = vadd.f32 0.0, %v6189
        %v6191 = vpop.f32.mrb[0].mxu0
        %6192 = vmatprep.mubr.f32.mxu0 0.0
        %6193 = vmatmul.mubr.f32.gmra.mrb[0].mxu0 %v5971
        %v6194 = vpop.f32.mrb[0].mxu0
        %v6195 = vadd.f32 0.0, %v6194
        %v6196 = vpop.f32.mrb[0].mxu0
        %6197 = vdwg.mxu0
        %6198 = vmatprep.subr.mxu0 0.0
        %6199 = vmatpush1.msra.mxu0 %v222
        %6200 = vmatprep.subr.mxu0 0.0
        %6201 = vmatpush1.msra.mxu0 %v223
        %6202 = vmatprep.subr.mxu0 0.0
        %6203 = vmatpush1.msra.mxu0 0.0
        %6204 = vmatprep.subr.mxu0 0.0
        %6205 = vmatpush1.msra.mxu0 0.0
        %6206 = vmatprep.subr.mxu0 0.0
        %6207 = vmatpush1.msra.mxu0 0.0
        %6208 = vmatprep.subr.mxu0 0.0
        %6209 = vmatpush1.msra.mxu0 0.0
        %6210 = vmatprep.subr.mxu0 0.0
        %6211 = vmatpush1.msra.mxu0 0.0
        %6212 = vmatprep.subr.mxu0 0.0
        %6213 = vmatpush1.msra.mxu0 0.0
        %6214 = vmatprep.subr.mxu0 0.0
        %6215 = vmatpush1.msra.mxu0 0.0
        %6216 = vmatprep.subr.mxu0 0.0
        %6217 = vmatpush1.msra.mxu0 0.0
        %6218 = vmatprep.subr.mxu0 0.0
        %6219 = vmatpush1.msra.mxu0 0.0
        %6220 = vmatprep.subr.mxu0 0.0
        %6221 = vmatpush1.msra.mxu0 0.0
        %6222 = vmatprep.subr.mxu0 0.0
        %6223 = vmatpush1.msra.mxu0 0.0
        %6224 = vmatprep.subr.mxu0 0.0
        %6225 = vmatpush1.msra.mxu0 0.0
        %6226 = vmatprep.subr.mxu0 0.0
        %6227 = vmatpush1.msra.mxu0 0.0
        %6228 = vmatprep.subr.mxu0 0.0
        %6229 = vmatpush1.msra.mxu0 0.0
        %6230 = vmatprep.subr.mxu0 0.0
        %6231 = vmatpush1.msra.mxu0 0.0
        %6232 = vmatprep.subr.mxu0 0.0
        %6233 = vmatpush1.msra.mxu0 0.0
        %6234 = vmatprep.subr.mxu0 0.0
        %6235 = vmatpush1.msra.mxu0 0.0
        %6236 = vmatprep.subr.mxu0 0.0
        %6237 = vmatpush1.msra.mxu0 0.0
        %6238 = vmatprep.subr.mxu0 0.0
        %6239 = vmatpush1.msra.mxu0 0.0
        %6240 = vmatprep.subr.mxu0 0.0
        %6241 = vmatpush1.msra.mxu0 0.0
        %6242 = vmatprep.subr.mxu0 0.0
        %6243 = vmatpush1.msra.mxu0 0.0
        %6244 = vmatprep.subr.mxu0 0.0
        %6245 = vmatpush1.msra.mxu0 0.0
        %6246 = vmatprep.subr.mxu0 0.0
        %6247 = vmatpush1.msra.mxu0 0.0
        %6248 = vmatprep.subr.mxu0 0.0
        %6249 = vmatpush1.msra.mxu0 0.0
        %6250 = vmatprep.subr.mxu0 0.0
        %6251 = vmatpush1.msra.mxu0 0.0
        %6252 = vmatprep.subr.mxu0 0.0
        %6253 = vmatpush1.msra.mxu0 0.0
        %6254 = vmatprep.subr.mxu0 0.0
        %6255 = vmatpush1.msra.mxu0 0.0
        %6256 = vmatprep.subr.mxu0 0.0
        %6257 = vmatpush1.msra.mxu0 0.0
        %6258 = vmatprep.subr.mxu0 0.0
        %6259 = vmatpush1.msra.mxu0 0.0
        %6260 = vmatprep.subr.mxu0 0.0
        %6261 = vmatpush1.msra.mxu0 0.0
        %6262 = vmatprep.mubr.f32.mxu0 0.0
        %6263 = vmatmul.mubr.f32.gmra.mrb[0].mxu0 %v5968
        %v6264 = vpop.f32.mrb[0].mxu0
        %v6265 = vadd.f32 0.0, %v6264
        %v6266 = vpop.f32.mrb[0].mxu0
        %6267 = vmatprep.mubr.f32.mxu0 0.0
        %6268 = vmatmul.mubr.f32.gmra.mrb[0].mxu0 %v5971
        %v6269 = vpop.f32.mrb[0].mxu0
        %v6270 = vadd.f32 0.0, %v6269
        %v6271 = vpop.f32.mrb[0].mxu0
        %6272 = vdwg.mxu0
        %6273 = vmatprep.subr.mxu0 0.0
        %6274 = vmatpush1.msra.mxu0 %v224
        %6275 = vmatprep.subr.mxu0 0.0
        %6276 = vmatpush1.msra.mxu0 %v225
        %6277 = vmatprep.subr.mxu0 0.0
        %6278 = vmatpush1.msra.mxu0 0.0
        %6279 = vmatprep.subr.mxu0 0.0
        %6280 = vmatpush1.msra.mxu0 0.0
        %6281 = vmatprep.subr.mxu0 0.0
        %6282 = vmatpush1.msra.mxu0 0.0
        %6283 = vmatprep.subr.mxu0 0.0
        %6284 = vmatpush1.msra.mxu0 0.0
        %6285 = vmatprep.subr.mxu0 0.0
        %6286 = vmatpush1.msra.mxu0 0.0
        %6287 = vmatprep.subr.mxu0 0.0
        %6288 = vmatpush1.msra.mxu0 0.0
        %6289 = vmatprep.subr.mxu0 0.0
        %6290 = vmatpush1.msra.mxu0 0.0
        %6291 = vmatprep.subr.mxu0 0.0
        %6292 = vmatpush1.msra.mxu0 0.0
        %6293 = vmatprep.subr.mxu0 0.0
        %6294 = vmatpush1.msra.mxu0 0.0
        %6295 = vmatprep.subr.mxu0 0.0
        %6296 = vmatpush1.msra.mxu0 0.0
        %6297 = vmatprep.subr.mxu0 0.0
        %6298 = vmatpush1.msra.mxu0 0.0
        %6299 = vmatprep.subr.mxu0 0.0
        %6300 = vmatpush1.msra.mxu0 0.0
        %6301 = vmatprep.subr.mxu0 0.0
        %6302 = vmatpush1.msra.mxu0 0.0
        %6303 = vmatprep.subr.mxu0 0.0
        %6304 = vmatpush1.msra.mxu0 0.0
        %6305 = vmatprep.subr.mxu0 0.0
        %6306 = vmatpush1.msra.mxu0 0.0
        %6307 = vmatprep.subr.mxu0 0.0
        %6308 = vmatpush1.msra.mxu0 0.0
        %6309 = vmatprep.subr.mxu0 0.0
        %6310 = vmatpush1.msra.mxu0 0.0
        %6311 = vmatprep.subr.mxu0 0.0
        %6312 = vmatpush1.msra.mxu0 0.0
        %6313 = vmatprep.subr.mxu0 0.0
        %6314 = vmatpush1.msra.mxu0 0.0
        %6315 = vmatprep.subr.mxu0 0.0
        %6316 = vmatpush1.msra.mxu0 0.0
        %6317 = vmatprep.subr.mxu0 0.0
        %6318 = vmatpush1.msra.mxu0 0.0
        %6319 = vmatprep.subr.mxu0 0.0
        %6320 = vmatpush1.msra.mxu0 0.0
        %6321 = vmatprep.subr.mxu0 0.0
        %6322 = vmatpush1.msra.mxu0 0.0
        %6323 = vmatprep.subr.mxu0 0.0
        %6324 = vmatpush1.msra.mxu0 0.0
        %6325 = vmatprep.subr.mxu0 0.0
        %6326 = vmatpush1.msra.mxu0 0.0
        %6327 = vmatprep.subr.mxu0 0.0
        %6328 = vmatpush1.msra.mxu0 0.0
        %6329 = vmatprep.subr.mxu0 0.0
        %6330 = vmatpush1.msra.mxu0 0.0
        %6331 = vmatprep.subr.mxu0 0.0
        %6332 = vmatpush1.msra.mxu0 0.0
        %6333 = vmatprep.subr.mxu0 0.0
        %6334 = vmatpush1.msra.mxu0 0.0
        %6335 = vmatprep.subr.mxu0 0.0
        %6336 = vmatpush1.msra.mxu0 0.0
        %6337 = vmatprep.mubr.f32.mxu0 0.0
        %6338 = vmatmul.mubr.f32.gmra.mrb[0].mxu0 %v5968
        %v6339 = vpop.f32.mrb[0].mxu0
        %v6340 = vadd.f32 0.0, %v6339
        %v6341 = vpop.f32.mrb[0].mxu0
        %6342 = vmatprep.mubr.f32.mxu0 0.0
        %6343 = vmatmul.mubr.f32.gmra.mrb[0].mxu0 %v5971
        %v6344 = vpop.f32.mrb[0].mxu0
        %v6345 = vadd.f32 0.0, %v6344
        %v6346 = vpop.f32.mrb[0].mxu0
        %6347 = vdwg.mxu0
        %6348 = vmatprep.subr.mxu0 0.0
        %6349 = vmatpush1.msra.mxu0 %v226
        %6350 = vmatprep.subr.mxu0 0.0
        %6351 = vmatpush1.msra.mxu0 %v227
        %6352 = vmatprep.subr.mxu0 0.0
        %6353 = vmatpush1.msra.mxu0 0.0
        %6354 = vmatprep.subr.mxu0 0.0
        %6355 = vmatpush1.msra.mxu0 0.0
        %6356 = vmatprep.subr.mxu0 0.0
        %6357 = vmatpush1.msra.mxu0 0.0
        %6358 = vmatprep.subr.mxu0 0.0
        %6359 = vmatpush1.msra.mxu0 0.0
        %6360 = vmatprep.subr.mxu0 0.0
        %6361 = vmatpush1.msra.mxu0 0.0
        %6362 = vmatprep.subr.mxu0 0.0
        %6363 = vmatpush1.msra.mxu0 0.0
        %6364 = vmatprep.subr.mxu0 0.0
        %6365 = vmatpush1.msra.mxu0 0.0
        %6366 = vmatprep.subr.mxu0 0.0
        %6367 = vmatpush1.msra.mxu0 0.0
        %6368 = vmatprep.subr.mxu0 0.0
        %6369 = vmatpush1.msra.mxu0 0.0
        %6370 = vmatprep.subr.mxu0 0.0
        %6371 = vmatpush1.msra.mxu0 0.0
        %6372 = vmatprep.subr.mxu0 0.0
        %6373 = vmatpush1.msra.mxu0 0.0
        %6374 = vmatprep.subr.mxu0 0.0
        %6375 = vmatpush1.msra.mxu0 0.0
        %6376 = vmatprep.subr.mxu0 0.0
        %6377 = vmatpush1.msra.mxu0 0.0
        %6378 = vmatprep.subr.mxu0 0.0
        %6379 = vmatpush1.msra.mxu0 0.0
        %6380 = vmatprep.subr.mxu0 0.0
        %6381 = vmatpush1.msra.mxu0 0.0
        %6382 = vmatprep.subr.mxu0 0.0
        %6383 = vmatpush1.msra.mxu0 0.0
        %6384 = vmatprep.subr.mxu0 0.0
        %6385 = vmatpush1.msra.mxu0 0.0
        %6386 = vmatprep.subr.mxu0 0.0
        %6387 = vmatpush1.msra.mxu0 0.0
        %6388 = vmatprep.subr.mxu0 0.0
        %6389 = vmatpush1.msra.mxu0 0.0
        %6390 = vmatprep.subr.mxu0 0.0
        %6391 = vmatpush1.msra.mxu0 0.0
        %6392 = vmatprep.subr.mxu0 0.0
        %6393 = vmatpush1.msra.mxu0 0.0
        %6394 = vmatprep.subr.mxu0 0.0
        %6395 = vmatpush1.msra.mxu0 0.0
        %6396 = vmatprep.subr.mxu0 0.0
        %6397 = vmatpush1.msra.mxu0 0.0
        %6398 = vmatprep.subr.mxu0 0.0
        %6399 = vmatpush1.msra.mxu0 0.0
        %6400 = vmatprep.subr.mxu0 0.0
        %6401 = vmatpush1.msra.mxu0 0.0
        %6402 = vmatprep.subr.mxu0 0.0
        %6403 = vmatpush1.msra.mxu0 0.0
        %6404 = vmatprep.subr.mxu0 0.0
        %6405 = vmatpush1.msra.mxu0 0.0
        %6406 = vmatprep.subr.mxu0 0.0
        %6407 = vmatpush1.msra.mxu0 0.0
        %6408 = vmatprep.subr.mxu0 0.0
        %6409 = vmatpush1.msra.mxu0 0.0
        %6410 = vmatprep.subr.mxu0 0.0
        %6411 = vmatpush1.msra.mxu0 0.0
        %6412 = vmatprep.mubr.f32.mxu0 0.0
        %6413 = vmatmul.mubr.f32.gmra.mrb[0].mxu0 %v5968
        %v6414 = vpop.f32.mrb[0].mxu0
        %v6415 = vadd.f32 0.0, %v6414
        %v6416 = vpop.f32.mrb[0].mxu0
        %6417 = vmatprep.mubr.f32.mxu0 0.0
        %6418 = vmatmul.mubr.f32.gmra.mrb[0].mxu0 %v5971
        %v6419 = vpop.f32.mrb[0].mxu0
        %v6420 = vadd.f32 0.0, %v6419
        %v6421 = vpop.f32.mrb[0].mxu0
        %6422 = vdwg.mxu0
        %6423 = vmatprep.subr.mxu0 0.0
        %6424 = vmatpush1.msra.mxu0 %v228
        %6425 = vmatprep.subr.mxu0 0.0
        %6426 = vmatpush1.msra.mxu0 %v229
        %6427 = vmatprep.subr.mxu0 0.0
        %6428 = vmatpush1.msra.mxu0 0.0
        %6429 = vmatprep.subr.mxu0 0.0
        %6430 = vmatpush1.msra.mxu0 0.0
        %6431 = vmatprep.subr.mxu0 0.0
        %6432 = vmatpush1.msra.mxu0 0.0
        %6433 = vmatprep.subr.mxu0 0.0
        %6434 = vmatpush1.msra.mxu0 0.0
        %6435 = vmatprep.subr.mxu0 0.0
        %6436 = vmatpush1.msra.mxu0 0.0
        %6437 = vmatprep.subr.mxu0 0.0
        %6438 = vmatpush1.msra.mxu0 0.0
        %6439 = vmatprep.subr.mxu0 0.0
        %6440 = vmatpush1.msra.mxu0 0.0
        %6441 = vmatprep.subr.mxu0 0.0
        %6442 = vmatpush1.msra.mxu0 0.0
        %6443 = vmatprep.subr.mxu0 0.0
        %6444 = vmatpush1.msra.mxu0 0.0
        %6445 = vmatprep.subr.mxu0 0.0
        %6446 = vmatpush1.msra.mxu0 0.0
        %6447 = vmatprep.subr.mxu0 0.0
        %6448 = vmatpush1.msra.mxu0 0.0
        %6449 = vmatprep.subr.mxu0 0.0
        %6450 = vmatpush1.msra.mxu0 0.0
        %6451 = vmatprep.subr.mxu0 0.0
        %6452 = vmatpush1.msra.mxu0 0.0
        %6453 = vmatprep.subr.mxu0 0.0
        %6454 = vmatpush1.msra.mxu0 0.0
        %6455 = vmatprep.subr.mxu0 0.0
        %6456 = vmatpush1.msra.mxu0 0.0
        %6457 = vmatprep.subr.mxu0 0.0
        %6458 = vmatpush1.msra.mxu0 0.0
        %6459 = vmatprep.subr.mxu0 0.0
        %6460 = vmatpush1.msra.mxu0 0.0
        %6461 = vmatprep.subr.mxu0 0.0
        %6462 = vmatpush1.msra.mxu0 0.0
        %6463 = vmatprep.subr.mxu0 0.0
        %6464 = vmatpush1.msra.mxu0 0.0
        %6465 = vmatprep.subr.mxu0 0.0
        %6466 = vmatpush1.msra.mxu0 0.0
        %6467 = vmatprep.subr.mxu0 0.0
        %6468 = vmatpush1.msra.mxu0 0.0
        %6469 = vmatprep.subr.mxu0 0.0
        %6470 = vmatpush1.msra.mxu0 0.0
        %6471 = vmatprep.subr.mxu0 0.0
        %6472 = vmatpush1.msra.mxu0 0.0
        %6473 = vmatprep.subr.mxu0 0.0
        %6474 = vmatpush1.msra.mxu0 0.0
        %6475 = vmatprep.subr.mxu0 0.0
        %6476 = vmatpush1.msra.mxu0 0.0
        %6477 = vmatprep.subr.mxu0 0.0
        %6478 = vmatpush1.msra.mxu0 0.0
        %6479 = vmatprep.subr.mxu0 0.0
        %6480 = vmatpush1.msra.mxu0 0.0
        %6481 = vmatprep.subr.mxu0 0.0
        %6482 = vmatpush1.msra.mxu0 0.0
        %6483 = vmatprep.subr.mxu0 0.0
        %6484 = vmatpush1.msra.mxu0 0.0
        %6485 = vmatprep.subr.mxu0 0.0
        %6486 = vmatpush1.msra.mxu0 0.0
        %6487 = vmatprep.mubr.f32.mxu0 0.0
        %6488 = vmatmul.mubr.f32.gmra.mrb[0].mxu0 %v5968
        %v6489 = vpop.f32.mrb[0].mxu0
        %v6490 = vadd.f32 0.0, %v6489
        %v6491 = vpop.f32.mrb[0].mxu0
        %6492 = vmatprep.mubr.f32.mxu0 0.0
        %6493 = vmatmul.mubr.f32.gmra.mrb[0].mxu0 %v5971
        %v6494 = vpop.f32.mrb[0].mxu0
        %v6495 = vadd.f32 0.0, %v6494
        %v6496 = vpop.f32.mrb[0].mxu0
        %6497 = vdwg.mxu0
        %6498 = vmatprep.subr.mxu0 0.0
        %6499 = vmatpush1.msra.mxu0 %v230
        %6500 = vmatprep.subr.mxu0 0.0
        %6501 = vmatpush1.msra.mxu0 %v231
        %6502 = vmatprep.subr.mxu0 0.0
        %6503 = vmatpush1.msra.mxu0 0.0
        %6504 = vmatprep.subr.mxu0 0.0
        %6505 = vmatpush1.msra.mxu0 0.0
        %6506 = vmatprep.subr.mxu0 0.0
        %6507 = vmatpush1.msra.mxu0 0.0
        %6508 = vmatprep.subr.mxu0 0.0
        %6509 = vmatpush1.msra.mxu0 0.0
        %6510 = vmatprep.subr.mxu0 0.0
        %6511 = vmatpush1.msra.mxu0 0.0
        %6512 = vmatprep.subr.mxu0 0.0
        %6513 = vmatpush1.msra.mxu0 0.0
        %6514 = vmatprep.subr.mxu0 0.0
        %6515 = vmatpush1.msra.mxu0 0.0
        %6516 = vmatprep.subr.mxu0 0.0
        %6517 = vmatpush1.msra.mxu0 0.0
        %6518 = vmatprep.subr.mxu0 0.0
        %6519 = vmatpush1.msra.mxu0 0.0
        %6520 = vmatprep.subr.mxu0 0.0
        %6521 = vmatpush1.msra.mxu0 0.0
        %6522 = vmatprep.subr.mxu0 0.0
        %6523 = vmatpush1.msra.mxu0 0.0
        %6524 = vmatprep.subr.mxu0 0.0
        %6525 = vmatpush1.msra.mxu0 0.0
        %6526 = vmatprep.subr.mxu0 0.0
        %6527 = vmatpush1.msra.mxu0 0.0
        %6528 = vmatprep.subr.mxu0 0.0
        %6529 = vmatpush1.msra.mxu0 0.0
        %6530 = vmatprep.subr.mxu0 0.0
        %6531 = vmatpush1.msra.mxu0 0.0
        %6532 = vmatprep.subr.mxu0 0.0
        %6533 = vmatpush1.msra.mxu0 0.0
        %6534 = vmatprep.subr.mxu0 0.0
        %6535 = vmatpush1.msra.mxu0 0.0
        %6536 = vmatprep.subr.mxu0 0.0
        %6537 = vmatpush1.msra.mxu0 0.0
        %6538 = vmatprep.subr.mxu0 0.0
        %6539 = vmatpush1.msra.mxu0 0.0
        %6540 = vmatprep.subr.mxu0 0.0
        %6541 = vmatpush1.msra.mxu0 0.0
        %6542 = vmatprep.subr.mxu0 0.0
        %6543 = vmatpush1.msra.mxu0 0.0
        %6544 = vmatprep.subr.mxu0 0.0
        %6545 = vmatpush1.msra.mxu0 0.0
        %6546 = vmatprep.subr.mxu0 0.0
        %6547 = vmatpush1.msra.mxu0 0.0
        %6548 = vmatprep.subr.mxu0 0.0
        %6549 = vmatpush1.msra.mxu0 0.0
        %6550 = vmatprep.subr.mxu0 0.0
        %6551 = vmatpush1.msra.mxu0 0.0
        %6552 = vmatprep.subr.mxu0 0.0
        %6553 = vmatpush1.msra.mxu0 0.0
        %6554 = vmatprep.subr.mxu0 0.0
        %6555 = vmatpush1.msra.mxu0 0.0
        %6556 = vmatprep.subr.mxu0 0.0
        %6557 = vmatpush1.msra.mxu0 0.0
        %6558 = vmatprep.subr.mxu0 0.0
        %6559 = vmatpush1.msra.mxu0 0.0
        %6560 = vmatprep.subr.mxu0 0.0
        %6561 = vmatpush1.msra.mxu0 0.0
        %6562 = vmatprep.mubr.f32.mxu0 0.0
        %6563 = vmatmul.mubr.f32.gmra.mrb[0].mxu0 %v5968
        %v6564 = vpop.f32.mrb[0].mxu0
        %v6565 = vadd.f32 0.0, %v6564
        %v6566 = vpop.f32.mrb[0].mxu0
        %6567 = vmatprep.mubr.f32.mxu0 0.0
        %6568 = vmatmul.mubr.f32.gmra.mrb[0].mxu0 %v5971
        %v6569 = vpop.f32.mrb[0].mxu0
        %v6570 = vadd.f32 0.0, %v6569
        %v6571 = vpop.f32.mrb[0].mxu0
        %6572 = vdwg.mxu0
        %s6573 = scalar_lea.vmem %s2, 20
        %v6574 = vld [vmem:[%s6573] sm:$0xf]
        %v6576 = vsel %vm844, %v6040, 0
        %v6579 = vsel %vm844, %v6045, 0
        %v6582 = vsel %vm851, %v6574, 0
        %6584 = vmatprep.subr.mxu0 0.0
        %6585 = vmatpush1.msra.mxu0 %v6582
        %6586 = vmatprep.subr.mxu0 0.0
        %6587 = vmatpush1.msra.mxu0 0.0
        %6588 = vmatprep.subr.mxu0 0.0
        %6589 = vmatpush1.msra.mxu0 0.0
        %6590 = vmatprep.subr.mxu0 0.0
        %6591 = vmatpush1.msra.mxu0 0.0
        %6592 = vmatprep.subr.mxu0 0.0
        %6593 = vmatpush1.msra.mxu0 0.0
        %6594 = vmatprep.subr.mxu0 0.0
        %6595 = vmatpush1.msra.mxu0 0.0
        %6596 = vmatprep.subr.mxu0 0.0
        %6597 = vmatpush1.msra.mxu0 0.0
        %6598 = vmatprep.subr.mxu0 0.0
        %6599 = vmatpush1.msra.mxu0 0.0
        %6600 = vmatprep.subr.mxu0 0.0
        %6601 = vmatpush1.msra.mxu0 0.0
        %6602 = vmatprep.subr.mxu0 0.0
        %6603 = vmatpush1.msra.mxu0 0.0
        %6604 = vmatprep.subr.mxu0 0.0
        %6605 = vmatpush1.msra.mxu0 0.0
        %6606 = vmatprep.subr.mxu0 0.0
        %6607 = vmatpush1.msra.mxu0 0.0
        %6608 = vmatprep.subr.mxu0 0.0
        %6609 = vmatpush1.msra.mxu0 0.0
        %6610 = vmatprep.subr.mxu0 0.0
        %6611 = vmatpush1.msra.mxu0 0.0
        %6612 = vmatprep.subr.mxu0 0.0
        %6613 = vmatpush1.msra.mxu0 0.0
        %6614 = vmatprep.subr.mxu0 0.0
        %6615 = vmatpush1.msra.mxu0 0.0
        %6616 = vmatprep.subr.mxu0 0.0
        %6617 = vmatpush1.msra.mxu0 0.0
        %6618 = vmatprep.subr.mxu0 0.0
        %6619 = vmatpush1.msra.mxu0 0.0
        %6620 = vmatprep.subr.mxu0 0.0
        %6621 = vmatpush1.msra.mxu0 0.0
        %6622 = vmatprep.subr.mxu0 0.0
        %6623 = vmatpush1.msra.mxu0 0.0
        %6624 = vmatprep.subr.mxu0 0.0
        %6625 = vmatpush1.msra.mxu0 0.0
        %6626 = vmatprep.subr.mxu0 0.0
        %6627 = vmatpush1.msra.mxu0 0.0
        %6628 = vmatprep.subr.mxu0 0.0
        %6629 = vmatpush1.msra.mxu0 0.0
        %6630 = vmatprep.subr.mxu0 0.0
        %6631 = vmatpush1.msra.mxu0 0.0
        %6632 = vmatprep.subr.mxu0 0.0
        %6633 = vmatpush1.msra.mxu0 0.0
        %6634 = vmatprep.subr.mxu0 0.0
        %6635 = vmatpush1.msra.mxu0 0.0
        %6636 = vmatprep.subr.mxu0 0.0
        %6637 = vmatpush1.msra.mxu0 0.0
        %6638 = vmatprep.subr.mxu0 0.0
        %6639 = vmatpush1.msra.mxu0 0.0
        %6640 = vmatprep.subr.mxu0 0.0
        %6641 = vmatpush1.msra.mxu0 0.0
        %6642 = vmatprep.subr.mxu0 0.0
        %6643 = vmatpush1.msra.mxu0 0.0
        %6644 = vmatprep.subr.mxu0 0.0
        %6645 = vmatpush1.msra.mxu0 0.0
        %6646 = vmatprep.subr.mxu0 0.0
        %6647 = vmatpush1.msra.mxu0 0.0
        %6648 = vmatprep.mubr.f32.mxu0 0.0
        %6649 = vmatmul.mubr.f32.gmra.mrb[0].mxu0 %v6576
        %v6650 = vpop.f32.mrb[0].mxu0
        %v6651 = vadd.f32 0.0, %v6650
        %v6652 = vpop.f32.mrb[0].mxu0
        %6653 = vmatprep.mubr.f32.mxu0 0.0
        %6654 = vmatmul.mubr.f32.gmra.mrb[0].mxu0 %v6579
        %v6655 = vpop.f32.mrb[0].mxu0
        %v6656 = vadd.f32 0.0, %v6655
        %v6657 = vpop.f32.mrb[0].mxu0
        %6658 = vdwg.mxu0
        %v6660 = vsel %vm844, %v6115, 0
        %v6663 = vsel %vm844, %v6120, 0
        %6665 = vmatprep.subr.mxu0 0.0
        %6666 = vmatpush1.msra.mxu0 %v6582
        %6667 = vmatprep.subr.mxu0 0.0
        %6668 = vmatpush1.msra.mxu0 0.0
        %6669 = vmatprep.subr.mxu0 0.0
        %6670 = vmatpush1.msra.mxu0 0.0
        %6671 = vmatprep.subr.mxu0 0.0
        %6672 = vmatpush1.msra.mxu0 0.0
        %6673 = vmatprep.subr.mxu0 0.0
        %6674 = vmatpush1.msra.mxu0 0.0
        %6675 = vmatprep.subr.mxu0 0.0
        %6676 = vmatpush1.msra.mxu0 0.0
        %6677 = vmatprep.subr.mxu0 0.0
        %6678 = vmatpush1.msra.mxu0 0.0
        %6679 = vmatprep.subr.mxu0 0.0
        %6680 = vmatpush1.msra.mxu0 0.0
        %6681 = vmatprep.subr.mxu0 0.0
        %6682 = vmatpush1.msra.mxu0 0.0
        %6683 = vmatprep.subr.mxu0 0.0
        %6684 = vmatpush1.msra.mxu0 0.0
        %6685 = vmatprep.subr.mxu0 0.0
        %6686 = vmatpush1.msra.mxu0 0.0
        %6687 = vmatprep.subr.mxu0 0.0
        %6688 = vmatpush1.msra.mxu0 0.0
        %6689 = vmatprep.subr.mxu0 0.0
        %6690 = vmatpush1.msra.mxu0 0.0
        %6691 = vmatprep.subr.mxu0 0.0
        %6692 = vmatpush1.msra.mxu0 0.0
        %6693 = vmatprep.subr.mxu0 0.0
        %6694 = vmatpush1.msra.mxu0 0.0
        %6695 = vmatprep.subr.mxu0 0.0
        %6696 = vmatpush1.msra.mxu0 0.0
        %6697 = vmatprep.subr.mxu0 0.0
        %6698 = vmatpush1.msra.mxu0 0.0
        %6699 = vmatprep.subr.mxu0 0.0
        %6700 = vmatpush1.msra.mxu0 0.0
        %6701 = vmatprep.subr.mxu0 0.0
        %6702 = vmatpush1.msra.mxu0 0.0
        %6703 = vmatprep.subr.mxu0 0.0
        %6704 = vmatpush1.msra.mxu0 0.0
        %6705 = vmatprep.subr.mxu0 0.0
        %6706 = vmatpush1.msra.mxu0 0.0
        %6707 = vmatprep.subr.mxu0 0.0
        %6708 = vmatpush1.msra.mxu0 0.0
        %6709 = vmatprep.subr.mxu0 0.0
        %6710 = vmatpush1.msra.mxu0 0.0
        %6711 = vmatprep.subr.mxu0 0.0
        %6712 = vmatpush1.msra.mxu0 0.0
        %6713 = vmatprep.subr.mxu0 0.0
        %6714 = vmatpush1.msra.mxu0 0.0
        %6715 = vmatprep.subr.mxu0 0.0
        %6716 = vmatpush1.msra.mxu0 0.0
        %6717 = vmatprep.subr.mxu0 0.0
        %6718 = vmatpush1.msra.mxu0 0.0
        %6719 = vmatprep.subr.mxu0 0.0
        %6720 = vmatpush1.msra.mxu0 0.0
        %6721 = vmatprep.subr.mxu0 0.0
        %6722 = vmatpush1.msra.mxu0 0.0
        %6723 = vmatprep.subr.mxu0 0.0
        %6724 = vmatpush1.msra.mxu0 0.0
        %6725 = vmatprep.subr.mxu0 0.0
        %6726 = vmatpush1.msra.mxu0 0.0
        %6727 = vmatprep.subr.mxu0 0.0
        %6728 = vmatpush1.msra.mxu0 0.0
        %6729 = vmatprep.mubr.f32.mxu0 0.0
        %6730 = vmatmul.mubr.f32.gmra.mrb[0].mxu0 %v6660
        %v6731 = vpop.f32.mrb[0].mxu0
        %v6732 = vadd.f32 0.0, %v6731
        %v6733 = vpop.f32.mrb[0].mxu0
        %6734 = vmatprep.mubr.f32.mxu0 0.0
        %6735 = vmatmul.mubr.f32.gmra.mrb[0].mxu0 %v6663
        %v6736 = vpop.f32.mrb[0].mxu0
        %v6737 = vadd.f32 0.0, %v6736
        %v6738 = vpop.f32.mrb[0].mxu0
        %6739 = vdwg.mxu0
        %v6741 = vsel %vm844, %v6190, 0
        %v6744 = vsel %vm844, %v6195, 0
        %6746 = vmatprep.subr.mxu0 0.0
        %6747 = vmatpush1.msra.mxu0 %v6582
        %6748 = vmatprep.subr.mxu0 0.0
        %6749 = vmatpush1.msra.mxu0 0.0
        %6750 = vmatprep.subr.mxu0 0.0
        %6751 = vmatpush1.msra.mxu0 0.0
        %6752 = vmatprep.subr.mxu0 0.0
        %6753 = vmatpush1.msra.mxu0 0.0
        %6754 = vmatprep.subr.mxu0 0.0
        %6755 = vmatpush1.msra.mxu0 0.0
        %6756 = vmatprep.subr.mxu0 0.0
        %6757 = vmatpush1.msra.mxu0 0.0
        %6758 = vmatprep.subr.mxu0 0.0
        %6759 = vmatpush1.msra.mxu0 0.0
        %6760 = vmatprep.subr.mxu0 0.0
        %6761 = vmatpush1.msra.mxu0 0.0
        %6762 = vmatprep.subr.mxu0 0.0
        %6763 = vmatpush1.msra.mxu0 0.0
        %6764 = vmatprep.subr.mxu0 0.0
        %6765 = vmatpush1.msra.mxu0 0.0
        %6766 = vmatprep.subr.mxu0 0.0
        %6767 = vmatpush1.msra.mxu0 0.0
        %6768 = vmatprep.subr.mxu0 0.0
        %6769 = vmatpush1.msra.mxu0 0.0
        %6770 = vmatprep.subr.mxu0 0.0
        %6771 = vmatpush1.msra.mxu0 0.0
        %6772 = vmatprep.subr.mxu0 0.0
        %6773 = vmatpush1.msra.mxu0 0.0
        %6774 = vmatprep.subr.mxu0 0.0
        %6775 = vmatpush1.msra.mxu0 0.0
        %6776 = vmatprep.subr.mxu0 0.0
        %6777 = vmatpush1.msra.mxu0 0.0
        %6778 = vmatprep.subr.mxu0 0.0
        %6779 = vmatpush1.msra.mxu0 0.0
        %6780 = vmatprep.subr.mxu0 0.0
        %6781 = vmatpush1.msra.mxu0 0.0
        %6782 = vmatprep.subr.mxu0 0.0
        %6783 = vmatpush1.msra.mxu0 0.0
        %6784 = vmatprep.subr.mxu0 0.0
        %6785 = vmatpush1.msra.mxu0 0.0
        %6786 = vmatprep.subr.mxu0 0.0
        %6787 = vmatpush1.msra.mxu0 0.0
        %6788 = vmatprep.subr.mxu0 0.0
        %6789 = vmatpush1.msra.mxu0 0.0
        %6790 = vmatprep.subr.mxu0 0.0
        %6791 = vmatpush1.msra.mxu0 0.0
        %6792 = vmatprep.subr.mxu0 0.0
        %6793 = vmatpush1.msra.mxu0 0.0
        %6794 = vmatprep.subr.mxu0 0.0
        %6795 = vmatpush1.msra.mxu0 0.0
        %6796 = vmatprep.subr.mxu0 0.0
        %6797 = vmatpush1.msra.mxu0 0.0
        %6798 = vmatprep.subr.mxu0 0.0
        %6799 = vmatpush1.msra.mxu0 0.0
        %6800 = vmatprep.subr.mxu0 0.0
        %6801 = vmatpush1.msra.mxu0 0.0
        %6802 = vmatprep.subr.mxu0 0.0
        %6803 = vmatpush1.msra.mxu0 0.0
        %6804 = vmatprep.subr.mxu0 0.0
        %6805 = vmatpush1.msra.mxu0 0.0
        %6806 = vmatprep.subr.mxu0 0.0
        %6807 = vmatpush1.msra.mxu0 0.0
        %6808 = vmatprep.subr.mxu0 0.0
        %6809 = vmatpush1.msra.mxu0 0.0
        %6810 = vmatprep.mubr.f32.mxu0 0.0
        %6811 = vmatmul.mubr.f32.gmra.mrb[0].mxu0 %v6741
        %v6812 = vpop.f32.mrb[0].mxu0
        %v6813 = vadd.f32 0.0, %v6812
        %v6814 = vpop.f32.mrb[0].mxu0
        %6815 = vmatprep.mubr.f32.mxu0 0.0
        %6816 = vmatmul.mubr.f32.gmra.mrb[0].mxu0 %v6744
        %v6817 = vpop.f32.mrb[0].mxu0
        %v6818 = vadd.f32 0.0, %v6817
        %v6819 = vpop.f32.mrb[0].mxu0
        %6820 = vdwg.mxu0
        %v6822 = vsel %vm844, %v6265, 0
        %v6825 = vsel %vm844, %v6270, 0
        %6827 = vmatprep.subr.mxu0 0.0
        %6828 = vmatpush1.msra.mxu0 %v6582
        %6829 = vmatprep.subr.mxu0 0.0
        %6830 = vmatpush1.msra.mxu0 0.0
        %6831 = vmatprep.subr.mxu0 0.0
        %6832 = vmatpush1.msra.mxu0 0.0
        %6833 = vmatprep.subr.mxu0 0.0
        %6834 = vmatpush1.msra.mxu0 0.0
        %6835 = vmatprep.subr.mxu0 0.0
        %6836 = vmatpush1.msra.mxu0 0.0
        %6837 = vmatprep.subr.mxu0 0.0
        %6838 = vmatpush1.msra.mxu0 0.0
        %6839 = vmatprep.subr.mxu0 0.0
        %6840 = vmatpush1.msra.mxu0 0.0
        %6841 = vmatprep.subr.mxu0 0.0
        %6842 = vmatpush1.msra.mxu0 0.0
        %6843 = vmatprep.subr.mxu0 0.0
        %6844 = vmatpush1.msra.mxu0 0.0
        %6845 = vmatprep.subr.mxu0 0.0
        %6846 = vmatpush1.msra.mxu0 0.0
        %6847 = vmatprep.subr.mxu0 0.0
        %6848 = vmatpush1.msra.mxu0 0.0
        %6849 = vmatprep.subr.mxu0 0.0
        %6850 = vmatpush1.msra.mxu0 0.0
        %6851 = vmatprep.subr.mxu0 0.0
        %6852 = vmatpush1.msra.mxu0 0.0
        %6853 = vmatprep.subr.mxu0 0.0
        %6854 = vmatpush1.msra.mxu0 0.0
        %6855 = vmatprep.subr.mxu0 0.0
        %6856 = vmatpush1.msra.mxu0 0.0
        %6857 = vmatprep.subr.mxu0 0.0
        %6858 = vmatpush1.msra.mxu0 0.0
        %6859 = vmatprep.subr.mxu0 0.0
        %6860 = vmatpush1.msra.mxu0 0.0
        %6861 = vmatprep.subr.mxu0 0.0
        %6862 = vmatpush1.msra.mxu0 0.0
        %6863 = vmatprep.subr.mxu0 0.0
        %6864 = vmatpush1.msra.mxu0 0.0
        %6865 = vmatprep.subr.mxu0 0.0
        %6866 = vmatpush1.msra.mxu0 0.0
        %6867 = vmatprep.subr.mxu0 0.0
        %6868 = vmatpush1.msra.mxu0 0.0
        %6869 = vmatprep.subr.mxu0 0.0
        %6870 = vmatpush1.msra.mxu0 0.0
        %6871 = vmatprep.subr.mxu0 0.0
        %6872 = vmatpush1.msra.mxu0 0.0
        %6873 = vmatprep.subr.mxu0 0.0
        %6874 = vmatpush1.msra.mxu0 0.0
        %6875 = vmatprep.subr.mxu0 0.0
        %6876 = vmatpush1.msra.mxu0 0.0
        %6877 = vmatprep.subr.mxu0 0.0
        %6878 = vmatpush1.msra.mxu0 0.0
        %6879 = vmatprep.subr.mxu0 0.0
        %6880 = vmatpush1.msra.mxu0 0.0
        %6881 = vmatprep.subr.mxu0 0.0
        %6882 = vmatpush1.msra.mxu0 0.0
        %6883 = vmatprep.subr.mxu0 0.0
        %6884 = vmatpush1.msra.mxu0 0.0
        %6885 = vmatprep.subr.mxu0 0.0
        %6886 = vmatpush1.msra.mxu0 0.0
        %6887 = vmatprep.subr.mxu0 0.0
        %6888 = vmatpush1.msra.mxu0 0.0
        %6889 = vmatprep.subr.mxu0 0.0
        %6890 = vmatpush1.msra.mxu0 0.0
        %6891 = vmatprep.mubr.f32.mxu0 0.0
        %6892 = vmatmul.mubr.f32.gmra.mrb[0].mxu0 %v6822
        %v6893 = vpop.f32.mrb[0].mxu0
        %v6894 = vadd.f32 0.0, %v6893
        %v6895 = vpop.f32.mrb[0].mxu0
        %6896 = vmatprep.mubr.f32.mxu0 0.0
        %6897 = vmatmul.mubr.f32.gmra.mrb[0].mxu0 %v6825
        %v6898 = vpop.f32.mrb[0].mxu0
        %v6899 = vadd.f32 0.0, %v6898
        %v6900 = vpop.f32.mrb[0].mxu0
        %6901 = vdwg.mxu0
        %v6903 = vsel %vm844, %v6340, 0
        %v6906 = vsel %vm844, %v6345, 0
        %6908 = vmatprep.subr.mxu0 0.0
        %6909 = vmatpush1.msra.mxu0 %v6582
        %6910 = vmatprep.subr.mxu0 0.0
        %6911 = vmatpush1.msra.mxu0 0.0
        %6912 = vmatprep.subr.mxu0 0.0
        %6913 = vmatpush1.msra.mxu0 0.0
        %6914 = vmatprep.subr.mxu0 0.0
        %6915 = vmatpush1.msra.mxu0 0.0
        %6916 = vmatprep.subr.mxu0 0.0
        %6917 = vmatpush1.msra.mxu0 0.0
        %6918 = vmatprep.subr.mxu0 0.0
        %6919 = vmatpush1.msra.mxu0 0.0
        %6920 = vmatprep.subr.mxu0 0.0
        %6921 = vmatpush1.msra.mxu0 0.0
        %6922 = vmatprep.subr.mxu0 0.0
        %6923 = vmatpush1.msra.mxu0 0.0
        %6924 = vmatprep.subr.mxu0 0.0
        %6925 = vmatpush1.msra.mxu0 0.0
        %6926 = vmatprep.subr.mxu0 0.0
        %6927 = vmatpush1.msra.mxu0 0.0
        %6928 = vmatprep.subr.mxu0 0.0
        %6929 = vmatpush1.msra.mxu0 0.0
        %6930 = vmatprep.subr.mxu0 0.0
        %6931 = vmatpush1.msra.mxu0 0.0
        %6932 = vmatprep.subr.mxu0 0.0
        %6933 = vmatpush1.msra.mxu0 0.0
        %6934 = vmatprep.subr.mxu0 0.0
        %6935 = vmatpush1.msra.mxu0 0.0
        %6936 = vmatprep.subr.mxu0 0.0
        %6937 = vmatpush1.msra.mxu0 0.0
        %6938 = vmatprep.subr.mxu0 0.0
        %6939 = vmatpush1.msra.mxu0 0.0
        %6940 = vmatprep.subr.mxu0 0.0
        %6941 = vmatpush1.msra.mxu0 0.0
        %6942 = vmatprep.subr.mxu0 0.0
        %6943 = vmatpush1.msra.mxu0 0.0
        %6944 = vmatprep.subr.mxu0 0.0
        %6945 = vmatpush1.msra.mxu0 0.0
        %6946 = vmatprep.subr.mxu0 0.0
        %6947 = vmatpush1.msra.mxu0 0.0
        %6948 = vmatprep.subr.mxu0 0.0
        %6949 = vmatpush1.msra.mxu0 0.0
        %6950 = vmatprep.subr.mxu0 0.0
        %6951 = vmatpush1.msra.mxu0 0.0
        %6952 = vmatprep.subr.mxu0 0.0
        %6953 = vmatpush1.msra.mxu0 0.0
        %6954 = vmatprep.subr.mxu0 0.0
        %6955 = vmatpush1.msra.mxu0 0.0
        %6956 = vmatprep.subr.mxu0 0.0
        %6957 = vmatpush1.msra.mxu0 0.0
        %6958 = vmatprep.subr.mxu0 0.0
        %6959 = vmatpush1.msra.mxu0 0.0
        %6960 = vmatprep.subr.mxu0 0.0
        %6961 = vmatpush1.msra.mxu0 0.0
        %6962 = vmatprep.subr.mxu0 0.0
        %6963 = vmatpush1.msra.mxu0 0.0
        %6964 = vmatprep.subr.mxu0 0.0
        %6965 = vmatpush1.msra.mxu0 0.0
        %6966 = vmatprep.subr.mxu0 0.0
        %6967 = vmatpush1.msra.mxu0 0.0
        %6968 = vmatprep.subr.mxu0 0.0
        %6969 = vmatpush1.msra.mxu0 0.0
        %6970 = vmatprep.subr.mxu0 0.0
        %6971 = vmatpush1.msra.mxu0 0.0
        %6972 = vmatprep.mubr.f32.mxu0 0.0
        %6973 = vmatmul.mubr.f32.gmra.mrb[0].mxu0 %v6903
        %v6974 = vpop.f32.mrb[0].mxu0
        %v6975 = vadd.f32 0.0, %v6974
        %v6976 = vpop.f32.mrb[0].mxu0
        %6977 = vmatprep.mubr.f32.mxu0 0.0
        %6978 = vmatmul.mubr.f32.gmra.mrb[0].mxu0 %v6906
        %v6979 = vpop.f32.mrb[0].mxu0
        %v6980 = vadd.f32 0.0, %v6979
        %v6981 = vpop.f32.mrb[0].mxu0
        %6982 = vdwg.mxu0
        %v6984 = vsel %vm844, %v6415, 0
        %v6987 = vsel %vm844, %v6420, 0
        %6989 = vmatprep.subr.mxu0 0.0
        %6990 = vmatpush1.msra.mxu0 %v6582
        %6991 = vmatprep.subr.mxu0 0.0
        %6992 = vmatpush1.msra.mxu0 0.0
        %6993 = vmatprep.subr.mxu0 0.0
        %6994 = vmatpush1.msra.mxu0 0.0
        %6995 = vmatprep.subr.mxu0 0.0
        %6996 = vmatpush1.msra.mxu0 0.0
        %6997 = vmatprep.subr.mxu0 0.0
        %6998 = vmatpush1.msra.mxu0 0.0
        %6999 = vmatprep.subr.mxu0 0.0
        %7000 = vmatpush1.msra.mxu0 0.0
        %7001 = vmatprep.subr.mxu0 0.0
        %7002 = vmatpush1.msra.mxu0 0.0
        %7003 = vmatprep.subr.mxu0 0.0
        %7004 = vmatpush1.msra.mxu0 0.0
        %7005 = vmatprep.subr.mxu0 0.0
        %7006 = vmatpush1.msra.mxu0 0.0
        %7007 = vmatprep.subr.mxu0 0.0
        %7008 = vmatpush1.msra.mxu0 0.0
        %7009 = vmatprep.subr.mxu0 0.0
        %7010 = vmatpush1.msra.mxu0 0.0
        %7011 = vmatprep.subr.mxu0 0.0
        %7012 = vmatpush1.msra.mxu0 0.0
        %7013 = vmatprep.subr.mxu0 0.0
        %7014 = vmatpush1.msra.mxu0 0.0
        %7015 = vmatprep.subr.mxu0 0.0
        %7016 = vmatpush1.msra.mxu0 0.0
        %7017 = vmatprep.subr.mxu0 0.0
        %7018 = vmatpush1.msra.mxu0 0.0
        %7019 = vmatprep.subr.mxu0 0.0
        %7020 = vmatpush1.msra.mxu0 0.0
        %7021 = vmatprep.subr.mxu0 0.0
        %7022 = vmatpush1.msra.mxu0 0.0
        %7023 = vmatprep.subr.mxu0 0.0
        %7024 = vmatpush1.msra.mxu0 0.0
        %7025 = vmatprep.subr.mxu0 0.0
        %7026 = vmatpush1.msra.mxu0 0.0
        %7027 = vmatprep.subr.mxu0 0.0
        %7028 = vmatpush1.msra.mxu0 0.0
        %7029 = vmatprep.subr.mxu0 0.0
        %7030 = vmatpush1.msra.mxu0 0.0
        %7031 = vmatprep.subr.mxu0 0.0
        %7032 = vmatpush1.msra.mxu0 0.0
        %7033 = vmatprep.subr.mxu0 0.0
        %7034 = vmatpush1.msra.mxu0 0.0
        %7035 = vmatprep.subr.mxu0 0.0
        %7036 = vmatpush1.msra.mxu0 0.0
        %7037 = vmatprep.subr.mxu0 0.0
        %7038 = vmatpush1.msra.mxu0 0.0
        %7039 = vmatprep.subr.mxu0 0.0
        %7040 = vmatpush1.msra.mxu0 0.0
        %7041 = vmatprep.subr.mxu0 0.0
        %7042 = vmatpush1.msra.mxu0 0.0
        %7043 = vmatprep.subr.mxu0 0.0
        %7044 = vmatpush1.msra.mxu0 0.0
        %7045 = vmatprep.subr.mxu0 0.0
        %7046 = vmatpush1.msra.mxu0 0.0
        %7047 = vmatprep.subr.mxu0 0.0
        %7048 = vmatpush1.msra.mxu0 0.0
        %7049 = vmatprep.subr.mxu0 0.0
        %7050 = vmatpush1.msra.mxu0 0.0
        %7051 = vmatprep.subr.mxu0 0.0
        %7052 = vmatpush1.msra.mxu0 0.0
        %7053 = vmatprep.mubr.f32.mxu0 0.0
        %7054 = vmatmul.mubr.f32.gmra.mrb[0].mxu0 %v6984
        %v7055 = vpop.f32.mrb[0].mxu0
        %v7056 = vadd.f32 0.0, %v7055
        %v7057 = vpop.f32.mrb[0].mxu0
        %7058 = vmatprep.mubr.f32.mxu0 0.0
        %7059 = vmatmul.mubr.f32.gmra.mrb[0].mxu0 %v6987
        %v7060 = vpop.f32.mrb[0].mxu0
        %v7061 = vadd.f32 0.0, %v7060
        %v7062 = vpop.f32.mrb[0].mxu0
        %7063 = vdwg.mxu0
        %v7065 = vsel %vm844, %v6490, 0
        %v7068 = vsel %vm844, %v6495, 0
        %7070 = vmatprep.subr.mxu0 0.0
        %7071 = vmatpush1.msra.mxu0 %v6582
        %7072 = vmatprep.subr.mxu0 0.0
        %7073 = vmatpush1.msra.mxu0 0.0
        %7074 = vmatprep.subr.mxu0 0.0
        %7075 = vmatpush1.msra.mxu0 0.0
        %7076 = vmatprep.subr.mxu0 0.0
        %7077 = vmatpush1.msra.mxu0 0.0
        %7078 = vmatprep.subr.mxu0 0.0
        %7079 = vmatpush1.msra.mxu0 0.0
        %7080 = vmatprep.subr.mxu0 0.0
        %7081 = vmatpush1.msra.mxu0 0.0
        %7082 = vmatprep.subr.mxu0 0.0
        %7083 = vmatpush1.msra.mxu0 0.0
        %7084 = vmatprep.subr.mxu0 0.0
        %7085 = vmatpush1.msra.mxu0 0.0
        %7086 = vmatprep.subr.mxu0 0.0
        %7087 = vmatpush1.msra.mxu0 0.0
        %7088 = vmatprep.subr.mxu0 0.0
        %7089 = vmatpush1.msra.mxu0 0.0
        %7090 = vmatprep.subr.mxu0 0.0
        %7091 = vmatpush1.msra.mxu0 0.0
        %7092 = vmatprep.subr.mxu0 0.0
        %7093 = vmatpush1.msra.mxu0 0.0
        %7094 = vmatprep.subr.mxu0 0.0
        %7095 = vmatpush1.msra.mxu0 0.0
        %7096 = vmatprep.subr.mxu0 0.0
        %7097 = vmatpush1.msra.mxu0 0.0
        %7098 = vmatprep.subr.mxu0 0.0
        %7099 = vmatpush1.msra.mxu0 0.0
        %7100 = vmatprep.subr.mxu0 0.0
        %7101 = vmatpush1.msra.mxu0 0.0
        %7102 = vmatprep.subr.mxu0 0.0
        %7103 = vmatpush1.msra.mxu0 0.0
        %7104 = vmatprep.subr.mxu0 0.0
        %7105 = vmatpush1.msra.mxu0 0.0
        %7106 = vmatprep.subr.mxu0 0.0
        %7107 = vmatpush1.msra.mxu0 0.0
        %7108 = vmatprep.subr.mxu0 0.0
        %7109 = vmatpush1.msra.mxu0 0.0
        %7110 = vmatprep.subr.mxu0 0.0
        %7111 = vmatpush1.msra.mxu0 0.0
        %7112 = vmatprep.subr.mxu0 0.0
        %7113 = vmatpush1.msra.mxu0 0.0
        %7114 = vmatprep.subr.mxu0 0.0
        %7115 = vmatpush1.msra.mxu0 0.0
        %7116 = vmatprep.subr.mxu0 0.0
        %7117 = vmatpush1.msra.mxu0 0.0
        %7118 = vmatprep.subr.mxu0 0.0
        %7119 = vmatpush1.msra.mxu0 0.0
        %7120 = vmatprep.subr.mxu0 0.0
        %7121 = vmatpush1.msra.mxu0 0.0
        %7122 = vmatprep.subr.mxu0 0.0
        %7123 = vmatpush1.msra.mxu0 0.0
        %7124 = vmatprep.subr.mxu0 0.0
        %7125 = vmatpush1.msra.mxu0 0.0
        %7126 = vmatprep.subr.mxu0 0.0
        %7127 = vmatpush1.msra.mxu0 0.0
        %7128 = vmatprep.subr.mxu0 0.0
        %7129 = vmatpush1.msra.mxu0 0.0
        %7130 = vmatprep.subr.mxu0 0.0
        %7131 = vmatpush1.msra.mxu0 0.0
        %7132 = vmatprep.subr.mxu0 0.0
        %7133 = vmatpush1.msra.mxu0 0.0
        %7134 = vmatprep.mubr.f32.mxu0 0.0
        %7135 = vmatmul.mubr.f32.gmra.mrb[0].mxu0 %v7065
        %v7136 = vpop.f32.mrb[0].mxu0
        %v7137 = vadd.f32 0.0, %v7136
        %v7138 = vpop.f32.mrb[0].mxu0
        %7139 = vmatprep.mubr.f32.mxu0 0.0
        %7140 = vmatmul.mubr.f32.gmra.mrb[0].mxu0 %v7068
        %v7141 = vpop.f32.mrb[0].mxu0
        %v7142 = vadd.f32 0.0, %v7141
        %v7143 = vpop.f32.mrb[0].mxu0
        %7144 = vdwg.mxu0
        %v7146 = vsel %vm844, %v6565, 0
        %v7149 = vsel %vm844, %v6570, 0
        %7151 = vmatprep.subr.mxu0 0.0
        %7152 = vmatpush1.msra.mxu0 %v6582
        %7153 = vmatprep.subr.mxu0 0.0
        %7154 = vmatpush1.msra.mxu0 0.0
        %7155 = vmatprep.subr.mxu0 0.0
        %7156 = vmatpush1.msra.mxu0 0.0
        %7157 = vmatprep.subr.mxu0 0.0
        %7158 = vmatpush1.msra.mxu0 0.0
        %7159 = vmatprep.subr.mxu0 0.0
        %7160 = vmatpush1.msra.mxu0 0.0
        %7161 = vmatprep.subr.mxu0 0.0
        %7162 = vmatpush1.msra.mxu0 0.0
        %7163 = vmatprep.subr.mxu0 0.0
        %7164 = vmatpush1.msra.mxu0 0.0
        %7165 = vmatprep.subr.mxu0 0.0
        %7166 = vmatpush1.msra.mxu0 0.0
        %7167 = vmatprep.subr.mxu0 0.0
        %7168 = vmatpush1.msra.mxu0 0.0
        %7169 = vmatprep.subr.mxu0 0.0
        %7170 = vmatpush1.msra.mxu0 0.0
        %7171 = vmatprep.subr.mxu0 0.0
        %7172 = vmatpush1.msra.mxu0 0.0
        %7173 = vmatprep.subr.mxu0 0.0
        %7174 = vmatpush1.msra.mxu0 0.0
        %7175 = vmatprep.subr.mxu0 0.0
        %7176 = vmatpush1.msra.mxu0 0.0
        %7177 = vmatprep.subr.mxu0 0.0
        %7178 = vmatpush1.msra.mxu0 0.0
        %7179 = vmatprep.subr.mxu0 0.0
        %7180 = vmatpush1.msra.mxu0 0.0
        %7181 = vmatprep.subr.mxu0 0.0
        %7182 = vmatpush1.msra.mxu0 0.0
        %7183 = vmatprep.subr.mxu0 0.0
        %7184 = vmatpush1.msra.mxu0 0.0
        %7185 = vmatprep.subr.mxu0 0.0
        %7186 = vmatpush1.msra.mxu0 0.0
        %7187 = vmatprep.subr.mxu0 0.0
        %7188 = vmatpush1.msra.mxu0 0.0
        %7189 = vmatprep.subr.mxu0 0.0
        %7190 = vmatpush1.msra.mxu0 0.0
        %7191 = vmatprep.subr.mxu0 0.0
        %7192 = vmatpush1.msra.mxu0 0.0
        %7193 = vmatprep.subr.mxu0 0.0
        %7194 = vmatpush1.msra.mxu0 0.0
        %7195 = vmatprep.subr.mxu0 0.0
        %7196 = vmatpush1.msra.mxu0 0.0
        %7197 = vmatprep.subr.mxu0 0.0
        %7198 = vmatpush1.msra.mxu0 0.0
        %7199 = vmatprep.subr.mxu0 0.0
        %7200 = vmatpush1.msra.mxu0 0.0
        %7201 = vmatprep.subr.mxu0 0.0
        %7202 = vmatpush1.msra.mxu0 0.0
        %7203 = vmatprep.subr.mxu0 0.0
        %7204 = vmatpush1.msra.mxu0 0.0
        %7205 = vmatprep.subr.mxu0 0.0
        %7206 = vmatpush1.msra.mxu0 0.0
        %7207 = vmatprep.subr.mxu0 0.0
        %7208 = vmatpush1.msra.mxu0 0.0
        %7209 = vmatprep.subr.mxu0 0.0
        %7210 = vmatpush1.msra.mxu0 0.0
        %7211 = vmatprep.subr.mxu0 0.0
        %7212 = vmatpush1.msra.mxu0 0.0
        %7213 = vmatprep.subr.mxu0 0.0
        %7214 = vmatpush1.msra.mxu0 0.0
        %7215 = vmatprep.mubr.f32.mxu0 0.0
        %7216 = vmatmul.mubr.f32.gmra.mrb[0].mxu0 %v7146
        %v7217 = vpop.f32.mrb[0].mxu0
        %v7218 = vadd.f32 0.0, %v7217
        %v7219 = vpop.f32.mrb[0].mxu0
        %7220 = vmatprep.mubr.f32.mxu0 0.0
        %7221 = vmatmul.mubr.f32.gmra.mrb[0].mxu0 %v7149
        %v7222 = vpop.f32.mrb[0].mxu0
        %v7223 = vadd.f32 0.0, %v7222
        %v7224 = vpop.f32.mrb[0].mxu0
        %7225 = vdwg.mxu0
        %v7226 = vadd.f32 %v5948, %v6651
        %v7227 = vadd.f32 %v5949, %v6656
        %v7228 = vadd.f32 %v5950, %v6732
        %v7229 = vadd.f32 %v5951, %v6737
        %v7230 = vadd.f32 %v5952, %v6813
        %v7231 = vadd.f32 %v5953, %v6818
        %v7232 = vadd.f32 %v5954, %v6894
        %v7233 = vadd.f32 %v5955, %v6899
        %v7234 = vadd.f32 %v5956, %v6975
        %v7235 = vadd.f32 %v5957, %v6980
        %v7236 = vadd.f32 %v5958, %v7056
        %v7237 = vadd.f32 %v5959, %v7061
        %v7238 = vadd.f32 %v5960, %v7137
        %v7239 = vadd.f32 %v5961, %v7142
        %v7240 = vadd.f32 %v5962, %v7218
        %v7241 = vadd.f32 %v5963, %v7223
        %7242 = vmatprep.subr.mxu0 0.0
        %7243 = vmatpush1.msra.mxu0 %v6040
        %7244 = vmatprep.subr.mxu0 0.0
        %7245 = vmatpush1.msra.mxu0 %v6045
        %7246 = vmatprep.subr.mxu0 0.0
        %7247 = vmatpush1.msra.mxu0 0.0
        %7248 = vmatprep.subr.mxu0 0.0
        %7249 = vmatpush1.msra.mxu0 0.0
        %7250 = vmatprep.subr.mxu0 0.0
        %7251 = vmatpush1.msra.mxu0 0.0
        %7252 = vmatprep.subr.mxu0 0.0
        %7253 = vmatpush1.msra.mxu0 0.0
        %7254 = vmatprep.subr.mxu0 0.0
        %7255 = vmatpush1.msra.mxu0 0.0
        %7256 = vmatprep.subr.mxu0 0.0
        %7257 = vmatpush1.msra.mxu0 0.0
        %7258 = vmatprep.subr.mxu0 0.0
        %7259 = vmatpush1.msra.mxu0 0.0
        %7260 = vmatprep.subr.mxu0 0.0
        %7261 = vmatpush1.msra.mxu0 0.0
        %7262 = vmatprep.subr.mxu0 0.0
        %7263 = vmatpush1.msra.mxu0 0.0
        %7264 = vmatprep.subr.mxu0 0.0
        %7265 = vmatpush1.msra.mxu0 0.0
        %7266 = vmatprep.subr.mxu0 0.0
        %7267 = vmatpush1.msra.mxu0 0.0
        %7268 = vmatprep.subr.mxu0 0.0
        %7269 = vmatpush1.msra.mxu0 0.0
        %7270 = vmatprep.subr.mxu0 0.0
        %7271 = vmatpush1.msra.mxu0 0.0
        %7272 = vmatprep.subr.mxu0 0.0
        %7273 = vmatpush1.msra.mxu0 0.0
        %7274 = vmatprep.subr.mxu0 0.0
        %7275 = vmatpush1.msra.mxu0 0.0
        %7276 = vmatprep.subr.mxu0 0.0
        %7277 = vmatpush1.msra.mxu0 0.0
        %7278 = vmatprep.subr.mxu0 0.0
        %7279 = vmatpush1.msra.mxu0 0.0
        %7280 = vmatprep.subr.mxu0 0.0
        %7281 = vmatpush1.msra.mxu0 0.0
        %7282 = vmatprep.subr.mxu0 0.0
        %7283 = vmatpush1.msra.mxu0 0.0
        %7284 = vmatprep.subr.mxu0 0.0
        %7285 = vmatpush1.msra.mxu0 0.0
        %7286 = vmatprep.subr.mxu0 0.0
        %7287 = vmatpush1.msra.mxu0 0.0
        %7288 = vmatprep.subr.mxu0 0.0
        %7289 = vmatpush1.msra.mxu0 0.0
        %7290 = vmatprep.subr.mxu0 0.0
        %7291 = vmatpush1.msra.mxu0 0.0
        %7292 = vmatprep.subr.mxu0 0.0
        %7293 = vmatpush1.msra.mxu0 0.0
        %7294 = vmatprep.subr.mxu0 0.0
        %7295 = vmatpush1.msra.mxu0 0.0
        %7296 = vmatprep.subr.mxu0 0.0
        %7297 = vmatpush1.msra.mxu0 0.0
        %7298 = vmatprep.subr.mxu0 0.0
        %7299 = vmatpush1.msra.mxu0 0.0
        %7300 = vmatprep.subr.mxu0 0.0
        %7301 = vmatpush1.msra.mxu0 0.0
        %7302 = vmatprep.subr.mxu0 0.0
        %7303 = vmatpush1.msra.mxu0 0.0
        %7304 = vmatprep.subr.mxu0 0.0
        %7305 = vmatpush1.msra.mxu0 0.0
        %7306 = vmatprep.mubr.f32.mxu0 0.0
        %7307 = vmatmul.mubr.f32.gmra.mrb[0].mxu0 %v5968
        %v7308 = vpop.f32.mrb[0].mxu0
        %v7309 = vadd.f32 0.0, %v7308
        %v7310 = vpop.f32.mrb[0].mxu0
        %7311 = vmatprep.mubr.f32.mxu0 0.0
        %7312 = vmatmul.mubr.f32.gmra.mrb[0].mxu0 %v5971
        %v7313 = vpop.f32.mrb[0].mxu0
        %v7314 = vadd.f32 0.0, %v7313
        %v7315 = vpop.f32.mrb[0].mxu0
        %7316 = vdwg.mxu0
        %7317 = vmatprep.subr.mxu0 0.0
        %7318 = vmatpush1.msra.mxu0 %v6115
        %7319 = vmatprep.subr.mxu0 0.0
        %7320 = vmatpush1.msra.mxu0 %v6120
        %7321 = vmatprep.subr.mxu0 0.0
        %7322 = vmatpush1.msra.mxu0 0.0
        %7323 = vmatprep.subr.mxu0 0.0
        %7324 = vmatpush1.msra.mxu0 0.0
        %7325 = vmatprep.subr.mxu0 0.0
        %7326 = vmatpush1.msra.mxu0 0.0
        %7327 = vmatprep.subr.mxu0 0.0
        %7328 = vmatpush1.msra.mxu0 0.0
        %7329 = vmatprep.subr.mxu0 0.0
        %7330 = vmatpush1.msra.mxu0 0.0
        %7331 = vmatprep.subr.mxu0 0.0
        %7332 = vmatpush1.msra.mxu0 0.0
        %7333 = vmatprep.subr.mxu0 0.0
        %7334 = vmatpush1.msra.mxu0 0.0
        %7335 = vmatprep.subr.mxu0 0.0
        %7336 = vmatpush1.msra.mxu0 0.0
        %7337 = vmatprep.subr.mxu0 0.0
        %7338 = vmatpush1.msra.mxu0 0.0
        %7339 = vmatprep.subr.mxu0 0.0
        %7340 = vmatpush1.msra.mxu0 0.0
        %7341 = vmatprep.subr.mxu0 0.0
        %7342 = vmatpush1.msra.mxu0 0.0
        %7343 = vmatprep.subr.mxu0 0.0
        %7344 = vmatpush1.msra.mxu0 0.0
        %7345 = vmatprep.subr.mxu0 0.0
        %7346 = vmatpush1.msra.mxu0 0.0
        %7347 = vmatprep.subr.mxu0 0.0
        %7348 = vmatpush1.msra.mxu0 0.0
        %7349 = vmatprep.subr.mxu0 0.0
        %7350 = vmatpush1.msra.mxu0 0.0
        %7351 = vmatprep.subr.mxu0 0.0
        %7352 = vmatpush1.msra.mxu0 0.0
        %7353 = vmatprep.subr.mxu0 0.0
        %7354 = vmatpush1.msra.mxu0 0.0
        %7355 = vmatprep.subr.mxu0 0.0
        %7356 = vmatpush1.msra.mxu0 0.0
        %7357 = vmatprep.subr.mxu0 0.0
        %7358 = vmatpush1.msra.mxu0 0.0
        %7359 = vmatprep.subr.mxu0 0.0
        %7360 = vmatpush1.msra.mxu0 0.0
        %7361 = vmatprep.subr.mxu0 0.0
        %7362 = vmatpush1.msra.mxu0 0.0
        %7363 = vmatprep.subr.mxu0 0.0
        %7364 = vmatpush1.msra.mxu0 0.0
        %7365 = vmatprep.subr.mxu0 0.0
        %7366 = vmatpush1.msra.mxu0 0.0
        %7367 = vmatprep.subr.mxu0 0.0
        %7368 = vmatpush1.msra.mxu0 0.0
        %7369 = vmatprep.subr.mxu0 0.0
        %7370 = vmatpush1.msra.mxu0 0.0
        %7371 = vmatprep.subr.mxu0 0.0
        %7372 = vmatpush1.msra.mxu0 0.0
        %7373 = vmatprep.subr.mxu0 0.0
        %7374 = vmatpush1.msra.mxu0 0.0
        %7375 = vmatprep.subr.mxu0 0.0
        %7376 = vmatpush1.msra.mxu0 0.0
        %7377 = vmatprep.subr.mxu0 0.0
        %7378 = vmatpush1.msra.mxu0 0.0
        %7379 = vmatprep.subr.mxu0 0.0
        %7380 = vmatpush1.msra.mxu0 0.0
        %7381 = vmatprep.mubr.f32.mxu0 0.0
        %7382 = vmatmul.mubr.f32.gmra.mrb[0].mxu0 %v5968
        %v7383 = vpop.f32.mrb[0].mxu0
        %v7384 = vadd.f32 0.0, %v7383
        %v7385 = vpop.f32.mrb[0].mxu0
        %7386 = vmatprep.mubr.f32.mxu0 0.0
        %7387 = vmatmul.mubr.f32.gmra.mrb[0].mxu0 %v5971
        %v7388 = vpop.f32.mrb[0].mxu0
        %v7389 = vadd.f32 0.0, %v7388
        %v7390 = vpop.f32.mrb[0].mxu0
        %7391 = vdwg.mxu0
        %7392 = vmatprep.subr.mxu0 0.0
        %7393 = vmatpush1.msra.mxu0 %v6190
        %7394 = vmatprep.subr.mxu0 0.0
        %7395 = vmatpush1.msra.mxu0 %v6195
        %7396 = vmatprep.subr.mxu0 0.0
        %7397 = vmatpush1.msra.mxu0 0.0
        %7398 = vmatprep.subr.mxu0 0.0
        %7399 = vmatpush1.msra.mxu0 0.0
        %7400 = vmatprep.subr.mxu0 0.0
        %7401 = vmatpush1.msra.mxu0 0.0
        %7402 = vmatprep.subr.mxu0 0.0
        %7403 = vmatpush1.msra.mxu0 0.0
        %7404 = vmatprep.subr.mxu0 0.0
        %7405 = vmatpush1.msra.mxu0 0.0
        %7406 = vmatprep.subr.mxu0 0.0
        %7407 = vmatpush1.msra.mxu0 0.0
        %7408 = vmatprep.subr.mxu0 0.0
        %7409 = vmatpush1.msra.mxu0 0.0
        %7410 = vmatprep.subr.mxu0 0.0
        %7411 = vmatpush1.msra.mxu0 0.0
        %7412 = vmatprep.subr.mxu0 0.0
        %7413 = vmatpush1.msra.mxu0 0.0
        %7414 = vmatprep.subr.mxu0 0.0
        %7415 = vmatpush1.msra.mxu0 0.0
        %7416 = vmatprep.subr.mxu0 0.0
        %7417 = vmatpush1.msra.mxu0 0.0
        %7418 = vmatprep.subr.mxu0 0.0
        %7419 = vmatpush1.msra.mxu0 0.0
        %7420 = vmatprep.subr.mxu0 0.0
        %7421 = vmatpush1.msra.mxu0 0.0
        %7422 = vmatprep.subr.mxu0 0.0
        %7423 = vmatpush1.msra.mxu0 0.0
        %7424 = vmatprep.subr.mxu0 0.0
        %7425 = vmatpush1.msra.mxu0 0.0
        %7426 = vmatprep.subr.mxu0 0.0
        %7427 = vmatpush1.msra.mxu0 0.0
        %7428 = vmatprep.subr.mxu0 0.0
        %7429 = vmatpush1.msra.mxu0 0.0
        %7430 = vmatprep.subr.mxu0 0.0
        %7431 = vmatpush1.msra.mxu0 0.0
        %7432 = vmatprep.subr.mxu0 0.0
        %7433 = vmatpush1.msra.mxu0 0.0
        %7434 = vmatprep.subr.mxu0 0.0
        %7435 = vmatpush1.msra.mxu0 0.0
        %7436 = vmatprep.subr.mxu0 0.0
        %7437 = vmatpush1.msra.mxu0 0.0
        %7438 = vmatprep.subr.mxu0 0.0
        %7439 = vmatpush1.msra.mxu0 0.0
        %7440 = vmatprep.subr.mxu0 0.0
        %7441 = vmatpush1.msra.mxu0 0.0
        %7442 = vmatprep.subr.mxu0 0.0
        %7443 = vmatpush1.msra.mxu0 0.0
        %7444 = vmatprep.subr.mxu0 0.0
        %7445 = vmatpush1.msra.mxu0 0.0
        %7446 = vmatprep.subr.mxu0 0.0
        %7447 = vmatpush1.msra.mxu0 0.0
        %7448 = vmatprep.subr.mxu0 0.0
        %7449 = vmatpush1.msra.mxu0 0.0
        %7450 = vmatprep.subr.mxu0 0.0
        %7451 = vmatpush1.msra.mxu0 0.0
        %7452 = vmatprep.subr.mxu0 0.0
        %7453 = vmatpush1.msra.mxu0 0.0
        %7454 = vmatprep.subr.mxu0 0.0
        %7455 = vmatpush1.msra.mxu0 0.0
        %7456 = vmatprep.mubr.f32.mxu0 0.0
        %7457 = vmatmul.mubr.f32.gmra.mrb[0].mxu0 %v5968
        %v7458 = vpop.f32.mrb[0].mxu0
        %v7459 = vadd.f32 0.0, %v7458
        %v7460 = vpop.f32.mrb[0].mxu0
        %7461 = vmatprep.mubr.f32.mxu0 0.0
        %7462 = vmatmul.mubr.f32.gmra.mrb[0].mxu0 %v5971
        %v7463 = vpop.f32.mrb[0].mxu0
        %v7464 = vadd.f32 0.0, %v7463
        %v7465 = vpop.f32.mrb[0].mxu0
        %7466 = vdwg.mxu0
        %7467 = vmatprep.subr.mxu0 0.0
        %7468 = vmatpush1.msra.mxu0 %v6265
        %7469 = vmatprep.subr.mxu0 0.0
        %7470 = vmatpush1.msra.mxu0 %v6270
        %7471 = vmatprep.subr.mxu0 0.0
        %7472 = vmatpush1.msra.mxu0 0.0
        %7473 = vmatprep.subr.mxu0 0.0
        %7474 = vmatpush1.msra.mxu0 0.0
        %7475 = vmatprep.subr.mxu0 0.0
        %7476 = vmatpush1.msra.mxu0 0.0
        %7477 = vmatprep.subr.mxu0 0.0
        %7478 = vmatpush1.msra.mxu0 0.0
        %7479 = vmatprep.subr.mxu0 0.0
        %7480 = vmatpush1.msra.mxu0 0.0
        %7481 = vmatprep.subr.mxu0 0.0
        %7482 = vmatpush1.msra.mxu0 0.0
        %7483 = vmatprep.subr.mxu0 0.0
        %7484 = vmatpush1.msra.mxu0 0.0
        %7485 = vmatprep.subr.mxu0 0.0
        %7486 = vmatpush1.msra.mxu0 0.0
        %7487 = vmatprep.subr.mxu0 0.0
        %7488 = vmatpush1.msra.mxu0 0.0
        %7489 = vmatprep.subr.mxu0 0.0
        %7490 = vmatpush1.msra.mxu0 0.0
        %7491 = vmatprep.subr.mxu0 0.0
        %7492 = vmatpush1.msra.mxu0 0.0
        %7493 = vmatprep.subr.mxu0 0.0
        %7494 = vmatpush1.msra.mxu0 0.0
        %7495 = vmatprep.subr.mxu0 0.0
        %7496 = vmatpush1.msra.mxu0 0.0
        %7497 = vmatprep.subr.mxu0 0.0
        %7498 = vmatpush1.msra.mxu0 0.0
        %7499 = vmatprep.subr.mxu0 0.0
        %7500 = vmatpush1.msra.mxu0 0.0
        %7501 = vmatprep.subr.mxu0 0.0
        %7502 = vmatpush1.msra.mxu0 0.0
        %7503 = vmatprep.subr.mxu0 0.0
        %7504 = vmatpush1.msra.mxu0 0.0
        %7505 = vmatprep.subr.mxu0 0.0
        %7506 = vmatpush1.msra.mxu0 0.0
        %7507 = vmatprep.subr.mxu0 0.0
        %7508 = vmatpush1.msra.mxu0 0.0
        %7509 = vmatprep.subr.mxu0 0.0
        %7510 = vmatpush1.msra.mxu0 0.0
        %7511 = vmatprep.subr.mxu0 0.0
        %7512 = vmatpush1.msra.mxu0 0.0
        %7513 = vmatprep.subr.mxu0 0.0
        %7514 = vmatpush1.msra.mxu0 0.0
        %7515 = vmatprep.subr.mxu0 0.0
        %7516 = vmatpush1.msra.mxu0 0.0
        %7517 = vmatprep.subr.mxu0 0.0
        %7518 = vmatpush1.msra.mxu0 0.0
        %7519 = vmatprep.subr.mxu0 0.0
        %7520 = vmatpush1.msra.mxu0 0.0
        %7521 = vmatprep.subr.mxu0 0.0
        %7522 = vmatpush1.msra.mxu0 0.0
        %7523 = vmatprep.subr.mxu0 0.0
        %7524 = vmatpush1.msra.mxu0 0.0
        %7525 = vmatprep.subr.mxu0 0.0
        %7526 = vmatpush1.msra.mxu0 0.0
        %7527 = vmatprep.subr.mxu0 0.0
        %7528 = vmatpush1.msra.mxu0 0.0
        %7529 = vmatprep.subr.mxu0 0.0
        %7530 = vmatpush1.msra.mxu0 0.0
        %7531 = vmatprep.mubr.f32.mxu0 0.0
        %7532 = vmatmul.mubr.f32.gmra.mrb[0].mxu0 %v5968
        %v7533 = vpop.f32.mrb[0].mxu0
        %v7534 = vadd.f32 0.0, %v7533
        %v7535 = vpop.f32.mrb[0].mxu0
        %7536 = vmatprep.mubr.f32.mxu0 0.0
        %7537 = vmatmul.mubr.f32.gmra.mrb[0].mxu0 %v5971
        %v7538 = vpop.f32.mrb[0].mxu0
        %v7539 = vadd.f32 0.0, %v7538
        %v7540 = vpop.f32.mrb[0].mxu0
        %7541 = vdwg.mxu0
        %7542 = vmatprep.subr.mxu0 0.0
        %7543 = vmatpush1.msra.mxu0 %v6340
        %7544 = vmatprep.subr.mxu0 0.0
        %7545 = vmatpush1.msra.mxu0 %v6345
        %7546 = vmatprep.subr.mxu0 0.0
        %7547 = vmatpush1.msra.mxu0 0.0
        %7548 = vmatprep.subr.mxu0 0.0
        %7549 = vmatpush1.msra.mxu0 0.0
        %7550 = vmatprep.subr.mxu0 0.0
        %7551 = vmatpush1.msra.mxu0 0.0
        %7552 = vmatprep.subr.mxu0 0.0
        %7553 = vmatpush1.msra.mxu0 0.0
        %7554 = vmatprep.subr.mxu0 0.0
        %7555 = vmatpush1.msra.mxu0 0.0
        %7556 = vmatprep.subr.mxu0 0.0
        %7557 = vmatpush1.msra.mxu0 0.0
        %7558 = vmatprep.subr.mxu0 0.0
        %7559 = vmatpush1.msra.mxu0 0.0
        %7560 = vmatprep.subr.mxu0 0.0
        %7561 = vmatpush1.msra.mxu0 0.0
        %7562 = vmatprep.subr.mxu0 0.0
        %7563 = vmatpush1.msra.mxu0 0.0
        %7564 = vmatprep.subr.mxu0 0.0
        %7565 = vmatpush1.msra.mxu0 0.0
        %7566 = vmatprep.subr.mxu0 0.0
        %7567 = vmatpush1.msra.mxu0 0.0
        %7568 = vmatprep.subr.mxu0 0.0
        %7569 = vmatpush1.msra.mxu0 0.0
        %7570 = vmatprep.subr.mxu0 0.0
        %7571 = vmatpush1.msra.mxu0 0.0
        %7572 = vmatprep.subr.mxu0 0.0
        %7573 = vmatpush1.msra.mxu0 0.0
        %7574 = vmatprep.subr.mxu0 0.0
        %7575 = vmatpush1.msra.mxu0 0.0
        %7576 = vmatprep.subr.mxu0 0.0
        %7577 = vmatpush1.msra.mxu0 0.0
        %7578 = vmatprep.subr.mxu0 0.0
        %7579 = vmatpush1.msra.mxu0 0.0
        %7580 = vmatprep.subr.mxu0 0.0
        %7581 = vmatpush1.msra.mxu0 0.0
        %7582 = vmatprep.subr.mxu0 0.0
        %7583 = vmatpush1.msra.mxu0 0.0
        %7584 = vmatprep.subr.mxu0 0.0
        %7585 = vmatpush1.msra.mxu0 0.0
        %7586 = vmatprep.subr.mxu0 0.0
        %7587 = vmatpush1.msra.mxu0 0.0
        %7588 = vmatprep.subr.mxu0 0.0
        %7589 = vmatpush1.msra.mxu0 0.0
        %7590 = vmatprep.subr.mxu0 0.0
        %7591 = vmatpush1.msra.mxu0 0.0
        %7592 = vmatprep.subr.mxu0 0.0
        %7593 = vmatpush1.msra.mxu0 0.0
        %7594 = vmatprep.subr.mxu0 0.0
        %7595 = vmatpush1.msra.mxu0 0.0
        %7596 = vmatprep.subr.mxu0 0.0
        %7597 = vmatpush1.msra.mxu0 0.0
        %7598 = vmatprep.subr.mxu0 0.0
        %7599 = vmatpush1.msra.mxu0 0.0
        %7600 = vmatprep.subr.mxu0 0.0
        %7601 = vmatpush1.msra.mxu0 0.0
        %7602 = vmatprep.subr.mxu0 0.0
        %7603 = vmatpush1.msra.mxu0 0.0
        %7604 = vmatprep.subr.mxu0 0.0
        %7605 = vmatpush1.msra.mxu0 0.0
        %7606 = vmatprep.mubr.f32.mxu0 0.0
        %7607 = vmatmul.mubr.f32.gmra.mrb[0].mxu0 %v5968
        %v7608 = vpop.f32.mrb[0].mxu0
        %v7609 = vadd.f32 0.0, %v7608
        %v7610 = vpop.f32.mrb[0].mxu0
        %7611 = vmatprep.mubr.f32.mxu0 0.0
        %7612 = vmatmul.mubr.f32.gmra.mrb[0].mxu0 %v5971
        %v7613 = vpop.f32.mrb[0].mxu0
        %v7614 = vadd.f32 0.0, %v7613
        %v7615 = vpop.f32.mrb[0].mxu0
        %7616 = vdwg.mxu0
        %7617 = vmatprep.subr.mxu0 0.0
        %7618 = vmatpush1.msra.mxu0 %v6415
        %7619 = vmatprep.subr.mxu0 0.0
        %7620 = vmatpush1.msra.mxu0 %v6420
        %7621 = vmatprep.subr.mxu0 0.0
        %7622 = vmatpush1.msra.mxu0 0.0
        %7623 = vmatprep.subr.mxu0 0.0
        %7624 = vmatpush1.msra.mxu0 0.0
        %7625 = vmatprep.subr.mxu0 0.0
        %7626 = vmatpush1.msra.mxu0 0.0
        %7627 = vmatprep.subr.mxu0 0.0
        %7628 = vmatpush1.msra.mxu0 0.0
        %7629 = vmatprep.subr.mxu0 0.0
        %7630 = vmatpush1.msra.mxu0 0.0
        %7631 = vmatprep.subr.mxu0 0.0
        %7632 = vmatpush1.msra.mxu0 0.0
        %7633 = vmatprep.subr.mxu0 0.0
        %7634 = vmatpush1.msra.mxu0 0.0
        %7635 = vmatprep.subr.mxu0 0.0
        %7636 = vmatpush1.msra.mxu0 0.0
        %7637 = vmatprep.subr.mxu0 0.0
        %7638 = vmatpush1.msra.mxu0 0.0
        %7639 = vmatprep.subr.mxu0 0.0
        %7640 = vmatpush1.msra.mxu0 0.0
        %7641 = vmatprep.subr.mxu0 0.0
        %7642 = vmatpush1.msra.mxu0 0.0
        %7643 = vmatprep.subr.mxu0 0.0
        %7644 = vmatpush1.msra.mxu0 0.0
        %7645 = vmatprep.subr.mxu0 0.0
        %7646 = vmatpush1.msra.mxu0 0.0
        %7647 = vmatprep.subr.mxu0 0.0
        %7648 = vmatpush1.msra.mxu0 0.0
        %7649 = vmatprep.subr.mxu0 0.0
        %7650 = vmatpush1.msra.mxu0 0.0
        %7651 = vmatprep.subr.mxu0 0.0
        %7652 = vmatpush1.msra.mxu0 0.0
        %7653 = vmatprep.subr.mxu0 0.0
        %7654 = vmatpush1.msra.mxu0 0.0
        %7655 = vmatprep.subr.mxu0 0.0
        %7656 = vmatpush1.msra.mxu0 0.0
        %7657 = vmatprep.subr.mxu0 0.0
        %7658 = vmatpush1.msra.mxu0 0.0
        %7659 = vmatprep.subr.mxu0 0.0
        %7660 = vmatpush1.msra.mxu0 0.0
        %7661 = vmatprep.subr.mxu0 0.0
        %7662 = vmatpush1.msra.mxu0 0.0
        %7663 = vmatprep.subr.mxu0 0.0
        %7664 = vmatpush1.msra.mxu0 0.0
        %7665 = vmatprep.subr.mxu0 0.0
        %7666 = vmatpush1.msra.mxu0 0.0
        %7667 = vmatprep.subr.mxu0 0.0
        %7668 = vmatpush1.msra.mxu0 0.0
        %7669 = vmatprep.subr.mxu0 0.0
        %7670 = vmatpush1.msra.mxu0 0.0
        %7671 = vmatprep.subr.mxu0 0.0
        %7672 = vmatpush1.msra.mxu0 0.0
        %7673 = vmatprep.subr.mxu0 0.0
        %7674 = vmatpush1.msra.mxu0 0.0
        %7675 = vmatprep.subr.mxu0 0.0
        %7676 = vmatpush1.msra.mxu0 0.0
        %7677 = vmatprep.subr.mxu0 0.0
        %7678 = vmatpush1.msra.mxu0 0.0
        %7679 = vmatprep.subr.mxu0 0.0
        %7680 = vmatpush1.msra.mxu0 0.0
        %7681 = vmatprep.mubr.f32.mxu0 0.0
        %7682 = vmatmul.mubr.f32.gmra.mrb[0].mxu0 %v5968
        %v7683 = vpop.f32.mrb[0].mxu0
        %v7684 = vadd.f32 0.0, %v7683
        %v7685 = vpop.f32.mrb[0].mxu0
        %7686 = vmatprep.mubr.f32.mxu0 0.0
        %7687 = vmatmul.mubr.f32.gmra.mrb[0].mxu0 %v5971
        %v7688 = vpop.f32.mrb[0].mxu0
        %v7689 = vadd.f32 0.0, %v7688
        %v7690 = vpop.f32.mrb[0].mxu0
        %7691 = vdwg.mxu0
        %7692 = vmatprep.subr.mxu0 0.0
        %7693 = vmatpush1.msra.mxu0 %v6490
        %7694 = vmatprep.subr.mxu0 0.0
        %7695 = vmatpush1.msra.mxu0 %v6495
        %7696 = vmatprep.subr.mxu0 0.0
        %7697 = vmatpush1.msra.mxu0 0.0
        %7698 = vmatprep.subr.mxu0 0.0
        %7699 = vmatpush1.msra.mxu0 0.0
        %7700 = vmatprep.subr.mxu0 0.0
        %7701 = vmatpush1.msra.mxu0 0.0
        %7702 = vmatprep.subr.mxu0 0.0
        %7703 = vmatpush1.msra.mxu0 0.0
        %7704 = vmatprep.subr.mxu0 0.0
        %7705 = vmatpush1.msra.mxu0 0.0
        %7706 = vmatprep.subr.mxu0 0.0
        %7707 = vmatpush1.msra.mxu0 0.0
        %7708 = vmatprep.subr.mxu0 0.0
        %7709 = vmatpush1.msra.mxu0 0.0
        %7710 = vmatprep.subr.mxu0 0.0
        %7711 = vmatpush1.msra.mxu0 0.0
        %7712 = vmatprep.subr.mxu0 0.0
        %7713 = vmatpush1.msra.mxu0 0.0
        %7714 = vmatprep.subr.mxu0 0.0
        %7715 = vmatpush1.msra.mxu0 0.0
        %7716 = vmatprep.subr.mxu0 0.0
        %7717 = vmatpush1.msra.mxu0 0.0
        %7718 = vmatprep.subr.mxu0 0.0
        %7719 = vmatpush1.msra.mxu0 0.0
        %7720 = vmatprep.subr.mxu0 0.0
        %7721 = vmatpush1.msra.mxu0 0.0
        %7722 = vmatprep.subr.mxu0 0.0
        %7723 = vmatpush1.msra.mxu0 0.0
        %7724 = vmatprep.subr.mxu0 0.0
        %7725 = vmatpush1.msra.mxu0 0.0
        %7726 = vmatprep.subr.mxu0 0.0
        %7727 = vmatpush1.msra.mxu0 0.0
        %7728 = vmatprep.subr.mxu0 0.0
        %7729 = vmatpush1.msra.mxu0 0.0
        %7730 = vmatprep.subr.mxu0 0.0
        %7731 = vmatpush1.msra.mxu0 0.0
        %7732 = vmatprep.subr.mxu0 0.0
        %7733 = vmatpush1.msra.mxu0 0.0
        %7734 = vmatprep.subr.mxu0 0.0
        %7735 = vmatpush1.msra.mxu0 0.0
        %7736 = vmatprep.subr.mxu0 0.0
        %7737 = vmatpush1.msra.mxu0 0.0
        %7738 = vmatprep.subr.mxu0 0.0
        %7739 = vmatpush1.msra.mxu0 0.0
        %7740 = vmatprep.subr.mxu0 0.0
        %7741 = vmatpush1.msra.mxu0 0.0
        %7742 = vmatprep.subr.mxu0 0.0
        %7743 = vmatpush1.msra.mxu0 0.0
        %7744 = vmatprep.subr.mxu0 0.0
        %7745 = vmatpush1.msra.mxu0 0.0
        %7746 = vmatprep.subr.mxu0 0.0
        %7747 = vmatpush1.msra.mxu0 0.0
        %7748 = vmatprep.subr.mxu0 0.0
        %7749 = vmatpush1.msra.mxu0 0.0
        %7750 = vmatprep.subr.mxu0 0.0
        %7751 = vmatpush1.msra.mxu0 0.0
        %7752 = vmatprep.subr.mxu0 0.0
        %7753 = vmatpush1.msra.mxu0 0.0
        %7754 = vmatprep.subr.mxu0 0.0
        %7755 = vmatpush1.msra.mxu0 0.0
        %7756 = vmatprep.mubr.f32.mxu0 0.0
        %7757 = vmatmul.mubr.f32.gmra.mrb[0].mxu0 %v5968
        %v7758 = vpop.f32.mrb[0].mxu0
        %v7759 = vadd.f32 0.0, %v7758
        %v7760 = vpop.f32.mrb[0].mxu0
        %7761 = vmatprep.mubr.f32.mxu0 0.0
        %7762 = vmatmul.mubr.f32.gmra.mrb[0].mxu0 %v5971
        %v7763 = vpop.f32.mrb[0].mxu0
        %v7764 = vadd.f32 0.0, %v7763
        %v7765 = vpop.f32.mrb[0].mxu0
        %7766 = vdwg.mxu0
        %7767 = vmatprep.subr.mxu0 0.0
        %7768 = vmatpush1.msra.mxu0 %v6565
        %7769 = vmatprep.subr.mxu0 0.0
        %7770 = vmatpush1.msra.mxu0 %v6570
        %7771 = vmatprep.subr.mxu0 0.0
        %7772 = vmatpush1.msra.mxu0 0.0
        %7773 = vmatprep.subr.mxu0 0.0
        %7774 = vmatpush1.msra.mxu0 0.0
        %7775 = vmatprep.subr.mxu0 0.0
        %7776 = vmatpush1.msra.mxu0 0.0
        %7777 = vmatprep.subr.mxu0 0.0
        %7778 = vmatpush1.msra.mxu0 0.0
        %7779 = vmatprep.subr.mxu0 0.0
        %7780 = vmatpush1.msra.mxu0 0.0
        %7781 = vmatprep.subr.mxu0 0.0
        %7782 = vmatpush1.msra.mxu0 0.0
        %7783 = vmatprep.subr.mxu0 0.0
        %7784 = vmatpush1.msra.mxu0 0.0
        %7785 = vmatprep.subr.mxu0 0.0
        %7786 = vmatpush1.msra.mxu0 0.0
        %7787 = vmatprep.subr.mxu0 0.0
        %7788 = vmatpush1.msra.mxu0 0.0
        %7789 = vmatprep.subr.mxu0 0.0
        %7790 = vmatpush1.msra.mxu0 0.0
        %7791 = vmatprep.subr.mxu0 0.0
        %7792 = vmatpush1.msra.mxu0 0.0
        %7793 = vmatprep.subr.mxu0 0.0
        %7794 = vmatpush1.msra.mxu0 0.0
        %7795 = vmatprep.subr.mxu0 0.0
        %7796 = vmatpush1.msra.mxu0 0.0
        %7797 = vmatprep.subr.mxu0 0.0
        %7798 = vmatpush1.msra.mxu0 0.0
        %7799 = vmatprep.subr.mxu0 0.0
        %7800 = vmatpush1.msra.mxu0 0.0
        %7801 = vmatprep.subr.mxu0 0.0
        %7802 = vmatpush1.msra.mxu0 0.0
        %7803 = vmatprep.subr.mxu0 0.0
        %7804 = vmatpush1.msra.mxu0 0.0
        %7805 = vmatprep.subr.mxu0 0.0
        %7806 = vmatpush1.msra.mxu0 0.0
        %7807 = vmatprep.subr.mxu0 0.0
        %7808 = vmatpush1.msra.mxu0 0.0
        %7809 = vmatprep.subr.mxu0 0.0
        %7810 = vmatpush1.msra.mxu0 0.0
        %7811 = vmatprep.subr.mxu0 0.0
        %7812 = vmatpush1.msra.mxu0 0.0
        %7813 = vmatprep.subr.mxu0 0.0
        %7814 = vmatpush1.msra.mxu0 0.0
        %7815 = vmatprep.subr.mxu0 0.0
        %7816 = vmatpush1.msra.mxu0 0.0
        %7817 = vmatprep.subr.mxu0 0.0
        %7818 = vmatpush1.msra.mxu0 0.0
        %7819 = vmatprep.subr.mxu0 0.0
        %7820 = vmatpush1.msra.mxu0 0.0
        %7821 = vmatprep.subr.mxu0 0.0
        %7822 = vmatpush1.msra.mxu0 0.0
        %7823 = vmatprep.subr.mxu0 0.0
        %7824 = vmatpush1.msra.mxu0 0.0
        %7825 = vmatprep.subr.mxu0 0.0
        %7826 = vmatpush1.msra.mxu0 0.0
        %7827 = vmatprep.subr.mxu0 0.0
        %7828 = vmatpush1.msra.mxu0 0.0
        %7829 = vmatprep.subr.mxu0 0.0
        %7830 = vmatpush1.msra.mxu0 0.0
        %7831 = vmatprep.mubr.f32.mxu0 0.0
        %7832 = vmatmul.mubr.f32.gmra.mrb[0].mxu0 %v5968
        %v7833 = vpop.f32.mrb[0].mxu0
        %v7834 = vadd.f32 0.0, %v7833
        %v7835 = vpop.f32.mrb[0].mxu0
        %7836 = vmatprep.mubr.f32.mxu0 0.0
        %7837 = vmatmul.mubr.f32.gmra.mrb[0].mxu0 %v5971
        %v7838 = vpop.f32.mrb[0].mxu0
        %v7839 = vadd.f32 0.0, %v7838
        %v7840 = vpop.f32.mrb[0].mxu0
        %7841 = vdwg.mxu0
        %s7842 = scalar_lea.vmem %s2, 24
        %v7843 = vld [vmem:[%s7842] sm:$0xf]
        %v7845 = vsel %vm844, %v7309, 0
        %v7848 = vsel %vm844, %v7314, 0
        %v7851 = vsel %vm851, %v7843, 0
        %7853 = vmatprep.subr.mxu0 0.0
        %7854 = vmatpush1.msra.mxu0 %v7851
        %7855 = vmatprep.subr.mxu0 0.0
        %7856 = vmatpush1.msra.mxu0 0.0
        %7857 = vmatprep.subr.mxu0 0.0
        %7858 = vmatpush1.msra.mxu0 0.0
        %7859 = vmatprep.subr.mxu0 0.0
        %7860 = vmatpush1.msra.mxu0 0.0
        %7861 = vmatprep.subr.mxu0 0.0
        %7862 = vmatpush1.msra.mxu0 0.0
        %7863 = vmatprep.subr.mxu0 0.0
        %7864 = vmatpush1.msra.mxu0 0.0
        %7865 = vmatprep.subr.mxu0 0.0
        %7866 = vmatpush1.msra.mxu0 0.0
        %7867 = vmatprep.subr.mxu0 0.0
        %7868 = vmatpush1.msra.mxu0 0.0
        %7869 = vmatprep.subr.mxu0 0.0
        %7870 = vmatpush1.msra.mxu0 0.0
        %7871 = vmatprep.subr.mxu0 0.0
        %7872 = vmatpush1.msra.mxu0 0.0
        %7873 = vmatprep.subr.mxu0 0.0
        %7874 = vmatpush1.msra.mxu0 0.0
        %7875 = vmatprep.subr.mxu0 0.0
        %7876 = vmatpush1.msra.mxu0 0.0
        %7877 = vmatprep.subr.mxu0 0.0
        %7878 = vmatpush1.msra.mxu0 0.0
        %7879 = vmatprep.subr.mxu0 0.0
        %7880 = vmatpush1.msra.mxu0 0.0
        %7881 = vmatprep.subr.mxu0 0.0
        %7882 = vmatpush1.msra.mxu0 0.0
        %7883 = vmatprep.subr.mxu0 0.0
        %7884 = vmatpush1.msra.mxu0 0.0
        %7885 = vmatprep.subr.mxu0 0.0
        %7886 = vmatpush1.msra.mxu0 0.0
        %7887 = vmatprep.subr.mxu0 0.0
        %7888 = vmatpush1.msra.mxu0 0.0
        %7889 = vmatprep.subr.mxu0 0.0
        %7890 = vmatpush1.msra.mxu0 0.0
        %7891 = vmatprep.subr.mxu0 0.0
        %7892 = vmatpush1.msra.mxu0 0.0
        %7893 = vmatprep.subr.mxu0 0.0
        %7894 = vmatpush1.msra.mxu0 0.0
        %7895 = vmatprep.subr.mxu0 0.0
        %7896 = vmatpush1.msra.mxu0 0.0
        %7897 = vmatprep.subr.mxu0 0.0
        %7898 = vmatpush1.msra.mxu0 0.0
        %7899 = vmatprep.subr.mxu0 0.0
        %7900 = vmatpush1.msra.mxu0 0.0
        %7901 = vmatprep.subr.mxu0 0.0
        %7902 = vmatpush1.msra.mxu0 0.0
        %7903 = vmatprep.subr.mxu0 0.0
        %7904 = vmatpush1.msra.mxu0 0.0
        %7905 = vmatprep.subr.mxu0 0.0
        %7906 = vmatpush1.msra.mxu0 0.0
        %7907 = vmatprep.subr.mxu0 0.0
        %7908 = vmatpush1.msra.mxu0 0.0
        %7909 = vmatprep.subr.mxu0 0.0
        %7910 = vmatpush1.msra.mxu0 0.0
        %7911 = vmatprep.subr.mxu0 0.0
        %7912 = vmatpush1.msra.mxu0 0.0
        %7913 = vmatprep.subr.mxu0 0.0
        %7914 = vmatpush1.msra.mxu0 0.0
        %7915 = vmatprep.subr.mxu0 0.0
        %7916 = vmatpush1.msra.mxu0 0.0
        %7917 = vmatprep.mubr.f32.mxu0 0.0
        %7918 = vmatmul.mubr.f32.gmra.mrb[0].mxu0 %v7845
        %v7919 = vpop.f32.mrb[0].mxu0
        %v7920 = vadd.f32 0.0, %v7919
        %v7921 = vpop.f32.mrb[0].mxu0
        %7922 = vmatprep.mubr.f32.mxu0 0.0
        %7923 = vmatmul.mubr.f32.gmra.mrb[0].mxu0 %v7848
        %v7924 = vpop.f32.mrb[0].mxu0
        %v7925 = vadd.f32 0.0, %v7924
        %v7926 = vpop.f32.mrb[0].mxu0
        %7927 = vdwg.mxu0
        %v7929 = vsel %vm844, %v7384, 0
        %v7932 = vsel %vm844, %v7389, 0
        %7934 = vmatprep.subr.mxu0 0.0
        %7935 = vmatpush1.msra.mxu0 %v7851
        %7936 = vmatprep.subr.mxu0 0.0
        %7937 = vmatpush1.msra.mxu0 0.0
        %7938 = vmatprep.subr.mxu0 0.0
        %7939 = vmatpush1.msra.mxu0 0.0
        %7940 = vmatprep.subr.mxu0 0.0
        %7941 = vmatpush1.msra.mxu0 0.0
        %7942 = vmatprep.subr.mxu0 0.0
        %7943 = vmatpush1.msra.mxu0 0.0
        %7944 = vmatprep.subr.mxu0 0.0
        %7945 = vmatpush1.msra.mxu0 0.0
        %7946 = vmatprep.subr.mxu0 0.0
        %7947 = vmatpush1.msra.mxu0 0.0
        %7948 = vmatprep.subr.mxu0 0.0
        %7949 = vmatpush1.msra.mxu0 0.0
        %7950 = vmatprep.subr.mxu0 0.0
        %7951 = vmatpush1.msra.mxu0 0.0
        %7952 = vmatprep.subr.mxu0 0.0
        %7953 = vmatpush1.msra.mxu0 0.0
        %7954 = vmatprep.subr.mxu0 0.0
        %7955 = vmatpush1.msra.mxu0 0.0
        %7956 = vmatprep.subr.mxu0 0.0
        %7957 = vmatpush1.msra.mxu0 0.0
        %7958 = vmatprep.subr.mxu0 0.0
        %7959 = vmatpush1.msra.mxu0 0.0
        %7960 = vmatprep.subr.mxu0 0.0
        %7961 = vmatpush1.msra.mxu0 0.0
        %7962 = vmatprep.subr.mxu0 0.0
        %7963 = vmatpush1.msra.mxu0 0.0
        %7964 = vmatprep.subr.mxu0 0.0
        %7965 = vmatpush1.msra.mxu0 0.0
        %7966 = vmatprep.subr.mxu0 0.0
        %7967 = vmatpush1.msra.mxu0 0.0
        %7968 = vmatprep.subr.mxu0 0.0
        %7969 = vmatpush1.msra.mxu0 0.0
        %7970 = vmatprep.subr.mxu0 0.0
        %7971 = vmatpush1.msra.mxu0 0.0
        %7972 = vmatprep.subr.mxu0 0.0
        %7973 = vmatpush1.msra.mxu0 0.0
        %7974 = vmatprep.subr.mxu0 0.0
        %7975 = vmatpush1.msra.mxu0 0.0
        %7976 = vmatprep.subr.mxu0 0.0
        %7977 = vmatpush1.msra.mxu0 0.0
        %7978 = vmatprep.subr.mxu0 0.0
        %7979 = vmatpush1.msra.mxu0 0.0
        %7980 = vmatprep.subr.mxu0 0.0
        %7981 = vmatpush1.msra.mxu0 0.0
        %7982 = vmatprep.subr.mxu0 0.0
        %7983 = vmatpush1.msra.mxu0 0.0
        %7984 = vmatprep.subr.mxu0 0.0
        %7985 = vmatpush1.msra.mxu0 0.0
        %7986 = vmatprep.subr.mxu0 0.0
        %7987 = vmatpush1.msra.mxu0 0.0
        %7988 = vmatprep.subr.mxu0 0.0
        %7989 = vmatpush1.msra.mxu0 0.0
        %7990 = vmatprep.subr.mxu0 0.0
        %7991 = vmatpush1.msra.mxu0 0.0
        %7992 = vmatprep.subr.mxu0 0.0
        %7993 = vmatpush1.msra.mxu0 0.0
        %7994 = vmatprep.subr.mxu0 0.0
        %7995 = vmatpush1.msra.mxu0 0.0
        %7996 = vmatprep.subr.mxu0 0.0
        %7997 = vmatpush1.msra.mxu0 0.0
        %7998 = vmatprep.mubr.f32.mxu0 0.0
        %7999 = vmatmul.mubr.f32.gmra.mrb[0].mxu0 %v7929
        %v8000 = vpop.f32.mrb[0].mxu0
        %v8001 = vadd.f32 0.0, %v8000
        %v8002 = vpop.f32.mrb[0].mxu0
        %8003 = vmatprep.mubr.f32.mxu0 0.0
        %8004 = vmatmul.mubr.f32.gmra.mrb[0].mxu0 %v7932
        %v8005 = vpop.f32.mrb[0].mxu0
        %v8006 = vadd.f32 0.0, %v8005
        %v8007 = vpop.f32.mrb[0].mxu0
        %8008 = vdwg.mxu0
        %v8010 = vsel %vm844, %v7459, 0
        %v8013 = vsel %vm844, %v7464, 0
        %8015 = vmatprep.subr.mxu0 0.0
        %8016 = vmatpush1.msra.mxu0 %v7851
        %8017 = vmatprep.subr.mxu0 0.0
        %8018 = vmatpush1.msra.mxu0 0.0
        %8019 = vmatprep.subr.mxu0 0.0
        %8020 = vmatpush1.msra.mxu0 0.0
        %8021 = vmatprep.subr.mxu0 0.0
        %8022 = vmatpush1.msra.mxu0 0.0
        %8023 = vmatprep.subr.mxu0 0.0
        %8024 = vmatpush1.msra.mxu0 0.0
        %8025 = vmatprep.subr.mxu0 0.0
        %8026 = vmatpush1.msra.mxu0 0.0
        %8027 = vmatprep.subr.mxu0 0.0
        %8028 = vmatpush1.msra.mxu0 0.0
        %8029 = vmatprep.subr.mxu0 0.0
        %8030 = vmatpush1.msra.mxu0 0.0
        %8031 = vmatprep.subr.mxu0 0.0
        %8032 = vmatpush1.msra.mxu0 0.0
        %8033 = vmatprep.subr.mxu0 0.0
        %8034 = vmatpush1.msra.mxu0 0.0
        %8035 = vmatprep.subr.mxu0 0.0
        %8036 = vmatpush1.msra.mxu0 0.0
        %8037 = vmatprep.subr.mxu0 0.0
        %8038 = vmatpush1.msra.mxu0 0.0
        %8039 = vmatprep.subr.mxu0 0.0
        %8040 = vmatpush1.msra.mxu0 0.0
        %8041 = vmatprep.subr.mxu0 0.0
        %8042 = vmatpush1.msra.mxu0 0.0
        %8043 = vmatprep.subr.mxu0 0.0
        %8044 = vmatpush1.msra.mxu0 0.0
        %8045 = vmatprep.subr.mxu0 0.0
        %8046 = vmatpush1.msra.mxu0 0.0
        %8047 = vmatprep.subr.mxu0 0.0
        %8048 = vmatpush1.msra.mxu0 0.0
        %8049 = vmatprep.subr.mxu0 0.0
        %8050 = vmatpush1.msra.mxu0 0.0
        %8051 = vmatprep.subr.mxu0 0.0
        %8052 = vmatpush1.msra.mxu0 0.0
        %8053 = vmatprep.subr.mxu0 0.0
        %8054 = vmatpush1.msra.mxu0 0.0
        %8055 = vmatprep.subr.mxu0 0.0
        %8056 = vmatpush1.msra.mxu0 0.0
        %8057 = vmatprep.subr.mxu0 0.0
        %8058 = vmatpush1.msra.mxu0 0.0
        %8059 = vmatprep.subr.mxu0 0.0
        %8060 = vmatpush1.msra.mxu0 0.0
        %8061 = vmatprep.subr.mxu0 0.0
        %8062 = vmatpush1.msra.mxu0 0.0
        %8063 = vmatprep.subr.mxu0 0.0
        %8064 = vmatpush1.msra.mxu0 0.0
        %8065 = vmatprep.subr.mxu0 0.0
        %8066 = vmatpush1.msra.mxu0 0.0
        %8067 = vmatprep.subr.mxu0 0.0
        %8068 = vmatpush1.msra.mxu0 0.0
        %8069 = vmatprep.subr.mxu0 0.0
        %8070 = vmatpush1.msra.mxu0 0.0
        %8071 = vmatprep.subr.mxu0 0.0
        %8072 = vmatpush1.msra.mxu0 0.0
        %8073 = vmatprep.subr.mxu0 0.0
        %8074 = vmatpush1.msra.mxu0 0.0
        %8075 = vmatprep.subr.mxu0 0.0
        %8076 = vmatpush1.msra.mxu0 0.0
        %8077 = vmatprep.subr.mxu0 0.0
        %8078 = vmatpush1.msra.mxu0 0.0
        %8079 = vmatprep.mubr.f32.mxu0 0.0
        %8080 = vmatmul.mubr.f32.gmra.mrb[0].mxu0 %v8010
        %v8081 = vpop.f32.mrb[0].mxu0
        %v8082 = vadd.f32 0.0, %v8081
        %v8083 = vpop.f32.mrb[0].mxu0
        %8084 = vmatprep.mubr.f32.mxu0 0.0
        %8085 = vmatmul.mubr.f32.gmra.mrb[0].mxu0 %v8013
        %v8086 = vpop.f32.mrb[0].mxu0
        %v8087 = vadd.f32 0.0, %v8086
        %v8088 = vpop.f32.mrb[0].mxu0
        %8089 = vdwg.mxu0
        %v8091 = vsel %vm844, %v7534, 0
        %v8094 = vsel %vm844, %v7539, 0
        %8096 = vmatprep.subr.mxu0 0.0
        %8097 = vmatpush1.msra.mxu0 %v7851
        %8098 = vmatprep.subr.mxu0 0.0
        %8099 = vmatpush1.msra.mxu0 0.0
        %8100 = vmatprep.subr.mxu0 0.0
        %8101 = vmatpush1.msra.mxu0 0.0
        %8102 = vmatprep.subr.mxu0 0.0
        %8103 = vmatpush1.msra.mxu0 0.0
        %8104 = vmatprep.subr.mxu0 0.0
        %8105 = vmatpush1.msra.mxu0 0.0
        %8106 = vmatprep.subr.mxu0 0.0
        %8107 = vmatpush1.msra.mxu0 0.0
        %8108 = vmatprep.subr.mxu0 0.0
        %8109 = vmatpush1.msra.mxu0 0.0
        %8110 = vmatprep.subr.mxu0 0.0
        %8111 = vmatpush1.msra.mxu0 0.0
        %8112 = vmatprep.subr.mxu0 0.0
        %8113 = vmatpush1.msra.mxu0 0.0
        %8114 = vmatprep.subr.mxu0 0.0
        %8115 = vmatpush1.msra.mxu0 0.0
        %8116 = vmatprep.subr.mxu0 0.0
        %8117 = vmatpush1.msra.mxu0 0.0
        %8118 = vmatprep.subr.mxu0 0.0
        %8119 = vmatpush1.msra.mxu0 0.0
        %8120 = vmatprep.subr.mxu0 0.0
        %8121 = vmatpush1.msra.mxu0 0.0
        %8122 = vmatprep.subr.mxu0 0.0
        %8123 = vmatpush1.msra.mxu0 0.0
        %8124 = vmatprep.subr.mxu0 0.0
        %8125 = vmatpush1.msra.mxu0 0.0
        %8126 = vmatprep.subr.mxu0 0.0
        %8127 = vmatpush1.msra.mxu0 0.0
        %8128 = vmatprep.subr.mxu0 0.0
        %8129 = vmatpush1.msra.mxu0 0.0
        %8130 = vmatprep.subr.mxu0 0.0
        %8131 = vmatpush1.msra.mxu0 0.0
        %8132 = vmatprep.subr.mxu0 0.0
        %8133 = vmatpush1.msra.mxu0 0.0
        %8134 = vmatprep.subr.mxu0 0.0
        %8135 = vmatpush1.msra.mxu0 0.0
        %8136 = vmatprep.subr.mxu0 0.0
        %8137 = vmatpush1.msra.mxu0 0.0
        %8138 = vmatprep.subr.mxu0 0.0
        %8139 = vmatpush1.msra.mxu0 0.0
        %8140 = vmatprep.subr.mxu0 0.0
        %8141 = vmatpush1.msra.mxu0 0.0
        %8142 = vmatprep.subr.mxu0 0.0
        %8143 = vmatpush1.msra.mxu0 0.0
        %8144 = vmatprep.subr.mxu0 0.0
        %8145 = vmatpush1.msra.mxu0 0.0
        %8146 = vmatprep.subr.mxu0 0.0
        %8147 = vmatpush1.msra.mxu0 0.0
        %8148 = vmatprep.subr.mxu0 0.0
        %8149 = vmatpush1.msra.mxu0 0.0
        %8150 = vmatprep.subr.mxu0 0.0
        %8151 = vmatpush1.msra.mxu0 0.0
        %8152 = vmatprep.subr.mxu0 0.0
        %8153 = vmatpush1.msra.mxu0 0.0
        %8154 = vmatprep.subr.mxu0 0.0
        %8155 = vmatpush1.msra.mxu0 0.0
        %8156 = vmatprep.subr.mxu0 0.0
        %8157 = vmatpush1.msra.mxu0 0.0
        %8158 = vmatprep.subr.mxu0 0.0
        %8159 = vmatpush1.msra.mxu0 0.0
        %8160 = vmatprep.mubr.f32.mxu0 0.0
        %8161 = vmatmul.mubr.f32.gmra.mrb[0].mxu0 %v8091
        %v8162 = vpop.f32.mrb[0].mxu0
        %v8163 = vadd.f32 0.0, %v8162
        %v8164 = vpop.f32.mrb[0].mxu0
        %8165 = vmatprep.mubr.f32.mxu0 0.0
        %8166 = vmatmul.mubr.f32.gmra.mrb[0].mxu0 %v8094
        %v8167 = vpop.f32.mrb[0].mxu0
        %v8168 = vadd.f32 0.0, %v8167
        %v8169 = vpop.f32.mrb[0].mxu0
        %8170 = vdwg.mxu0
        %v8172 = vsel %vm844, %v7609, 0
        %v8175 = vsel %vm844, %v7614, 0
        %8177 = vmatprep.subr.mxu0 0.0
        %8178 = vmatpush1.msra.mxu0 %v7851
        %8179 = vmatprep.subr.mxu0 0.0
        %8180 = vmatpush1.msra.mxu0 0.0
        %8181 = vmatprep.subr.mxu0 0.0
        %8182 = vmatpush1.msra.mxu0 0.0
        %8183 = vmatprep.subr.mxu0 0.0
        %8184 = vmatpush1.msra.mxu0 0.0
        %8185 = vmatprep.subr.mxu0 0.0
        %8186 = vmatpush1.msra.mxu0 0.0
        %8187 = vmatprep.subr.mxu0 0.0
        %8188 = vmatpush1.msra.mxu0 0.0
        %8189 = vmatprep.subr.mxu0 0.0
        %8190 = vmatpush1.msra.mxu0 0.0
        %8191 = vmatprep.subr.mxu0 0.0
        %8192 = vmatpush1.msra.mxu0 0.0
        %8193 = vmatprep.subr.mxu0 0.0
        %8194 = vmatpush1.msra.mxu0 0.0
        %8195 = vmatprep.subr.mxu0 0.0
        %8196 = vmatpush1.msra.mxu0 0.0
        %8197 = vmatprep.subr.mxu0 0.0
        %8198 = vmatpush1.msra.mxu0 0.0
        %8199 = vmatprep.subr.mxu0 0.0
        %8200 = vmatpush1.msra.mxu0 0.0
        %8201 = vmatprep.subr.mxu0 0.0
        %8202 = vmatpush1.msra.mxu0 0.0
        %8203 = vmatprep.subr.mxu0 0.0
        %8204 = vmatpush1.msra.mxu0 0.0
        %8205 = vmatprep.subr.mxu0 0.0
        %8206 = vmatpush1.msra.mxu0 0.0
        %8207 = vmatprep.subr.mxu0 0.0
        %8208 = vmatpush1.msra.mxu0 0.0
        %8209 = vmatprep.subr.mxu0 0.0
        %8210 = vmatpush1.msra.mxu0 0.0
        %8211 = vmatprep.subr.mxu0 0.0
        %8212 = vmatpush1.msra.mxu0 0.0
        %8213 = vmatprep.subr.mxu0 0.0
        %8214 = vmatpush1.msra.mxu0 0.0
        %8215 = vmatprep.subr.mxu0 0.0
        %8216 = vmatpush1.msra.mxu0 0.0
        %8217 = vmatprep.subr.mxu0 0.0
        %8218 = vmatpush1.msra.mxu0 0.0
        %8219 = vmatprep.subr.mxu0 0.0
        %8220 = vmatpush1.msra.mxu0 0.0
        %8221 = vmatprep.subr.mxu0 0.0
        %8222 = vmatpush1.msra.mxu0 0.0
        %8223 = vmatprep.subr.mxu0 0.0
        %8224 = vmatpush1.msra.mxu0 0.0
        %8225 = vmatprep.subr.mxu0 0.0
        %8226 = vmatpush1.msra.mxu0 0.0
        %8227 = vmatprep.subr.mxu0 0.0
        %8228 = vmatpush1.msra.mxu0 0.0
        %8229 = vmatprep.subr.mxu0 0.0
        %8230 = vmatpush1.msra.mxu0 0.0
        %8231 = vmatprep.subr.mxu0 0.0
        %8232 = vmatpush1.msra.mxu0 0.0
        %8233 = vmatprep.subr.mxu0 0.0
        %8234 = vmatpush1.msra.mxu0 0.0
        %8235 = vmatprep.subr.mxu0 0.0
        %8236 = vmatpush1.msra.mxu0 0.0
        %8237 = vmatprep.subr.mxu0 0.0
        %8238 = vmatpush1.msra.mxu0 0.0
        %8239 = vmatprep.subr.mxu0 0.0
        %8240 = vmatpush1.msra.mxu0 0.0
        %8241 = vmatprep.mubr.f32.mxu0 0.0
        %8242 = vmatmul.mubr.f32.gmra.mrb[0].mxu0 %v8172
        %v8243 = vpop.f32.mrb[0].mxu0
        %v8244 = vadd.f32 0.0, %v8243
        %v8245 = vpop.f32.mrb[0].mxu0
        %8246 = vmatprep.mubr.f32.mxu0 0.0
        %8247 = vmatmul.mubr.f32.gmra.mrb[0].mxu0 %v8175
        %v8248 = vpop.f32.mrb[0].mxu0
        %v8249 = vadd.f32 0.0, %v8248
        %v8250 = vpop.f32.mrb[0].mxu0
        %8251 = vdwg.mxu0
        %v8253 = vsel %vm844, %v7684, 0
        %v8256 = vsel %vm844, %v7689, 0
        %8258 = vmatprep.subr.mxu0 0.0
        %8259 = vmatpush1.msra.mxu0 %v7851
        %8260 = vmatprep.subr.mxu0 0.0
        %8261 = vmatpush1.msra.mxu0 0.0
        %8262 = vmatprep.subr.mxu0 0.0
        %8263 = vmatpush1.msra.mxu0 0.0
        %8264 = vmatprep.subr.mxu0 0.0
        %8265 = vmatpush1.msra.mxu0 0.0
        %8266 = vmatprep.subr.mxu0 0.0
        %8267 = vmatpush1.msra.mxu0 0.0
        %8268 = vmatprep.subr.mxu0 0.0
        %8269 = vmatpush1.msra.mxu0 0.0
        %8270 = vmatprep.subr.mxu0 0.0
        %8271 = vmatpush1.msra.mxu0 0.0
        %8272 = vmatprep.subr.mxu0 0.0
        %8273 = vmatpush1.msra.mxu0 0.0
        %8274 = vmatprep.subr.mxu0 0.0
        %8275 = vmatpush1.msra.mxu0 0.0
        %8276 = vmatprep.subr.mxu0 0.0
        %8277 = vmatpush1.msra.mxu0 0.0
        %8278 = vmatprep.subr.mxu0 0.0
        %8279 = vmatpush1.msra.mxu0 0.0
        %8280 = vmatprep.subr.mxu0 0.0
        %8281 = vmatpush1.msra.mxu0 0.0
        %8282 = vmatprep.subr.mxu0 0.0
        %8283 = vmatpush1.msra.mxu0 0.0
        %8284 = vmatprep.subr.mxu0 0.0
        %8285 = vmatpush1.msra.mxu0 0.0
        %8286 = vmatprep.subr.mxu0 0.0
        %8287 = vmatpush1.msra.mxu0 0.0
        %8288 = vmatprep.subr.mxu0 0.0
        %8289 = vmatpush1.msra.mxu0 0.0
        %8290 = vmatprep.subr.mxu0 0.0
        %8291 = vmatpush1.msra.mxu0 0.0
        %8292 = vmatprep.subr.mxu0 0.0
        %8293 = vmatpush1.msra.mxu0 0.0
        %8294 = vmatprep.subr.mxu0 0.0
        %8295 = vmatpush1.msra.mxu0 0.0
        %8296 = vmatprep.subr.mxu0 0.0
        %8297 = vmatpush1.msra.mxu0 0.0
        %8298 = vmatprep.subr.mxu0 0.0
        %8299 = vmatpush1.msra.mxu0 0.0
        %8300 = vmatprep.subr.mxu0 0.0
        %8301 = vmatpush1.msra.mxu0 0.0
        %8302 = vmatprep.subr.mxu0 0.0
        %8303 = vmatpush1.msra.mxu0 0.0
        %8304 = vmatprep.subr.mxu0 0.0
        %8305 = vmatpush1.msra.mxu0 0.0
        %8306 = vmatprep.subr.mxu0 0.0
        %8307 = vmatpush1.msra.mxu0 0.0
        %8308 = vmatprep.subr.mxu0 0.0
        %8309 = vmatpush1.msra.mxu0 0.0
        %8310 = vmatprep.subr.mxu0 0.0
        %8311 = vmatpush1.msra.mxu0 0.0
        %8312 = vmatprep.subr.mxu0 0.0
        %8313 = vmatpush1.msra.mxu0 0.0
        %8314 = vmatprep.subr.mxu0 0.0
        %8315 = vmatpush1.msra.mxu0 0.0
        %8316 = vmatprep.subr.mxu0 0.0
        %8317 = vmatpush1.msra.mxu0 0.0
        %8318 = vmatprep.subr.mxu0 0.0
        %8319 = vmatpush1.msra.mxu0 0.0
        %8320 = vmatprep.subr.mxu0 0.0
        %8321 = vmatpush1.msra.mxu0 0.0
        %8322 = vmatprep.mubr.f32.mxu0 0.0
        %8323 = vmatmul.mubr.f32.gmra.mrb[0].mxu0 %v8253
        %v8324 = vpop.f32.mrb[0].mxu0
        %v8325 = vadd.f32 0.0, %v8324
        %v8326 = vpop.f32.mrb[0].mxu0
        %8327 = vmatprep.mubr.f32.mxu0 0.0
        %8328 = vmatmul.mubr.f32.gmra.mrb[0].mxu0 %v8256
        %v8329 = vpop.f32.mrb[0].mxu0
        %v8330 = vadd.f32 0.0, %v8329
        %v8331 = vpop.f32.mrb[0].mxu0
        %8332 = vdwg.mxu0
        %v8334 = vsel %vm844, %v7759, 0
        %v8337 = vsel %vm844, %v7764, 0
        %8339 = vmatprep.subr.mxu0 0.0
        %8340 = vmatpush1.msra.mxu0 %v7851
        %8341 = vmatprep.subr.mxu0 0.0
        %8342 = vmatpush1.msra.mxu0 0.0
        %8343 = vmatprep.subr.mxu0 0.0
        %8344 = vmatpush1.msra.mxu0 0.0
        %8345 = vmatprep.subr.mxu0 0.0
        %8346 = vmatpush1.msra.mxu0 0.0
        %8347 = vmatprep.subr.mxu0 0.0
        %8348 = vmatpush1.msra.mxu0 0.0
        %8349 = vmatprep.subr.mxu0 0.0
        %8350 = vmatpush1.msra.mxu0 0.0
        %8351 = vmatprep.subr.mxu0 0.0
        %8352 = vmatpush1.msra.mxu0 0.0
        %8353 = vmatprep.subr.mxu0 0.0
        %8354 = vmatpush1.msra.mxu0 0.0
        %8355 = vmatprep.subr.mxu0 0.0
        %8356 = vmatpush1.msra.mxu0 0.0
        %8357 = vmatprep.subr.mxu0 0.0
        %8358 = vmatpush1.msra.mxu0 0.0
        %8359 = vmatprep.subr.mxu0 0.0
        %8360 = vmatpush1.msra.mxu0 0.0
        %8361 = vmatprep.subr.mxu0 0.0
        %8362 = vmatpush1.msra.mxu0 0.0
        %8363 = vmatprep.subr.mxu0 0.0
        %8364 = vmatpush1.msra.mxu0 0.0
        %8365 = vmatprep.subr.mxu0 0.0
        %8366 = vmatpush1.msra.mxu0 0.0
        %8367 = vmatprep.subr.mxu0 0.0
        %8368 = vmatpush1.msra.mxu0 0.0
        %8369 = vmatprep.subr.mxu0 0.0
        %8370 = vmatpush1.msra.mxu0 0.0
        %8371 = vmatprep.subr.mxu0 0.0
        %8372 = vmatpush1.msra.mxu0 0.0
        %8373 = vmatprep.subr.mxu0 0.0
        %8374 = vmatpush1.msra.mxu0 0.0
        %8375 = vmatprep.subr.mxu0 0.0
        %8376 = vmatpush1.msra.mxu0 0.0
        %8377 = vmatprep.subr.mxu0 0.0
        %8378 = vmatpush1.msra.mxu0 0.0
        %8379 = vmatprep.subr.mxu0 0.0
        %8380 = vmatpush1.msra.mxu0 0.0
        %8381 = vmatprep.subr.mxu0 0.0
        %8382 = vmatpush1.msra.mxu0 0.0
        %8383 = vmatprep.subr.mxu0 0.0
        %8384 = vmatpush1.msra.mxu0 0.0
        %8385 = vmatprep.subr.mxu0 0.0
        %8386 = vmatpush1.msra.mxu0 0.0
        %8387 = vmatprep.subr.mxu0 0.0
        %8388 = vmatpush1.msra.mxu0 0.0
        %8389 = vmatprep.subr.mxu0 0.0
        %8390 = vmatpush1.msra.mxu0 0.0
        %8391 = vmatprep.subr.mxu0 0.0
        %8392 = vmatpush1.msra.mxu0 0.0
        %8393 = vmatprep.subr.mxu0 0.0
        %8394 = vmatpush1.msra.mxu0 0.0
        %8395 = vmatprep.subr.mxu0 0.0
        %8396 = vmatpush1.msra.mxu0 0.0
        %8397 = vmatprep.subr.mxu0 0.0
        %8398 = vmatpush1.msra.mxu0 0.0
        %8399 = vmatprep.subr.mxu0 0.0
        %8400 = vmatpush1.msra.mxu0 0.0
        %8401 = vmatprep.subr.mxu0 0.0
        %8402 = vmatpush1.msra.mxu0 0.0
        %8403 = vmatprep.mubr.f32.mxu0 0.0
        %8404 = vmatmul.mubr.f32.gmra.mrb[0].mxu0 %v8334
        %v8405 = vpop.f32.mrb[0].mxu0
        %v8406 = vadd.f32 0.0, %v8405
        %v8407 = vpop.f32.mrb[0].mxu0
        %8408 = vmatprep.mubr.f32.mxu0 0.0
        %8409 = vmatmul.mubr.f32.gmra.mrb[0].mxu0 %v8337
        %v8410 = vpop.f32.mrb[0].mxu0
        %v8411 = vadd.f32 0.0, %v8410
        %v8412 = vpop.f32.mrb[0].mxu0
        %8413 = vdwg.mxu0
        %v8415 = vsel %vm844, %v7834, 0
        %v8418 = vsel %vm844, %v7839, 0
        %8420 = vmatprep.subr.mxu0 0.0
        %8421 = vmatpush1.msra.mxu0 %v7851
        %8422 = vmatprep.subr.mxu0 0.0
        %8423 = vmatpush1.msra.mxu0 0.0
        %8424 = vmatprep.subr.mxu0 0.0
        %8425 = vmatpush1.msra.mxu0 0.0
        %8426 = vmatprep.subr.mxu0 0.0
        %8427 = vmatpush1.msra.mxu0 0.0
        %8428 = vmatprep.subr.mxu0 0.0
        %8429 = vmatpush1.msra.mxu0 0.0
        %8430 = vmatprep.subr.mxu0 0.0
        %8431 = vmatpush1.msra.mxu0 0.0
        %8432 = vmatprep.subr.mxu0 0.0
        %8433 = vmatpush1.msra.mxu0 0.0
        %8434 = vmatprep.subr.mxu0 0.0
        %8435 = vmatpush1.msra.mxu0 0.0
        %8436 = vmatprep.subr.mxu0 0.0
        %8437 = vmatpush1.msra.mxu0 0.0
        %8438 = vmatprep.subr.mxu0 0.0
        %8439 = vmatpush1.msra.mxu0 0.0
        %8440 = vmatprep.subr.mxu0 0.0
        %8441 = vmatpush1.msra.mxu0 0.0
        %8442 = vmatprep.subr.mxu0 0.0
        %8443 = vmatpush1.msra.mxu0 0.0
        %8444 = vmatprep.subr.mxu0 0.0
        %8445 = vmatpush1.msra.mxu0 0.0
        %8446 = vmatprep.subr.mxu0 0.0
        %8447 = vmatpush1.msra.mxu0 0.0
        %8448 = vmatprep.subr.mxu0 0.0
        %8449 = vmatpush1.msra.mxu0 0.0
        %8450 = vmatprep.subr.mxu0 0.0
        %8451 = vmatpush1.msra.mxu0 0.0
        %8452 = vmatprep.subr.mxu0 0.0
        %8453 = vmatpush1.msra.mxu0 0.0
        %8454 = vmatprep.subr.mxu0 0.0
        %8455 = vmatpush1.msra.mxu0 0.0
        %8456 = vmatprep.subr.mxu0 0.0
        %8457 = vmatpush1.msra.mxu0 0.0
        %8458 = vmatprep.subr.mxu0 0.0
        %8459 = vmatpush1.msra.mxu0 0.0
        %8460 = vmatprep.subr.mxu0 0.0
        %8461 = vmatpush1.msra.mxu0 0.0
        %8462 = vmatprep.subr.mxu0 0.0
        %8463 = vmatpush1.msra.mxu0 0.0
        %8464 = vmatprep.subr.mxu0 0.0
        %8465 = vmatpush1.msra.mxu0 0.0
        %8466 = vmatprep.subr.mxu0 0.0
        %8467 = vmatpush1.msra.mxu0 0.0
        %8468 = vmatprep.subr.mxu0 0.0
        %8469 = vmatpush1.msra.mxu0 0.0
        %8470 = vmatprep.subr.mxu0 0.0
        %8471 = vmatpush1.msra.mxu0 0.0
        %8472 = vmatprep.subr.mxu0 0.0
        %8473 = vmatpush1.msra.mxu0 0.0
        %8474 = vmatprep.subr.mxu0 0.0
        %8475 = vmatpush1.msra.mxu0 0.0
        %8476 = vmatprep.subr.mxu0 0.0
        %8477 = vmatpush1.msra.mxu0 0.0
        %8478 = vmatprep.subr.mxu0 0.0
        %8479 = vmatpush1.msra.mxu0 0.0
        %8480 = vmatprep.subr.mxu0 0.0
        %8481 = vmatpush1.msra.mxu0 0.0
        %8482 = vmatprep.subr.mxu0 0.0
        %8483 = vmatpush1.msra.mxu0 0.0
        %8484 = vmatprep.mubr.f32.mxu0 0.0
        %8485 = vmatmul.mubr.f32.gmra.mrb[0].mxu0 %v8415
        %v8486 = vpop.f32.mrb[0].mxu0
        %v8487 = vadd.f32 0.0, %v8486
        %v8488 = vpop.f32.mrb[0].mxu0
        %8489 = vmatprep.mubr.f32.mxu0 0.0
        %8490 = vmatmul.mubr.f32.gmra.mrb[0].mxu0 %v8418
        %v8491 = vpop.f32.mrb[0].mxu0
        %v8492 = vadd.f32 0.0, %v8491
        %v8493 = vpop.f32.mrb[0].mxu0
        %8494 = vdwg.mxu0
        %v8495 = vadd.f32 %v7226, %v7920
        %v8496 = vadd.f32 %v7227, %v7925
        %v8497 = vadd.f32 %v7228, %v8001
        %v8498 = vadd.f32 %v7229, %v8006
        %v8499 = vadd.f32 %v7230, %v8082
        %v8500 = vadd.f32 %v7231, %v8087
        %v8501 = vadd.f32 %v7232, %v8163
        %v8502 = vadd.f32 %v7233, %v8168
        %v8503 = vadd.f32 %v7234, %v8244
        %v8504 = vadd.f32 %v7235, %v8249
        %v8505 = vadd.f32 %v7236, %v8325
        %v8506 = vadd.f32 %v7237, %v8330
        %v8507 = vadd.f32 %v7238, %v8406
        %v8508 = vadd.f32 %v7239, %v8411
        %v8509 = vadd.f32 %v7240, %v8487
        %v8510 = vadd.f32 %v7241, %v8492
        %v8511 = vld [vmem:[%s3] sm:$0x1]
        %v8513 = vlaneseq
        %v8514 = vshrl.u32 %v8513, 7
        %v8515 = vsub.s32 0, %v8514
        %v8516 = vrot.slane %v8511, %v8515
        %v8518 = vadd.f32 %v8495, %v8516
        %v8519 = vadd.f32 %v8496, %v8516
        %v8520 = vadd.f32 %v8497, %v8516
        %v8521 = vadd.f32 %v8498, %v8516
        %v8522 = vadd.f32 %v8499, %v8516
        %v8523 = vadd.f32 %v8500, %v8516
        %v8524 = vadd.f32 %v8501, %v8516
        %v8525 = vadd.f32 %v8502, %v8516
        %v8526 = vadd.f32 %v8503, %v8516
        %v8527 = vadd.f32 %v8504, %v8516
        %v8528 = vadd.f32 %v8505, %v8516
        %v8529 = vadd.f32 %v8506, %v8516
        %v8530 = vadd.f32 %v8507, %v8516
        %v8531 = vadd.f32 %v8508, %v8516
        %v8532 = vadd.f32 %v8509, %v8516
        %v8533 = vadd.f32 %v8510, %v8516
        %vm8534 = vcmask 261120
        %8535 = vst.msk [vmem:[%s205] sm:$0xff] %vm8534, %v8518
        %8536 = vst.msk [vmem:[%s205 + $0x8] sm:$0xff] %vm8534, %v8519
        %8537 = vst.msk [vmem:[%s205 + $0x10] sm:$0xff] %vm8534, %v8520
        %8538 = vst.msk [vmem:[%s205 + $0x18] sm:$0xff] %vm8534, %v8521
        %8539 = vst.msk [vmem:[%s205 + $0x20] sm:$0xff] %vm8534, %v8522
        %8540 = vst.msk [vmem:[%s205 + $0x28] sm:$0xff] %vm8534, %v8523
        %8541 = vst.msk [vmem:[%s205 + $0x30] sm:$0xff] %vm8534, %v8524
        %8542 = vst.msk [vmem:[%s205 + $0x38] sm:$0xff] %vm8534, %v8525
        %8543 = vst.msk [vmem:[%s205 + $0x40] sm:$0xff] %vm8534, %v8526
        %8544 = vst.msk [vmem:[%s205 + $0x48] sm:$0xff] %vm8534, %v8527
        %8545 = vst.msk [vmem:[%s205 + $0x50] sm:$0xff] %vm8534, %v8528
        %8546 = vst.msk [vmem:[%s205 + $0x58] sm:$0xff] %vm8534, %v8529
        %8547 = vst.msk [vmem:[%s205 + $0x60] sm:$0xff] %vm8534, %v8530
        %8548 = vst.msk [vmem:[%s205 + $0x68] sm:$0xff] %vm8534, %v8531
        %8549 = vst.msk [vmem:[%s205 + $0x70] sm:$0xff] %vm8534, %v8532
        %8550 = vst.msk [vmem:[%s205 + $0x78] sm:$0xff] %vm8534, %v8533
        %s8551 = sand.u32 %s120, 1
        %s8552 = scalar_lea.sflag [#allocation3], %s8551
        %s8553 = sand.u32 %s120, 1
        %s8554 = smul.addr %s8553, 128
        %s8555 = scalar_lea.vmem [#allocation2], %s8554
        // Predicated region
        $region37: #{tpu_custom_call.1} parent=35 // pred_check
          %p8556 = pneg %p130
        $region38: #{tpu_custom_call.1} parent=35 // pred_check_branch
          %8558 = sbr.rel (%p8556) target = $region40
        $region39: #{tpu_custom_call.1} parent=35 // pred_region
          %s8560 = ssub.s32 2048, 2048
          %8561 = vsyncadd %s8552, %s8560
          %s8562 = smul.addr %s18, 16
          %s8563 = smul.addr %s8562, 128
          %s8564 = scalar_lea.hbm %s4, %s8563
          %s8565 = sshll.u32 %s8555, 4
          %s8566 = int_to_ptr.vmem [resolvable:$true] %s8565
          %8571 = dma.vmem_to_hbm [thread:$0]  %s8566, 2048, %s8564, %s8552, 128, 128, 8
        $region40: #{tpu_custom_call.1} parent=35 // pred_fallthru
          _
      $region36: #{tpu_custom_call.1} parent=5 // pred_fallthru
        _
      %p8572 = scmp.le.s32.totalorder 2, %s13
      // Predicated region
      $region41: #{tpu_custom_call.1} parent=5 // pred_check
        %p8573 = pneg %p8572
      $region42: #{tpu_custom_call.1} parent=5 // pred_check_branch
        %8575 = sbr.rel (%p8573) target = $region44
      $region43: #{tpu_custom_call.1} parent=5 // pred_region
        %s8576 = ssub.s32 %s13, 2
        // Predicated region
        $region45: #{tpu_custom_call.1} parent=43 // pred_check
          %p8577 = pneg %p136
        $region46: #{tpu_custom_call.1} parent=43 // pred_check_branch
          %8579 = sbr.rel (%p8577) target = $region48
        $region47: #{tpu_custom_call.1} parent=43 // pred_region
          %s8580 = sand.u32 %s121, 1
          %s8581 = scalar_lea.sflag [#allocation3], %s8580
          %s8582 = sand.u32 %s121, 1
          %s8583 = smul.addr %s8582, 128
          %s8584 = scalar_lea.vmem [#allocation2], %s8583
          %8585 = dma.done %s8581, 2048
        $region48: #{tpu_custom_call.1} parent=43 // pred_fallthru
          _
      $region44: #{tpu_custom_call.1} parent=5 // pred_fallthru
        _
    $region6: #{tpu_custom_call.1} parent=1 // loop_footer
      %s17 = sadd.s32 1, %s13
    $region7: #{tpu_custom_call.1} parent=1 // loop_footer_branch
      %12 = sbr.rel target = $region3
    $region8: #{tpu_custom_call.1} parent=1 // loop_exit
      _
    %8586 = vsyncpa [#allocation3], 1
    %s8587 = scalar_lea.sflag [#allocation3], 1
    %8588 = vsyncpa %s8587, 1

</llo_original>
